<compile_context>
chip_gen: v7x
topology: tpu7x:2x2x1
jax: 0.10.0
libtpu: 0.0.40
codegen_flags: <defaults>
</compile_context>

<pallas_src>
import functools
from math import sqrt

import jax
import jax.numpy as jnp
from jax.experimental import pallas as pl
from jax.experimental.pallas import tpu as pltpu


def _rnn_kernel(x_ref, noise_ref, wrecT_ref, wi_ref, wo_ref, h0_ref,
                out_ref, h_ref, r_ref, rhist_ref, drive_ref,
                *, noise_std, one_minus_alpha, vpu_input_proj):
    """One (batch_tile, time_chunk) step of the leaky noisy RNN recurrence.

    x_ref:     (BT, TT, I)   input chunk
    noise_ref: (BT, TT, H)   pre-sampled white-noise chunk
    wrecT_ref: (H, H)        alpha * w_rec^T
    wi_ref:    (I, H)        alpha * w_i * s_i[:, None]
    wo_ref:    (H, O)        w_o * s_o / H
    h0_ref:    (1, H)        initial hidden state
    out_ref:   (TT, BT, O)   output chunk (time-major)
    h_ref, r_ref:   (BT, H)  carried hidden state / rate
    rhist_ref:  (TT, BT, H)  time-major rate history (deferred output matmul)
    drive_ref:  (TT, BT, H)  time-major staged drive term
    """
    BT, TT, I = x_ref.shape
    H = h_ref.shape[-1]

    # ---- init carried state at the first time chunk of each batch tile --------
    @pl.when(pl.program_id(1) == 0)
    def _init():
        h0 = jnp.broadcast_to(h0_ref[...], (BT, H)).astype(jnp.float32)
        h_ref[...] = h0
        r_ref[...] = jnp.tanh(h0)

    # ---- hoisted drive term: noise_std * n_t + x_t @ (alpha * w_i * s_i) ------
    noise_term = noise_std * noise_ref[...].astype(jnp.float32)      # (BT, TT, H)
    if vpu_input_proj:
        # K=I matmul would leave the MXU ~idle; use I broadcast-FMAs on the VPU.
        x = x_ref[...].astype(jnp.float32)
        drive = noise_term
        for i in range(I):
            drive = drive + x[:, :, i:i + 1] * wi_ref[i:i + 1, :]
    else:
        inp = jnp.dot(x_ref[...].reshape(BT * TT, I).astype(jnp.float32),
                      wi_ref[...], preferred_element_type=jnp.float32)
        drive = noise_term + inp.reshape(BT, TT, H)

    # Stage the drive time-major in VMEM: bounded vreg pressure across the
    # fully-unrolled recurrence, dense (BT, H) loads per step.
    for t in range(TT):
        drive_ref[t] = drive[:, t, :]

    wrecT = wrecT_ref[...]            # alpha * w_rec^T

    h = h_ref[...]
    r = r_ref[...]
    # Short static chunk -> fully unrolled; only the (BT,H)@(H,H) matmul and one
    # tanh per step sit on the serial critical path.
    for t in range(TT):
        rec = jnp.dot(r, wrecT, preferred_element_type=jnp.float32)
        h = one_minus_alpha * h + drive_ref[t] + rec
        r = jnp.tanh(h)               # single tanh per step; r is carried
        rhist_ref[t] = r              # dense full-tile store (time-major)
    h_ref[...] = h
    r_ref[...] = r

    # ---- deferred output projection: one MXU matmul per chunk -----------------
    rates = rhist_ref[...].reshape(TT * BT, H)     # pure relabel (BT % 8 == 0)
    out = jnp.dot(rates, wo_ref[...], preferred_element_type=jnp.float32)
    out_ref[...] = out.reshape(TT, BT, -1).astype(out_ref.dtype)


def _round_up(x, m):
    return ((x + m - 1) // m) * m


def full_rank_leaky_noisy_rnn(inputs, noise, w_i, s_i, w_rec, w_o, s_o, h0,
                              noise_std, alpha, *, time_chunk=None,
                              batch_tile=None):
    """inputs: (B, T, I), noise: (B, T, H)  ->  output (B, T, O)."""
    B, T, I = inputs.shape
    H = w_rec.shape[0]
    O = w_o.shape[1]
    alpha = float(alpha)
    noise_std = float(noise_std)

    # Fold scale vectors, alpha and the 1/H normalization into the (tiny) weights
    # once, off the sequential path.
    wi_a = (alpha * w_i * s_i[:, None]).astype(jnp.float32)        # (I, H)
    wrecT_a = (alpha * jnp.transpose(w_rec)).astype(jnp.float32)   # (H, H)
    wo_n = (w_o * s_o[None, :] / H).astype(jnp.float32)            # (H, O)
    h0_2d = h0.reshape(1, H).astype(jnp.float32)

    # Pad hidden to a lane multiple (128) and batch to a sublane multiple (8).
    # Zero padding is exact: padded hidden units / batch rows stay identically 0.
    Hp = _round_up(H, 128)
    Bp = _round_up(B, 8)
    if Hp != H:
        wi_a = jnp.pad(wi_a, ((0, 0), (0, Hp - H)))
        wrecT_a = jnp.pad(wrecT_a, ((0, Hp - H), (0, Hp - H)))
        wo_n = jnp.pad(wo_n, ((0, Hp - H), (0, 0)))
        h0_2d = jnp.pad(h0_2d, ((0, 0), (0, Hp - H)))

    if batch_tile is None:
        batch_tile = Bp     # v7x: pass Bp // 2 to shard the batch over the 2 TCs
    BT = int(batch_tile)
    assert BT % 8 == 0 and Bp % BT == 0, \
        "batch_tile must divide the padded batch and be a multiple of 8"
    num_b = Bp // BT

    # Time chunking: target ~2 MiB of streamed noise per grid step (amortizes the
    # ~0.35us/step grid overhead, keeps double-buffered chunks inside v7x VMEM).
    if time_chunk is None:
        steps = max(8, (2 << 20) // max(BT * Hp * 4, 1))
        steps = (steps // 8) * 8
        time_chunk = T if steps >= T else steps
    TT = int(time_chunk)
    num_t = -(-T // TT)
    T_pad = num_t * TT
    if num_t > 1:
        assert TT % 8 == 0, "time_chunk must be a multiple of 8 when T is chunked"

    x_p = jnp.pad(inputs.astype(jnp.float32),
                  ((0, Bp - B), (0, T_pad - T), (0, 0)))
    n_p = jnp.pad(noise.astype(jnp.float32),
                  ((0, Bp - B), (0, T_pad - T), (0, Hp - H)))

    # VMEM budget: double-buffered x/noise/out streams + weights + scratch, with
    # headroom, clamped to <= 64 MiB (v7x physical per-TC VMEM).
    est = 4 * (2 * (BT * TT * (I + Hp) + TT * BT * O)
               + 2 * (Hp * Hp + I * Hp + Hp * O + Hp)
               + (2 * BT * Hp + 2 * TT * BT * Hp))
    vmem_limit = int(min(max(2 * est, 32 << 20), 64 << 20))

    def build(single_buffer_weights, vpu_input_proj):
        wmode = pl.Buffered(buffer_count=1) if single_buffer_weights else None

        def wspec(shape):
            idx = lambda b, t, _n=len(shape): (0,) * _n
            if wmode is None:
                return pl.BlockSpec(shape, idx)
            return pl.BlockSpec(shape, idx, pipeline_mode=wmode)

        kernel = functools.partial(
            _rnn_kernel, noise_std=noise_std, one_minus_alpha=1.0 - alpha,
            vpu_input_proj=bool(vpu_input_proj) and I <= 8)

        return pl.pallas_call(
            kernel,
            out_shape=jax.ShapeDtypeStruct((T_pad, Bp, O), jnp.float32),
            grid_spec=pltpu.PrefetchScalarGridSpec(
                num_scalar_prefetch=0,
                grid=(num_b, num_t),
                in_specs=[
                    pl.BlockSpec((BT, TT, I), lambda b, t: (b, t, 0)),    # x
                    pl.BlockSpec((BT, TT, Hp), lambda b, t: (b, t, 0)),   # noise
                    wspec((Hp, Hp)),     # alpha * w_rec^T
                    wspec((I, Hp)),      # alpha * w_i * s_i
                    wspec((Hp, O)),      # w_o * s_o / H
                    wspec((1, Hp)),      # h0
                ],
                out_specs=pl.BlockSpec((TT, BT, O), lambda b, t: (t, b, 0)),
                scratch_shapes=[
                    pltpu.VMEM((BT, Hp), jnp.float32),       # h  (carried)
                    pltpu.VMEM((BT, Hp), jnp.float32),       # r  (carried)
                    pltpu.VMEM((TT, BT, Hp), jnp.float32),   # rate history
                    pltpu.VMEM((TT, BT, Hp), jnp.float32),   # staged drive
                ],
            ),
            compiler_params=pltpu.CompilerParams(
                dimension_semantics=("parallel", "arbitrary"),
                vmem_limit_bytes=vmem_limit,
            ),
        )

    # Preferred config first; progressively drop optional lowering features
    # (single-buffered weights, VPU input projection) if the installed jax/Mosaic
    # rejects them, so the kernel always runs.
    configs = [(True, True), (False, True), (True, False), (False, False)]
    out_tm = None
    last_err = None
    for cfg in configs:
        try:
            out_tm = build(*cfg)(x_p, n_p, wrecT_a, wi_a, wo_n, h0_2d)
            break
        except Exception as e:  # noqa: BLE001 - capability fallback
            last_err = e
    if out_tm is None:
        raise last_err

    # (T_pad, Bp, O) time-major -> (B, T, O)
    return jnp.transpose(out_tm, (1, 0, 2))[:B, :T, :]


def _reference(inputs, noise, w_i, s_i, w_rec, w_o, s_o, h0, noise_std, alpha):
    """Pure-JAX reference mirroring the PyTorch forward (for validation)."""
    B, T, _ = inputs.shape
    H = w_rec.shape[0]
    w_i_mat = (w_i.T * s_i).T
    w_o_mat = w_o * s_o
    h = jnp.broadcast_to(h0, (B, H))
    r = jnp.tanh(h)
    outs = []
    for i in range(T):
        h = h + noise_std * noise[:, i, :] + alpha * (
            -h + r @ w_rec.T + inputs[:, i, :] @ w_i_mat)
        r = jnp.tanh(h)
        outs.append(r @ w_o_mat / H)
    return jnp.stack(outs, axis=1)


if __name__ == "__main__":
    # Model hyperparameters (small, consistent with the module's forward).
    input_size, hidden_size, output_size = 4, 32, 8
    batch_size, seq_len = 2, 8
    noise_std, alpha, rho = 0.1, 0.2, 1.0

    key = jax.random.PRNGKey(0)
    k_wi, k_wrec, k_wo, k_x, k_noise = jax.random.split(key, 5)

    # Deterministic parameter init (mirrors the PyTorch __init__ defaults).
    w_i = jax.random.normal(k_wi, (input_size, hidden_size), jnp.float32)
    s_i = jnp.ones((input_size,), jnp.float32)
    w_rec = jax.random.normal(k_wrec, (hidden_size, hidden_size),
                              jnp.float32) * (rho / sqrt(hidden_size))
    w_o = jax.random.normal(k_wo, (hidden_size, output_size), jnp.float32)
    s_o = jnp.ones((output_size,), jnp.float32)
    h0 = jnp.zeros((hidden_size,), jnp.float32)

    # Inputs and pre-sampled recurrent noise (torch.randn inside forward is
    # replaced by an explicit noise input so the kernel is deterministic).
    x = jax.random.normal(k_x, (batch_size, seq_len, input_size), jnp.float32)
    noise = jax.random.normal(k_noise, (batch_size, seq_len, hidden_size),
                              jnp.float32)

    out = full_rank_leaky_noisy_rnn(x, noise, w_i, s_i, w_rec, w_o, s_o, h0,
                                    noise_std, alpha)
    out = jax.block_until_ready(out)

    ref = _reference(x, noise, w_i, s_i, w_rec, w_o, s_o, h0, noise_std, alpha)
    assert out.shape == (batch_size, seq_len, output_size)
    assert jnp.allclose(out, ref, atol=3e-5, rtol=3e-5), \
        float(jnp.max(jnp.abs(out - ref)))

    print("KERNEL_OK")
</pallas_src>

<mosaic_0001>
module attributes {stable_mosaic.version = 11 : i64} {
  func.func @_rnn_kernel(%arg0: i32, %arg1: i32, %arg2: memref<8x8x4xf32, #tpu.memory_space<vmem>>, %arg3: memref<8x8x128xf32, #tpu.memory_space<vmem>>, %arg4: memref<128x128xf32, #tpu.memory_space<vmem>>, %arg5: memref<4x128xf32, #tpu.memory_space<vmem>>, %arg6: memref<128x8xf32, #tpu.memory_space<vmem>>, %arg7: memref<1x128xf32, #tpu.memory_space<vmem>>, %arg8: memref<8x8x8xf32, #tpu.memory_space<vmem>>, %arg9: memref<8x128xf32, #tpu.memory_space<vmem>>, %arg10: memref<8x128xf32, #tpu.memory_space<vmem>>, %arg11: memref<8x8x128xf32, #tpu.memory_space<vmem>>, %arg12: memref<8x8x128xf32, #tpu.memory_space<vmem>>) attributes {dimension_semantics = [#tpu.dimension_semantics<parallel>, #tpu.dimension_semantics<arbitrary>], iteration_bounds = array<i64: 1, 1>, scalar_prefetch = 0 : i64, scratch_operands = 4 : i64, tpu.core_type = #tpu.core_type<tc>, window_params = [{transform_indices = @transform_0, window_bounds = array<i64: 8, 8, 4>}, {transform_indices = @transform_1, window_bounds = array<i64: 8, 8, 128>}, {pipeline_mode = #tpu.pipeline_mode<synchronous>, transform_indices = @transform_2, window_bounds = array<i64: 128, 128>}, {pipeline_mode = #tpu.pipeline_mode<synchronous>, transform_indices = @transform_3, window_bounds = array<i64: 4, 128>}, {pipeline_mode = #tpu.pipeline_mode<synchronous>, transform_indices = @transform_4, window_bounds = array<i64: 128, 8>}, {pipeline_mode = #tpu.pipeline_mode<synchronous>, transform_indices = @transform_5, window_bounds = array<i64: 1, 128>}, {transform_indices = @transform_6, window_bounds = array<i64: 8, 8, 8>}]} {
    %c0_i32 = arith.constant 0 : i32
    %0 = arith.cmpi eq, %arg1, %c0_i32 : i32
    %1 = arith.extui %0 : i1 to i32
    %c0_i32_0 = arith.constant 0 : i32
    %2 = arith.cmpi ne, %1, %c0_i32_0 : i32
    scf.if %2 {
      %c0_114 = arith.constant 0 : index
      %c0_115 = arith.constant 0 : index
      %174 = vector.load %arg7[%c0_114, %c0_115] : memref<1x128xf32, #tpu.memory_space<vmem>>, vector<1x128xf32>
      %175 = vector.shape_cast %174 : vector<1x128xf32> to vector<1x128xf32>
      %176 = vector.broadcast %175 : vector<1x128xf32> to vector<8x128xf32>
      %c0_116 = arith.constant 0 : index
      %c0_117 = arith.constant 0 : index
      %177 = vector.load %arg9[%c0_116, %c0_117] : memref<8x128xf32, #tpu.memory_space<vmem>>, vector<8x128xf32>
      tpu.vector_store %arg9[%c0_116, %c0_117], %176 {strides = array<i32>} : memref<8x128xf32, #tpu.memory_space<vmem>>, vector<8x128xf32>,
      %178 = math.tanh %176 : vector<8x128xf32>
      %c0_118 = arith.constant 0 : index
      %c0_119 = arith.constant 0 : index
      %179 = vector.load %arg10[%c0_118, %c0_119] : memref<8x128xf32, #tpu.memory_space<vmem>>, vector<8x128xf32>
      tpu.vector_store %arg10[%c0_118, %c0_119], %178 {strides = array<i32>} : memref<8x128xf32, #tpu.memory_space<vmem>>, vector<8x128xf32>,
    } else {
    }
    %c0 = arith.constant 0 : index
    %c0_1 = arith.constant 0 : index
    %c0_2 = arith.constant 0 : index
    %3 = vector.load %arg3[%c0, %c0_1, %c0_2] : memref<8x8x128xf32, #tpu.memory_space<vmem>>, vector<8x8x128xf32>
    %cst = arith.constant 1.000000e-01 : f32
    %4 = vector.broadcast %cst : f32 to vector<8x8x128xf32>
    %5 = arith.mulf %4, %3 : vector<8x8x128xf32>
    %c0_3 = arith.constant 0 : index
    %c0_4 = arith.constant 0 : index
    %c0_5 = arith.constant 0 : index
    %6 = vector.load %arg2[%c0_3, %c0_4, %c0_5] : memref<8x8x4xf32, #tpu.memory_space<vmem>>, vector<8x8x4xf32>
    %7 = vector.extract_strided_slice %6 {offsets = [0, 0, 0], sizes = [8, 8, 1], strides = [1, 1, 1]} : vector<8x8x4xf32> to vector<8x8x1xf32>
    %c0_6 = arith.constant 0 : index
    %c0_7 = arith.constant 0 : index
    %8 = vector.load %arg5[%c0_6, %c0_7] : memref<4x128xf32, #tpu.memory_space<vmem>>, vector<1x128xf32>
    %9 = vector.shape_cast %8 : vector<1x128xf32> to vector<1x1x128xf32>
    %10 = vector.broadcast %7 : vector<8x8x1xf32> to vector<8x8x128xf32>
    %11 = vector.broadcast %9 : vector<1x1x128xf32> to vector<8x8x128xf32>
    %12 = arith.mulf %10, %11 : vector<8x8x128xf32>
    %13 = arith.addf %5, %12 : vector<8x8x128xf32>
    %14 = vector.extract_strided_slice %6 {offsets = [0, 0, 1], sizes = [8, 8, 1], strides = [1, 1, 1]} : vector<8x8x4xf32> to vector<8x8x1xf32>
    %c1 = arith.constant 1 : index
    %c0_8 = arith.constant 0 : index
    %15 = vector.load %arg5[%c1, %c0_8] : memref<4x128xf32, #tpu.memory_space<vmem>>, vector<1x128xf32>
    %16 = vector.shape_cast %15 : vector<1x128xf32> to vector<1x1x128xf32>
    %17 = vector.broadcast %14 : vector<8x8x1xf32> to vector<8x8x128xf32>
    %18 = vector.broadcast %16 : vector<1x1x128xf32> to vector<8x8x128xf32>
    %19 = arith.mulf %17, %18 : vector<8x8x128xf32>
    %20 = arith.addf %13, %19 : vector<8x8x128xf32>
    %21 = vector.extract_strided_slice %6 {offsets = [0, 0, 2], sizes = [8, 8, 1], strides = [1, 1, 1]} : vector<8x8x4xf32> to vector<8x8x1xf32>
    %c2 = arith.constant 2 : index
    %c0_9 = arith.constant 0 : index
    %22 = vector.load %arg5[%c2, %c0_9] : memref<4x128xf32, #tpu.memory_space<vmem>>, vector<1x128xf32>
    %23 = vector.shape_cast %22 : vector<1x128xf32> to vector<1x1x128xf32>
    %24 = vector.broadcast %21 : vector<8x8x1xf32> to vector<8x8x128xf32>
    %25 = vector.broadcast %23 : vector<1x1x128xf32> to vector<8x8x128xf32>
    %26 = arith.mulf %24, %25 : vector<8x8x128xf32>
    %27 = arith.addf %20, %26 : vector<8x8x128xf32>
    %28 = vector.extract_strided_slice %6 {offsets = [0, 0, 3], sizes = [8, 8, 1], strides = [1, 1, 1]} : vector<8x8x4xf32> to vector<8x8x1xf32>
    %c3 = arith.constant 3 : index
    %c0_10 = arith.constant 0 : index
    %29 = vector.load %arg5[%c3, %c0_10] : memref<4x128xf32, #tpu.memory_space<vmem>>, vector<1x128xf32>
    %30 = vector.shape_cast %29 : vector<1x128xf32> to vector<1x1x128xf32>
    %31 = vector.broadcast %28 : vector<8x8x1xf32> to vector<8x8x128xf32>
    %32 = vector.broadcast %30 : vector<1x1x128xf32> to vector<8x8x128xf32>
    %33 = arith.mulf %31, %32 : vector<8x8x128xf32>
    %34 = arith.addf %27, %33 : vector<8x8x128xf32>
    %35 = vector.extract_strided_slice %34 {offsets = [0, 0, 0], sizes = [8, 1, 128], strides = [1, 1, 1]} : vector<8x8x128xf32> to vector<8x1x128xf32>
    %36 = vector.shape_cast %35 : vector<8x1x128xf32> to vector<8x128xf32>
    %c0_11 = arith.constant 0 : index
    %c0_12 = arith.constant 0 : index
    %c0_13 = arith.constant 0 : index
    %37 = vector.load %arg12[%c0_11, %c0_12, %c0_13] : memref<8x8x128xf32, #tpu.memory_space<vmem>>, vector<1x8x128xf32>
    %38 = vector.shape_cast %37 : vector<1x8x128xf32> to vector<8x128xf32>
    %39 = vector.shape_cast %36 : vector<8x128xf32> to vector<1x8x128xf32>
    tpu.vector_store %arg12[%c0_11, %c0_12, %c0_13], %39 {strides = array<i32>} : memref<8x8x128xf32, #tpu.memory_space<vmem>>, vector<1x8x128xf32>,
    %40 = vector.extract_strided_slice %34 {offsets = [0, 1, 0], sizes = [8, 1, 128], strides = [1, 1, 1]} : vector<8x8x128xf32> to vector<8x1x128xf32>
    %41 = vector.shape_cast %40 : vector<8x1x128xf32> to vector<8x128xf32>
    %c1_14 = arith.constant 1 : index
    %c0_15 = arith.constant 0 : index
    %c0_16 = arith.constant 0 : index
    %42 = vector.load %arg12[%c1_14, %c0_15, %c0_16] : memref<8x8x128xf32, #tpu.memory_space<vmem>>, vector<1x8x128xf32>
    %43 = vector.shape_cast %42 : vector<1x8x128xf32> to vector<8x128xf32>
    %44 = vector.shape_cast %41 : vector<8x128xf32> to vector<1x8x128xf32>
    tpu.vector_store %arg12[%c1_14, %c0_15, %c0_16], %44 {strides = array<i32>} : memref<8x8x128xf32, #tpu.memory_space<vmem>>, vector<1x8x128xf32>,
    %45 = vector.extract_strided_slice %34 {offsets = [0, 2, 0], sizes = [8, 1, 128], strides = [1, 1, 1]} : vector<8x8x128xf32> to vector<8x1x128xf32>
    %46 = vector.shape_cast %45 : vector<8x1x128xf32> to vector<8x128xf32>
    %c2_17 = arith.constant 2 : index
    %c0_18 = arith.constant 0 : index
    %c0_19 = arith.constant 0 : index
    %47 = vector.load %arg12[%c2_17, %c0_18, %c0_19] : memref<8x8x128xf32, #tpu.memory_space<vmem>>, vector<1x8x128xf32>
    %48 = vector.shape_cast %47 : vector<1x8x128xf32> to vector<8x128xf32>
    %49 = vector.shape_cast %46 : vector<8x128xf32> to vector<1x8x128xf32>
    tpu.vector_store %arg12[%c2_17, %c0_18, %c0_19], %49 {strides = array<i32>} : memref<8x8x128xf32, #tpu.memory_space<vmem>>, vector<1x8x128xf32>,
    %50 = vector.extract_strided_slice %34 {offsets = [0, 3, 0], sizes = [8, 1, 128], strides = [1, 1, 1]} : vector<8x8x128xf32> to vector<8x1x128xf32>
    %51 = vector.shape_cast %50 : vector<8x1x128xf32> to vector<8x128xf32>
    %c3_20 = arith.constant 3 : index
    %c0_21 = arith.constant 0 : index
    %c0_22 = arith.constant 0 : index
    %52 = vector.load %arg12[%c3_20, %c0_21, %c0_22] : memref<8x8x128xf32, #tpu.memory_space<vmem>>, vector<1x8x128xf32>
    %53 = vector.shape_cast %52 : vector<1x8x128xf32> to vector<8x128xf32>
    %54 = vector.shape_cast %51 : vector<8x128xf32> to vector<1x8x128xf32>
    tpu.vector_store %arg12[%c3_20, %c0_21, %c0_22], %54 {strides = array<i32>} : memref<8x8x128xf32, #tpu.memory_space<vmem>>, vector<1x8x128xf32>,
    %55 = vector.extract_strided_slice %34 {offsets = [0, 4, 0], sizes = [8, 1, 128], strides = [1, 1, 1]} : vector<8x8x128xf32> to vector<8x1x128xf32>
    %56 = vector.shape_cast %55 : vector<8x1x128xf32> to vector<8x128xf32>
    %c4 = arith.constant 4 : index
    %c0_23 = arith.constant 0 : index
    %c0_24 = arith.constant 0 : index
    %57 = vector.load %arg12[%c4, %c0_23, %c0_24] : memref<8x8x128xf32, #tpu.memory_space<vmem>>, vector<1x8x128xf32>
    %58 = vector.shape_cast %57 : vector<1x8x128xf32> to vector<8x128xf32>
    %59 = vector.shape_cast %56 : vector<8x128xf32> to vector<1x8x128xf32>
    tpu.vector_store %arg12[%c4, %c0_23, %c0_24], %59 {strides = array<i32>} : memref<8x8x128xf32, #tpu.memory_space<vmem>>, vector<1x8x128xf32>,
    %60 = vector.extract_strided_slice %34 {offsets = [0, 5, 0], sizes = [8, 1, 128], strides = [1, 1, 1]} : vector<8x8x128xf32> to vector<8x1x128xf32>
    %61 = vector.shape_cast %60 : vector<8x1x128xf32> to vector<8x128xf32>
    %c5 = arith.constant 5 : index
    %c0_25 = arith.constant 0 : index
    %c0_26 = arith.constant 0 : index
    %62 = vector.load %arg12[%c5, %c0_25, %c0_26] : memref<8x8x128xf32, #tpu.memory_space<vmem>>, vector<1x8x128xf32>
    %63 = vector.shape_cast %62 : vector<1x8x128xf32> to vector<8x128xf32>
    %64 = vector.shape_cast %61 : vector<8x128xf32> to vector<1x8x128xf32>
    tpu.vector_store %arg12[%c5, %c0_25, %c0_26], %64 {strides = array<i32>} : memref<8x8x128xf32, #tpu.memory_space<vmem>>, vector<1x8x128xf32>,
    %65 = vector.extract_strided_slice %34 {offsets = [0, 6, 0], sizes = [8, 1, 128], strides = [1, 1, 1]} : vector<8x8x128xf32> to vector<8x1x128xf32>
    %66 = vector.shape_cast %65 : vector<8x1x128xf32> to vector<8x128xf32>
    %c6 = arith.constant 6 : index
    %c0_27 = arith.constant 0 : index
    %c0_28 = arith.constant 0 : index
    %67 = vector.load %arg12[%c6, %c0_27, %c0_28] : memref<8x8x128xf32, #tpu.memory_space<vmem>>, vector<1x8x128xf32>
    %68 = vector.shape_cast %67 : vector<1x8x128xf32> to vector<8x128xf32>
    %69 = vector.shape_cast %66 : vector<8x128xf32> to vector<1x8x128xf32>
    tpu.vector_store %arg12[%c6, %c0_27, %c0_28], %69 {strides = array<i32>} : memref<8x8x128xf32, #tpu.memory_space<vmem>>, vector<1x8x128xf32>,
    %70 = vector.extract_strided_slice %34 {offsets = [0, 7, 0], sizes = [8, 1, 128], strides = [1, 1, 1]} : vector<8x8x128xf32> to vector<8x1x128xf32>
    %71 = vector.shape_cast %70 : vector<8x1x128xf32> to vector<8x128xf32>
    %c7 = arith.constant 7 : index
    %c0_29 = arith.constant 0 : index
    %c0_30 = arith.constant 0 : index
    %72 = vector.load %arg12[%c7, %c0_29, %c0_30] : memref<8x8x128xf32, #tpu.memory_space<vmem>>, vector<1x8x128xf32>
    %73 = vector.shape_cast %72 : vector<1x8x128xf32> to vector<8x128xf32>
    %74 = vector.shape_cast %71 : vector<8x128xf32> to vector<1x8x128xf32>
    tpu.vector_store %arg12[%c7, %c0_29, %c0_30], %74 {strides = array<i32>} : memref<8x8x128xf32, #tpu.memory_space<vmem>>, vector<1x8x128xf32>,
    %c0_31 = arith.constant 0 : index
    %c0_32 = arith.constant 0 : index
    %75 = vector.load %arg4[%c0_31, %c0_32] : memref<128x128xf32, #tpu.memory_space<vmem>>, vector<128x128xf32>
    %c0_33 = arith.constant 0 : index
    %c0_34 = arith.constant 0 : index
    %76 = vector.load %arg9[%c0_33, %c0_34] : memref<8x128xf32, #tpu.memory_space<vmem>>, vector<8x128xf32>
    %c0_35 = arith.constant 0 : index
    %c0_36 = arith.constant 0 : index
    %77 = vector.load %arg10[%c0_35, %c0_36] : memref<8x128xf32, #tpu.memory_space<vmem>>, vector<8x128xf32>
    %cst_37 = arith.constant dense<0.000000e+00> : vector<8x128xf32>
    %78 = tpu.matmul %77, %75, %cst_37 {dimension_numbers = #tpu.dot_dimension_numbers<[1], [0], [0], [1], [0, 0, 1, 1], [], []>} : vector<8x128xf32>, vector<128x128xf32>, vector<8x128xf32> -> vector<8x128xf32>
    %cst_38 = arith.constant 8.000000e-01 : f32
    %79 = vector.broadcast %cst_38 : f32 to vector<8x128xf32>
    %80 = arith.mulf %79, %76 : vector<8x128xf32>
    %c0_39 = arith.constant 0 : index
    %c0_40 = arith.constant 0 : index
    %c0_41 = arith.constant 0 : index
    %81 = vector.load %arg12[%c0_39, %c0_40, %c0_41] : memref<8x8x128xf32, #tpu.memory_space<vmem>>, vector<1x8x128xf32>
    %82 = vector.shape_cast %81 : vector<1x8x128xf32> to vector<8x128xf32>
    %83 = arith.addf %80, %82 : vector<8x128xf32>
    %84 = arith.addf %83, %78 : vector<8x128xf32>
    %85 = math.tanh %84 : vector<8x128xf32>
    %c0_42 = arith.constant 0 : index
    %c0_43 = arith.constant 0 : index
    %c0_44 = arith.constant 0 : index
    %86 = vector.load %arg11[%c0_42, %c0_43, %c0_44] : memref<8x8x128xf32, #tpu.memory_space<vmem>>, vector<1x8x128xf32>
    %87 = vector.shape_cast %86 : vector<1x8x128xf32> to vector<8x128xf32>
    %88 = vector.shape_cast %85 : vector<8x128xf32> to vector<1x8x128xf32>
    tpu.vector_store %arg11[%c0_42, %c0_43, %c0_44], %88 {strides = array<i32>} : memref<8x8x128xf32, #tpu.memory_space<vmem>>, vector<1x8x128xf32>,
    %cst_45 = arith.constant dense<0.000000e+00> : vector<8x128xf32>
    %89 = tpu.matmul %85, %75, %cst_45 {dimension_numbers = #tpu.dot_dimension_numbers<[1], [0], [0], [1], [0, 0, 1, 1], [], []>} : vector<8x128xf32>, vector<128x128xf32>, vector<8x128xf32> -> vector<8x128xf32>
    %cst_46 = arith.constant 8.000000e-01 : f32
    %90 = vector.broadcast %cst_46 : f32 to vector<8x128xf32>
    %91 = arith.mulf %90, %84 : vector<8x128xf32>
    %c1_47 = arith.constant 1 : index
    %c0_48 = arith.constant 0 : index
    %c0_49 = arith.constant 0 : index
    %92 = vector.load %arg12[%c1_47, %c0_48, %c0_49] : memref<8x8x128xf32, #tpu.memory_space<vmem>>, vector<1x8x128xf32>
    %93 = vector.shape_cast %92 : vector<1x8x128xf32> to vector<8x128xf32>
    %94 = arith.addf %91, %93 : vector<8x128xf32>
    %95 = arith.addf %94, %89 : vector<8x128xf32>
    %96 = math.tanh %95 : vector<8x128xf32>
    %c1_50 = arith.constant 1 : index
    %c0_51 = arith.constant 0 : index
    %c0_52 = arith.constant 0 : index
    %97 = vector.load %arg11[%c1_50, %c0_51, %c0_52] : memref<8x8x128xf32, #tpu.memory_space<vmem>>, vector<1x8x128xf32>
    %98 = vector.shape_cast %97 : vector<1x8x128xf32> to vector<8x128xf32>
    %99 = vector.shape_cast %96 : vector<8x128xf32> to vector<1x8x128xf32>
    tpu.vector_store %arg11[%c1_50, %c0_51, %c0_52], %99 {strides = array<i32>} : memref<8x8x128xf32, #tpu.memory_space<vmem>>, vector<1x8x128xf32>,
    %cst_53 = arith.constant dense<0.000000e+00> : vector<8x128xf32>
    %100 = tpu.matmul %96, %75, %cst_53 {dimension_numbers = #tpu.dot_dimension_numbers<[1], [0], [0], [1], [0, 0, 1, 1], [], []>} : vector<8x128xf32>, vector<128x128xf32>, vector<8x128xf32> -> vector<8x128xf32>
    %cst_54 = arith.constant 8.000000e-01 : f32
    %101 = vector.broadcast %cst_54 : f32 to vector<8x128xf32>
    %102 = arith.mulf %101, %95 : vector<8x128xf32>
    %c2_55 = arith.constant 2 : index
    %c0_56 = arith.constant 0 : index
    %c0_57 = arith.constant 0 : index
    %103 = vector.load %arg12[%c2_55, %c0_56, %c0_57] : memref<8x8x128xf32, #tpu.memory_space<vmem>>, vector<1x8x128xf32>
    %104 = vector.shape_cast %103 : vector<1x8x128xf32> to vector<8x128xf32>
    %105 = arith.addf %102, %104 : vector<8x128xf32>
    %106 = arith.addf %105, %100 : vector<8x128xf32>
    %107 = math.tanh %106 : vector<8x128xf32>
    %c2_58 = arith.constant 2 : index
    %c0_59 = arith.constant 0 : index
    %c0_60 = arith.constant 0 : index
    %108 = vector.load %arg11[%c2_58, %c0_59, %c0_60] : memref<8x8x128xf32, #tpu.memory_space<vmem>>, vector<1x8x128xf32>
    %109 = vector.shape_cast %108 : vector<1x8x128xf32> to vector<8x128xf32>
    %110 = vector.shape_cast %107 : vector<8x128xf32> to vector<1x8x128xf32>
    tpu.vector_store %arg11[%c2_58, %c0_59, %c0_60], %110 {strides = array<i32>} : memref<8x8x128xf32, #tpu.memory_space<vmem>>, vector<1x8x128xf32>,
    %cst_61 = arith.constant dense<0.000000e+00> : vector<8x128xf32>
    %111 = tpu.matmul %107, %75, %cst_61 {dimension_numbers = #tpu.dot_dimension_numbers<[1], [0], [0], [1], [0, 0, 1, 1], [], []>} : vector<8x128xf32>, vector<128x128xf32>, vector<8x128xf32> -> vector<8x128xf32>
    %cst_62 = arith.constant 8.000000e-01 : f32
    %112 = vector.broadcast %cst_62 : f32 to vector<8x128xf32>
    %113 = arith.mulf %112, %106 : vector<8x128xf32>
    %c3_63 = arith.constant 3 : index
    %c0_64 = arith.constant 0 : index
    %c0_65 = arith.constant 0 : index
    %114 = vector.load %arg12[%c3_63, %c0_64, %c0_65] : memref<8x8x128xf32, #tpu.memory_space<vmem>>, vector<1x8x128xf32>
    %115 = vector.shape_cast %114 : vector<1x8x128xf32> to vector<8x128xf32>
    %116 = arith.addf %113, %115 : vector<8x128xf32>
    %117 = arith.addf %116, %111 : vector<8x128xf32>
    %118 = math.tanh %117 : vector<8x128xf32>
    %c3_66 = arith.constant 3 : index
    %c0_67 = arith.constant 0 : index
    %c0_68 = arith.constant 0 : index
    %119 = vector.load %arg11[%c3_66, %c0_67, %c0_68] : memref<8x8x128xf32, #tpu.memory_space<vmem>>, vector<1x8x128xf32>
    %120 = vector.shape_cast %119 : vector<1x8x128xf32> to vector<8x128xf32>
    %121 = vector.shape_cast %118 : vector<8x128xf32> to vector<1x8x128xf32>
    tpu.vector_store %arg11[%c3_66, %c0_67, %c0_68], %121 {strides = array<i32>} : memref<8x8x128xf32, #tpu.memory_space<vmem>>, vector<1x8x128xf32>,
    %cst_69 = arith.constant dense<0.000000e+00> : vector<8x128xf32>
    %122 = tpu.matmul %118, %75, %cst_69 {dimension_numbers = #tpu.dot_dimension_numbers<[1], [0], [0], [1], [0, 0, 1, 1], [], []>} : vector<8x128xf32>, vector<128x128xf32>, vector<8x128xf32> -> vector<8x128xf32>
    %cst_70 = arith.constant 8.000000e-01 : f32
    %123 = vector.broadcast %cst_70 : f32 to vector<8x128xf32>
    %124 = arith.mulf %123, %117 : vector<8x128xf32>
    %c4_71 = arith.constant 4 : index
    %c0_72 = arith.constant 0 : index
    %c0_73 = arith.constant 0 : index
    %125 = vector.load %arg12[%c4_71, %c0_72, %c0_73] : memref<8x8x128xf32, #tpu.memory_space<vmem>>, vector<1x8x128xf32>
    %126 = vector.shape_cast %125 : vector<1x8x128xf32> to vector<8x128xf32>
    %127 = arith.addf %124, %126 : vector<8x128xf32>
    %128 = arith.addf %127, %122 : vector<8x128xf32>
    %129 = math.tanh %128 : vector<8x128xf32>
    %c4_74 = arith.constant 4 : index
    %c0_75 = arith.constant 0 : index
    %c0_76 = arith.constant 0 : index
    %130 = vector.load %arg11[%c4_74, %c0_75, %c0_76] : memref<8x8x128xf32, #tpu.memory_space<vmem>>, vector<1x8x128xf32>
    %131 = vector.shape_cast %130 : vector<1x8x128xf32> to vector<8x128xf32>
    %132 = vector.shape_cast %129 : vector<8x128xf32> to vector<1x8x128xf32>
    tpu.vector_store %arg11[%c4_74, %c0_75, %c0_76], %132 {strides = array<i32>} : memref<8x8x128xf32, #tpu.memory_space<vmem>>, vector<1x8x128xf32>,
    %cst_77 = arith.constant dense<0.000000e+00> : vector<8x128xf32>
    %133 = tpu.matmul %129, %75, %cst_77 {dimension_numbers = #tpu.dot_dimension_numbers<[1], [0], [0], [1], [0, 0, 1, 1], [], []>} : vector<8x128xf32>, vector<128x128xf32>, vector<8x128xf32> -> vector<8x128xf32>
    %cst_78 = arith.constant 8.000000e-01 : f32
    %134 = vector.broadcast %cst_78 : f32 to vector<8x128xf32>
    %135 = arith.mulf %134, %128 : vector<8x128xf32>
    %c5_79 = arith.constant 5 : index
    %c0_80 = arith.constant 0 : index
    %c0_81 = arith.constant 0 : index
    %136 = vector.load %arg12[%c5_79, %c0_80, %c0_81] : memref<8x8x128xf32, #tpu.memory_space<vmem>>, vector<1x8x128xf32>
    %137 = vector.shape_cast %136 : vector<1x8x128xf32> to vector<8x128xf32>
    %138 = arith.addf %135, %137 : vector<8x128xf32>
    %139 = arith.addf %138, %133 : vector<8x128xf32>
    %140 = math.tanh %139 : vector<8x128xf32>
    %c5_82 = arith.constant 5 : index
    %c0_83 = arith.constant 0 : index
    %c0_84 = arith.constant 0 : index
    %141 = vector.load %arg11[%c5_82, %c0_83, %c0_84] : memref<8x8x128xf32, #tpu.memory_space<vmem>>, vector<1x8x128xf32>
    %142 = vector.shape_cast %141 : vector<1x8x128xf32> to vector<8x128xf32>
    %143 = vector.shape_cast %140 : vector<8x128xf32> to vector<1x8x128xf32>
    tpu.vector_store %arg11[%c5_82, %c0_83, %c0_84], %143 {strides = array<i32>} : memref<8x8x128xf32, #tpu.memory_space<vmem>>, vector<1x8x128xf32>,
    %cst_85 = arith.constant dense<0.000000e+00> : vector<8x128xf32>
    %144 = tpu.matmul %140, %75, %cst_85 {dimension_numbers = #tpu.dot_dimension_numbers<[1], [0], [0], [1], [0, 0, 1, 1], [], []>} : vector<8x128xf32>, vector<128x128xf32>, vector<8x128xf32> -> vector<8x128xf32>
    %cst_86 = arith.constant 8.000000e-01 : f32
    %145 = vector.broadcast %cst_86 : f32 to vector<8x128xf32>
    %146 = arith.mulf %145, %139 : vector<8x128xf32>
    %c6_87 = arith.constant 6 : index
    %c0_88 = arith.constant 0 : index
    %c0_89 = arith.constant 0 : index
    %147 = vector.load %arg12[%c6_87, %c0_88, %c0_89] : memref<8x8x128xf32, #tpu.memory_space<vmem>>, vector<1x8x128xf32>
    %148 = vector.shape_cast %147 : vector<1x8x128xf32> to vector<8x128xf32>
    %149 = arith.addf %146, %148 : vector<8x128xf32>
    %150 = arith.addf %149, %144 : vector<8x128xf32>
    %151 = math.tanh %150 : vector<8x128xf32>
    %c6_90 = arith.constant 6 : index
    %c0_91 = arith.constant 0 : index
    %c0_92 = arith.constant 0 : index
    %152 = vector.load %arg11[%c6_90, %c0_91, %c0_92] : memref<8x8x128xf32, #tpu.memory_space<vmem>>, vector<1x8x128xf32>
    %153 = vector.shape_cast %152 : vector<1x8x128xf32> to vector<8x128xf32>
    %154 = vector.shape_cast %151 : vector<8x128xf32> to vector<1x8x128xf32>
    tpu.vector_store %arg11[%c6_90, %c0_91, %c0_92], %154 {strides = array<i32>} : memref<8x8x128xf32, #tpu.memory_space<vmem>>, vector<1x8x128xf32>,
    %cst_93 = arith.constant dense<0.000000e+00> : vector<8x128xf32>
    %155 = tpu.matmul %151, %75, %cst_93 {dimension_numbers = #tpu.dot_dimension_numbers<[1], [0], [0], [1], [0, 0, 1, 1], [], []>} : vector<8x128xf32>, vector<128x128xf32>, vector<8x128xf32> -> vector<8x128xf32>
    %cst_94 = arith.constant 8.000000e-01 : f32
    %156 = vector.broadcast %cst_94 : f32 to vector<8x128xf32>
    %157 = arith.mulf %156, %150 : vector<8x128xf32>
    %c7_95 = arith.constant 7 : index
    %c0_96 = arith.constant 0 : index
    %c0_97 = arith.constant 0 : index
    %158 = vector.load %arg12[%c7_95, %c0_96, %c0_97] : memref<8x8x128xf32, #tpu.memory_space<vmem>>, vector<1x8x128xf32>
    %159 = vector.shape_cast %158 : vector<1x8x128xf32> to vector<8x128xf32>
    %160 = arith.addf %157, %159 : vector<8x128xf32>
    %161 = arith.addf %160, %155 : vector<8x128xf32>
    %162 = math.tanh %161 : vector<8x128xf32>
    %c7_98 = arith.constant 7 : index
    %c0_99 = arith.constant 0 : index
    %c0_100 = arith.constant 0 : index
    %163 = vector.load %arg11[%c7_98, %c0_99, %c0_100] : memref<8x8x128xf32, #tpu.memory_space<vmem>>, vector<1x8x128xf32>
    %164 = vector.shape_cast %163 : vector<1x8x128xf32> to vector<8x128xf32>
    %165 = vector.shape_cast %162 : vector<8x128xf32> to vector<1x8x128xf32>
    tpu.vector_store %arg11[%c7_98, %c0_99, %c0_100], %165 {strides = array<i32>} : memref<8x8x128xf32, #tpu.memory_space<vmem>>, vector<1x8x128xf32>,
    %c0_101 = arith.constant 0 : index
    %c0_102 = arith.constant 0 : index
    %166 = vector.load %arg9[%c0_101, %c0_102] : memref<8x128xf32, #tpu.memory_space<vmem>>, vector<8x128xf32>
    tpu.vector_store %arg9[%c0_101, %c0_102], %161 {strides = array<i32>} : memref<8x128xf32, #tpu.memory_space<vmem>>, vector<8x128xf32>,
    %c0_103 = arith.constant 0 : index
    %c0_104 = arith.constant 0 : index
    %167 = vector.load %arg10[%c0_103, %c0_104] : memref<8x128xf32, #tpu.memory_space<vmem>>, vector<8x128xf32>
    tpu.vector_store %arg10[%c0_103, %c0_104], %162 {strides = array<i32>} : memref<8x128xf32, #tpu.memory_space<vmem>>, vector<8x128xf32>,
    %c0_105 = arith.constant 0 : index
    %c0_106 = arith.constant 0 : index
    %c0_107 = arith.constant 0 : index
    %168 = vector.load %arg11[%c0_105, %c0_106, %c0_107] : memref<8x8x128xf32, #tpu.memory_space<vmem>>, vector<8x8x128xf32>
    %169 = vector.shape_cast %168 : vector<8x8x128xf32> to vector<64x128xf32>
    %c0_108 = arith.constant 0 : index
    %c0_109 = arith.constant 0 : index
    %170 = vector.load %arg6[%c0_108, %c0_109] : memref<128x8xf32, #tpu.memory_space<vmem>>, vector<128x8xf32>
    %cst_110 = arith.constant dense<0.000000e+00> : vector<64x8xf32>
    %171 = tpu.matmul %169, %170, %cst_110 {dimension_numbers = #tpu.dot_dimension_numbers<[1], [0], [0], [1], [0, 0, 1, 1], [], []>} : vector<64x128xf32>, vector<128x8xf32>, vector<64x8xf32> -> vector<64x8xf32>
    %172 = vector.shape_cast %171 : vector<64x8xf32> to vector<8x8x8xf32>
    %c0_111 = arith.constant 0 : index
    %c0_112 = arith.constant 0 : index
    %c0_113 = arith.constant 0 : index
    %173 = vector.load %arg8[%c0_111, %c0_112, %c0_113] : memref<8x8x8xf32, #tpu.memory_space<vmem>>, vector<8x8x8xf32>
    tpu.vector_store %arg8[%c0_111, %c0_112, %c0_113], %172 {strides = array<i32>} : memref<8x8x8xf32, #tpu.memory_space<vmem>>, vector<8x8x8xf32>,
    return
  }
  func.func @transform_0(%arg0: i32, %arg1: i32) -> (i32, i32, i32) {
    %c0_i32 = arith.constant 0 : i32
    %c0_i32_0 = arith.constant 0 : i32
    return %arg0, %arg1, %c0_i32 : i32, i32, i32
  }
  func.func @transform_1(%arg0: i32, %arg1: i32) -> (i32, i32, i32) {
    %c0_i32 = arith.constant 0 : i32
    %c0_i32_0 = arith.constant 0 : i32
    return %arg0, %arg1, %c0_i32 : i32, i32, i32
  }
  func.func @transform_2(%arg0: i32, %arg1: i32) -> (i32, i32) {
    %c0_i32 = arith.constant 0 : i32
    %c0_i32_0 = arith.constant 0 : i32
    %c0_i32_1 = arith.constant 0 : i32
    return %c0_i32, %c0_i32_0 : i32, i32
  }
  func.func @transform_3(%arg0: i32, %arg1: i32) -> (i32, i32) {
    %c0_i32 = arith.constant 0 : i32
    %c0_i32_0 = arith.constant 0 : i32
    %c0_i32_1 = arith.constant 0 : i32
    return %c0_i32, %c0_i32_0 : i32, i32
  }
  func.func @transform_4(%arg0: i32, %arg1: i32) -> (i32, i32) {
    %c0_i32 = arith.constant 0 : i32
    %c0_i32_0 = arith.constant 0 : i32
    %c0_i32_1 = arith.constant 0 : i32
    return %c0_i32, %c0_i32_0 : i32, i32
  }
  func.func @transform_5(%arg0: i32, %arg1: i32) -> (i32, i32) {
    %c0_i32 = arith.constant 0 : i32
    %c0_i32_0 = arith.constant 0 : i32
    %c0_i32_1 = arith.constant 0 : i32
    return %c0_i32, %c0_i32_0 : i32, i32
  }
  func.func @transform_6(%arg0: i32, %arg1: i32) -> (i32, i32, i32) {
    %c0_i32 = arith.constant 0 : i32
    %c0_i32_0 = arith.constant 0 : i32
    return %arg1, %arg0, %c0_i32 : i32, i32, i32
  }
}

module attributes {stable_mosaic.version = 11 : i64} {
  func.func @_rnn_kernel(%arg0: i32, %arg1: i32, %arg2: memref<8x8x4xf32, #tpu.memory_space<vmem>>, %arg3: memref<8x8x128xf32, #tpu.memory_space<vmem>>, %arg4: memref<128x128xf32, #tpu.memory_space<vmem>>, %arg5: memref<4x128xf32, #tpu.memory_space<vmem>>, %arg6: memref<128x8xf32, #tpu.memory_space<vmem>>, %arg7: memref<1x128xf32, #tpu.memory_space<vmem>>, %arg8: memref<8x8x8xf32, #tpu.memory_space<vmem>>, %arg9: memref<8x128xf32, #tpu.memory_space<vmem>>, %arg10: memref<8x128xf32, #tpu.memory_space<vmem>>, %arg11: memref<8x8x128xf32, #tpu.memory_space<vmem>>, %arg12: memref<8x8x128xf32, #tpu.memory_space<vmem>>) attributes {dimension_semantics = [#tpu.dimension_semantics<parallel>, #tpu.dimension_semantics<arbitrary>], iteration_bounds = array<i64: 1, 1>, scalar_prefetch = 0 : i64, scratch_operands = 4 : i64, tpu.core_type = #tpu.core_type<tc>, window_params = [{transform_indices = @transform_0, window_bounds = array<i64: 8, 8, 4>}, {transform_indices = @transform_1, window_bounds = array<i64: 8, 8, 128>}, {pipeline_mode = #tpu.pipeline_mode<synchronous>, transform_indices = @transform_2, window_bounds = array<i64: 128, 128>}, {pipeline_mode = #tpu.pipeline_mode<synchronous>, transform_indices = @transform_3, window_bounds = array<i64: 4, 128>}, {pipeline_mode = #tpu.pipeline_mode<synchronous>, transform_indices = @transform_4, window_bounds = array<i64: 128, 8>}, {pipeline_mode = #tpu.pipeline_mode<synchronous>, transform_indices = @transform_5, window_bounds = array<i64: 1, 128>}, {transform_indices = @transform_6, window_bounds = array<i64: 8, 8, 8>}]} {
    %c0_i32 = arith.constant 0 : i32
    %0 = arith.cmpi eq, %arg1, %c0_i32 : i32
    %1 = arith.extui %0 : i1 to i32
    %c0_i32_0 = arith.constant 0 : i32
    %2 = arith.cmpi ne, %1, %c0_i32_0 : i32
    scf.if %2 {
      %c0_114 = arith.constant 0 : index
      %c0_115 = arith.constant 0 : index
      %174 = vector.load %arg7[%c0_114, %c0_115] : memref<1x128xf32, #tpu.memory_space<vmem>>, vector<1x128xf32>
      %175 = vector.shape_cast %174 : vector<1x128xf32> to vector<1x128xf32>
      %176 = vector.broadcast %175 : vector<1x128xf32> to vector<8x128xf32>
      %c0_116 = arith.constant 0 : index
      %c0_117 = arith.constant 0 : index
      %177 = vector.load %arg9[%c0_116, %c0_117] : memref<8x128xf32, #tpu.memory_space<vmem>>, vector<8x128xf32>
      tpu.vector_store %arg9[%c0_116, %c0_117], %176 {strides = array<i32>} : memref<8x128xf32, #tpu.memory_space<vmem>>, vector<8x128xf32>,
      %178 = math.tanh %176 : vector<8x128xf32>
      %c0_118 = arith.constant 0 : index
      %c0_119 = arith.constant 0 : index
      %179 = vector.load %arg10[%c0_118, %c0_119] : memref<8x128xf32, #tpu.memory_space<vmem>>, vector<8x128xf32>
      tpu.vector_store %arg10[%c0_118, %c0_119], %178 {strides = array<i32>} : memref<8x128xf32, #tpu.memory_space<vmem>>, vector<8x128xf32>,
    } else {
    }
    %c0 = arith.constant 0 : index
    %c0_1 = arith.constant 0 : index
    %c0_2 = arith.constant 0 : index
    %3 = vector.load %arg3[%c0, %c0_1, %c0_2] : memref<8x8x128xf32, #tpu.memory_space<vmem>>, vector<8x8x128xf32>
    %cst = arith.constant 1.000000e-01 : f32
    %4 = vector.broadcast %cst : f32 to vector<8x8x128xf32>
    %5 = arith.mulf %4, %3 : vector<8x8x128xf32>
    %c0_3 = arith.constant 0 : index
    %c0_4 = arith.constant 0 : index
    %c0_5 = arith.constant 0 : index
    %6 = vector.load %arg2[%c0_3, %c0_4, %c0_5] : memref<8x8x4xf32, #tpu.memory_space<vmem>>, vector<8x8x4xf32>
    %7 = vector.extract_strided_slice %6 {offsets = [0, 0, 0], sizes = [8, 8, 1], strides = [1, 1, 1]} : vector<8x8x4xf32> to vector<8x8x1xf32>
    %c0_6 = arith.constant 0 : index
    %c0_7 = arith.constant 0 : index
    %8 = vector.load %arg5[%c0_6, %c0_7] : memref<4x128xf32, #tpu.memory_space<vmem>>, vector<1x128xf32>
    %9 = vector.shape_cast %8 : vector<1x128xf32> to vector<1x1x128xf32>
    %10 = vector.broadcast %7 : vector<8x8x1xf32> to vector<8x8x128xf32>
    %11 = vector.broadcast %9 : vector<1x1x128xf32> to vector<8x8x128xf32>
    %12 = arith.mulf %10, %11 : vector<8x8x128xf32>
    %13 = arith.addf %5, %12 : vector<8x8x128xf32>
    %14 = vector.extract_strided_slice %6 {offsets = [0, 0, 1], sizes = [8, 8, 1], strides = [1, 1, 1]} : vector<8x8x4xf32> to vector<8x8x1xf32>
    %c1 = arith.constant 1 : index
    %c0_8 = arith.constant 0 : index
    %15 = vector.load %arg5[%c1, %c0_8] : memref<4x128xf32, #tpu.memory_space<vmem>>, vector<1x128xf32>
    %16 = vector.shape_cast %15 : vector<1x128xf32> to vector<1x1x128xf32>
    %17 = vector.broadcast %14 : vector<8x8x1xf32> to vector<8x8x128xf32>
    %18 = vector.broadcast %16 : vector<1x1x128xf32> to vector<8x8x128xf32>
    %19 = arith.mulf %17, %18 : vector<8x8x128xf32>
    %20 = arith.addf %13, %19 : vector<8x8x128xf32>
    %21 = vector.extract_strided_slice %6 {offsets = [0, 0, 2], sizes = [8, 8, 1], strides = [1, 1, 1]} : vector<8x8x4xf32> to vector<8x8x1xf32>
    %c2 = arith.constant 2 : index
    %c0_9 = arith.constant 0 : index
    %22 = vector.load %arg5[%c2, %c0_9] : memref<4x128xf32, #tpu.memory_space<vmem>>, vector<1x128xf32>
    %23 = vector.shape_cast %22 : vector<1x128xf32> to vector<1x1x128xf32>
    %24 = vector.broadcast %21 : vector<8x8x1xf32> to vector<8x8x128xf32>
    %25 = vector.broadcast %23 : vector<1x1x128xf32> to vector<8x8x128xf32>
    %26 = arith.mulf %24, %25 : vector<8x8x128xf32>
    %27 = arith.addf %20, %26 : vector<8x8x128xf32>
    %28 = vector.extract_strided_slice %6 {offsets = [0, 0, 3], sizes = [8, 8, 1], strides = [1, 1, 1]} : vector<8x8x4xf32> to vector<8x8x1xf32>
    %c3 = arith.constant 3 : index
    %c0_10 = arith.constant 0 : index
    %29 = vector.load %arg5[%c3, %c0_10] : memref<4x128xf32, #tpu.memory_space<vmem>>, vector<1x128xf32>
    %30 = vector.shape_cast %29 : vector<1x128xf32> to vector<1x1x128xf32>
    %31 = vector.broadcast %28 : vector<8x8x1xf32> to vector<8x8x128xf32>
    %32 = vector.broadcast %30 : vector<1x1x128xf32> to vector<8x8x128xf32>
    %33 = arith.mulf %31, %32 : vector<8x8x128xf32>
    %34 = arith.addf %27, %33 : vector<8x8x128xf32>
    %35 = vector.extract_strided_slice %34 {offsets = [0, 0, 0], sizes = [8, 1, 128], strides = [1, 1, 1]} : vector<8x8x128xf32> to vector<8x1x128xf32>
    %36 = vector.shape_cast %35 : vector<8x1x128xf32> to vector<8x128xf32>
    %c0_11 = arith.constant 0 : index
    %c0_12 = arith.constant 0 : index
    %c0_13 = arith.constant 0 : index
    %37 = vector.load %arg12[%c0_11, %c0_12, %c0_13] : memref<8x8x128xf32, #tpu.memory_space<vmem>>, vector<1x8x128xf32>
    %38 = vector.shape_cast %37 : vector<1x8x128xf32> to vector<8x128xf32>
    %39 = vector.shape_cast %36 : vector<8x128xf32> to vector<1x8x128xf32>
    tpu.vector_store %arg12[%c0_11, %c0_12, %c0_13], %39 {strides = array<i32>} : memref<8x8x128xf32, #tpu.memory_space<vmem>>, vector<1x8x128xf32>,
    %40 = vector.extract_strided_slice %34 {offsets = [0, 1, 0], sizes = [8, 1, 128], strides = [1, 1, 1]} : vector<8x8x128xf32> to vector<8x1x128xf32>
    %41 = vector.shape_cast %40 : vector<8x1x128xf32> to vector<8x128xf32>
    %c1_14 = arith.constant 1 : index
    %c0_15 = arith.constant 0 : index
    %c0_16 = arith.constant 0 : index
    %42 = vector.load %arg12[%c1_14, %c0_15, %c0_16] : memref<8x8x128xf32, #tpu.memory_space<vmem>>, vector<1x8x128xf32>
    %43 = vector.shape_cast %42 : vector<1x8x128xf32> to vector<8x128xf32>
    %44 = vector.shape_cast %41 : vector<8x128xf32> to vector<1x8x128xf32>
    tpu.vector_store %arg12[%c1_14, %c0_15, %c0_16], %44 {strides = array<i32>} : memref<8x8x128xf32, #tpu.memory_space<vmem>>, vector<1x8x128xf32>,
    %45 = vector.extract_strided_slice %34 {offsets = [0, 2, 0], sizes = [8, 1, 128], strides = [1, 1, 1]} : vector<8x8x128xf32> to vector<8x1x128xf32>
    %46 = vector.shape_cast %45 : vector<8x1x128xf32> to vector<8x128xf32>
    %c2_17 = arith.constant 2 : index
    %c0_18 = arith.constant 0 : index
    %c0_19 = arith.constant 0 : index
    %47 = vector.load %arg12[%c2_17, %c0_18, %c0_19] : memref<8x8x128xf32, #tpu.memory_space<vmem>>, vector<1x8x128xf32>
    %48 = vector.shape_cast %47 : vector<1x8x128xf32> to vector<8x128xf32>
    %49 = vector.shape_cast %46 : vector<8x128xf32> to vector<1x8x128xf32>
    tpu.vector_store %arg12[%c2_17, %c0_18, %c0_19], %49 {strides = array<i32>} : memref<8x8x128xf32, #tpu.memory_space<vmem>>, vector<1x8x128xf32>,
    %50 = vector.extract_strided_slice %34 {offsets = [0, 3, 0], sizes = [8, 1, 128], strides = [1, 1, 1]} : vector<8x8x128xf32> to vector<8x1x128xf32>
    %51 = vector.shape_cast %50 : vector<8x1x128xf32> to vector<8x128xf32>
    %c3_20 = arith.constant 3 : index
    %c0_21 = arith.constant 0 : index
    %c0_22 = arith.constant 0 : index
    %52 = vector.load %arg12[%c3_20, %c0_21, %c0_22] : memref<8x8x128xf32, #tpu.memory_space<vmem>>, vector<1x8x128xf32>
    %53 = vector.shape_cast %52 : vector<1x8x128xf32> to vector<8x128xf32>
    %54 = vector.shape_cast %51 : vector<8x128xf32> to vector<1x8x128xf32>
    tpu.vector_store %arg12[%c3_20, %c0_21, %c0_22], %54 {strides = array<i32>} : memref<8x8x128xf32, #tpu.memory_space<vmem>>, vector<1x8x128xf32>,
    %55 = vector.extract_strided_slice %34 {offsets = [0, 4, 0], sizes = [8, 1, 128], strides = [1, 1, 1]} : vector<8x8x128xf32> to vector<8x1x128xf32>
    %56 = vector.shape_cast %55 : vector<8x1x128xf32> to vector<8x128xf32>
    %c4 = arith.constant 4 : index
    %c0_23 = arith.constant 0 : index
    %c0_24 = arith.constant 0 : index
    %57 = vector.load %arg12[%c4, %c0_23, %c0_24] : memref<8x8x128xf32, #tpu.memory_space<vmem>>, vector<1x8x128xf32>
    %58 = vector.shape_cast %57 : vector<1x8x128xf32> to vector<8x128xf32>
    %59 = vector.shape_cast %56 : vector<8x128xf32> to vector<1x8x128xf32>
    tpu.vector_store %arg12[%c4, %c0_23, %c0_24], %59 {strides = array<i32>} : memref<8x8x128xf32, #tpu.memory_space<vmem>>, vector<1x8x128xf32>,
    %60 = vector.extract_strided_slice %34 {offsets = [0, 5, 0], sizes = [8, 1, 128], strides = [1, 1, 1]} : vector<8x8x128xf32> to vector<8x1x128xf32>
    %61 = vector.shape_cast %60 : vector<8x1x128xf32> to vector<8x128xf32>
    %c5 = arith.constant 5 : index
    %c0_25 = arith.constant 0 : index
    %c0_26 = arith.constant 0 : index
    %62 = vector.load %arg12[%c5, %c0_25, %c0_26] : memref<8x8x128xf32, #tpu.memory_space<vmem>>, vector<1x8x128xf32>
    %63 = vector.shape_cast %62 : vector<1x8x128xf32> to vector<8x128xf32>
    %64 = vector.shape_cast %61 : vector<8x128xf32> to vector<1x8x128xf32>
    tpu.vector_store %arg12[%c5, %c0_25, %c0_26], %64 {strides = array<i32>} : memref<8x8x128xf32, #tpu.memory_space<vmem>>, vector<1x8x128xf32>,
    %65 = vector.extract_strided_slice %34 {offsets = [0, 6, 0], sizes = [8, 1, 128], strides = [1, 1, 1]} : vector<8x8x128xf32> to vector<8x1x128xf32>
    %66 = vector.shape_cast %65 : vector<8x1x128xf32> to vector<8x128xf32>
    %c6 = arith.constant 6 : index
    %c0_27 = arith.constant 0 : index
    %c0_28 = arith.constant 0 : index
    %67 = vector.load %arg12[%c6, %c0_27, %c0_28] : memref<8x8x128xf32, #tpu.memory_space<vmem>>, vector<1x8x128xf32>
    %68 = vector.shape_cast %67 : vector<1x8x128xf32> to vector<8x128xf32>
    %69 = vector.shape_cast %66 : vector<8x128xf32> to vector<1x8x128xf32>
    tpu.vector_store %arg12[%c6, %c0_27, %c0_28], %69 {strides = array<i32>} : memref<8x8x128xf32, #tpu.memory_space<vmem>>, vector<1x8x128xf32>,
    %70 = vector.extract_strided_slice %34 {offsets = [0, 7, 0], sizes = [8, 1, 128], strides = [1, 1, 1]} : vector<8x8x128xf32> to vector<8x1x128xf32>
    %71 = vector.shape_cast %70 : vector<8x1x128xf32> to vector<8x128xf32>
    %c7 = arith.constant 7 : index
    %c0_29 = arith.constant 0 : index
    %c0_30 = arith.constant 0 : index
    %72 = vector.load %arg12[%c7, %c0_29, %c0_30] : memref<8x8x128xf32, #tpu.memory_space<vmem>>, vector<1x8x128xf32>
    %73 = vector.shape_cast %72 : vector<1x8x128xf32> to vector<8x128xf32>
    %74 = vector.shape_cast %71 : vector<8x128xf32> to vector<1x8x128xf32>
    tpu.vector_store %arg12[%c7, %c0_29, %c0_30], %74 {strides = array<i32>} : memref<8x8x128xf32, #tpu.memory_space<vmem>>, vector<1x8x128xf32>,
    %c0_31 = arith.constant 0 : index
    %c0_32 = arith.constant 0 : index
    %75 = vector.load %arg4[%c0_31, %c0_32] : memref<128x128xf32, #tpu.memory_space<vmem>>, vector<128x128xf32>
    %c0_33 = arith.constant 0 : index
    %c0_34 = arith.constant 0 : index
    %76 = vector.load %arg9[%c0_33, %c0_34] : memref<8x128xf32, #tpu.memory_space<vmem>>, vector<8x128xf32>
    %c0_35 = arith.constant 0 : index
    %c0_36 = arith.constant 0 : index
    %77 = vector.load %arg10[%c0_35, %c0_36] : memref<8x128xf32, #tpu.memory_space<vmem>>, vector<8x128xf32>
    %cst_37 = arith.constant dense<0.000000e+00> : vector<8x128xf32>
    %78 = tpu.matmul %77, %75, %cst_37 {dimension_numbers = #tpu.dot_dimension_numbers<[1], [0], [0], [1], [0, 0, 1, 1], [], []>} : vector<8x128xf32>, vector<128x128xf32>, vector<8x128xf32> -> vector<8x128xf32>
    %cst_38 = arith.constant 8.000000e-01 : f32
    %79 = vector.broadcast %cst_38 : f32 to vector<8x128xf32>
    %80 = arith.mulf %79, %76 : vector<8x128xf32>
    %c0_39 = arith.constant 0 : index
    %c0_40 = arith.constant 0 : index
    %c0_41 = arith.constant 0 : index
    %81 = vector.load %arg12[%c0_39, %c0_40, %c0_41] : memref<8x8x128xf32, #tpu.memory_space<vmem>>, vector<1x8x128xf32>
    %82 = vector.shape_cast %81 : vector<1x8x128xf32> to vector<8x128xf32>
    %83 = arith.addf %80, %82 : vector<8x128xf32>
    %84 = arith.addf %83, %78 : vector<8x128xf32>
    %85 = math.tanh %84 : vector<8x128xf32>
    %c0_42 = arith.constant 0 : index
    %c0_43 = arith.constant 0 : index
    %c0_44 = arith.constant 0 : index
    %86 = vector.load %arg11[%c0_42, %c0_43, %c0_44] : memref<8x8x128xf32, #tpu.memory_space<vmem>>, vector<1x8x128xf32>
    %87 = vector.shape_cast %86 : vector<1x8x128xf32> to vector<8x128xf32>
    %88 = vector.shape_cast %85 : vector<8x128xf32> to vector<1x8x128xf32>
    tpu.vector_store %arg11[%c0_42, %c0_43, %c0_44], %88 {strides = array<i32>} : memref<8x8x128xf32, #tpu.memory_space<vmem>>, vector<1x8x128xf32>,
    %cst_45 = arith.constant dense<0.000000e+00> : vector<8x128xf32>
    %89 = tpu.matmul %85, %75, %cst_45 {dimension_numbers = #tpu.dot_dimension_numbers<[1], [0], [0], [1], [0, 0, 1, 1], [], []>} : vector<8x128xf32>, vector<128x128xf32>, vector<8x128xf32> -> vector<8x128xf32>
    %cst_46 = arith.constant 8.000000e-01 : f32
    %90 = vector.broadcast %cst_46 : f32 to vector<8x128xf32>
    %91 = arith.mulf %90, %84 : vector<8x128xf32>
    %c1_47 = arith.constant 1 : index
    %c0_48 = arith.constant 0 : index
    %c0_49 = arith.constant 0 : index
    %92 = vector.load %arg12[%c1_47, %c0_48, %c0_49] : memref<8x8x128xf32, #tpu.memory_space<vmem>>, vector<1x8x128xf32>
    %93 = vector.shape_cast %92 : vector<1x8x128xf32> to vector<8x128xf32>
    %94 = arith.addf %91, %93 : vector<8x128xf32>
    %95 = arith.addf %94, %89 : vector<8x128xf32>
    %96 = math.tanh %95 : vector<8x128xf32>
    %c1_50 = arith.constant 1 : index
    %c0_51 = arith.constant 0 : index
    %c0_52 = arith.constant 0 : index
    %97 = vector.load %arg11[%c1_50, %c0_51, %c0_52] : memref<8x8x128xf32, #tpu.memory_space<vmem>>, vector<1x8x128xf32>
    %98 = vector.shape_cast %97 : vector<1x8x128xf32> to vector<8x128xf32>
    %99 = vector.shape_cast %96 : vector<8x128xf32> to vector<1x8x128xf32>
    tpu.vector_store %arg11[%c1_50, %c0_51, %c0_52], %99 {strides = array<i32>} : memref<8x8x128xf32, #tpu.memory_space<vmem>>, vector<1x8x128xf32>,
    %cst_53 = arith.constant dense<0.000000e+00> : vector<8x128xf32>
    %100 = tpu.matmul %96, %75, %cst_53 {dimension_numbers = #tpu.dot_dimension_numbers<[1], [0], [0], [1], [0, 0, 1, 1], [], []>} : vector<8x128xf32>, vector<128x128xf32>, vector<8x128xf32> -> vector<8x128xf32>
    %cst_54 = arith.constant 8.000000e-01 : f32
    %101 = vector.broadcast %cst_54 : f32 to vector<8x128xf32>
    %102 = arith.mulf %101, %95 : vector<8x128xf32>
    %c2_55 = arith.constant 2 : index
    %c0_56 = arith.constant 0 : index
    %c0_57 = arith.constant 0 : index
    %103 = vector.load %arg12[%c2_55, %c0_56, %c0_57] : memref<8x8x128xf32, #tpu.memory_space<vmem>>, vector<1x8x128xf32>
    %104 = vector.shape_cast %103 : vector<1x8x128xf32> to vector<8x128xf32>
    %105 = arith.addf %102, %104 : vector<8x128xf32>
    %106 = arith.addf %105, %100 : vector<8x128xf32>
    %107 = math.tanh %106 : vector<8x128xf32>
    %c2_58 = arith.constant 2 : index
    %c0_59 = arith.constant 0 : index
    %c0_60 = arith.constant 0 : index
    %108 = vector.load %arg11[%c2_58, %c0_59, %c0_60] : memref<8x8x128xf32, #tpu.memory_space<vmem>>, vector<1x8x128xf32>
    %109 = vector.shape_cast %108 : vector<1x8x128xf32> to vector<8x128xf32>
    %110 = vector.shape_cast %107 : vector<8x128xf32> to vector<1x8x128xf32>
    tpu.vector_store %arg11[%c2_58, %c0_59, %c0_60], %110 {strides = array<i32>} : memref<8x8x128xf32, #tpu.memory_space<vmem>>, vector<1x8x128xf32>,
    %cst_61 = arith.constant dense<0.000000e+00> : vector<8x128xf32>
    %111 = tpu.matmul %107, %75, %cst_61 {dimension_numbers = #tpu.dot_dimension_numbers<[1], [0], [0], [1], [0, 0, 1, 1], [], []>} : vector<8x128xf32>, vector<128x128xf32>, vector<8x128xf32> -> vector<8x128xf32>
    %cst_62 = arith.constant 8.000000e-01 : f32
    %112 = vector.broadcast %cst_62 : f32 to vector<8x128xf32>
    %113 = arith.mulf %112, %106 : vector<8x128xf32>
    %c3_63 = arith.constant 3 : index
    %c0_64 = arith.constant 0 : index
    %c0_65 = arith.constant 0 : index
    %114 = vector.load %arg12[%c3_63, %c0_64, %c0_65] : memref<8x8x128xf32, #tpu.memory_space<vmem>>, vector<1x8x128xf32>
    %115 = vector.shape_cast %114 : vector<1x8x128xf32> to vector<8x128xf32>
    %116 = arith.addf %113, %115 : vector<8x128xf32>
    %117 = arith.addf %116, %111 : vector<8x128xf32>
    %118 = math.tanh %117 : vector<8x128xf32>
    %c3_66 = arith.constant 3 : index
    %c0_67 = arith.constant 0 : index
    %c0_68 = arith.constant 0 : index
    %119 = vector.load %arg11[%c3_66, %c0_67, %c0_68] : memref<8x8x128xf32, #tpu.memory_space<vmem>>, vector<1x8x128xf32>
    %120 = vector.shape_cast %119 : vector<1x8x128xf32> to vector<8x128xf32>
    %121 = vector.shape_cast %118 : vector<8x128xf32> to vector<1x8x128xf32>
    tpu.vector_store %arg11[%c3_66, %c0_67, %c0_68], %121 {strides = array<i32>} : memref<8x8x128xf32, #tpu.memory_space<vmem>>, vector<1x8x128xf32>,
    %cst_69 = arith.constant dense<0.000000e+00> : vector<8x128xf32>
    %122 = tpu.matmul %118, %75, %cst_69 {dimension_numbers = #tpu.dot_dimension_numbers<[1], [0], [0], [1], [0, 0, 1, 1], [], []>} : vector<8x128xf32>, vector<128x128xf32>, vector<8x128xf32> -> vector<8x128xf32>
    %cst_70 = arith.constant 8.000000e-01 : f32
    %123 = vector.broadcast %cst_70 : f32 to vector<8x128xf32>
    %124 = arith.mulf %123, %117 : vector<8x128xf32>
    %c4_71 = arith.constant 4 : index
    %c0_72 = arith.constant 0 : index
    %c0_73 = arith.constant 0 : index
    %125 = vector.load %arg12[%c4_71, %c0_72, %c0_73] : memref<8x8x128xf32, #tpu.memory_space<vmem>>, vector<1x8x128xf32>
    %126 = vector.shape_cast %125 : vector<1x8x128xf32> to vector<8x128xf32>
    %127 = arith.addf %124, %126 : vector<8x128xf32>
    %128 = arith.addf %127, %122 : vector<8x128xf32>
    %129 = math.tanh %128 : vector<8x128xf32>
    %c4_74 = arith.constant 4 : index
    %c0_75 = arith.constant 0 : index
    %c0_76 = arith.constant 0 : index
    %130 = vector.load %arg11[%c4_74, %c0_75, %c0_76] : memref<8x8x128xf32, #tpu.memory_space<vmem>>, vector<1x8x128xf32>
    %131 = vector.shape_cast %130 : vector<1x8x128xf32> to vector<8x128xf32>
    %132 = vector.shape_cast %129 : vector<8x128xf32> to vector<1x8x128xf32>
    tpu.vector_store %arg11[%c4_74, %c0_75, %c0_76], %132 {strides = array<i32>} : memref<8x8x128xf32, #tpu.memory_space<vmem>>, vector<1x8x128xf32>,
    %cst_77 = arith.constant dense<0.000000e+00> : vector<8x128xf32>
    %133 = tpu.matmul %129, %75, %cst_77 {dimension_numbers = #tpu.dot_dimension_numbers<[1], [0], [0], [1], [0, 0, 1, 1], [], []>} : vector<8x128xf32>, vector<128x128xf32>, vector<8x128xf32> -> vector<8x128xf32>
    %cst_78 = arith.constant 8.000000e-01 : f32
    %134 = vector.broadcast %cst_78 : f32 to vector<8x128xf32>
    %135 = arith.mulf %134, %128 : vector<8x128xf32>
    %c5_79 = arith.constant 5 : index
    %c0_80 = arith.constant 0 : index
    %c0_81 = arith.constant 0 : index
    %136 = vector.load %arg12[%c5_79, %c0_80, %c0_81] : memref<8x8x128xf32, #tpu.memory_space<vmem>>, vector<1x8x128xf32>
    %137 = vector.shape_cast %136 : vector<1x8x128xf32> to vector<8x128xf32>
    %138 = arith.addf %135, %137 : vector<8x128xf32>
    %139 = arith.addf %138, %133 : vector<8x128xf32>
    %140 = math.tanh %139 : vector<8x128xf32>
    %c5_82 = arith.constant 5 : index
    %c0_83 = arith.constant 0 : index
    %c0_84 = arith.constant 0 : index
    %141 = vector.load %arg11[%c5_82, %c0_83, %c0_84] : memref<8x8x128xf32, #tpu.memory_space<vmem>>, vector<1x8x128xf32>
    %142 = vector.shape_cast %141 : vector<1x8x128xf32> to vector<8x128xf32>
    %143 = vector.shape_cast %140 : vector<8x128xf32> to vector<1x8x128xf32>
    tpu.vector_store %arg11[%c5_82, %c0_83, %c0_84], %143 {strides = array<i32>} : memref<8x8x128xf32, #tpu.memory_space<vmem>>, vector<1x8x128xf32>,
    %cst_85 = arith.constant dense<0.000000e+00> : vector<8x128xf32>
    %144 = tpu.matmul %140, %75, %cst_85 {dimension_numbers = #tpu.dot_dimension_numbers<[1], [0], [0], [1], [0, 0, 1, 1], [], []>} : vector<8x128xf32>, vector<128x128xf32>, vector<8x128xf32> -> vector<8x128xf32>
    %cst_86 = arith.constant 8.000000e-01 : f32
    %145 = vector.broadcast %cst_86 : f32 to vector<8x128xf32>
    %146 = arith.mulf %145, %139 : vector<8x128xf32>
    %c6_87 = arith.constant 6 : index
    %c0_88 = arith.constant 0 : index
    %c0_89 = arith.constant 0 : index
    %147 = vector.load %arg12[%c6_87, %c0_88, %c0_89] : memref<8x8x128xf32, #tpu.memory_space<vmem>>, vector<1x8x128xf32>
    %148 = vector.shape_cast %147 : vector<1x8x128xf32> to vector<8x128xf32>
    %149 = arith.addf %146, %148 : vector<8x128xf32>
    %150 = arith.addf %149, %144 : vector<8x128xf32>
    %151 = math.tanh %150 : vector<8x128xf32>
    %c6_90 = arith.constant 6 : index
    %c0_91 = arith.constant 0 : index
    %c0_92 = arith.constant 0 : index
    %152 = vector.load %arg11[%c6_90, %c0_91, %c0_92] : memref<8x8x128xf32, #tpu.memory_space<vmem>>, vector<1x8x128xf32>
    %153 = vector.shape_cast %152 : vector<1x8x128xf32> to vector<8x128xf32>
    %154 = vector.shape_cast %151 : vector<8x128xf32> to vector<1x8x128xf32>
    tpu.vector_store %arg11[%c6_90, %c0_91, %c0_92], %154 {strides = array<i32>} : memref<8x8x128xf32, #tpu.memory_space<vmem>>, vector<1x8x128xf32>,
    %cst_93 = arith.constant dense<0.000000e+00> : vector<8x128xf32>
    %155 = tpu.matmul %151, %75, %cst_93 {dimension_numbers = #tpu.dot_dimension_numbers<[1], [0], [0], [1], [0, 0, 1, 1], [], []>} : vector<8x128xf32>, vector<128x128xf32>, vector<8x128xf32> -> vector<8x128xf32>
    %cst_94 = arith.constant 8.000000e-01 : f32
    %156 = vector.broadcast %cst_94 : f32 to vector<8x128xf32>
    %157 = arith.mulf %156, %150 : vector<8x128xf32>
    %c7_95 = arith.constant 7 : index
    %c0_96 = arith.constant 0 : index
    %c0_97 = arith.constant 0 : index
    %158 = vector.load %arg12[%c7_95, %c0_96, %c0_97] : memref<8x8x128xf32, #tpu.memory_space<vmem>>, vector<1x8x128xf32>
    %159 = vector.shape_cast %158 : vector<1x8x128xf32> to vector<8x128xf32>
    %160 = arith.addf %157, %159 : vector<8x128xf32>
    %161 = arith.addf %160, %155 : vector<8x128xf32>
    %162 = math.tanh %161 : vector<8x128xf32>
    %c7_98 = arith.constant 7 : index
    %c0_99 = arith.constant 0 : index
    %c0_100 = arith.constant 0 : index
    %163 = vector.load %arg11[%c7_98, %c0_99, %c0_100] : memref<8x8x128xf32, #tpu.memory_space<vmem>>, vector<1x8x128xf32>
    %164 = vector.shape_cast %163 : vector<1x8x128xf32> to vector<8x128xf32>
    %165 = vector.shape_cast %162 : vector<8x128xf32> to vector<1x8x128xf32>
    tpu.vector_store %arg11[%c7_98, %c0_99, %c0_100], %165 {strides = array<i32>} : memref<8x8x128xf32, #tpu.memory_space<vmem>>, vector<1x8x128xf32>,
    %c0_101 = arith.constant 0 : index
    %c0_102 = arith.constant 0 : index
    %166 = vector.load %arg9[%c0_101, %c0_102] : memref<8x128xf32, #tpu.memory_space<vmem>>, vector<8x128xf32>
    tpu.vector_store %arg9[%c0_101, %c0_102], %161 {strides = array<i32>} : memref<8x128xf32, #tpu.memory_space<vmem>>, vector<8x128xf32>,
    %c0_103 = arith.constant 0 : index
    %c0_104 = arith.constant 0 : index
    %167 = vector.load %arg10[%c0_103, %c0_104] : memref<8x128xf32, #tpu.memory_space<vmem>>, vector<8x128xf32>
    tpu.vector_store %arg10[%c0_103, %c0_104], %162 {strides = array<i32>} : memref<8x128xf32, #tpu.memory_space<vmem>>, vector<8x128xf32>,
    %c0_105 = arith.constant 0 : index
    %c0_106 = arith.constant 0 : index
    %c0_107 = arith.constant 0 : index
    %168 = vector.load %arg11[%c0_105, %c0_106, %c0_107] : memref<8x8x128xf32, #tpu.memory_space<vmem>>, vector<8x8x128xf32>
    %169 = vector.shape_cast %168 : vector<8x8x128xf32> to vector<64x128xf32>
    %c0_108 = arith.constant 0 : index
    %c0_109 = arith.constant 0 : index
    %170 = vector.load %arg6[%c0_108, %c0_109] : memref<128x8xf32, #tpu.memory_space<vmem>>, vector<128x8xf32>
    %cst_110 = arith.constant dense<0.000000e+00> : vector<64x8xf32>
    %171 = tpu.matmul %169, %170, %cst_110 {dimension_numbers = #tpu.dot_dimension_numbers<[1], [0], [0], [1], [0, 0, 1, 1], [], []>} : vector<64x128xf32>, vector<128x8xf32>, vector<64x8xf32> -> vector<64x8xf32>
    %172 = vector.shape_cast %171 : vector<64x8xf32> to vector<8x8x8xf32>
    %c0_111 = arith.constant 0 : index
    %c0_112 = arith.constant 0 : index
    %c0_113 = arith.constant 0 : index
    %173 = vector.load %arg8[%c0_111, %c0_112, %c0_113] : memref<8x8x8xf32, #tpu.memory_space<vmem>>, vector<8x8x8xf32>
    tpu.vector_store %arg8[%c0_111, %c0_112, %c0_113], %172 {strides = array<i32>} : memref<8x8x8xf32, #tpu.memory_space<vmem>>, vector<8x8x8xf32>,
    return
  }
  func.func @transform_0(%arg0: i32, %arg1: i32) -> (i32, i32, i32) {
    %c0_i32 = arith.constant 0 : i32
    %c0_i32_0 = arith.constant 0 : i32
    return %arg0, %arg1, %c0_i32 : i32, i32, i32
  }
  func.func @transform_1(%arg0: i32, %arg1: i32) -> (i32, i32, i32) {
    %c0_i32 = arith.constant 0 : i32
    %c0_i32_0 = arith.constant 0 : i32
    return %arg0, %arg1, %c0_i32 : i32, i32, i32
  }
  func.func @transform_2(%arg0: i32, %arg1: i32) -> (i32, i32) {
    %c0_i32 = arith.constant 0 : i32
    %c0_i32_0 = arith.constant 0 : i32
    %c0_i32_1 = arith.constant 0 : i32
    return %c0_i32, %c0_i32_0 : i32, i32
  }
  func.func @transform_3(%arg0: i32, %arg1: i32) -> (i32, i32) {
    %c0_i32 = arith.constant 0 : i32
    %c0_i32_0 = arith.constant 0 : i32
    %c0_i32_1 = arith.constant 0 : i32
    return %c0_i32, %c0_i32_0 : i32, i32
  }
  func.func @transform_4(%arg0: i32, %arg1: i32) -> (i32, i32) {
    %c0_i32 = arith.constant 0 : i32
    %c0_i32_0 = arith.constant 0 : i32
    %c0_i32_1 = arith.constant 0 : i32
    return %c0_i32, %c0_i32_0 : i32, i32
  }
  func.func @transform_5(%arg0: i32, %arg1: i32) -> (i32, i32) {
    %c0_i32 = arith.constant 0 : i32
    %c0_i32_0 = arith.constant 0 : i32
    %c0_i32_1 = arith.constant 0 : i32
    return %c0_i32, %c0_i32_0 : i32, i32
  }
  func.func @transform_6(%arg0: i32, %arg1: i32) -> (i32, i32, i32) {
    %c0_i32 = arith.constant 0 : i32
    %c0_i32_0 = arith.constant 0 : i32
    return %arg1, %arg0, %c0_i32 : i32, i32, i32
  }
}

module attributes {stable_mosaic.version = 11 : i64} {
  func.func @_rnn_kernel(%arg0: i32, %arg1: i32, %arg2: memref<8x8x4xf32, #tpu.memory_space<vmem>>, %arg3: memref<8x8x128xf32, #tpu.memory_space<vmem>>, %arg4: memref<128x128xf32, #tpu.memory_space<vmem>>, %arg5: memref<4x128xf32, #tpu.memory_space<vmem>>, %arg6: memref<128x8xf32, #tpu.memory_space<vmem>>, %arg7: memref<1x128xf32, #tpu.memory_space<vmem>>, %arg8: memref<8x8x8xf32, #tpu.memory_space<vmem>>, %arg9: memref<8x128xf32, #tpu.memory_space<vmem>>, %arg10: memref<8x128xf32, #tpu.memory_space<vmem>>, %arg11: memref<8x8x128xf32, #tpu.memory_space<vmem>>, %arg12: memref<8x8x128xf32, #tpu.memory_space<vmem>>) attributes {dimension_semantics = [#tpu.dimension_semantics<parallel>, #tpu.dimension_semantics<arbitrary>], iteration_bounds = array<i64: 1, 1>, scalar_prefetch = 0 : i64, scratch_operands = 4 : i64, tpu.core_type = #tpu.core_type<tc>, window_params = [{transform_indices = @transform_0, window_bounds = array<i64: 8, 8, 4>}, {transform_indices = @transform_1, window_bounds = array<i64: 8, 8, 128>}, {pipeline_mode = #tpu.pipeline_mode<synchronous>, transform_indices = @transform_2, window_bounds = array<i64: 128, 128>}, {pipeline_mode = #tpu.pipeline_mode<synchronous>, transform_indices = @transform_3, window_bounds = array<i64: 4, 128>}, {pipeline_mode = #tpu.pipeline_mode<synchronous>, transform_indices = @transform_4, window_bounds = array<i64: 128, 8>}, {pipeline_mode = #tpu.pipeline_mode<synchronous>, transform_indices = @transform_5, window_bounds = array<i64: 1, 128>}, {transform_indices = @transform_6, window_bounds = array<i64: 8, 8, 8>}]} {
    %c0_i32 = arith.constant 0 : i32
    %0 = arith.cmpi eq, %arg1, %c0_i32 : i32
    %1 = arith.extui %0 : i1 to i32
    %c0_i32_0 = arith.constant 0 : i32
    %2 = arith.cmpi ne, %1, %c0_i32_0 : i32
    scf.if %2 {
      %c0_109 = arith.constant 0 : index
      %c0_110 = arith.constant 0 : index
      %151 = vector.load %arg7[%c0_109, %c0_110] : memref<1x128xf32, #tpu.memory_space<vmem>>, vector<1x128xf32>
      %152 = vector.shape_cast %151 : vector<1x128xf32> to vector<1x128xf32>
      %153 = vector.broadcast %152 : vector<1x128xf32> to vector<8x128xf32>
      %c0_111 = arith.constant 0 : index
      %c0_112 = arith.constant 0 : index
      %154 = vector.load %arg9[%c0_111, %c0_112] : memref<8x128xf32, #tpu.memory_space<vmem>>, vector<8x128xf32>
      tpu.vector_store %arg9[%c0_111, %c0_112], %153 {strides = array<i32>} : memref<8x128xf32, #tpu.memory_space<vmem>>, vector<8x128xf32>,
      %155 = math.tanh %153 : vector<8x128xf32>
      %c0_113 = arith.constant 0 : index
      %c0_114 = arith.constant 0 : index
      %156 = vector.load %arg10[%c0_113, %c0_114] : memref<8x128xf32, #tpu.memory_space<vmem>>, vector<8x128xf32>
      tpu.vector_store %arg10[%c0_113, %c0_114], %155 {strides = array<i32>} : memref<8x128xf32, #tpu.memory_space<vmem>>, vector<8x128xf32>,
    } else {
    }
    %c0 = arith.constant 0 : index
    %c0_1 = arith.constant 0 : index
    %c0_2 = arith.constant 0 : index
    %3 = vector.load %arg3[%c0, %c0_1, %c0_2] : memref<8x8x128xf32, #tpu.memory_space<vmem>>, vector<8x8x128xf32>
    %cst = arith.constant 1.000000e-01 : f32
    %4 = vector.broadcast %cst : f32 to vector<8x8x128xf32>
    %5 = arith.mulf %4, %3 : vector<8x8x128xf32>
    %c0_3 = arith.constant 0 : index
    %c0_4 = arith.constant 0 : index
    %c0_5 = arith.constant 0 : index
    %6 = vector.load %arg2[%c0_3, %c0_4, %c0_5] : memref<8x8x4xf32, #tpu.memory_space<vmem>>, vector<8x8x4xf32>
    %7 = vector.shape_cast %6 : vector<8x8x4xf32> to vector<64x4xf32>
    %c0_6 = arith.constant 0 : index
    %c0_7 = arith.constant 0 : index
    %8 = vector.load %arg5[%c0_6, %c0_7] : memref<4x128xf32, #tpu.memory_space<vmem>>, vector<4x128xf32>
    %cst_8 = arith.constant dense<0.000000e+00> : vector<64x128xf32>
    %9 = tpu.matmul %7, %8, %cst_8 {dimension_numbers = #tpu.dot_dimension_numbers<[1], [0], [0], [1], [0, 0, 1, 1], [], []>} : vector<64x4xf32>, vector<4x128xf32>, vector<64x128xf32> -> vector<64x128xf32>
    %10 = vector.shape_cast %9 : vector<64x128xf32> to vector<8x8x128xf32>
    %11 = arith.addf %5, %10 : vector<8x8x128xf32>
    %12 = vector.extract_strided_slice %11 {offsets = [0, 0, 0], sizes = [8, 1, 128], strides = [1, 1, 1]} : vector<8x8x128xf32> to vector<8x1x128xf32>
    %13 = vector.shape_cast %12 : vector<8x1x128xf32> to vector<8x128xf32>
    %c0_9 = arith.constant 0 : index
    %c0_10 = arith.constant 0 : index
    %c0_11 = arith.constant 0 : index
    %14 = vector.load %arg12[%c0_9, %c0_10, %c0_11] : memref<8x8x128xf32, #tpu.memory_space<vmem>>, vector<1x8x128xf32>
    %15 = vector.shape_cast %14 : vector<1x8x128xf32> to vector<8x128xf32>
    %16 = vector.shape_cast %13 : vector<8x128xf32> to vector<1x8x128xf32>
    tpu.vector_store %arg12[%c0_9, %c0_10, %c0_11], %16 {strides = array<i32>} : memref<8x8x128xf32, #tpu.memory_space<vmem>>, vector<1x8x128xf32>,
    %17 = vector.extract_strided_slice %11 {offsets = [0, 1, 0], sizes = [8, 1, 128], strides = [1, 1, 1]} : vector<8x8x128xf32> to vector<8x1x128xf32>
    %18 = vector.shape_cast %17 : vector<8x1x128xf32> to vector<8x128xf32>
    %c1 = arith.constant 1 : index
    %c0_12 = arith.constant 0 : index
    %c0_13 = arith.constant 0 : index
    %19 = vector.load %arg12[%c1, %c0_12, %c0_13] : memref<8x8x128xf32, #tpu.memory_space<vmem>>, vector<1x8x128xf32>
    %20 = vector.shape_cast %19 : vector<1x8x128xf32> to vector<8x128xf32>
    %21 = vector.shape_cast %18 : vector<8x128xf32> to vector<1x8x128xf32>
    tpu.vector_store %arg12[%c1, %c0_12, %c0_13], %21 {strides = array<i32>} : memref<8x8x128xf32, #tpu.memory_space<vmem>>, vector<1x8x128xf32>,
    %22 = vector.extract_strided_slice %11 {offsets = [0, 2, 0], sizes = [8, 1, 128], strides = [1, 1, 1]} : vector<8x8x128xf32> to vector<8x1x128xf32>
    %23 = vector.shape_cast %22 : vector<8x1x128xf32> to vector<8x128xf32>
    %c2 = arith.constant 2 : index
    %c0_14 = arith.constant 0 : index
    %c0_15 = arith.constant 0 : index
    %24 = vector.load %arg12[%c2, %c0_14, %c0_15] : memref<8x8x128xf32, #tpu.memory_space<vmem>>, vector<1x8x128xf32>
    %25 = vector.shape_cast %24 : vector<1x8x128xf32> to vector<8x128xf32>
    %26 = vector.shape_cast %23 : vector<8x128xf32> to vector<1x8x128xf32>
    tpu.vector_store %arg12[%c2, %c0_14, %c0_15], %26 {strides = array<i32>} : memref<8x8x128xf32, #tpu.memory_space<vmem>>, vector<1x8x128xf32>,
    %27 = vector.extract_strided_slice %11 {offsets = [0, 3, 0], sizes = [8, 1, 128], strides = [1, 1, 1]} : vector<8x8x128xf32> to vector<8x1x128xf32>
    %28 = vector.shape_cast %27 : vector<8x1x128xf32> to vector<8x128xf32>
    %c3 = arith.constant 3 : index
    %c0_16 = arith.constant 0 : index
    %c0_17 = arith.constant 0 : index
    %29 = vector.load %arg12[%c3, %c0_16, %c0_17] : memref<8x8x128xf32, #tpu.memory_space<vmem>>, vector<1x8x128xf32>
    %30 = vector.shape_cast %29 : vector<1x8x128xf32> to vector<8x128xf32>
    %31 = vector.shape_cast %28 : vector<8x128xf32> to vector<1x8x128xf32>
    tpu.vector_store %arg12[%c3, %c0_16, %c0_17], %31 {strides = array<i32>} : memref<8x8x128xf32, #tpu.memory_space<vmem>>, vector<1x8x128xf32>,
    %32 = vector.extract_strided_slice %11 {offsets = [0, 4, 0], sizes = [8, 1, 128], strides = [1, 1, 1]} : vector<8x8x128xf32> to vector<8x1x128xf32>
    %33 = vector.shape_cast %32 : vector<8x1x128xf32> to vector<8x128xf32>
    %c4 = arith.constant 4 : index
    %c0_18 = arith.constant 0 : index
    %c0_19 = arith.constant 0 : index
    %34 = vector.load %arg12[%c4, %c0_18, %c0_19] : memref<8x8x128xf32, #tpu.memory_space<vmem>>, vector<1x8x128xf32>
    %35 = vector.shape_cast %34 : vector<1x8x128xf32> to vector<8x128xf32>
    %36 = vector.shape_cast %33 : vector<8x128xf32> to vector<1x8x128xf32>
    tpu.vector_store %arg12[%c4, %c0_18, %c0_19], %36 {strides = array<i32>} : memref<8x8x128xf32, #tpu.memory_space<vmem>>, vector<1x8x128xf32>,
    %37 = vector.extract_strided_slice %11 {offsets = [0, 5, 0], sizes = [8, 1, 128], strides = [1, 1, 1]} : vector<8x8x128xf32> to vector<8x1x128xf32>
    %38 = vector.shape_cast %37 : vector<8x1x128xf32> to vector<8x128xf32>
    %c5 = arith.constant 5 : index
    %c0_20 = arith.constant 0 : index
    %c0_21 = arith.constant 0 : index
    %39 = vector.load %arg12[%c5, %c0_20, %c0_21] : memref<8x8x128xf32, #tpu.memory_space<vmem>>, vector<1x8x128xf32>
    %40 = vector.shape_cast %39 : vector<1x8x128xf32> to vector<8x128xf32>
    %41 = vector.shape_cast %38 : vector<8x128xf32> to vector<1x8x128xf32>
    tpu.vector_store %arg12[%c5, %c0_20, %c0_21], %41 {strides = array<i32>} : memref<8x8x128xf32, #tpu.memory_space<vmem>>, vector<1x8x128xf32>,
    %42 = vector.extract_strided_slice %11 {offsets = [0, 6, 0], sizes = [8, 1, 128], strides = [1, 1, 1]} : vector<8x8x128xf32> to vector<8x1x128xf32>
    %43 = vector.shape_cast %42 : vector<8x1x128xf32> to vector<8x128xf32>
    %c6 = arith.constant 6 : index
    %c0_22 = arith.constant 0 : index
    %c0_23 = arith.constant 0 : index
    %44 = vector.load %arg12[%c6, %c0_22, %c0_23] : memref<8x8x128xf32, #tpu.memory_space<vmem>>, vector<1x8x128xf32>
    %45 = vector.shape_cast %44 : vector<1x8x128xf32> to vector<8x128xf32>
    %46 = vector.shape_cast %43 : vector<8x128xf32> to vector<1x8x128xf32>
    tpu.vector_store %arg12[%c6, %c0_22, %c0_23], %46 {strides = array<i32>} : memref<8x8x128xf32, #tpu.memory_space<vmem>>, vector<1x8x128xf32>,
    %47 = vector.extract_strided_slice %11 {offsets = [0, 7, 0], sizes = [8, 1, 128], strides = [1, 1, 1]} : vector<8x8x128xf32> to vector<8x1x128xf32>
    %48 = vector.shape_cast %47 : vector<8x1x128xf32> to vector<8x128xf32>
    %c7 = arith.constant 7 : index
    %c0_24 = arith.constant 0 : index
    %c0_25 = arith.constant 0 : index
    %49 = vector.load %arg12[%c7, %c0_24, %c0_25] : memref<8x8x128xf32, #tpu.memory_space<vmem>>, vector<1x8x128xf32>
    %50 = vector.shape_cast %49 : vector<1x8x128xf32> to vector<8x128xf32>
    %51 = vector.shape_cast %48 : vector<8x128xf32> to vector<1x8x128xf32>
    tpu.vector_store %arg12[%c7, %c0_24, %c0_25], %51 {strides = array<i32>} : memref<8x8x128xf32, #tpu.memory_space<vmem>>, vector<1x8x128xf32>,
    %c0_26 = arith.constant 0 : index
    %c0_27 = arith.constant 0 : index
    %52 = vector.load %arg4[%c0_26, %c0_27] : memref<128x128xf32, #tpu.memory_space<vmem>>, vector<128x128xf32>
    %c0_28 = arith.constant 0 : index
    %c0_29 = arith.constant 0 : index
    %53 = vector.load %arg9[%c0_28, %c0_29] : memref<8x128xf32, #tpu.memory_space<vmem>>, vector<8x128xf32>
    %c0_30 = arith.constant 0 : index
    %c0_31 = arith.constant 0 : index
    %54 = vector.load %arg10[%c0_30, %c0_31] : memref<8x128xf32, #tpu.memory_space<vmem>>, vector<8x128xf32>
    %cst_32 = arith.constant dense<0.000000e+00> : vector<8x128xf32>
    %55 = tpu.matmul %54, %52, %cst_32 {dimension_numbers = #tpu.dot_dimension_numbers<[1], [0], [0], [1], [0, 0, 1, 1], [], []>} : vector<8x128xf32>, vector<128x128xf32>, vector<8x128xf32> -> vector<8x128xf32>
    %cst_33 = arith.constant 8.000000e-01 : f32
    %56 = vector.broadcast %cst_33 : f32 to vector<8x128xf32>
    %57 = arith.mulf %56, %53 : vector<8x128xf32>
    %c0_34 = arith.constant 0 : index
    %c0_35 = arith.constant 0 : index
    %c0_36 = arith.constant 0 : index
    %58 = vector.load %arg12[%c0_34, %c0_35, %c0_36] : memref<8x8x128xf32, #tpu.memory_space<vmem>>, vector<1x8x128xf32>
    %59 = vector.shape_cast %58 : vector<1x8x128xf32> to vector<8x128xf32>
    %60 = arith.addf %57, %59 : vector<8x128xf32>
    %61 = arith.addf %60, %55 : vector<8x128xf32>
    %62 = math.tanh %61 : vector<8x128xf32>
    %c0_37 = arith.constant 0 : index
    %c0_38 = arith.constant 0 : index
    %c0_39 = arith.constant 0 : index
    %63 = vector.load %arg11[%c0_37, %c0_38, %c0_39] : memref<8x8x128xf32, #tpu.memory_space<vmem>>, vector<1x8x128xf32>
    %64 = vector.shape_cast %63 : vector<1x8x128xf32> to vector<8x128xf32>
    %65 = vector.shape_cast %62 : vector<8x128xf32> to vector<1x8x128xf32>
    tpu.vector_store %arg11[%c0_37, %c0_38, %c0_39], %65 {strides = array<i32>} : memref<8x8x128xf32, #tpu.memory_space<vmem>>, vector<1x8x128xf32>,
    %cst_40 = arith.constant dense<0.000000e+00> : vector<8x128xf32>
    %66 = tpu.matmul %62, %52, %cst_40 {dimension_numbers = #tpu.dot_dimension_numbers<[1], [0], [0], [1], [0, 0, 1, 1], [], []>} : vector<8x128xf32>, vector<128x128xf32>, vector<8x128xf32> -> vector<8x128xf32>
    %cst_41 = arith.constant 8.000000e-01 : f32
    %67 = vector.broadcast %cst_41 : f32 to vector<8x128xf32>
    %68 = arith.mulf %67, %61 : vector<8x128xf32>
    %c1_42 = arith.constant 1 : index
    %c0_43 = arith.constant 0 : index
    %c0_44 = arith.constant 0 : index
    %69 = vector.load %arg12[%c1_42, %c0_43, %c0_44] : memref<8x8x128xf32, #tpu.memory_space<vmem>>, vector<1x8x128xf32>
    %70 = vector.shape_cast %69 : vector<1x8x128xf32> to vector<8x128xf32>
    %71 = arith.addf %68, %70 : vector<8x128xf32>
    %72 = arith.addf %71, %66 : vector<8x128xf32>
    %73 = math.tanh %72 : vector<8x128xf32>
    %c1_45 = arith.constant 1 : index
    %c0_46 = arith.constant 0 : index
    %c0_47 = arith.constant 0 : index
    %74 = vector.load %arg11[%c1_45, %c0_46, %c0_47] : memref<8x8x128xf32, #tpu.memory_space<vmem>>, vector<1x8x128xf32>
    %75 = vector.shape_cast %74 : vector<1x8x128xf32> to vector<8x128xf32>
    %76 = vector.shape_cast %73 : vector<8x128xf32> to vector<1x8x128xf32>
    tpu.vector_store %arg11[%c1_45, %c0_46, %c0_47], %76 {strides = array<i32>} : memref<8x8x128xf32, #tpu.memory_space<vmem>>, vector<1x8x128xf32>,
    %cst_48 = arith.constant dense<0.000000e+00> : vector<8x128xf32>
    %77 = tpu.matmul %73, %52, %cst_48 {dimension_numbers = #tpu.dot_dimension_numbers<[1], [0], [0], [1], [0, 0, 1, 1], [], []>} : vector<8x128xf32>, vector<128x128xf32>, vector<8x128xf32> -> vector<8x128xf32>
    %cst_49 = arith.constant 8.000000e-01 : f32
    %78 = vector.broadcast %cst_49 : f32 to vector<8x128xf32>
    %79 = arith.mulf %78, %72 : vector<8x128xf32>
    %c2_50 = arith.constant 2 : index
    %c0_51 = arith.constant 0 : index
    %c0_52 = arith.constant 0 : index
    %80 = vector.load %arg12[%c2_50, %c0_51, %c0_52] : memref<8x8x128xf32, #tpu.memory_space<vmem>>, vector<1x8x128xf32>
    %81 = vector.shape_cast %80 : vector<1x8x128xf32> to vector<8x128xf32>
    %82 = arith.addf %79, %81 : vector<8x128xf32>
    %83 = arith.addf %82, %77 : vector<8x128xf32>
    %84 = math.tanh %83 : vector<8x128xf32>
    %c2_53 = arith.constant 2 : index
    %c0_54 = arith.constant 0 : index
    %c0_55 = arith.constant 0 : index
    %85 = vector.load %arg11[%c2_53, %c0_54, %c0_55] : memref<8x8x128xf32, #tpu.memory_space<vmem>>, vector<1x8x128xf32>
    %86 = vector.shape_cast %85 : vector<1x8x128xf32> to vector<8x128xf32>
    %87 = vector.shape_cast %84 : vector<8x128xf32> to vector<1x8x128xf32>
    tpu.vector_store %arg11[%c2_53, %c0_54, %c0_55], %87 {strides = array<i32>} : memref<8x8x128xf32, #tpu.memory_space<vmem>>, vector<1x8x128xf32>,
    %cst_56 = arith.constant dense<0.000000e+00> : vector<8x128xf32>
    %88 = tpu.matmul %84, %52, %cst_56 {dimension_numbers = #tpu.dot_dimension_numbers<[1], [0], [0], [1], [0, 0, 1, 1], [], []>} : vector<8x128xf32>, vector<128x128xf32>, vector<8x128xf32> -> vector<8x128xf32>
    %cst_57 = arith.constant 8.000000e-01 : f32
    %89 = vector.broadcast %cst_57 : f32 to vector<8x128xf32>
    %90 = arith.mulf %89, %83 : vector<8x128xf32>
    %c3_58 = arith.constant 3 : index
    %c0_59 = arith.constant 0 : index
    %c0_60 = arith.constant 0 : index
    %91 = vector.load %arg12[%c3_58, %c0_59, %c0_60] : memref<8x8x128xf32, #tpu.memory_space<vmem>>, vector<1x8x128xf32>
    %92 = vector.shape_cast %91 : vector<1x8x128xf32> to vector<8x128xf32>
    %93 = arith.addf %90, %92 : vector<8x128xf32>
    %94 = arith.addf %93, %88 : vector<8x128xf32>
    %95 = math.tanh %94 : vector<8x128xf32>
    %c3_61 = arith.constant 3 : index
    %c0_62 = arith.constant 0 : index
    %c0_63 = arith.constant 0 : index
    %96 = vector.load %arg11[%c3_61, %c0_62, %c0_63] : memref<8x8x128xf32, #tpu.memory_space<vmem>>, vector<1x8x128xf32>
    %97 = vector.shape_cast %96 : vector<1x8x128xf32> to vector<8x128xf32>
    %98 = vector.shape_cast %95 : vector<8x128xf32> to vector<1x8x128xf32>
    tpu.vector_store %arg11[%c3_61, %c0_62, %c0_63], %98 {strides = array<i32>} : memref<8x8x128xf32, #tpu.memory_space<vmem>>, vector<1x8x128xf32>,
    %cst_64 = arith.constant dense<0.000000e+00> : vector<8x128xf32>
    %99 = tpu.matmul %95, %52, %cst_64 {dimension_numbers = #tpu.dot_dimension_numbers<[1], [0], [0], [1], [0, 0, 1, 1], [], []>} : vector<8x128xf32>, vector<128x128xf32>, vector<8x128xf32> -> vector<8x128xf32>
    %cst_65 = arith.constant 8.000000e-01 : f32
    %100 = vector.broadcast %cst_65 : f32 to vector<8x128xf32>
    %101 = arith.mulf %100, %94 : vector<8x128xf32>
    %c4_66 = arith.constant 4 : index
    %c0_67 = arith.constant 0 : index
    %c0_68 = arith.constant 0 : index
    %102 = vector.load %arg12[%c4_66, %c0_67, %c0_68] : memref<8x8x128xf32, #tpu.memory_space<vmem>>, vector<1x8x128xf32>
    %103 = vector.shape_cast %102 : vector<1x8x128xf32> to vector<8x128xf32>
    %104 = arith.addf %101, %103 : vector<8x128xf32>
    %105 = arith.addf %104, %99 : vector<8x128xf32>
    %106 = math.tanh %105 : vector<8x128xf32>
    %c4_69 = arith.constant 4 : index
    %c0_70 = arith.constant 0 : index
    %c0_71 = arith.constant 0 : index
    %107 = vector.load %arg11[%c4_69, %c0_70, %c0_71] : memref<8x8x128xf32, #tpu.memory_space<vmem>>, vector<1x8x128xf32>
    %108 = vector.shape_cast %107 : vector<1x8x128xf32> to vector<8x128xf32>
    %109 = vector.shape_cast %106 : vector<8x128xf32> to vector<1x8x128xf32>
    tpu.vector_store %arg11[%c4_69, %c0_70, %c0_71], %109 {strides = array<i32>} : memref<8x8x128xf32, #tpu.memory_space<vmem>>, vector<1x8x128xf32>,
    %cst_72 = arith.constant dense<0.000000e+00> : vector<8x128xf32>
    %110 = tpu.matmul %106, %52, %cst_72 {dimension_numbers = #tpu.dot_dimension_numbers<[1], [0], [0], [1], [0, 0, 1, 1], [], []>} : vector<8x128xf32>, vector<128x128xf32>, vector<8x128xf32> -> vector<8x128xf32>
    %cst_73 = arith.constant 8.000000e-01 : f32
    %111 = vector.broadcast %cst_73 : f32 to vector<8x128xf32>
    %112 = arith.mulf %111, %105 : vector<8x128xf32>
    %c5_74 = arith.constant 5 : index
    %c0_75 = arith.constant 0 : index
    %c0_76 = arith.constant 0 : index
    %113 = vector.load %arg12[%c5_74, %c0_75, %c0_76] : memref<8x8x128xf32, #tpu.memory_space<vmem>>, vector<1x8x128xf32>
    %114 = vector.shape_cast %113 : vector<1x8x128xf32> to vector<8x128xf32>
    %115 = arith.addf %112, %114 : vector<8x128xf32>
    %116 = arith.addf %115, %110 : vector<8x128xf32>
    %117 = math.tanh %116 : vector<8x128xf32>
    %c5_77 = arith.constant 5 : index
    %c0_78 = arith.constant 0 : index
    %c0_79 = arith.constant 0 : index
    %118 = vector.load %arg11[%c5_77, %c0_78, %c0_79] : memref<8x8x128xf32, #tpu.memory_space<vmem>>, vector<1x8x128xf32>
    %119 = vector.shape_cast %118 : vector<1x8x128xf32> to vector<8x128xf32>
    %120 = vector.shape_cast %117 : vector<8x128xf32> to vector<1x8x128xf32>
    tpu.vector_store %arg11[%c5_77, %c0_78, %c0_79], %120 {strides = array<i32>} : memref<8x8x128xf32, #tpu.memory_space<vmem>>, vector<1x8x128xf32>,
    %cst_80 = arith.constant dense<0.000000e+00> : vector<8x128xf32>
    %121 = tpu.matmul %117, %52, %cst_80 {dimension_numbers = #tpu.dot_dimension_numbers<[1], [0], [0], [1], [0, 0, 1, 1], [], []>} : vector<8x128xf32>, vector<128x128xf32>, vector<8x128xf32> -> vector<8x128xf32>
    %cst_81 = arith.constant 8.000000e-01 : f32
    %122 = vector.broadcast %cst_81 : f32 to vector<8x128xf32>
    %123 = arith.mulf %122, %116 : vector<8x128xf32>
    %c6_82 = arith.constant 6 : index
    %c0_83 = arith.constant 0 : index
    %c0_84 = arith.constant 0 : index
    %124 = vector.load %arg12[%c6_82, %c0_83, %c0_84] : memref<8x8x128xf32, #tpu.memory_space<vmem>>, vector<1x8x128xf32>
    %125 = vector.shape_cast %124 : vector<1x8x128xf32> to vector<8x128xf32>
    %126 = arith.addf %123, %125 : vector<8x128xf32>
    %127 = arith.addf %126, %121 : vector<8x128xf32>
    %128 = math.tanh %127 : vector<8x128xf32>
    %c6_85 = arith.constant 6 : index
    %c0_86 = arith.constant 0 : index
    %c0_87 = arith.constant 0 : index
    %129 = vector.load %arg11[%c6_85, %c0_86, %c0_87] : memref<8x8x128xf32, #tpu.memory_space<vmem>>, vector<1x8x128xf32>
    %130 = vector.shape_cast %129 : vector<1x8x128xf32> to vector<8x128xf32>
    %131 = vector.shape_cast %128 : vector<8x128xf32> to vector<1x8x128xf32>
    tpu.vector_store %arg11[%c6_85, %c0_86, %c0_87], %131 {strides = array<i32>} : memref<8x8x128xf32, #tpu.memory_space<vmem>>, vector<1x8x128xf32>,
    %cst_88 = arith.constant dense<0.000000e+00> : vector<8x128xf32>
    %132 = tpu.matmul %128, %52, %cst_88 {dimension_numbers = #tpu.dot_dimension_numbers<[1], [0], [0], [1], [0, 0, 1, 1], [], []>} : vector<8x128xf32>, vector<128x128xf32>, vector<8x128xf32> -> vector<8x128xf32>
    %cst_89 = arith.constant 8.000000e-01 : f32
    %133 = vector.broadcast %cst_89 : f32 to vector<8x128xf32>
    %134 = arith.mulf %133, %127 : vector<8x128xf32>
    %c7_90 = arith.constant 7 : index
    %c0_91 = arith.constant 0 : index
    %c0_92 = arith.constant 0 : index
    %135 = vector.load %arg12[%c7_90, %c0_91, %c0_92] : memref<8x8x128xf32, #tpu.memory_space<vmem>>, vector<1x8x128xf32>
    %136 = vector.shape_cast %135 : vector<1x8x128xf32> to vector<8x128xf32>
    %137 = arith.addf %134, %136 : vector<8x128xf32>
    %138 = arith.addf %137, %132 : vector<8x128xf32>
    %139 = math.tanh %138 : vector<8x128xf32>
    %c7_93 = arith.constant 7 : index
    %c0_94 = arith.constant 0 : index
    %c0_95 = arith.constant 0 : index
    %140 = vector.load %arg11[%c7_93, %c0_94, %c0_95] : memref<8x8x128xf32, #tpu.memory_space<vmem>>, vector<1x8x128xf32>
    %141 = vector.shape_cast %140 : vector<1x8x128xf32> to vector<8x128xf32>
    %142 = vector.shape_cast %139 : vector<8x128xf32> to vector<1x8x128xf32>
    tpu.vector_store %arg11[%c7_93, %c0_94, %c0_95], %142 {strides = array<i32>} : memref<8x8x128xf32, #tpu.memory_space<vmem>>, vector<1x8x128xf32>,
    %c0_96 = arith.constant 0 : index
    %c0_97 = arith.constant 0 : index
    %143 = vector.load %arg9[%c0_96, %c0_97] : memref<8x128xf32, #tpu.memory_space<vmem>>, vector<8x128xf32>
    tpu.vector_store %arg9[%c0_96, %c0_97], %138 {strides = array<i32>} : memref<8x128xf32, #tpu.memory_space<vmem>>, vector<8x128xf32>,
    %c0_98 = arith.constant 0 : index
    %c0_99 = arith.constant 0 : index
    %144 = vector.load %arg10[%c0_98, %c0_99] : memref<8x128xf32, #tpu.memory_space<vmem>>, vector<8x128xf32>
    tpu.vector_store %arg10[%c0_98, %c0_99], %139 {strides = array<i32>} : memref<8x128xf32, #tpu.memory_space<vmem>>, vector<8x128xf32>,
    %c0_100 = arith.constant 0 : index
    %c0_101 = arith.constant 0 : index
    %c0_102 = arith.constant 0 : index
    %145 = vector.load %arg11[%c0_100, %c0_101, %c0_102] : memref<8x8x128xf32, #tpu.memory_space<vmem>>, vector<8x8x128xf32>
    %146 = vector.shape_cast %145 : vector<8x8x128xf32> to vector<64x128xf32>
    %c0_103 = arith.constant 0 : index
    %c0_104 = arith.constant 0 : index
    %147 = vector.load %arg6[%c0_103, %c0_104] : memref<128x8xf32, #tpu.memory_space<vmem>>, vector<128x8xf32>
    %cst_105 = arith.constant dense<0.000000e+00> : vector<64x8xf32>
    %148 = tpu.matmul %146, %147, %cst_105 {dimension_numbers = #tpu.dot_dimension_numbers<[1], [0], [0], [1], [0, 0, 1, 1], [], []>} : vector<64x128xf32>, vector<128x8xf32>, vector<64x8xf32> -> vector<64x8xf32>
    %149 = vector.shape_cast %148 : vector<64x8xf32> to vector<8x8x8xf32>
    %c0_106 = arith.constant 0 : index
    %c0_107 = arith.constant 0 : index
    %c0_108 = arith.constant 0 : index
    %150 = vector.load %arg8[%c0_106, %c0_107, %c0_108] : memref<8x8x8xf32, #tpu.memory_space<vmem>>, vector<8x8x8xf32>
    tpu.vector_store %arg8[%c0_106, %c0_107, %c0_108], %149 {strides = array<i32>} : memref<8x8x8xf32, #tpu.memory_space<vmem>>, vector<8x8x8xf32>,
    return
  }
  func.func @transform_0(%arg0: i32, %arg1: i32) -> (i32, i32, i32) {
    %c0_i32 = arith.constant 0 : i32
    %c0_i32_0 = arith.constant 0 : i32
    return %arg0, %arg1, %c0_i32 : i32, i32, i32
  }
  func.func @transform_1(%arg0: i32, %arg1: i32) -> (i32, i32, i32) {
    %c0_i32 = arith.constant 0 : i32
    %c0_i32_0 = arith.constant 0 : i32
    return %arg0, %arg1, %c0_i32 : i32, i32, i32
  }
  func.func @transform_2(%arg0: i32, %arg1: i32) -> (i32, i32) {
    %c0_i32 = arith.constant 0 : i32
    %c0_i32_0 = arith.constant 0 : i32
    %c0_i32_1 = arith.constant 0 : i32
    return %c0_i32, %c0_i32_0 : i32, i32
  }
  func.func @transform_3(%arg0: i32, %arg1: i32) -> (i32, i32) {
    %c0_i32 = arith.constant 0 : i32
    %c0_i32_0 = arith.constant 0 : i32
    %c0_i32_1 = arith.constant 0 : i32
    return %c0_i32, %c0_i32_0 : i32, i32
  }
  func.func @transform_4(%arg0: i32, %arg1: i32) -> (i32, i32) {
    %c0_i32 = arith.constant 0 : i32
    %c0_i32_0 = arith.constant 0 : i32
    %c0_i32_1 = arith.constant 0 : i32
    return %c0_i32, %c0_i32_0 : i32, i32
  }
  func.func @transform_5(%arg0: i32, %arg1: i32) -> (i32, i32) {
    %c0_i32 = arith.constant 0 : i32
    %c0_i32_0 = arith.constant 0 : i32
    %c0_i32_1 = arith.constant 0 : i32
    return %c0_i32, %c0_i32_0 : i32, i32
  }
  func.func @transform_6(%arg0: i32, %arg1: i32) -> (i32, i32, i32) {
    %c0_i32 = arith.constant 0 : i32
    %c0_i32_0 = arith.constant 0 : i32
    return %arg1, %arg0, %c0_i32 : i32, i32, i32
  }
}

module attributes {stable_mosaic.version = 11 : i64} {
  func.func @_rnn_kernel(%arg0: i32, %arg1: i32, %arg2: memref<8x8x4xf32, #tpu.memory_space<vmem>>, %arg3: memref<8x8x128xf32, #tpu.memory_space<vmem>>, %arg4: memref<128x128xf32, #tpu.memory_space<vmem>>, %arg5: memref<4x128xf32, #tpu.memory_space<vmem>>, %arg6: memref<128x8xf32, #tpu.memory_space<vmem>>, %arg7: memref<1x128xf32, #tpu.memory_space<vmem>>, %arg8: memref<8x8x8xf32, #tpu.memory_space<vmem>>, %arg9: memref<8x128xf32, #tpu.memory_space<vmem>>, %arg10: memref<8x128xf32, #tpu.memory_space<vmem>>, %arg11: memref<8x8x128xf32, #tpu.memory_space<vmem>>, %arg12: memref<8x8x128xf32, #tpu.memory_space<vmem>>) attributes {dimension_semantics = [#tpu.dimension_semantics<parallel>, #tpu.dimension_semantics<arbitrary>], iteration_bounds = array<i64: 1, 1>, scalar_prefetch = 0 : i64, scratch_operands = 4 : i64, tpu.core_type = #tpu.core_type<tc>, window_params = [{transform_indices = @transform_0, window_bounds = array<i64: 8, 8, 4>}, {transform_indices = @transform_1, window_bounds = array<i64: 8, 8, 128>}, {pipeline_mode = #tpu.pipeline_mode<synchronous>, transform_indices = @transform_2, window_bounds = array<i64: 128, 128>}, {pipeline_mode = #tpu.pipeline_mode<synchronous>, transform_indices = @transform_3, window_bounds = array<i64: 4, 128>}, {pipeline_mode = #tpu.pipeline_mode<synchronous>, transform_indices = @transform_4, window_bounds = array<i64: 128, 8>}, {pipeline_mode = #tpu.pipeline_mode<synchronous>, transform_indices = @transform_5, window_bounds = array<i64: 1, 128>}, {transform_indices = @transform_6, window_bounds = array<i64: 8, 8, 8>}]} {
    %c0_i32 = arith.constant 0 : i32
    %0 = arith.cmpi eq, %arg1, %c0_i32 : i32
    %1 = arith.extui %0 : i1 to i32
    %c0_i32_0 = arith.constant 0 : i32
    %2 = arith.cmpi ne, %1, %c0_i32_0 : i32
    scf.if %2 {
      %c0_109 = arith.constant 0 : index
      %c0_110 = arith.constant 0 : index
      %151 = vector.load %arg7[%c0_109, %c0_110] : memref<1x128xf32, #tpu.memory_space<vmem>>, vector<1x128xf32>
      %152 = vector.shape_cast %151 : vector<1x128xf32> to vector<1x128xf32>
      %153 = vector.broadcast %152 : vector<1x128xf32> to vector<8x128xf32>
      %c0_111 = arith.constant 0 : index
      %c0_112 = arith.constant 0 : index
      %154 = vector.load %arg9[%c0_111, %c0_112] : memref<8x128xf32, #tpu.memory_space<vmem>>, vector<8x128xf32>
      tpu.vector_store %arg9[%c0_111, %c0_112], %153 {strides = array<i32>} : memref<8x128xf32, #tpu.memory_space<vmem>>, vector<8x128xf32>,
      %155 = math.tanh %153 : vector<8x128xf32>
      %c0_113 = arith.constant 0 : index
      %c0_114 = arith.constant 0 : index
      %156 = vector.load %arg10[%c0_113, %c0_114] : memref<8x128xf32, #tpu.memory_space<vmem>>, vector<8x128xf32>
      tpu.vector_store %arg10[%c0_113, %c0_114], %155 {strides = array<i32>} : memref<8x128xf32, #tpu.memory_space<vmem>>, vector<8x128xf32>,
    } else {
    }
    %c0 = arith.constant 0 : index
    %c0_1 = arith.constant 0 : index
    %c0_2 = arith.constant 0 : index
    %3 = vector.load %arg3[%c0, %c0_1, %c0_2] : memref<8x8x128xf32, #tpu.memory_space<vmem>>, vector<8x8x128xf32>
    %cst = arith.constant 1.000000e-01 : f32
    %4 = vector.broadcast %cst : f32 to vector<8x8x128xf32>
    %5 = arith.mulf %4, %3 : vector<8x8x128xf32>
    %c0_3 = arith.constant 0 : index
    %c0_4 = arith.constant 0 : index
    %c0_5 = arith.constant 0 : index
    %6 = vector.load %arg2[%c0_3, %c0_4, %c0_5] : memref<8x8x4xf32, #tpu.memory_space<vmem>>, vector<8x8x4xf32>
    %7 = vector.shape_cast %6 : vector<8x8x4xf32> to vector<64x4xf32>
    %c0_6 = arith.constant 0 : index
    %c0_7 = arith.constant 0 : index
    %8 = vector.load %arg5[%c0_6, %c0_7] : memref<4x128xf32, #tpu.memory_space<vmem>>, vector<4x128xf32>
    %cst_8 = arith.constant dense<0.000000e+00> : vector<64x128xf32>
    %9 = tpu.matmul %7, %8, %cst_8 {dimension_numbers = #tpu.dot_dimension_numbers<[1], [0], [0], [1], [0, 0, 1, 1], [], []>} : vector<64x4xf32>, vector<4x128xf32>, vector<64x128xf32> -> vector<64x128xf32>
    %10 = vector.shape_cast %9 : vector<64x128xf32> to vector<8x8x128xf32>
    %11 = arith.addf %5, %10 : vector<8x8x128xf32>
    %12 = vector.extract_strided_slice %11 {offsets = [0, 0, 0], sizes = [8, 1, 128], strides = [1, 1, 1]} : vector<8x8x128xf32> to vector<8x1x128xf32>
    %13 = vector.shape_cast %12 : vector<8x1x128xf32> to vector<8x128xf32>
    %c0_9 = arith.constant 0 : index
    %c0_10 = arith.constant 0 : index
    %c0_11 = arith.constant 0 : index
    %14 = vector.load %arg12[%c0_9, %c0_10, %c0_11] : memref<8x8x128xf32, #tpu.memory_space<vmem>>, vector<1x8x128xf32>
    %15 = vector.shape_cast %14 : vector<1x8x128xf32> to vector<8x128xf32>
    %16 = vector.shape_cast %13 : vector<8x128xf32> to vector<1x8x128xf32>
    tpu.vector_store %arg12[%c0_9, %c0_10, %c0_11], %16 {strides = array<i32>} : memref<8x8x128xf32, #tpu.memory_space<vmem>>, vector<1x8x128xf32>,
    %17 = vector.extract_strided_slice %11 {offsets = [0, 1, 0], sizes = [8, 1, 128], strides = [1, 1, 1]} : vector<8x8x128xf32> to vector<8x1x128xf32>
    %18 = vector.shape_cast %17 : vector<8x1x128xf32> to vector<8x128xf32>
    %c1 = arith.constant 1 : index
    %c0_12 = arith.constant 0 : index
    %c0_13 = arith.constant 0 : index
    %19 = vector.load %arg12[%c1, %c0_12, %c0_13] : memref<8x8x128xf32, #tpu.memory_space<vmem>>, vector<1x8x128xf32>
    %20 = vector.shape_cast %19 : vector<1x8x128xf32> to vector<8x128xf32>
    %21 = vector.shape_cast %18 : vector<8x128xf32> to vector<1x8x128xf32>
    tpu.vector_store %arg12[%c1, %c0_12, %c0_13], %21 {strides = array<i32>} : memref<8x8x128xf32, #tpu.memory_space<vmem>>, vector<1x8x128xf32>,
    %22 = vector.extract_strided_slice %11 {offsets = [0, 2, 0], sizes = [8, 1, 128], strides = [1, 1, 1]} : vector<8x8x128xf32> to vector<8x1x128xf32>
    %23 = vector.shape_cast %22 : vector<8x1x128xf32> to vector<8x128xf32>
    %c2 = arith.constant 2 : index
    %c0_14 = arith.constant 0 : index
    %c0_15 = arith.constant 0 : index
    %24 = vector.load %arg12[%c2, %c0_14, %c0_15] : memref<8x8x128xf32, #tpu.memory_space<vmem>>, vector<1x8x128xf32>
    %25 = vector.shape_cast %24 : vector<1x8x128xf32> to vector<8x128xf32>
    %26 = vector.shape_cast %23 : vector<8x128xf32> to vector<1x8x128xf32>
    tpu.vector_store %arg12[%c2, %c0_14, %c0_15], %26 {strides = array<i32>} : memref<8x8x128xf32, #tpu.memory_space<vmem>>, vector<1x8x128xf32>,
    %27 = vector.extract_strided_slice %11 {offsets = [0, 3, 0], sizes = [8, 1, 128], strides = [1, 1, 1]} : vector<8x8x128xf32> to vector<8x1x128xf32>
    %28 = vector.shape_cast %27 : vector<8x1x128xf32> to vector<8x128xf32>
    %c3 = arith.constant 3 : index
    %c0_16 = arith.constant 0 : index
    %c0_17 = arith.constant 0 : index
    %29 = vector.load %arg12[%c3, %c0_16, %c0_17] : memref<8x8x128xf32, #tpu.memory_space<vmem>>, vector<1x8x128xf32>
    %30 = vector.shape_cast %29 : vector<1x8x128xf32> to vector<8x128xf32>
    %31 = vector.shape_cast %28 : vector<8x128xf32> to vector<1x8x128xf32>
    tpu.vector_store %arg12[%c3, %c0_16, %c0_17], %31 {strides = array<i32>} : memref<8x8x128xf32, #tpu.memory_space<vmem>>, vector<1x8x128xf32>,
    %32 = vector.extract_strided_slice %11 {offsets = [0, 4, 0], sizes = [8, 1, 128], strides = [1, 1, 1]} : vector<8x8x128xf32> to vector<8x1x128xf32>
    %33 = vector.shape_cast %32 : vector<8x1x128xf32> to vector<8x128xf32>
    %c4 = arith.constant 4 : index
    %c0_18 = arith.constant 0 : index
    %c0_19 = arith.constant 0 : index
    %34 = vector.load %arg12[%c4, %c0_18, %c0_19] : memref<8x8x128xf32, #tpu.memory_space<vmem>>, vector<1x8x128xf32>
    %35 = vector.shape_cast %34 : vector<1x8x128xf32> to vector<8x128xf32>
    %36 = vector.shape_cast %33 : vector<8x128xf32> to vector<1x8x128xf32>
    tpu.vector_store %arg12[%c4, %c0_18, %c0_19], %36 {strides = array<i32>} : memref<8x8x128xf32, #tpu.memory_space<vmem>>, vector<1x8x128xf32>,
    %37 = vector.extract_strided_slice %11 {offsets = [0, 5, 0], sizes = [8, 1, 128], strides = [1, 1, 1]} : vector<8x8x128xf32> to vector<8x1x128xf32>
    %38 = vector.shape_cast %37 : vector<8x1x128xf32> to vector<8x128xf32>
    %c5 = arith.constant 5 : index
    %c0_20 = arith.constant 0 : index
    %c0_21 = arith.constant 0 : index
    %39 = vector.load %arg12[%c5, %c0_20, %c0_21] : memref<8x8x128xf32, #tpu.memory_space<vmem>>, vector<1x8x128xf32>
    %40 = vector.shape_cast %39 : vector<1x8x128xf32> to vector<8x128xf32>
    %41 = vector.shape_cast %38 : vector<8x128xf32> to vector<1x8x128xf32>
    tpu.vector_store %arg12[%c5, %c0_20, %c0_21], %41 {strides = array<i32>} : memref<8x8x128xf32, #tpu.memory_space<vmem>>, vector<1x8x128xf32>,
    %42 = vector.extract_strided_slice %11 {offsets = [0, 6, 0], sizes = [8, 1, 128], strides = [1, 1, 1]} : vector<8x8x128xf32> to vector<8x1x128xf32>
    %43 = vector.shape_cast %42 : vector<8x1x128xf32> to vector<8x128xf32>
    %c6 = arith.constant 6 : index
    %c0_22 = arith.constant 0 : index
    %c0_23 = arith.constant 0 : index
    %44 = vector.load %arg12[%c6, %c0_22, %c0_23] : memref<8x8x128xf32, #tpu.memory_space<vmem>>, vector<1x8x128xf32>
    %45 = vector.shape_cast %44 : vector<1x8x128xf32> to vector<8x128xf32>
    %46 = vector.shape_cast %43 : vector<8x128xf32> to vector<1x8x128xf32>
    tpu.vector_store %arg12[%c6, %c0_22, %c0_23], %46 {strides = array<i32>} : memref<8x8x128xf32, #tpu.memory_space<vmem>>, vector<1x8x128xf32>,
    %47 = vector.extract_strided_slice %11 {offsets = [0, 7, 0], sizes = [8, 1, 128], strides = [1, 1, 1]} : vector<8x8x128xf32> to vector<8x1x128xf32>
    %48 = vector.shape_cast %47 : vector<8x1x128xf32> to vector<8x128xf32>
    %c7 = arith.constant 7 : index
    %c0_24 = arith.constant 0 : index
    %c0_25 = arith.constant 0 : index
    %49 = vector.load %arg12[%c7, %c0_24, %c0_25] : memref<8x8x128xf32, #tpu.memory_space<vmem>>, vector<1x8x128xf32>
    %50 = vector.shape_cast %49 : vector<1x8x128xf32> to vector<8x128xf32>
    %51 = vector.shape_cast %48 : vector<8x128xf32> to vector<1x8x128xf32>
    tpu.vector_store %arg12[%c7, %c0_24, %c0_25], %51 {strides = array<i32>} : memref<8x8x128xf32, #tpu.memory_space<vmem>>, vector<1x8x128xf32>,
    %c0_26 = arith.constant 0 : index
    %c0_27 = arith.constant 0 : index
    %52 = vector.load %arg4[%c0_26, %c0_27] : memref<128x128xf32, #tpu.memory_space<vmem>>, vector<128x128xf32>
    %c0_28 = arith.constant 0 : index
    %c0_29 = arith.constant 0 : index
    %53 = vector.load %arg9[%c0_28, %c0_29] : memref<8x128xf32, #tpu.memory_space<vmem>>, vector<8x128xf32>
    %c0_30 = arith.constant 0 : index
    %c0_31 = arith.constant 0 : index
    %54 = vector.load %arg10[%c0_30, %c0_31] : memref<8x128xf32, #tpu.memory_space<vmem>>, vector<8x128xf32>
    %cst_32 = arith.constant dense<0.000000e+00> : vector<8x128xf32>
    %55 = tpu.matmul %54, %52, %cst_32 {dimension_numbers = #tpu.dot_dimension_numbers<[1], [0], [0], [1], [0, 0, 1, 1], [], []>} : vector<8x128xf32>, vector<128x128xf32>, vector<8x128xf32> -> vector<8x128xf32>
    %cst_33 = arith.constant 8.000000e-01 : f32
    %56 = vector.broadcast %cst_33 : f32 to vector<8x128xf32>
    %57 = arith.mulf %56, %53 : vector<8x128xf32>
    %c0_34 = arith.constant 0 : index
    %c0_35 = arith.constant 0 : index
    %c0_36 = arith.constant 0 : index
    %58 = vector.load %arg12[%c0_34, %c0_35, %c0_36] : memref<8x8x128xf32, #tpu.memory_space<vmem>>, vector<1x8x128xf32>
    %59 = vector.shape_cast %58 : vector<1x8x128xf32> to vector<8x128xf32>
    %60 = arith.addf %57, %59 : vector<8x128xf32>
    %61 = arith.addf %60, %55 : vector<8x128xf32>
    %62 = math.tanh %61 : vector<8x128xf32>
    %c0_37 = arith.constant 0 : index
    %c0_38 = arith.constant 0 : index
    %c0_39 = arith.constant 0 : index
    %63 = vector.load %arg11[%c0_37, %c0_38, %c0_39] : memref<8x8x128xf32, #tpu.memory_space<vmem>>, vector<1x8x128xf32>
    %64 = vector.shape_cast %63 : vector<1x8x128xf32> to vector<8x128xf32>
    %65 = vector.shape_cast %62 : vector<8x128xf32> to vector<1x8x128xf32>
    tpu.vector_store %arg11[%c0_37, %c0_38, %c0_39], %65 {strides = array<i32>} : memref<8x8x128xf32, #tpu.memory_space<vmem>>, vector<1x8x128xf32>,
    %cst_40 = arith.constant dense<0.000000e+00> : vector<8x128xf32>
    %66 = tpu.matmul %62, %52, %cst_40 {dimension_numbers = #tpu.dot_dimension_numbers<[1], [0], [0], [1], [0, 0, 1, 1], [], []>} : vector<8x128xf32>, vector<128x128xf32>, vector<8x128xf32> -> vector<8x128xf32>
    %cst_41 = arith.constant 8.000000e-01 : f32
    %67 = vector.broadcast %cst_41 : f32 to vector<8x128xf32>
    %68 = arith.mulf %67, %61 : vector<8x128xf32>
    %c1_42 = arith.constant 1 : index
    %c0_43 = arith.constant 0 : index
    %c0_44 = arith.constant 0 : index
    %69 = vector.load %arg12[%c1_42, %c0_43, %c0_44] : memref<8x8x128xf32, #tpu.memory_space<vmem>>, vector<1x8x128xf32>
    %70 = vector.shape_cast %69 : vector<1x8x128xf32> to vector<8x128xf32>
    %71 = arith.addf %68, %70 : vector<8x128xf32>
    %72 = arith.addf %71, %66 : vector<8x128xf32>
    %73 = math.tanh %72 : vector<8x128xf32>
    %c1_45 = arith.constant 1 : index
    %c0_46 = arith.constant 0 : index
    %c0_47 = arith.constant 0 : index
    %74 = vector.load %arg11[%c1_45, %c0_46, %c0_47] : memref<8x8x128xf32, #tpu.memory_space<vmem>>, vector<1x8x128xf32>
    %75 = vector.shape_cast %74 : vector<1x8x128xf32> to vector<8x128xf32>
    %76 = vector.shape_cast %73 : vector<8x128xf32> to vector<1x8x128xf32>
    tpu.vector_store %arg11[%c1_45, %c0_46, %c0_47], %76 {strides = array<i32>} : memref<8x8x128xf32, #tpu.memory_space<vmem>>, vector<1x8x128xf32>,
    %cst_48 = arith.constant dense<0.000000e+00> : vector<8x128xf32>
    %77 = tpu.matmul %73, %52, %cst_48 {dimension_numbers = #tpu.dot_dimension_numbers<[1], [0], [0], [1], [0, 0, 1, 1], [], []>} : vector<8x128xf32>, vector<128x128xf32>, vector<8x128xf32> -> vector<8x128xf32>
    %cst_49 = arith.constant 8.000000e-01 : f32
    %78 = vector.broadcast %cst_49 : f32 to vector<8x128xf32>
    %79 = arith.mulf %78, %72 : vector<8x128xf32>
    %c2_50 = arith.constant 2 : index
    %c0_51 = arith.constant 0 : index
    %c0_52 = arith.constant 0 : index
    %80 = vector.load %arg12[%c2_50, %c0_51, %c0_52] : memref<8x8x128xf32, #tpu.memory_space<vmem>>, vector<1x8x128xf32>
    %81 = vector.shape_cast %80 : vector<1x8x128xf32> to vector<8x128xf32>
    %82 = arith.addf %79, %81 : vector<8x128xf32>
    %83 = arith.addf %82, %77 : vector<8x128xf32>
    %84 = math.tanh %83 : vector<8x128xf32>
    %c2_53 = arith.constant 2 : index
    %c0_54 = arith.constant 0 : index
    %c0_55 = arith.constant 0 : index
    %85 = vector.load %arg11[%c2_53, %c0_54, %c0_55] : memref<8x8x128xf32, #tpu.memory_space<vmem>>, vector<1x8x128xf32>
    %86 = vector.shape_cast %85 : vector<1x8x128xf32> to vector<8x128xf32>
    %87 = vector.shape_cast %84 : vector<8x128xf32> to vector<1x8x128xf32>
    tpu.vector_store %arg11[%c2_53, %c0_54, %c0_55], %87 {strides = array<i32>} : memref<8x8x128xf32, #tpu.memory_space<vmem>>, vector<1x8x128xf32>,
    %cst_56 = arith.constant dense<0.000000e+00> : vector<8x128xf32>
    %88 = tpu.matmul %84, %52, %cst_56 {dimension_numbers = #tpu.dot_dimension_numbers<[1], [0], [0], [1], [0, 0, 1, 1], [], []>} : vector<8x128xf32>, vector<128x128xf32>, vector<8x128xf32> -> vector<8x128xf32>
    %cst_57 = arith.constant 8.000000e-01 : f32
    %89 = vector.broadcast %cst_57 : f32 to vector<8x128xf32>
    %90 = arith.mulf %89, %83 : vector<8x128xf32>
    %c3_58 = arith.constant 3 : index
    %c0_59 = arith.constant 0 : index
    %c0_60 = arith.constant 0 : index
    %91 = vector.load %arg12[%c3_58, %c0_59, %c0_60] : memref<8x8x128xf32, #tpu.memory_space<vmem>>, vector<1x8x128xf32>
    %92 = vector.shape_cast %91 : vector<1x8x128xf32> to vector<8x128xf32>
    %93 = arith.addf %90, %92 : vector<8x128xf32>
    %94 = arith.addf %93, %88 : vector<8x128xf32>
    %95 = math.tanh %94 : vector<8x128xf32>
    %c3_61 = arith.constant 3 : index
    %c0_62 = arith.constant 0 : index
    %c0_63 = arith.constant 0 : index
    %96 = vector.load %arg11[%c3_61, %c0_62, %c0_63] : memref<8x8x128xf32, #tpu.memory_space<vmem>>, vector<1x8x128xf32>
    %97 = vector.shape_cast %96 : vector<1x8x128xf32> to vector<8x128xf32>
    %98 = vector.shape_cast %95 : vector<8x128xf32> to vector<1x8x128xf32>
    tpu.vector_store %arg11[%c3_61, %c0_62, %c0_63], %98 {strides = array<i32>} : memref<8x8x128xf32, #tpu.memory_space<vmem>>, vector<1x8x128xf32>,
    %cst_64 = arith.constant dense<0.000000e+00> : vector<8x128xf32>
    %99 = tpu.matmul %95, %52, %cst_64 {dimension_numbers = #tpu.dot_dimension_numbers<[1], [0], [0], [1], [0, 0, 1, 1], [], []>} : vector<8x128xf32>, vector<128x128xf32>, vector<8x128xf32> -> vector<8x128xf32>
    %cst_65 = arith.constant 8.000000e-01 : f32
    %100 = vector.broadcast %cst_65 : f32 to vector<8x128xf32>
    %101 = arith.mulf %100, %94 : vector<8x128xf32>
    %c4_66 = arith.constant 4 : index
    %c0_67 = arith.constant 0 : index
    %c0_68 = arith.constant 0 : index
    %102 = vector.load %arg12[%c4_66, %c0_67, %c0_68] : memref<8x8x128xf32, #tpu.memory_space<vmem>>, vector<1x8x128xf32>
    %103 = vector.shape_cast %102 : vector<1x8x128xf32> to vector<8x128xf32>
    %104 = arith.addf %101, %103 : vector<8x128xf32>
    %105 = arith.addf %104, %99 : vector<8x128xf32>
    %106 = math.tanh %105 : vector<8x128xf32>
    %c4_69 = arith.constant 4 : index
    %c0_70 = arith.constant 0 : index
    %c0_71 = arith.constant 0 : index
    %107 = vector.load %arg11[%c4_69, %c0_70, %c0_71] : memref<8x8x128xf32, #tpu.memory_space<vmem>>, vector<1x8x128xf32>
    %108 = vector.shape_cast %107 : vector<1x8x128xf32> to vector<8x128xf32>
    %109 = vector.shape_cast %106 : vector<8x128xf32> to vector<1x8x128xf32>
    tpu.vector_store %arg11[%c4_69, %c0_70, %c0_71], %109 {strides = array<i32>} : memref<8x8x128xf32, #tpu.memory_space<vmem>>, vector<1x8x128xf32>,
    %cst_72 = arith.constant dense<0.000000e+00> : vector<8x128xf32>
    %110 = tpu.matmul %106, %52, %cst_72 {dimension_numbers = #tpu.dot_dimension_numbers<[1], [0], [0], [1], [0, 0, 1, 1], [], []>} : vector<8x128xf32>, vector<128x128xf32>, vector<8x128xf32> -> vector<8x128xf32>
    %cst_73 = arith.constant 8.000000e-01 : f32
    %111 = vector.broadcast %cst_73 : f32 to vector<8x128xf32>
    %112 = arith.mulf %111, %105 : vector<8x128xf32>
    %c5_74 = arith.constant 5 : index
    %c0_75 = arith.constant 0 : index
    %c0_76 = arith.constant 0 : index
    %113 = vector.load %arg12[%c5_74, %c0_75, %c0_76] : memref<8x8x128xf32, #tpu.memory_space<vmem>>, vector<1x8x128xf32>
    %114 = vector.shape_cast %113 : vector<1x8x128xf32> to vector<8x128xf32>
    %115 = arith.addf %112, %114 : vector<8x128xf32>
    %116 = arith.addf %115, %110 : vector<8x128xf32>
    %117 = math.tanh %116 : vector<8x128xf32>
    %c5_77 = arith.constant 5 : index
    %c0_78 = arith.constant 0 : index
    %c0_79 = arith.constant 0 : index
    %118 = vector.load %arg11[%c5_77, %c0_78, %c0_79] : memref<8x8x128xf32, #tpu.memory_space<vmem>>, vector<1x8x128xf32>
    %119 = vector.shape_cast %118 : vector<1x8x128xf32> to vector<8x128xf32>
    %120 = vector.shape_cast %117 : vector<8x128xf32> to vector<1x8x128xf32>
    tpu.vector_store %arg11[%c5_77, %c0_78, %c0_79], %120 {strides = array<i32>} : memref<8x8x128xf32, #tpu.memory_space<vmem>>, vector<1x8x128xf32>,
    %cst_80 = arith.constant dense<0.000000e+00> : vector<8x128xf32>
    %121 = tpu.matmul %117, %52, %cst_80 {dimension_numbers = #tpu.dot_dimension_numbers<[1], [0], [0], [1], [0, 0, 1, 1], [], []>} : vector<8x128xf32>, vector<128x128xf32>, vector<8x128xf32> -> vector<8x128xf32>
    %cst_81 = arith.constant 8.000000e-01 : f32
    %122 = vector.broadcast %cst_81 : f32 to vector<8x128xf32>
    %123 = arith.mulf %122, %116 : vector<8x128xf32>
    %c6_82 = arith.constant 6 : index
    %c0_83 = arith.constant 0 : index
    %c0_84 = arith.constant 0 : index
    %124 = vector.load %arg12[%c6_82, %c0_83, %c0_84] : memref<8x8x128xf32, #tpu.memory_space<vmem>>, vector<1x8x128xf32>
    %125 = vector.shape_cast %124 : vector<1x8x128xf32> to vector<8x128xf32>
    %126 = arith.addf %123, %125 : vector<8x128xf32>
    %127 = arith.addf %126, %121 : vector<8x128xf32>
    %128 = math.tanh %127 : vector<8x128xf32>
    %c6_85 = arith.constant 6 : index
    %c0_86 = arith.constant 0 : index
    %c0_87 = arith.constant 0 : index
    %129 = vector.load %arg11[%c6_85, %c0_86, %c0_87] : memref<8x8x128xf32, #tpu.memory_space<vmem>>, vector<1x8x128xf32>
    %130 = vector.shape_cast %129 : vector<1x8x128xf32> to vector<8x128xf32>
    %131 = vector.shape_cast %128 : vector<8x128xf32> to vector<1x8x128xf32>
    tpu.vector_store %arg11[%c6_85, %c0_86, %c0_87], %131 {strides = array<i32>} : memref<8x8x128xf32, #tpu.memory_space<vmem>>, vector<1x8x128xf32>,
    %cst_88 = arith.constant dense<0.000000e+00> : vector<8x128xf32>
    %132 = tpu.matmul %128, %52, %cst_88 {dimension_numbers = #tpu.dot_dimension_numbers<[1], [0], [0], [1], [0, 0, 1, 1], [], []>} : vector<8x128xf32>, vector<128x128xf32>, vector<8x128xf32> -> vector<8x128xf32>
    %cst_89 = arith.constant 8.000000e-01 : f32
    %133 = vector.broadcast %cst_89 : f32 to vector<8x128xf32>
    %134 = arith.mulf %133, %127 : vector<8x128xf32>
    %c7_90 = arith.constant 7 : index
    %c0_91 = arith.constant 0 : index
    %c0_92 = arith.constant 0 : index
    %135 = vector.load %arg12[%c7_90, %c0_91, %c0_92] : memref<8x8x128xf32, #tpu.memory_space<vmem>>, vector<1x8x128xf32>
    %136 = vector.shape_cast %135 : vector<1x8x128xf32> to vector<8x128xf32>
    %137 = arith.addf %134, %136 : vector<8x128xf32>
    %138 = arith.addf %137, %132 : vector<8x128xf32>
    %139 = math.tanh %138 : vector<8x128xf32>
    %c7_93 = arith.constant 7 : index
    %c0_94 = arith.constant 0 : index
    %c0_95 = arith.constant 0 : index
    %140 = vector.load %arg11[%c7_93, %c0_94, %c0_95] : memref<8x8x128xf32, #tpu.memory_space<vmem>>, vector<1x8x128xf32>
    %141 = vector.shape_cast %140 : vector<1x8x128xf32> to vector<8x128xf32>
    %142 = vector.shape_cast %139 : vector<8x128xf32> to vector<1x8x128xf32>
    tpu.vector_store %arg11[%c7_93, %c0_94, %c0_95], %142 {strides = array<i32>} : memref<8x8x128xf32, #tpu.memory_space<vmem>>, vector<1x8x128xf32>,
    %c0_96 = arith.constant 0 : index
    %c0_97 = arith.constant 0 : index
    %143 = vector.load %arg9[%c0_96, %c0_97] : memref<8x128xf32, #tpu.memory_space<vmem>>, vector<8x128xf32>
    tpu.vector_store %arg9[%c0_96, %c0_97], %138 {strides = array<i32>} : memref<8x128xf32, #tpu.memory_space<vmem>>, vector<8x128xf32>,
    %c0_98 = arith.constant 0 : index
    %c0_99 = arith.constant 0 : index
    %144 = vector.load %arg10[%c0_98, %c0_99] : memref<8x128xf32, #tpu.memory_space<vmem>>, vector<8x128xf32>
    tpu.vector_store %arg10[%c0_98, %c0_99], %139 {strides = array<i32>} : memref<8x128xf32, #tpu.memory_space<vmem>>, vector<8x128xf32>,
    %c0_100 = arith.constant 0 : index
    %c0_101 = arith.constant 0 : index
    %c0_102 = arith.constant 0 : index
    %145 = vector.load %arg11[%c0_100, %c0_101, %c0_102] : memref<8x8x128xf32, #tpu.memory_space<vmem>>, vector<8x8x128xf32>
    %146 = vector.shape_cast %145 : vector<8x8x128xf32> to vector<64x128xf32>
    %c0_103 = arith.constant 0 : index
    %c0_104 = arith.constant 0 : index
    %147 = vector.load %arg6[%c0_103, %c0_104] : memref<128x8xf32, #tpu.memory_space<vmem>>, vector<128x8xf32>
    %cst_105 = arith.constant dense<0.000000e+00> : vector<64x8xf32>
    %148 = tpu.matmul %146, %147, %cst_105 {dimension_numbers = #tpu.dot_dimension_numbers<[1], [0], [0], [1], [0, 0, 1, 1], [], []>} : vector<64x128xf32>, vector<128x8xf32>, vector<64x8xf32> -> vector<64x8xf32>
    %149 = vector.shape_cast %148 : vector<64x8xf32> to vector<8x8x8xf32>
    %c0_106 = arith.constant 0 : index
    %c0_107 = arith.constant 0 : index
    %c0_108 = arith.constant 0 : index
    %150 = vector.load %arg8[%c0_106, %c0_107, %c0_108] : memref<8x8x8xf32, #tpu.memory_space<vmem>>, vector<8x8x8xf32>
    tpu.vector_store %arg8[%c0_106, %c0_107, %c0_108], %149 {strides = array<i32>} : memref<8x8x8xf32, #tpu.memory_space<vmem>>, vector<8x8x8xf32>,
    return
  }
  func.func @transform_0(%arg0: i32, %arg1: i32) -> (i32, i32, i32) {
    %c0_i32 = arith.constant 0 : i32
    %c0_i32_0 = arith.constant 0 : i32
    return %arg0, %arg1, %c0_i32 : i32, i32, i32
  }
  func.func @transform_1(%arg0: i32, %arg1: i32) -> (i32, i32, i32) {
    %c0_i32 = arith.constant 0 : i32
    %c0_i32_0 = arith.constant 0 : i32
    return %arg0, %arg1, %c0_i32 : i32, i32, i32
  }
  func.func @transform_2(%arg0: i32, %arg1: i32) -> (i32, i32) {
    %c0_i32 = arith.constant 0 : i32
    %c0_i32_0 = arith.constant 0 : i32
    %c0_i32_1 = arith.constant 0 : i32
    return %c0_i32, %c0_i32_0 : i32, i32
  }
  func.func @transform_3(%arg0: i32, %arg1: i32) -> (i32, i32) {
    %c0_i32 = arith.constant 0 : i32
    %c0_i32_0 = arith.constant 0 : i32
    %c0_i32_1 = arith.constant 0 : i32
    return %c0_i32, %c0_i32_0 : i32, i32
  }
  func.func @transform_4(%arg0: i32, %arg1: i32) -> (i32, i32) {
    %c0_i32 = arith.constant 0 : i32
    %c0_i32_0 = arith.constant 0 : i32
    %c0_i32_1 = arith.constant 0 : i32
    return %c0_i32, %c0_i32_0 : i32, i32
  }
  func.func @transform_5(%arg0: i32, %arg1: i32) -> (i32, i32) {
    %c0_i32 = arith.constant 0 : i32
    %c0_i32_0 = arith.constant 0 : i32
    %c0_i32_1 = arith.constant 0 : i32
    return %c0_i32, %c0_i32_0 : i32, i32
  }
  func.func @transform_6(%arg0: i32, %arg1: i32) -> (i32, i32, i32) {
    %c0_i32 = arith.constant 0 : i32
    %c0_i32_0 = arith.constant 0 : i32
    return %arg1, %arg0, %c0_i32 : i32, i32, i32
  }
}

</mosaic_0001>

<llo_original>
// kernel: tpu_custom_call.1
$region0: #{tpu_custom_call.1}
  #allocation0 [shape = 'u32[]', space=smem, size = 0x4, offset = 0x4, fixed_abs, tag = 'smem constant byte address 0x4 - core index']
  #allocation1 [shape = 'u32[144,128]{1,0:T(1,128)}', space=vmem, size = 0x12000, scoped, tag = 'internal scratch']
  #allocation2 [shape = 'f32[8,128]{1,0:T(8,128)}', space=vmem, size = 0x1000, scoped, tag = 'scratch operand']
  #allocation3 [shape = 'f32[8,128]{1,0:T(8,128)}', space=vmem, size = 0x1000, scoped, tag = 'scratch operand']
  #allocation4 [shape = 'f32[8,8,128]{2,1,0:T(8,128)}', space=vmem, size = 0x8000, scoped, tag = 'scratch operand']
  #allocation5 [shape = 'f32[8,8,128]{2,1,0:T(8,128)}', space=vmem, size = 0x8000, scoped, tag = 'scratch operand']
  %s0 = inlined_call_operand.vmem [shape: f32[8,8,4], index: 0, kind: input, shape index: {}]
  %s1 = inlined_call_operand.vmem [shape: f32[8,8,128], index: 1, kind: input, shape index: {}]
  %s2 = inlined_call_operand.vmem [shape: f32[128,128], index: 2, kind: input, shape index: {}]
  %s3 = inlined_call_operand.vmem [shape: f32[4,128], index: 3, kind: input, shape index: {}]
  %s4 = inlined_call_operand.vmem [shape: f32[128,8], index: 4, kind: input, shape index: {}]
  %s5 = inlined_call_operand.vmem [shape: f32[1,128], index: 5, kind: input, shape index: {}]
  %s6 = inlined_call_operand.hbm [shape: f32[8,8,8], index: 6, kind: output, shape index: {}]
  %s7 = sld [smem:[#allocation0]]
  $region38: #{tpu_custom_call.1} parent=0
    _
  %s9 = ssub.s32 1, %s7
  %s10 = scalar_select 0, %s9, %s7
  $region1: #{tpu_custom_call.1} parent=0
    #allocation6 [shape = 'u8[32768]{0}', space=vmem, size = 0x8000, scoped, tag = 'output window, operand 0, single buffered']
    #allocation7 [shape = 's32[1]{0}', space=sflag, size = 0x4, scoped, tag = 'scoped memory for tpu_custom_call.1']
    %11 = vsyncpa [#allocation7], 0
    // Predicated region
    $region2: #{tpu_custom_call.1} parent=1 // pred_check
      _
    $region3: #{tpu_custom_call.1} parent=1 // pred_check_branch
      %13 = sbr.rel (0) target = $region5
    $region4: #{tpu_custom_call.1} parent=1 // pred_region
      _
    $region5: #{tpu_custom_call.1} parent=1 // pred_fallthru
      _
    // Predicated region
    $region6: #{tpu_custom_call.1} parent=1 // pred_check
      _
    $region7: #{tpu_custom_call.1} parent=1 // pred_check_branch
      %15 = sbr.rel (0) target = $region9
    $region8: #{tpu_custom_call.1} parent=1 // pred_region
      _
    $region9: #{tpu_custom_call.1} parent=1 // pred_fallthru
      _
    // Predicated region
    $region10: #{tpu_custom_call.1} parent=1 // pred_check
      _
    $region11: #{tpu_custom_call.1} parent=1 // pred_check_branch
      %17 = sbr.rel (0) target = $region13
    $region12: #{tpu_custom_call.1} parent=1 // pred_region
      _
    $region13: #{tpu_custom_call.1} parent=1 // pred_fallthru
      _
    // Predicated region
    $region14: #{tpu_custom_call.1} parent=1 // pred_check
      _
    $region15: #{tpu_custom_call.1} parent=1 // pred_check_branch
      %19 = sbr.rel (0) target = $region17
    $region16: #{tpu_custom_call.1} parent=1 // pred_region
      _
    $region17: #{tpu_custom_call.1} parent=1 // pred_fallthru
      _
    // Predicated region
    $region18: #{tpu_custom_call.1} parent=1 // pred_check
      _
    $region19: #{tpu_custom_call.1} parent=1 // pred_check_branch
      %21 = sbr.rel (0) target = $region21
    $region20: #{tpu_custom_call.1} parent=1 // pred_region
      _
    $region21: #{tpu_custom_call.1} parent=1 // pred_fallthru
      _
    // Predicated region
    $region22: #{tpu_custom_call.1} parent=1 // pred_check
      _
    $region23: #{tpu_custom_call.1} parent=1 // pred_check_branch
      %23 = sbr.rel (0) target = $region25
    $region24: #{tpu_custom_call.1} parent=1 // pred_region
      _
    $region25: #{tpu_custom_call.1} parent=1 // pred_fallthru
      _
    %p24 = scmp.eq.s32.totalorder 0, 0
    // Predicated region
    $region26: #{tpu_custom_call.1} parent=1 // pred_check
      %p25 = pneg %p24
    $region27: #{tpu_custom_call.1} parent=1 // pred_check_branch
      %27 = sbr.rel (%p25) target = $region29
    $region28: #{tpu_custom_call.1} parent=1 // pred_region
      %v28 = vld [vmem:[%s5] sm:$0x1]
      %v30 = vlaneseq
      %v31 = vshrl.u32 %v30, 7
      %v32 = vsub.s32 0, %v31
      %v33 = vrot.slane %v28, %v32
      %35 = vst [vmem:[#allocation2] sm:$0xff] %v33
      %v36 = vtanh.pop %v33
      %37 = vst [vmem:[#allocation3] sm:$0xff] %v36
    $region29: #{tpu_custom_call.1} parent=1 // pred_fallthru
      _
    %v38 = vld [vmem:[%s1] sm:$0xff]
    %v39 = vld [vmem:[%s1 + $0x8] sm:$0xff]
    %v40 = vld [vmem:[%s1 + $0x10] sm:$0xff]
    %v41 = vld [vmem:[%s1 + $0x18] sm:$0xff]
    %v42 = vld [vmem:[%s1 + $0x20] sm:$0xff]
    %v43 = vld [vmem:[%s1 + $0x28] sm:$0xff]
    %v44 = vld [vmem:[%s1 + $0x30] sm:$0xff]
    %v45 = vld [vmem:[%s1 + $0x38] sm:$0xff]
    %v46 = vmul.f32 %v38, 0.1
    %v47 = vmul.f32 %v39, 0.1
    %v48 = vmul.f32 %v40, 0.1
    %v49 = vmul.f32 %v41, 0.1
    %v50 = vmul.f32 %v42, 0.1
    %v51 = vmul.f32 %v43, 0.1
    %v52 = vmul.f32 %v44, 0.1
    %v53 = vmul.f32 %v45, 0.1
    %v54 = vld [vmem:[%s0] sm:$0xff]
    %v55 = vld [vmem:[%s0 + $0x8] sm:$0xff]
    %v56 = vld [vmem:[%s0 + $0x10] sm:$0xff]
    %v57 = vld [vmem:[%s0 + $0x18] sm:$0xff]
    %v58 = vld [vmem:[%s0 + $0x20] sm:$0xff]
    %v59 = vld [vmem:[%s0 + $0x28] sm:$0xff]
    %v60 = vld [vmem:[%s0 + $0x30] sm:$0xff]
    %v61 = vld [vmem:[%s0 + $0x38] sm:$0xff]
    %v62 = vld [vmem:[%s3] sm:$0x1]
    %64 = vset.pattern.permute.xlu0 0
    %65 = vperm.xlu0 %64, %v54
    %v66 = vpop.permute.xlu0 %65
    %69 = vset.pattern.permute.xlu0 0
    %70 = vperm.xlu0 %69, %v55
    %v71 = vpop.permute.xlu0 %70
    %74 = vset.pattern.permute.xlu0 0
    %75 = vperm.xlu0 %74, %v56
    %v76 = vpop.permute.xlu0 %75
    %79 = vset.pattern.permute.xlu0 0
    %80 = vperm.xlu0 %79, %v57
    %v81 = vpop.permute.xlu0 %80
    %84 = vset.pattern.permute.xlu0 0
    %85 = vperm.xlu0 %84, %v58
    %v86 = vpop.permute.xlu0 %85
    %89 = vset.pattern.permute.xlu0 0
    %90 = vperm.xlu0 %89, %v59
    %v91 = vpop.permute.xlu0 %90
    %94 = vset.pattern.permute.xlu0 0
    %95 = vperm.xlu0 %94, %v60
    %v96 = vpop.permute.xlu0 %95
    %99 = vset.pattern.permute.xlu0 0
    %100 = vperm.xlu0 %99, %v61
    %v101 = vpop.permute.xlu0 %100
    %v103 = vlaneseq
    %v104 = vshrl.u32 %v103, 7
    %v105 = vsub.s32 0, %v104
    %v106 = vrot.slane %v62, %v105
    %v107 = vmul.f32 %v66, %v106
    %v108 = vmul.f32 %v71, %v106
    %v109 = vmul.f32 %v76, %v106
    %v110 = vmul.f32 %v81, %v106
    %v111 = vmul.f32 %v86, %v106
    %v112 = vmul.f32 %v91, %v106
    %v113 = vmul.f32 %v96, %v106
    %v114 = vmul.f32 %v101, %v106
    %v115 = vadd.f32 %v46, %v107
    %v116 = vadd.f32 %v47, %v108
    %v117 = vadd.f32 %v48, %v109
    %v118 = vadd.f32 %v49, %v110
    %v119 = vadd.f32 %v50, %v111
    %v120 = vadd.f32 %v51, %v112
    %v121 = vadd.f32 %v52, %v113
    %v122 = vadd.f32 %v53, %v114
    %v123 = vld [vmem:[%s3 + $0x1] sm:$0x1]
    %124 = vset.pattern.permute.xlu0 1
    %125 = vperm.xlu0 %124, %v54
    %v126 = vpop.permute.xlu0 %125
    %128 = vset.pattern.permute.xlu0 1
    %129 = vperm.xlu0 %128, %v55
    %v130 = vpop.permute.xlu0 %129
    %132 = vset.pattern.permute.xlu0 1
    %133 = vperm.xlu0 %132, %v56
    %v134 = vpop.permute.xlu0 %133
    %136 = vset.pattern.permute.xlu0 1
    %137 = vperm.xlu0 %136, %v57
    %v138 = vpop.permute.xlu0 %137
    %140 = vset.pattern.permute.xlu0 1
    %141 = vperm.xlu0 %140, %v58
    %v142 = vpop.permute.xlu0 %141
    %144 = vset.pattern.permute.xlu0 1
    %145 = vperm.xlu0 %144, %v59
    %v146 = vpop.permute.xlu0 %145
    %148 = vset.pattern.permute.xlu0 1
    %149 = vperm.xlu0 %148, %v60
    %v150 = vpop.permute.xlu0 %149
    %152 = vset.pattern.permute.xlu0 1
    %153 = vperm.xlu0 %152, %v61
    %v154 = vpop.permute.xlu0 %153
    %v156 = vlaneseq
    %v157 = vshrl.u32 %v156, 7
    %v158 = vsub.s32 0, %v157
    %v159 = vrot.slane %v123, %v158
    %v160 = vmul.f32 %v126, %v159
    %v161 = vmul.f32 %v130, %v159
    %v162 = vmul.f32 %v134, %v159
    %v163 = vmul.f32 %v138, %v159
    %v164 = vmul.f32 %v142, %v159
    %v165 = vmul.f32 %v146, %v159
    %v166 = vmul.f32 %v150, %v159
    %v167 = vmul.f32 %v154, %v159
    %v168 = vadd.f32 %v115, %v160
    %v169 = vadd.f32 %v116, %v161
    %v170 = vadd.f32 %v117, %v162
    %v171 = vadd.f32 %v118, %v163
    %v172 = vadd.f32 %v119, %v164
    %v173 = vadd.f32 %v120, %v165
    %v174 = vadd.f32 %v121, %v166
    %v175 = vadd.f32 %v122, %v167
    %v176 = vld [vmem:[%s3 + $0x2] sm:$0x1]
    %177 = vset.pattern.permute.xlu0 2
    %178 = vperm.xlu0 %177, %v54
    %v179 = vpop.permute.xlu0 %178
    %181 = vset.pattern.permute.xlu0 2
    %182 = vperm.xlu0 %181, %v55
    %v183 = vpop.permute.xlu0 %182
    %185 = vset.pattern.permute.xlu0 2
    %186 = vperm.xlu0 %185, %v56
    %v187 = vpop.permute.xlu0 %186
    %189 = vset.pattern.permute.xlu0 2
    %190 = vperm.xlu0 %189, %v57
    %v191 = vpop.permute.xlu0 %190
    %193 = vset.pattern.permute.xlu0 2
    %194 = vperm.xlu0 %193, %v58
    %v195 = vpop.permute.xlu0 %194
    %197 = vset.pattern.permute.xlu0 2
    %198 = vperm.xlu0 %197, %v59
    %v199 = vpop.permute.xlu0 %198
    %201 = vset.pattern.permute.xlu0 2
    %202 = vperm.xlu0 %201, %v60
    %v203 = vpop.permute.xlu0 %202
    %205 = vset.pattern.permute.xlu0 2
    %206 = vperm.xlu0 %205, %v61
    %v207 = vpop.permute.xlu0 %206
    %v209 = vlaneseq
    %v210 = vshrl.u32 %v209, 7
    %v211 = vsub.s32 0, %v210
    %v212 = vrot.slane %v176, %v211
    %v213 = vmul.f32 %v179, %v212
    %v214 = vmul.f32 %v183, %v212
    %v215 = vmul.f32 %v187, %v212
    %v216 = vmul.f32 %v191, %v212
    %v217 = vmul.f32 %v195, %v212
    %v218 = vmul.f32 %v199, %v212
    %v219 = vmul.f32 %v203, %v212
    %v220 = vmul.f32 %v207, %v212
    %v221 = vadd.f32 %v168, %v213
    %v222 = vadd.f32 %v169, %v214
    %v223 = vadd.f32 %v170, %v215
    %v224 = vadd.f32 %v171, %v216
    %v225 = vadd.f32 %v172, %v217
    %v226 = vadd.f32 %v173, %v218
    %v227 = vadd.f32 %v174, %v219
    %v228 = vadd.f32 %v175, %v220
    %v229 = vld [vmem:[%s3 + $0x3] sm:$0x1]
    %230 = vset.pattern.permute.xlu0 3
    %231 = vperm.xlu0 %230, %v54
    %v232 = vpop.permute.xlu0 %231
    %234 = vset.pattern.permute.xlu0 3
    %235 = vperm.xlu0 %234, %v55
    %v236 = vpop.permute.xlu0 %235
    %238 = vset.pattern.permute.xlu0 3
    %239 = vperm.xlu0 %238, %v56
    %v240 = vpop.permute.xlu0 %239
    %242 = vset.pattern.permute.xlu0 3
    %243 = vperm.xlu0 %242, %v57
    %v244 = vpop.permute.xlu0 %243
    %246 = vset.pattern.permute.xlu0 3
    %247 = vperm.xlu0 %246, %v58
    %v248 = vpop.permute.xlu0 %247
    %250 = vset.pattern.permute.xlu0 3
    %251 = vperm.xlu0 %250, %v59
    %v252 = vpop.permute.xlu0 %251
    %254 = vset.pattern.permute.xlu0 3
    %255 = vperm.xlu0 %254, %v60
    %v256 = vpop.permute.xlu0 %255
    %258 = vset.pattern.permute.xlu0 3
    %259 = vperm.xlu0 %258, %v61
    %v260 = vpop.permute.xlu0 %259
    %v262 = vlaneseq
    %v263 = vshrl.u32 %v262, 7
    %v264 = vsub.s32 0, %v263
    %v265 = vrot.slane %v229, %v264
    %v266 = vmul.f32 %v232, %v265
    %v267 = vmul.f32 %v236, %v265
    %v268 = vmul.f32 %v240, %v265
    %v269 = vmul.f32 %v244, %v265
    %v270 = vmul.f32 %v248, %v265
    %v271 = vmul.f32 %v252, %v265
    %v272 = vmul.f32 %v256, %v265
    %v273 = vmul.f32 %v260, %v265
    %v274 = vadd.f32 %v221, %v266
    %v275 = vadd.f32 %v222, %v267
    %v276 = vadd.f32 %v223, %v268
    %v277 = vadd.f32 %v224, %v269
    %v278 = vadd.f32 %v225, %v270
    %v279 = vadd.f32 %v226, %v271
    %v280 = vadd.f32 %v227, %v272
    %v281 = vadd.f32 %v228, %v273
    %v290 = vrot.slane %v275, 7
    %vm291 = vcmask 1041409
    %v292 = vsel %vm291, %v290, %v274
    %v293 = vrot.slane %v276, 6
    %vm294 = vcmask 1042434
    %v295 = vsel %vm294, %v293, %v292
    %v296 = vrot.slane %v277, 5
    %vm297 = vcmask 1043459
    %v298 = vsel %vm297, %v296, %v295
    %v299 = vrot.slane %v278, 4
    %vm300 = vcmask 1044484
    %v301 = vsel %vm300, %v299, %v298
    %v302 = vrot.slane %v279, 3
    %vm303 = vcmask 1045509
    %v304 = vsel %vm303, %v302, %v301
    %v305 = vrot.slane %v280, 2
    %vm306 = vcmask 1046534
    %v307 = vsel %vm306, %v305, %v304
    %v308 = vrot.slane %v281, 1
    %vm309 = vcmask 1047559
    %v310 = vsel %vm309, %v308, %v307
    %312 = vst [vmem:[#allocation5] sm:$0xff] %v310
    %v313 = vsel %vm294, %v290, %v274
    %v314 = vsel %vm297, %v293, %v313
    %v315 = vsel %vm300, %v296, %v314
    %v316 = vsel %vm303, %v299, %v315
    %v317 = vsel %vm306, %v302, %v316
    %v318 = vsel %vm309, %v305, %v317
    %s321 = scalar_lea.vmem [#allocation5], 8
    %322 = vst [vmem:[%s321 - $0x1] sm:$0xfe] %v318
    %323 = vst [vmem:[%s321 + $0x7] sm:$0x1] %v308
    %v324 = vsel %vm297, %v290, %v274
    %v325 = vsel %vm300, %v293, %v324
    %v326 = vsel %vm303, %v296, %v325
    %v327 = vsel %vm306, %v299, %v326
    %v328 = vsel %vm309, %v302, %v327
    %v329 = vsel %vm291, %v308, %v305
    %s332 = scalar_lea.vmem [#allocation5], 16
    %333 = vst [vmem:[%s332 - $0x2] sm:$0xfc] %v328
    %334 = vst [vmem:[%s332 + $0x6] sm:$0x3] %v329
    %v335 = vsel %vm300, %v290, %v274
    %v336 = vsel %vm303, %v293, %v335
    %v337 = vsel %vm306, %v296, %v336
    %v338 = vsel %vm309, %v299, %v337
    %v339 = vsel %vm291, %v305, %v302
    %v340 = vsel %vm294, %v308, %v339
    %s343 = scalar_lea.vmem [#allocation5], 24
    %344 = vst [vmem:[%s343 - $0x3] sm:$0xf8] %v338
    %345 = vst [vmem:[%s343 + $0x5] sm:$0x7] %v340
    %v346 = vsel %vm303, %v290, %v274
    %v347 = vsel %vm306, %v293, %v346
    %v348 = vsel %vm309, %v296, %v347
    %v349 = vsel %vm291, %v302, %v299
    %v350 = vsel %vm294, %v305, %v349
    %v351 = vsel %vm297, %v308, %v350
    %s354 = scalar_lea.vmem [#allocation5], 32
    %355 = vst [vmem:[%s354 - $0x4] sm:$0xf0] %v348
    %356 = vst [vmem:[%s354 + $0x4] sm:$0xf] %v351
    %v357 = vsel %vm306, %v290, %v274
    %v358 = vsel %vm309, %v293, %v357
    %v359 = vsel %vm291, %v299, %v296
    %v360 = vsel %vm294, %v302, %v359
    %v361 = vsel %vm297, %v305, %v360
    %v362 = vsel %vm300, %v308, %v361
    %s365 = scalar_lea.vmem [#allocation5], 40
    %366 = vst [vmem:[%s365 - $0x5] sm:$0xe0] %v358
    %367 = vst [vmem:[%s365 + $0x3] sm:$0x1f] %v362
    %v368 = vsel %vm309, %v290, %v274
    %v369 = vsel %vm291, %v296, %v293
    %v370 = vsel %vm294, %v299, %v369
    %v371 = vsel %vm297, %v302, %v370
    %v372 = vsel %vm300, %v305, %v371
    %v373 = vsel %vm303, %v308, %v372
    %s376 = scalar_lea.vmem [#allocation5], 48
    %377 = vst [vmem:[%s376 - $0x6] sm:$0xc0] %v368
    %378 = vst [vmem:[%s376 + $0x2] sm:$0x3f] %v373
    %v379 = vsel %vm291, %v293, %v290
    %v380 = vsel %vm294, %v296, %v379
    %v381 = vsel %vm297, %v299, %v380
    %v382 = vsel %vm300, %v302, %v381
    %v383 = vsel %vm303, %v305, %v382
    %v384 = vsel %vm306, %v308, %v383
    %s387 = scalar_lea.vmem [#allocation5], 56
    %388 = vst [vmem:[%s387 - $0x7] sm:$0x80] %v274
    %389 = vst [vmem:[%s387 + $0x1] sm:$0x7f] %v384
    %v390 = vld [vmem:[%s2] sm:$0xff]
    %v391 = vld [vmem:[%s2 + $0x8] sm:$0xff]
    %v392 = vld [vmem:[%s2 + $0x10] sm:$0xff]
    %v393 = vld [vmem:[%s2 + $0x18] sm:$0xff]
    %v394 = vld [vmem:[%s2 + $0x20] sm:$0xff]
    %v395 = vld [vmem:[%s2 + $0x28] sm:$0xff]
    %v396 = vld [vmem:[%s2 + $0x30] sm:$0xff]
    %v397 = vld [vmem:[%s2 + $0x38] sm:$0xff]
    %v398 = vld [vmem:[%s2 + $0x40] sm:$0xff]
    %v399 = vld [vmem:[%s2 + $0x48] sm:$0xff]
    %v400 = vld [vmem:[%s2 + $0x50] sm:$0xff]
    %v401 = vld [vmem:[%s2 + $0x58] sm:$0xff]
    %v402 = vld [vmem:[%s2 + $0x60] sm:$0xff]
    %v403 = vld [vmem:[%s2 + $0x68] sm:$0xff]
    %v404 = vld [vmem:[%s2 + $0x70] sm:$0xff]
    %v405 = vld [vmem:[%s2 + $0x78] sm:$0xff]
    %v406 = vld [vmem:[#allocation2] sm:$0xff]
    %v407 = vld [vmem:[#allocation3] sm:$0xff]
    %408 = vmatprep.subr.mxu0 0.0
    %409 = vmatpush1.msra.mxu0 %v390
    %410 = vmatprep.subr.mxu0 0.0
    %411 = vmatpush1.msra.mxu0 %v391
    %412 = vmatprep.subr.mxu0 0.0
    %413 = vmatpush1.msra.mxu0 %v392
    %414 = vmatprep.subr.mxu0 0.0
    %415 = vmatpush1.msra.mxu0 %v393
    %416 = vmatprep.subr.mxu0 0.0
    %417 = vmatpush1.msra.mxu0 %v394
    %418 = vmatprep.subr.mxu0 0.0
    %419 = vmatpush1.msra.mxu0 %v395
    %420 = vmatprep.subr.mxu0 0.0
    %421 = vmatpush1.msra.mxu0 %v396
    %422 = vmatprep.subr.mxu0 0.0
    %423 = vmatpush1.msra.mxu0 %v397
    %424 = vmatprep.subr.mxu0 0.0
    %425 = vmatpush1.msra.mxu0 %v398
    %426 = vmatprep.subr.mxu0 0.0
    %427 = vmatpush1.msra.mxu0 %v399
    %428 = vmatprep.subr.mxu0 0.0
    %429 = vmatpush1.msra.mxu0 %v400
    %430 = vmatprep.subr.mxu0 0.0
    %431 = vmatpush1.msra.mxu0 %v401
    %432 = vmatprep.subr.mxu0 0.0
    %433 = vmatpush1.msra.mxu0 %v402
    %434 = vmatprep.subr.mxu0 0.0
    %435 = vmatpush1.msra.mxu0 %v403
    %436 = vmatprep.subr.mxu0 0.0
    %437 = vmatpush1.msra.mxu0 %v404
    %438 = vmatprep.subr.mxu0 0.0
    %439 = vmatpush1.msra.mxu0 %v405
    %440 = vmatprep.subr.mxu0 0.0
    %441 = vmatpush1.msra.mxu0 0.0
    %442 = vmatprep.subr.mxu0 0.0
    %443 = vmatpush1.msra.mxu0 0.0
    %444 = vmatprep.subr.mxu0 0.0
    %445 = vmatpush1.msra.mxu0 0.0
    %446 = vmatprep.subr.mxu0 0.0
    %447 = vmatpush1.msra.mxu0 0.0
    %448 = vmatprep.subr.mxu0 0.0
    %449 = vmatpush1.msra.mxu0 0.0
    %450 = vmatprep.subr.mxu0 0.0
    %451 = vmatpush1.msra.mxu0 0.0
    %452 = vmatprep.subr.mxu0 0.0
    %453 = vmatpush1.msra.mxu0 0.0
    %454 = vmatprep.subr.mxu0 0.0
    %455 = vmatpush1.msra.mxu0 0.0
    %456 = vmatprep.subr.mxu0 0.0
    %457 = vmatpush1.msra.mxu0 0.0
    %458 = vmatprep.subr.mxu0 0.0
    %459 = vmatpush1.msra.mxu0 0.0
    %460 = vmatprep.subr.mxu0 0.0
    %461 = vmatpush1.msra.mxu0 0.0
    %462 = vmatprep.subr.mxu0 0.0
    %463 = vmatpush1.msra.mxu0 0.0
    %464 = vmatprep.subr.mxu0 0.0
    %465 = vmatpush1.msra.mxu0 0.0
    %466 = vmatprep.subr.mxu0 0.0
    %467 = vmatpush1.msra.mxu0 0.0
    %468 = vmatprep.subr.mxu0 0.0
    %469 = vmatpush1.msra.mxu0 0.0
    %470 = vmatprep.subr.mxu0 0.0
    %471 = vmatpush1.msra.mxu0 0.0
    %472 = vmatprep.mubr.f32.mxu0 0.0
    %473 = vmatmul.mubr.f32.gmra.mrb[0].mxu0 %v407
    %v474 = vpop.f32.mrb[0].mxu0
    %v475 = vadd.f32 0.0, %v474
    %v476 = vpop.f32.mrb[0].mxu0
    %477 = vdwg.mxu0
    %v478 = vmul.f32 %v406, 0.8
    %v479 = vld [vmem:[#allocation5] sm:$0xff]
    %v480 = vadd.f32 %v478, %v479
    %v481 = vadd.f32 %v480, %v475
    %v482 = vtanh.pop %v481
    %483 = vst [vmem:[#allocation4] sm:$0xff] %v482
    %484 = vmatprep.subr.mxu0 0.0
    %485 = vmatpush1.msra.mxu0 %v390
    %486 = vmatprep.subr.mxu0 0.0
    %487 = vmatpush1.msra.mxu0 %v391
    %488 = vmatprep.subr.mxu0 0.0
    %489 = vmatpush1.msra.mxu0 %v392
    %490 = vmatprep.subr.mxu0 0.0
    %491 = vmatpush1.msra.mxu0 %v393
    %492 = vmatprep.subr.mxu0 0.0
    %493 = vmatpush1.msra.mxu0 %v394
    %494 = vmatprep.subr.mxu0 0.0
    %495 = vmatpush1.msra.mxu0 %v395
    %496 = vmatprep.subr.mxu0 0.0
    %497 = vmatpush1.msra.mxu0 %v396
    %498 = vmatprep.subr.mxu0 0.0
    %499 = vmatpush1.msra.mxu0 %v397
    %500 = vmatprep.subr.mxu0 0.0
    %501 = vmatpush1.msra.mxu0 %v398
    %502 = vmatprep.subr.mxu0 0.0
    %503 = vmatpush1.msra.mxu0 %v399
    %504 = vmatprep.subr.mxu0 0.0
    %505 = vmatpush1.msra.mxu0 %v400
    %506 = vmatprep.subr.mxu0 0.0
    %507 = vmatpush1.msra.mxu0 %v401
    %508 = vmatprep.subr.mxu0 0.0
    %509 = vmatpush1.msra.mxu0 %v402
    %510 = vmatprep.subr.mxu0 0.0
    %511 = vmatpush1.msra.mxu0 %v403
    %512 = vmatprep.subr.mxu0 0.0
    %513 = vmatpush1.msra.mxu0 %v404
    %514 = vmatprep.subr.mxu0 0.0
    %515 = vmatpush1.msra.mxu0 %v405
    %516 = vmatprep.subr.mxu0 0.0
    %517 = vmatpush1.msra.mxu0 0.0
    %518 = vmatprep.subr.mxu0 0.0
    %519 = vmatpush1.msra.mxu0 0.0
    %520 = vmatprep.subr.mxu0 0.0
    %521 = vmatpush1.msra.mxu0 0.0
    %522 = vmatprep.subr.mxu0 0.0
    %523 = vmatpush1.msra.mxu0 0.0
    %524 = vmatprep.subr.mxu0 0.0
    %525 = vmatpush1.msra.mxu0 0.0
    %526 = vmatprep.subr.mxu0 0.0
    %527 = vmatpush1.msra.mxu0 0.0
    %528 = vmatprep.subr.mxu0 0.0
    %529 = vmatpush1.msra.mxu0 0.0
    %530 = vmatprep.subr.mxu0 0.0
    %531 = vmatpush1.msra.mxu0 0.0
    %532 = vmatprep.subr.mxu0 0.0
    %533 = vmatpush1.msra.mxu0 0.0
    %534 = vmatprep.subr.mxu0 0.0
    %535 = vmatpush1.msra.mxu0 0.0
    %536 = vmatprep.subr.mxu0 0.0
    %537 = vmatpush1.msra.mxu0 0.0
    %538 = vmatprep.subr.mxu0 0.0
    %539 = vmatpush1.msra.mxu0 0.0
    %540 = vmatprep.subr.mxu0 0.0
    %541 = vmatpush1.msra.mxu0 0.0
    %542 = vmatprep.subr.mxu0 0.0
    %543 = vmatpush1.msra.mxu0 0.0
    %544 = vmatprep.subr.mxu0 0.0
    %545 = vmatpush1.msra.mxu0 0.0
    %546 = vmatprep.subr.mxu0 0.0
    %547 = vmatpush1.msra.mxu0 0.0
    %548 = vmatprep.mubr.f32.mxu0 0.0
    %549 = vmatmul.mubr.f32.gmra.mrb[0].mxu0 %v482
    %v550 = vpop.f32.mrb[0].mxu0
    %v551 = vadd.f32 0.0, %v550
    %v552 = vpop.f32.mrb[0].mxu0
    %553 = vdwg.mxu0
    %v554 = vmul.f32 %v481, 0.8
    %v555 = vld [vmem:[%s321] sm:$0xff]
    %v556 = vadd.f32 %v554, %v555
    %v557 = vadd.f32 %v556, %v551
    %v558 = vtanh.pop %v557
    %s559 = scalar_lea.vmem [#allocation4], 8
    %560 = vst [vmem:[%s559] sm:$0xff] %v558
    %561 = vmatprep.subr.mxu0 0.0
    %562 = vmatpush1.msra.mxu0 %v390
    %563 = vmatprep.subr.mxu0 0.0
    %564 = vmatpush1.msra.mxu0 %v391
    %565 = vmatprep.subr.mxu0 0.0
    %566 = vmatpush1.msra.mxu0 %v392
    %567 = vmatprep.subr.mxu0 0.0
    %568 = vmatpush1.msra.mxu0 %v393
    %569 = vmatprep.subr.mxu0 0.0
    %570 = vmatpush1.msra.mxu0 %v394
    %571 = vmatprep.subr.mxu0 0.0
    %572 = vmatpush1.msra.mxu0 %v395
    %573 = vmatprep.subr.mxu0 0.0
    %574 = vmatpush1.msra.mxu0 %v396
    %575 = vmatprep.subr.mxu0 0.0
    %576 = vmatpush1.msra.mxu0 %v397
    %577 = vmatprep.subr.mxu0 0.0
    %578 = vmatpush1.msra.mxu0 %v398
    %579 = vmatprep.subr.mxu0 0.0
    %580 = vmatpush1.msra.mxu0 %v399
    %581 = vmatprep.subr.mxu0 0.0
    %582 = vmatpush1.msra.mxu0 %v400
    %583 = vmatprep.subr.mxu0 0.0
    %584 = vmatpush1.msra.mxu0 %v401
    %585 = vmatprep.subr.mxu0 0.0
    %586 = vmatpush1.msra.mxu0 %v402
    %587 = vmatprep.subr.mxu0 0.0
    %588 = vmatpush1.msra.mxu0 %v403
    %589 = vmatprep.subr.mxu0 0.0
    %590 = vmatpush1.msra.mxu0 %v404
    %591 = vmatprep.subr.mxu0 0.0
    %592 = vmatpush1.msra.mxu0 %v405
    %593 = vmatprep.subr.mxu0 0.0
    %594 = vmatpush1.msra.mxu0 0.0
    %595 = vmatprep.subr.mxu0 0.0
    %596 = vmatpush1.msra.mxu0 0.0
    %597 = vmatprep.subr.mxu0 0.0
    %598 = vmatpush1.msra.mxu0 0.0
    %599 = vmatprep.subr.mxu0 0.0
    %600 = vmatpush1.msra.mxu0 0.0
    %601 = vmatprep.subr.mxu0 0.0
    %602 = vmatpush1.msra.mxu0 0.0
    %603 = vmatprep.subr.mxu0 0.0
    %604 = vmatpush1.msra.mxu0 0.0
    %605 = vmatprep.subr.mxu0 0.0
    %606 = vmatpush1.msra.mxu0 0.0
    %607 = vmatprep.subr.mxu0 0.0
    %608 = vmatpush1.msra.mxu0 0.0
    %609 = vmatprep.subr.mxu0 0.0
    %610 = vmatpush1.msra.mxu0 0.0
    %611 = vmatprep.subr.mxu0 0.0
    %612 = vmatpush1.msra.mxu0 0.0
    %613 = vmatprep.subr.mxu0 0.0
    %614 = vmatpush1.msra.mxu0 0.0
    %615 = vmatprep.subr.mxu0 0.0
    %616 = vmatpush1.msra.mxu0 0.0
    %617 = vmatprep.subr.mxu0 0.0
    %618 = vmatpush1.msra.mxu0 0.0
    %619 = vmatprep.subr.mxu0 0.0
    %620 = vmatpush1.msra.mxu0 0.0
    %621 = vmatprep.subr.mxu0 0.0
    %622 = vmatpush1.msra.mxu0 0.0
    %623 = vmatprep.subr.mxu0 0.0
    %624 = vmatpush1.msra.mxu0 0.0
    %625 = vmatprep.mubr.f32.mxu0 0.0
    %626 = vmatmul.mubr.f32.gmra.mrb[0].mxu0 %v558
    %v627 = vpop.f32.mrb[0].mxu0
    %v628 = vadd.f32 0.0, %v627
    %v629 = vpop.f32.mrb[0].mxu0
    %630 = vdwg.mxu0
    %v631 = vmul.f32 %v557, 0.8
    %v632 = vld [vmem:[%s332] sm:$0xff]
    %v633 = vadd.f32 %v631, %v632
    %v634 = vadd.f32 %v633, %v628
    %v635 = vtanh.pop %v634
    %s636 = scalar_lea.vmem [#allocation4], 16
    %637 = vst [vmem:[%s636] sm:$0xff] %v635
    %638 = vmatprep.subr.mxu0 0.0
    %639 = vmatpush1.msra.mxu0 %v390
    %640 = vmatprep.subr.mxu0 0.0
    %641 = vmatpush1.msra.mxu0 %v391
    %642 = vmatprep.subr.mxu0 0.0
    %643 = vmatpush1.msra.mxu0 %v392
    %644 = vmatprep.subr.mxu0 0.0
    %645 = vmatpush1.msra.mxu0 %v393
    %646 = vmatprep.subr.mxu0 0.0
    %647 = vmatpush1.msra.mxu0 %v394
    %648 = vmatprep.subr.mxu0 0.0
    %649 = vmatpush1.msra.mxu0 %v395
    %650 = vmatprep.subr.mxu0 0.0
    %651 = vmatpush1.msra.mxu0 %v396
    %652 = vmatprep.subr.mxu0 0.0
    %653 = vmatpush1.msra.mxu0 %v397
    %654 = vmatprep.subr.mxu0 0.0
    %655 = vmatpush1.msra.mxu0 %v398
    %656 = vmatprep.subr.mxu0 0.0
    %657 = vmatpush1.msra.mxu0 %v399
    %658 = vmatprep.subr.mxu0 0.0
    %659 = vmatpush1.msra.mxu0 %v400
    %660 = vmatprep.subr.mxu0 0.0
    %661 = vmatpush1.msra.mxu0 %v401
    %662 = vmatprep.subr.mxu0 0.0
    %663 = vmatpush1.msra.mxu0 %v402
    %664 = vmatprep.subr.mxu0 0.0
    %665 = vmatpush1.msra.mxu0 %v403
    %666 = vmatprep.subr.mxu0 0.0
    %667 = vmatpush1.msra.mxu0 %v404
    %668 = vmatprep.subr.mxu0 0.0
    %669 = vmatpush1.msra.mxu0 %v405
    %670 = vmatprep.subr.mxu0 0.0
    %671 = vmatpush1.msra.mxu0 0.0
    %672 = vmatprep.subr.mxu0 0.0
    %673 = vmatpush1.msra.mxu0 0.0
    %674 = vmatprep.subr.mxu0 0.0
    %675 = vmatpush1.msra.mxu0 0.0
    %676 = vmatprep.subr.mxu0 0.0
    %677 = vmatpush1.msra.mxu0 0.0
    %678 = vmatprep.subr.mxu0 0.0
    %679 = vmatpush1.msra.mxu0 0.0
    %680 = vmatprep.subr.mxu0 0.0
    %681 = vmatpush1.msra.mxu0 0.0
    %682 = vmatprep.subr.mxu0 0.0
    %683 = vmatpush1.msra.mxu0 0.0
    %684 = vmatprep.subr.mxu0 0.0
    %685 = vmatpush1.msra.mxu0 0.0
    %686 = vmatprep.subr.mxu0 0.0
    %687 = vmatpush1.msra.mxu0 0.0
    %688 = vmatprep.subr.mxu0 0.0
    %689 = vmatpush1.msra.mxu0 0.0
    %690 = vmatprep.subr.mxu0 0.0
    %691 = vmatpush1.msra.mxu0 0.0
    %692 = vmatprep.subr.mxu0 0.0
    %693 = vmatpush1.msra.mxu0 0.0
    %694 = vmatprep.subr.mxu0 0.0
    %695 = vmatpush1.msra.mxu0 0.0
    %696 = vmatprep.subr.mxu0 0.0
    %697 = vmatpush1.msra.mxu0 0.0
    %698 = vmatprep.subr.mxu0 0.0
    %699 = vmatpush1.msra.mxu0 0.0
    %700 = vmatprep.subr.mxu0 0.0
    %701 = vmatpush1.msra.mxu0 0.0
    %702 = vmatprep.mubr.f32.mxu0 0.0
    %703 = vmatmul.mubr.f32.gmra.mrb[0].mxu0 %v635
    %v704 = vpop.f32.mrb[0].mxu0
    %v705 = vadd.f32 0.0, %v704
    %v706 = vpop.f32.mrb[0].mxu0
    %707 = vdwg.mxu0
    %v708 = vmul.f32 %v634, 0.8
    %v709 = vld [vmem:[%s343] sm:$0xff]
    %v710 = vadd.f32 %v708, %v709
    %v711 = vadd.f32 %v710, %v705
    %v712 = vtanh.pop %v711
    %s713 = scalar_lea.vmem [#allocation4], 24
    %714 = vst [vmem:[%s713] sm:$0xff] %v712
    %715 = vmatprep.subr.mxu0 0.0
    %716 = vmatpush1.msra.mxu0 %v390
    %717 = vmatprep.subr.mxu0 0.0
    %718 = vmatpush1.msra.mxu0 %v391
    %719 = vmatprep.subr.mxu0 0.0
    %720 = vmatpush1.msra.mxu0 %v392
    %721 = vmatprep.subr.mxu0 0.0
    %722 = vmatpush1.msra.mxu0 %v393
    %723 = vmatprep.subr.mxu0 0.0
    %724 = vmatpush1.msra.mxu0 %v394
    %725 = vmatprep.subr.mxu0 0.0
    %726 = vmatpush1.msra.mxu0 %v395
    %727 = vmatprep.subr.mxu0 0.0
    %728 = vmatpush1.msra.mxu0 %v396
    %729 = vmatprep.subr.mxu0 0.0
    %730 = vmatpush1.msra.mxu0 %v397
    %731 = vmatprep.subr.mxu0 0.0
    %732 = vmatpush1.msra.mxu0 %v398
    %733 = vmatprep.subr.mxu0 0.0
    %734 = vmatpush1.msra.mxu0 %v399
    %735 = vmatprep.subr.mxu0 0.0
    %736 = vmatpush1.msra.mxu0 %v400
    %737 = vmatprep.subr.mxu0 0.0
    %738 = vmatpush1.msra.mxu0 %v401
    %739 = vmatprep.subr.mxu0 0.0
    %740 = vmatpush1.msra.mxu0 %v402
    %741 = vmatprep.subr.mxu0 0.0
    %742 = vmatpush1.msra.mxu0 %v403
    %743 = vmatprep.subr.mxu0 0.0
    %744 = vmatpush1.msra.mxu0 %v404
    %745 = vmatprep.subr.mxu0 0.0
    %746 = vmatpush1.msra.mxu0 %v405
    %747 = vmatprep.subr.mxu0 0.0
    %748 = vmatpush1.msra.mxu0 0.0
    %749 = vmatprep.subr.mxu0 0.0
    %750 = vmatpush1.msra.mxu0 0.0
    %751 = vmatprep.subr.mxu0 0.0
    %752 = vmatpush1.msra.mxu0 0.0
    %753 = vmatprep.subr.mxu0 0.0
    %754 = vmatpush1.msra.mxu0 0.0
    %755 = vmatprep.subr.mxu0 0.0
    %756 = vmatpush1.msra.mxu0 0.0
    %757 = vmatprep.subr.mxu0 0.0
    %758 = vmatpush1.msra.mxu0 0.0
    %759 = vmatprep.subr.mxu0 0.0
    %760 = vmatpush1.msra.mxu0 0.0
    %761 = vmatprep.subr.mxu0 0.0
    %762 = vmatpush1.msra.mxu0 0.0
    %763 = vmatprep.subr.mxu0 0.0
    %764 = vmatpush1.msra.mxu0 0.0
    %765 = vmatprep.subr.mxu0 0.0
    %766 = vmatpush1.msra.mxu0 0.0
    %767 = vmatprep.subr.mxu0 0.0
    %768 = vmatpush1.msra.mxu0 0.0
    %769 = vmatprep.subr.mxu0 0.0
    %770 = vmatpush1.msra.mxu0 0.0
    %771 = vmatprep.subr.mxu0 0.0
    %772 = vmatpush1.msra.mxu0 0.0
    %773 = vmatprep.subr.mxu0 0.0
    %774 = vmatpush1.msra.mxu0 0.0
    %775 = vmatprep.subr.mxu0 0.0
    %776 = vmatpush1.msra.mxu0 0.0
    %777 = vmatprep.subr.mxu0 0.0
    %778 = vmatpush1.msra.mxu0 0.0
    %779 = vmatprep.mubr.f32.mxu0 0.0
    %780 = vmatmul.mubr.f32.gmra.mrb[0].mxu0 %v712
    %v781 = vpop.f32.mrb[0].mxu0
    %v782 = vadd.f32 0.0, %v781
    %v783 = vpop.f32.mrb[0].mxu0
    %784 = vdwg.mxu0
    %v785 = vmul.f32 %v711, 0.8
    %v786 = vld [vmem:[%s354] sm:$0xff]
    %v787 = vadd.f32 %v785, %v786
    %v788 = vadd.f32 %v787, %v782
    %v789 = vtanh.pop %v788
    %s790 = scalar_lea.vmem [#allocation4], 32
    %791 = vst [vmem:[%s790] sm:$0xff] %v789
    %792 = vmatprep.subr.mxu0 0.0
    %793 = vmatpush1.msra.mxu0 %v390
    %794 = vmatprep.subr.mxu0 0.0
    %795 = vmatpush1.msra.mxu0 %v391
    %796 = vmatprep.subr.mxu0 0.0
    %797 = vmatpush1.msra.mxu0 %v392
    %798 = vmatprep.subr.mxu0 0.0
    %799 = vmatpush1.msra.mxu0 %v393
    %800 = vmatprep.subr.mxu0 0.0
    %801 = vmatpush1.msra.mxu0 %v394
    %802 = vmatprep.subr.mxu0 0.0
    %803 = vmatpush1.msra.mxu0 %v395
    %804 = vmatprep.subr.mxu0 0.0
    %805 = vmatpush1.msra.mxu0 %v396
    %806 = vmatprep.subr.mxu0 0.0
    %807 = vmatpush1.msra.mxu0 %v397
    %808 = vmatprep.subr.mxu0 0.0
    %809 = vmatpush1.msra.mxu0 %v398
    %810 = vmatprep.subr.mxu0 0.0
    %811 = vmatpush1.msra.mxu0 %v399
    %812 = vmatprep.subr.mxu0 0.0
    %813 = vmatpush1.msra.mxu0 %v400
    %814 = vmatprep.subr.mxu0 0.0
    %815 = vmatpush1.msra.mxu0 %v401
    %816 = vmatprep.subr.mxu0 0.0
    %817 = vmatpush1.msra.mxu0 %v402
    %818 = vmatprep.subr.mxu0 0.0
    %819 = vmatpush1.msra.mxu0 %v403
    %820 = vmatprep.subr.mxu0 0.0
    %821 = vmatpush1.msra.mxu0 %v404
    %822 = vmatprep.subr.mxu0 0.0
    %823 = vmatpush1.msra.mxu0 %v405
    %824 = vmatprep.subr.mxu0 0.0
    %825 = vmatpush1.msra.mxu0 0.0
    %826 = vmatprep.subr.mxu0 0.0
    %827 = vmatpush1.msra.mxu0 0.0
    %828 = vmatprep.subr.mxu0 0.0
    %829 = vmatpush1.msra.mxu0 0.0
    %830 = vmatprep.subr.mxu0 0.0
    %831 = vmatpush1.msra.mxu0 0.0
    %832 = vmatprep.subr.mxu0 0.0
    %833 = vmatpush1.msra.mxu0 0.0
    %834 = vmatprep.subr.mxu0 0.0
    %835 = vmatpush1.msra.mxu0 0.0
    %836 = vmatprep.subr.mxu0 0.0
    %837 = vmatpush1.msra.mxu0 0.0
    %838 = vmatprep.subr.mxu0 0.0
    %839 = vmatpush1.msra.mxu0 0.0
    %840 = vmatprep.subr.mxu0 0.0
    %841 = vmatpush1.msra.mxu0 0.0
    %842 = vmatprep.subr.mxu0 0.0
    %843 = vmatpush1.msra.mxu0 0.0
    %844 = vmatprep.subr.mxu0 0.0
    %845 = vmatpush1.msra.mxu0 0.0
    %846 = vmatprep.subr.mxu0 0.0
    %847 = vmatpush1.msra.mxu0 0.0
    %848 = vmatprep.subr.mxu0 0.0
    %849 = vmatpush1.msra.mxu0 0.0
    %850 = vmatprep.subr.mxu0 0.0
    %851 = vmatpush1.msra.mxu0 0.0
    %852 = vmatprep.subr.mxu0 0.0
    %853 = vmatpush1.msra.mxu0 0.0
    %854 = vmatprep.subr.mxu0 0.0
    %855 = vmatpush1.msra.mxu0 0.0
    %856 = vmatprep.mubr.f32.mxu0 0.0
    %857 = vmatmul.mubr.f32.gmra.mrb[0].mxu0 %v789
    %v858 = vpop.f32.mrb[0].mxu0
    %v859 = vadd.f32 0.0, %v858
    %v860 = vpop.f32.mrb[0].mxu0
    %861 = vdwg.mxu0
    %v862 = vmul.f32 %v788, 0.8
    %v863 = vld [vmem:[%s365] sm:$0xff]
    %v864 = vadd.f32 %v862, %v863
    %v865 = vadd.f32 %v864, %v859
    %v866 = vtanh.pop %v865
    %s867 = scalar_lea.vmem [#allocation4], 40
    %868 = vst [vmem:[%s867] sm:$0xff] %v866
    %869 = vmatprep.subr.mxu0 0.0
    %870 = vmatpush1.msra.mxu0 %v390
    %871 = vmatprep.subr.mxu0 0.0
    %872 = vmatpush1.msra.mxu0 %v391
    %873 = vmatprep.subr.mxu0 0.0
    %874 = vmatpush1.msra.mxu0 %v392
    %875 = vmatprep.subr.mxu0 0.0
    %876 = vmatpush1.msra.mxu0 %v393
    %877 = vmatprep.subr.mxu0 0.0
    %878 = vmatpush1.msra.mxu0 %v394
    %879 = vmatprep.subr.mxu0 0.0
    %880 = vmatpush1.msra.mxu0 %v395
    %881 = vmatprep.subr.mxu0 0.0
    %882 = vmatpush1.msra.mxu0 %v396
    %883 = vmatprep.subr.mxu0 0.0
    %884 = vmatpush1.msra.mxu0 %v397
    %885 = vmatprep.subr.mxu0 0.0
    %886 = vmatpush1.msra.mxu0 %v398
    %887 = vmatprep.subr.mxu0 0.0
    %888 = vmatpush1.msra.mxu0 %v399
    %889 = vmatprep.subr.mxu0 0.0
    %890 = vmatpush1.msra.mxu0 %v400
    %891 = vmatprep.subr.mxu0 0.0
    %892 = vmatpush1.msra.mxu0 %v401
    %893 = vmatprep.subr.mxu0 0.0
    %894 = vmatpush1.msra.mxu0 %v402
    %895 = vmatprep.subr.mxu0 0.0
    %896 = vmatpush1.msra.mxu0 %v403
    %897 = vmatprep.subr.mxu0 0.0
    %898 = vmatpush1.msra.mxu0 %v404
    %899 = vmatprep.subr.mxu0 0.0
    %900 = vmatpush1.msra.mxu0 %v405
    %901 = vmatprep.subr.mxu0 0.0
    %902 = vmatpush1.msra.mxu0 0.0
    %903 = vmatprep.subr.mxu0 0.0
    %904 = vmatpush1.msra.mxu0 0.0
    %905 = vmatprep.subr.mxu0 0.0
    %906 = vmatpush1.msra.mxu0 0.0
    %907 = vmatprep.subr.mxu0 0.0
    %908 = vmatpush1.msra.mxu0 0.0
    %909 = vmatprep.subr.mxu0 0.0
    %910 = vmatpush1.msra.mxu0 0.0
    %911 = vmatprep.subr.mxu0 0.0
    %912 = vmatpush1.msra.mxu0 0.0
    %913 = vmatprep.subr.mxu0 0.0
    %914 = vmatpush1.msra.mxu0 0.0
    %915 = vmatprep.subr.mxu0 0.0
    %916 = vmatpush1.msra.mxu0 0.0
    %917 = vmatprep.subr.mxu0 0.0
    %918 = vmatpush1.msra.mxu0 0.0
    %919 = vmatprep.subr.mxu0 0.0
    %920 = vmatpush1.msra.mxu0 0.0
    %921 = vmatprep.subr.mxu0 0.0
    %922 = vmatpush1.msra.mxu0 0.0
    %923 = vmatprep.subr.mxu0 0.0
    %924 = vmatpush1.msra.mxu0 0.0
    %925 = vmatprep.subr.mxu0 0.0
    %926 = vmatpush1.msra.mxu0 0.0
    %927 = vmatprep.subr.mxu0 0.0
    %928 = vmatpush1.msra.mxu0 0.0
    %929 = vmatprep.subr.mxu0 0.0
    %930 = vmatpush1.msra.mxu0 0.0
    %931 = vmatprep.subr.mxu0 0.0
    %932 = vmatpush1.msra.mxu0 0.0
    %933 = vmatprep.mubr.f32.mxu0 0.0
    %934 = vmatmul.mubr.f32.gmra.mrb[0].mxu0 %v866
    %v935 = vpop.f32.mrb[0].mxu0
    %v936 = vadd.f32 0.0, %v935
    %v937 = vpop.f32.mrb[0].mxu0
    %938 = vdwg.mxu0
    %v939 = vmul.f32 %v865, 0.8
    %v940 = vld [vmem:[%s376] sm:$0xff]
    %v941 = vadd.f32 %v939, %v940
    %v942 = vadd.f32 %v941, %v936
    %v943 = vtanh.pop %v942
    %s944 = scalar_lea.vmem [#allocation4], 48
    %945 = vst [vmem:[%s944] sm:$0xff] %v943
    %946 = vmatprep.subr.mxu0 0.0
    %947 = vmatpush1.msra.mxu0 %v390
    %948 = vmatprep.subr.mxu0 0.0
    %949 = vmatpush1.msra.mxu0 %v391
    %950 = vmatprep.subr.mxu0 0.0
    %951 = vmatpush1.msra.mxu0 %v392
    %952 = vmatprep.subr.mxu0 0.0
    %953 = vmatpush1.msra.mxu0 %v393
    %954 = vmatprep.subr.mxu0 0.0
    %955 = vmatpush1.msra.mxu0 %v394
    %956 = vmatprep.subr.mxu0 0.0
    %957 = vmatpush1.msra.mxu0 %v395
    %958 = vmatprep.subr.mxu0 0.0
    %959 = vmatpush1.msra.mxu0 %v396
    %960 = vmatprep.subr.mxu0 0.0
    %961 = vmatpush1.msra.mxu0 %v397
    %962 = vmatprep.subr.mxu0 0.0
    %963 = vmatpush1.msra.mxu0 %v398
    %964 = vmatprep.subr.mxu0 0.0
    %965 = vmatpush1.msra.mxu0 %v399
    %966 = vmatprep.subr.mxu0 0.0
    %967 = vmatpush1.msra.mxu0 %v400
    %968 = vmatprep.subr.mxu0 0.0
    %969 = vmatpush1.msra.mxu0 %v401
    %970 = vmatprep.subr.mxu0 0.0
    %971 = vmatpush1.msra.mxu0 %v402
    %972 = vmatprep.subr.mxu0 0.0
    %973 = vmatpush1.msra.mxu0 %v403
    %974 = vmatprep.subr.mxu0 0.0
    %975 = vmatpush1.msra.mxu0 %v404
    %976 = vmatprep.subr.mxu0 0.0
    %977 = vmatpush1.msra.mxu0 %v405
    %978 = vmatprep.subr.mxu0 0.0
    %979 = vmatpush1.msra.mxu0 0.0
    %980 = vmatprep.subr.mxu0 0.0
    %981 = vmatpush1.msra.mxu0 0.0
    %982 = vmatprep.subr.mxu0 0.0
    %983 = vmatpush1.msra.mxu0 0.0
    %984 = vmatprep.subr.mxu0 0.0
    %985 = vmatpush1.msra.mxu0 0.0
    %986 = vmatprep.subr.mxu0 0.0
    %987 = vmatpush1.msra.mxu0 0.0
    %988 = vmatprep.subr.mxu0 0.0
    %989 = vmatpush1.msra.mxu0 0.0
    %990 = vmatprep.subr.mxu0 0.0
    %991 = vmatpush1.msra.mxu0 0.0
    %992 = vmatprep.subr.mxu0 0.0
    %993 = vmatpush1.msra.mxu0 0.0
    %994 = vmatprep.subr.mxu0 0.0
    %995 = vmatpush1.msra.mxu0 0.0
    %996 = vmatprep.subr.mxu0 0.0
    %997 = vmatpush1.msra.mxu0 0.0
    %998 = vmatprep.subr.mxu0 0.0
    %999 = vmatpush1.msra.mxu0 0.0
    %1000 = vmatprep.subr.mxu0 0.0
    %1001 = vmatpush1.msra.mxu0 0.0
    %1002 = vmatprep.subr.mxu0 0.0
    %1003 = vmatpush1.msra.mxu0 0.0
    %1004 = vmatprep.subr.mxu0 0.0
    %1005 = vmatpush1.msra.mxu0 0.0
    %1006 = vmatprep.subr.mxu0 0.0
    %1007 = vmatpush1.msra.mxu0 0.0
    %1008 = vmatprep.subr.mxu0 0.0
    %1009 = vmatpush1.msra.mxu0 0.0
    %1010 = vmatprep.mubr.f32.mxu0 0.0
    %1011 = vmatmul.mubr.f32.gmra.mrb[0].mxu0 %v943
    %v1012 = vpop.f32.mrb[0].mxu0
    %v1013 = vadd.f32 0.0, %v1012
    %v1014 = vpop.f32.mrb[0].mxu0
    %1015 = vdwg.mxu0
    %v1016 = vmul.f32 %v942, 0.8
    %v1017 = vld [vmem:[%s387] sm:$0xff]
    %v1018 = vadd.f32 %v1016, %v1017
    %v1019 = vadd.f32 %v1018, %v1013
    %v1020 = vtanh.pop %v1019
    %s1021 = scalar_lea.vmem [#allocation4], 56
    %1022 = vst [vmem:[%s1021] sm:$0xff] %v1020
    %1023 = vst [vmem:[#allocation2] sm:$0xff] %v1019
    %1024 = vst [vmem:[#allocation3] sm:$0xff] %v1020
    %v1025 = vld [vmem:[#allocation4] sm:$0xff]
    %v1026 = vld [vmem:[#allocation4 + $0x8] sm:$0xff]
    %v1027 = vld [vmem:[#allocation4 + $0x10] sm:$0xff]
    %v1028 = vld [vmem:[#allocation4 + $0x18] sm:$0xff]
    %v1029 = vld [vmem:[#allocation4 + $0x20] sm:$0xff]
    %v1030 = vld [vmem:[#allocation4 + $0x28] sm:$0xff]
    %v1031 = vld [vmem:[#allocation4 + $0x30] sm:$0xff]
    %v1032 = vld [vmem:[#allocation4 + $0x38] sm:$0xff]
    %v1033 = vld [vmem:[%s4] sm:$0xff]
    %v1034 = vld [vmem:[%s4 + $0x8] sm:$0xff]
    %v1035 = vld [vmem:[%s4 + $0x10] sm:$0xff]
    %v1036 = vld [vmem:[%s4 + $0x18] sm:$0xff]
    %v1037 = vld [vmem:[%s4 + $0x20] sm:$0xff]
    %v1038 = vld [vmem:[%s4 + $0x28] sm:$0xff]
    %v1039 = vld [vmem:[%s4 + $0x30] sm:$0xff]
    %v1040 = vld [vmem:[%s4 + $0x38] sm:$0xff]
    %v1041 = vld [vmem:[%s4 + $0x40] sm:$0xff]
    %v1042 = vld [vmem:[%s4 + $0x48] sm:$0xff]
    %v1043 = vld [vmem:[%s4 + $0x50] sm:$0xff]
    %v1044 = vld [vmem:[%s4 + $0x58] sm:$0xff]
    %v1045 = vld [vmem:[%s4 + $0x60] sm:$0xff]
    %v1046 = vld [vmem:[%s4 + $0x68] sm:$0xff]
    %v1047 = vld [vmem:[%s4 + $0x70] sm:$0xff]
    %v1048 = vld [vmem:[%s4 + $0x78] sm:$0xff]
    %1049 = vmatprep.subr.mxu0 0.0
    %1050 = vmatpush1.msra.mxu0 %v1033
    %1051 = vmatprep.subr.mxu0 0.0
    %1052 = vmatpush1.msra.mxu0 %v1034
    %1053 = vmatprep.subr.mxu0 0.0
    %1054 = vmatpush1.msra.mxu0 %v1035
    %1055 = vmatprep.subr.mxu0 0.0
    %1056 = vmatpush1.msra.mxu0 %v1036
    %1057 = vmatprep.subr.mxu0 0.0
    %1058 = vmatpush1.msra.mxu0 %v1037
    %1059 = vmatprep.subr.mxu0 0.0
    %1060 = vmatpush1.msra.mxu0 %v1038
    %1061 = vmatprep.subr.mxu0 0.0
    %1062 = vmatpush1.msra.mxu0 %v1039
    %1063 = vmatprep.subr.mxu0 0.0
    %1064 = vmatpush1.msra.mxu0 %v1040
    %1065 = vmatprep.subr.mxu0 0.0
    %1066 = vmatpush1.msra.mxu0 %v1041
    %1067 = vmatprep.subr.mxu0 0.0
    %1068 = vmatpush1.msra.mxu0 %v1042
    %1069 = vmatprep.subr.mxu0 0.0
    %1070 = vmatpush1.msra.mxu0 %v1043
    %1071 = vmatprep.subr.mxu0 0.0
    %1072 = vmatpush1.msra.mxu0 %v1044
    %1073 = vmatprep.subr.mxu0 0.0
    %1074 = vmatpush1.msra.mxu0 %v1045
    %1075 = vmatprep.subr.mxu0 0.0
    %1076 = vmatpush1.msra.mxu0 %v1046
    %1077 = vmatprep.subr.mxu0 0.0
    %1078 = vmatpush1.msra.mxu0 %v1047
    %1079 = vmatprep.subr.mxu0 0.0
    %1080 = vmatpush1.msra.mxu0 %v1048
    %1081 = vmatprep.subr.mxu0 0.0
    %1082 = vmatpush1.msra.mxu0 0.0
    %1083 = vmatprep.subr.mxu0 0.0
    %1084 = vmatpush1.msra.mxu0 0.0
    %1085 = vmatprep.subr.mxu0 0.0
    %1086 = vmatpush1.msra.mxu0 0.0
    %1087 = vmatprep.subr.mxu0 0.0
    %1088 = vmatpush1.msra.mxu0 0.0
    %1089 = vmatprep.subr.mxu0 0.0
    %1090 = vmatpush1.msra.mxu0 0.0
    %1091 = vmatprep.subr.mxu0 0.0
    %1092 = vmatpush1.msra.mxu0 0.0
    %1093 = vmatprep.subr.mxu0 0.0
    %1094 = vmatpush1.msra.mxu0 0.0
    %1095 = vmatprep.subr.mxu0 0.0
    %1096 = vmatpush1.msra.mxu0 0.0
    %1097 = vmatprep.subr.mxu0 0.0
    %1098 = vmatpush1.msra.mxu0 0.0
    %1099 = vmatprep.subr.mxu0 0.0
    %1100 = vmatpush1.msra.mxu0 0.0
    %1101 = vmatprep.subr.mxu0 0.0
    %1102 = vmatpush1.msra.mxu0 0.0
    %1103 = vmatprep.subr.mxu0 0.0
    %1104 = vmatpush1.msra.mxu0 0.0
    %1105 = vmatprep.subr.mxu0 0.0
    %1106 = vmatpush1.msra.mxu0 0.0
    %1107 = vmatprep.subr.mxu0 0.0
    %1108 = vmatpush1.msra.mxu0 0.0
    %1109 = vmatprep.subr.mxu0 0.0
    %1110 = vmatpush1.msra.mxu0 0.0
    %1111 = vmatprep.subr.mxu0 0.0
    %1112 = vmatpush1.msra.mxu0 0.0
    %1113 = vmatprep.mubr.f32.mxu0 0.0
    %1114 = vmatmul.mubr.f32.gmra.mrb[0].mxu0 %v1025
    %v1115 = vpop.f32.mrb[0].mxu0
    %v1116 = vadd.f32 0.0, %v1115
    %v1117 = vpop.f32.mrb[0].mxu0
    %1118 = vmatprep.mubr.f32.mxu0 0.0
    %1119 = vmatmul.mubr.f32.gmra.mrb[0].mxu0 %v1026
    %v1120 = vpop.f32.mrb[0].mxu0
    %v1121 = vadd.f32 0.0, %v1120
    %v1122 = vpop.f32.mrb[0].mxu0
    %1123 = vmatprep.mubr.f32.mxu0 0.0
    %1124 = vmatmul.mubr.f32.gmra.mrb[0].mxu0 %v1027
    %v1125 = vpop.f32.mrb[0].mxu0
    %v1126 = vadd.f32 0.0, %v1125
    %v1127 = vpop.f32.mrb[0].mxu0
    %1128 = vmatprep.mubr.f32.mxu0 0.0
    %1129 = vmatmul.mubr.f32.gmra.mrb[0].mxu0 %v1028
    %v1130 = vpop.f32.mrb[0].mxu0
    %v1131 = vadd.f32 0.0, %v1130
    %v1132 = vpop.f32.mrb[0].mxu0
    %1133 = vmatprep.mubr.f32.mxu0 0.0
    %1134 = vmatmul.mubr.f32.gmra.mrb[0].mxu0 %v1029
    %v1135 = vpop.f32.mrb[0].mxu0
    %v1136 = vadd.f32 0.0, %v1135
    %v1137 = vpop.f32.mrb[0].mxu0
    %1138 = vmatprep.mubr.f32.mxu0 0.0
    %1139 = vmatmul.mubr.f32.gmra.mrb[0].mxu0 %v1030
    %v1140 = vpop.f32.mrb[0].mxu0
    %v1141 = vadd.f32 0.0, %v1140
    %v1142 = vpop.f32.mrb[0].mxu0
    %1143 = vmatprep.mubr.f32.mxu0 0.0
    %1144 = vmatmul.mubr.f32.gmra.mrb[0].mxu0 %v1031
    %v1145 = vpop.f32.mrb[0].mxu0
    %v1146 = vadd.f32 0.0, %v1145
    %v1147 = vpop.f32.mrb[0].mxu0
    %1148 = vmatprep.mubr.f32.mxu0 0.0
    %1149 = vmatmul.mubr.f32.gmra.mrb[0].mxu0 %v1032
    %v1150 = vpop.f32.mrb[0].mxu0
    %v1151 = vadd.f32 0.0, %v1150
    %v1152 = vpop.f32.mrb[0].mxu0
    %1153 = vdwg.mxu0
    %vm1154 = vcmask 64512
    %1155 = vst.msk [vmem:[#allocation6] sm:$0xff] %vm1154, %v1116
    %1156 = vst.msk [vmem:[#allocation6 + $0x8] sm:$0xff] %vm1154, %v1121
    %1157 = vst.msk [vmem:[#allocation6 + $0x10] sm:$0xff] %vm1154, %v1126
    %1158 = vst.msk [vmem:[#allocation6 + $0x18] sm:$0xff] %vm1154, %v1131
    %1159 = vst.msk [vmem:[#allocation6 + $0x20] sm:$0xff] %vm1154, %v1136
    %1160 = vst.msk [vmem:[#allocation6 + $0x28] sm:$0xff] %vm1154, %v1141
    %1161 = vst.msk [vmem:[#allocation6 + $0x30] sm:$0xff] %vm1154, %v1146
    %1162 = vst.msk [vmem:[#allocation6 + $0x38] sm:$0xff] %vm1154, %v1151
    // Predicated region
    $region30: #{tpu_custom_call.1} parent=1 // pred_check
      _
    $region31: #{tpu_custom_call.1} parent=1 // pred_check_branch
      %1164 = sbr.rel (0) target = $region33
    $region32: #{tpu_custom_call.1} parent=1 // pred_region
      %s1166 = ssub.s32 1024, 1024
      %1167 = vsyncadd [#allocation7], %s1166
      %s1168 = sshll.u32 [#allocation6], 4
      %s1169 = int_to_ptr.vmem [resolvable:$true] %s1168
      %1174 = dma.vmem_to_hbm [thread:$0]  %s1169, 1024, %s6, [#allocation7], 128, 128, 8
    $region33: #{tpu_custom_call.1} parent=1 // pred_fallthru
      _
    // Predicated region
    $region34: #{tpu_custom_call.1} parent=1 // pred_check
      _
    $region35: #{tpu_custom_call.1} parent=1 // pred_check_branch
      %1176 = sbr.rel (0) target = $region37
    $region36: #{tpu_custom_call.1} parent=1 // pred_region
      %1177 = dma.done [#allocation7], 1024
    $region37: #{tpu_custom_call.1} parent=1 // pred_fallthru
      _
    %1178 = vsyncpa [#allocation7], 1

// kernel: tpu_custom_call.1
$region0: #{tpu_custom_call.1}
  #allocation0 [shape = 'u32[]', space=smem, size = 0x4, offset = 0x4, fixed_abs, tag = 'smem constant byte address 0x4 - core index']
  #allocation1 [shape = 'u32[144,128]{1,0:T(1,128)}', space=vmem, size = 0x12000, scoped, tag = 'internal scratch']
  #allocation2 [shape = 'f32[8,128]{1,0:T(8,128)}', space=vmem, size = 0x1000, scoped, tag = 'scratch operand']
  #allocation3 [shape = 'f32[8,128]{1,0:T(8,128)}', space=vmem, size = 0x1000, scoped, tag = 'scratch operand']
  #allocation4 [shape = 'f32[8,8,128]{2,1,0:T(8,128)}', space=vmem, size = 0x8000, scoped, tag = 'scratch operand']
  #allocation5 [shape = 'f32[8,8,128]{2,1,0:T(8,128)}', space=vmem, size = 0x8000, scoped, tag = 'scratch operand']
  %s0 = inlined_call_operand.vmem [shape: f32[8,8,4], index: 0, kind: input, shape index: {}]
  %s1 = inlined_call_operand.vmem [shape: f32[8,8,128], index: 1, kind: input, shape index: {}]
  %s2 = inlined_call_operand.vmem [shape: f32[128,128], index: 2, kind: input, shape index: {}]
  %s3 = inlined_call_operand.vmem [shape: f32[4,128], index: 3, kind: input, shape index: {}]
  %s4 = inlined_call_operand.vmem [shape: f32[128,8], index: 4, kind: input, shape index: {}]
  %s5 = inlined_call_operand.vmem [shape: f32[1,128], index: 5, kind: input, shape index: {}]
  %s6 = inlined_call_operand.hbm [shape: f32[8,8,8], index: 6, kind: output, shape index: {}]
  %s7 = sld [smem:[#allocation0]]
  $region38: #{tpu_custom_call.1} parent=0
    _
  %s9 = ssub.s32 1, %s7
  %s10 = scalar_select 0, %s9, %s7
  $region1: #{tpu_custom_call.1} parent=0
    #allocation6 [shape = 'u8[32768]{0}', space=vmem, size = 0x8000, scoped, tag = 'output window, operand 0, single buffered']
    #allocation7 [shape = 's32[1]{0}', space=sflag, size = 0x4, scoped, tag = 'scoped memory for tpu_custom_call.1']
    %11 = vsyncpa [#allocation7], 0
    // Predicated region
    $region2: #{tpu_custom_call.1} parent=1 // pred_check
      _
    $region3: #{tpu_custom_call.1} parent=1 // pred_check_branch
      %13 = sbr.rel (0) target = $region5
    $region4: #{tpu_custom_call.1} parent=1 // pred_region
      _
    $region5: #{tpu_custom_call.1} parent=1 // pred_fallthru
      _
    // Predicated region
    $region6: #{tpu_custom_call.1} parent=1 // pred_check
      _
    $region7: #{tpu_custom_call.1} parent=1 // pred_check_branch
      %15 = sbr.rel (0) target = $region9
    $region8: #{tpu_custom_call.1} parent=1 // pred_region
      _
    $region9: #{tpu_custom_call.1} parent=1 // pred_fallthru
      _
    // Predicated region
    $region10: #{tpu_custom_call.1} parent=1 // pred_check
      _
    $region11: #{tpu_custom_call.1} parent=1 // pred_check_branch
      %17 = sbr.rel (0) target = $region13
    $region12: #{tpu_custom_call.1} parent=1 // pred_region
      _
    $region13: #{tpu_custom_call.1} parent=1 // pred_fallthru
      _
    // Predicated region
    $region14: #{tpu_custom_call.1} parent=1 // pred_check
      _
    $region15: #{tpu_custom_call.1} parent=1 // pred_check_branch
      %19 = sbr.rel (0) target = $region17
    $region16: #{tpu_custom_call.1} parent=1 // pred_region
      _
    $region17: #{tpu_custom_call.1} parent=1 // pred_fallthru
      _
    // Predicated region
    $region18: #{tpu_custom_call.1} parent=1 // pred_check
      _
    $region19: #{tpu_custom_call.1} parent=1 // pred_check_branch
      %21 = sbr.rel (0) target = $region21
    $region20: #{tpu_custom_call.1} parent=1 // pred_region
      _
    $region21: #{tpu_custom_call.1} parent=1 // pred_fallthru
      _
    // Predicated region
    $region22: #{tpu_custom_call.1} parent=1 // pred_check
      _
    $region23: #{tpu_custom_call.1} parent=1 // pred_check_branch
      %23 = sbr.rel (0) target = $region25
    $region24: #{tpu_custom_call.1} parent=1 // pred_region
      _
    $region25: #{tpu_custom_call.1} parent=1 // pred_fallthru
      _
    %p24 = scmp.eq.s32.totalorder 0, 0
    // Predicated region
    $region26: #{tpu_custom_call.1} parent=1 // pred_check
      %p25 = pneg %p24
    $region27: #{tpu_custom_call.1} parent=1 // pred_check_branch
      %27 = sbr.rel (%p25) target = $region29
    $region28: #{tpu_custom_call.1} parent=1 // pred_region
      %v28 = vld [vmem:[%s5] sm:$0x1]
      %v30 = vlaneseq
      %v31 = vshrl.u32 %v30, 7
      %v32 = vsub.s32 0, %v31
      %v33 = vrot.slane %v28, %v32
      %35 = vst [vmem:[#allocation2] sm:$0xff] %v33
      %v36 = vtanh.pop %v33
      %37 = vst [vmem:[#allocation3] sm:$0xff] %v36
    $region29: #{tpu_custom_call.1} parent=1 // pred_fallthru
      _
    %v38 = vld [vmem:[%s1] sm:$0xff]
    %v39 = vld [vmem:[%s1 + $0x8] sm:$0xff]
    %v40 = vld [vmem:[%s1 + $0x10] sm:$0xff]
    %v41 = vld [vmem:[%s1 + $0x18] sm:$0xff]
    %v42 = vld [vmem:[%s1 + $0x20] sm:$0xff]
    %v43 = vld [vmem:[%s1 + $0x28] sm:$0xff]
    %v44 = vld [vmem:[%s1 + $0x30] sm:$0xff]
    %v45 = vld [vmem:[%s1 + $0x38] sm:$0xff]
    %v46 = vmul.f32 %v38, 0.1
    %v47 = vmul.f32 %v39, 0.1
    %v48 = vmul.f32 %v40, 0.1
    %v49 = vmul.f32 %v41, 0.1
    %v50 = vmul.f32 %v42, 0.1
    %v51 = vmul.f32 %v43, 0.1
    %v52 = vmul.f32 %v44, 0.1
    %v53 = vmul.f32 %v45, 0.1
    %v54 = vld [vmem:[%s0] sm:$0xff]
    %v55 = vld [vmem:[%s0 + $0x8] sm:$0xff]
    %v56 = vld [vmem:[%s0 + $0x10] sm:$0xff]
    %v57 = vld [vmem:[%s0 + $0x18] sm:$0xff]
    %v58 = vld [vmem:[%s0 + $0x20] sm:$0xff]
    %v59 = vld [vmem:[%s0 + $0x28] sm:$0xff]
    %v60 = vld [vmem:[%s0 + $0x30] sm:$0xff]
    %v61 = vld [vmem:[%s0 + $0x38] sm:$0xff]
    %v62 = vld [vmem:[%s3] sm:$0x1]
    %64 = vset.pattern.permute.xlu0 0
    %65 = vperm.xlu0 %64, %v54
    %v66 = vpop.permute.xlu0 %65
    %69 = vset.pattern.permute.xlu0 0
    %70 = vperm.xlu0 %69, %v55
    %v71 = vpop.permute.xlu0 %70
    %74 = vset.pattern.permute.xlu0 0
    %75 = vperm.xlu0 %74, %v56
    %v76 = vpop.permute.xlu0 %75
    %79 = vset.pattern.permute.xlu0 0
    %80 = vperm.xlu0 %79, %v57
    %v81 = vpop.permute.xlu0 %80
    %84 = vset.pattern.permute.xlu0 0
    %85 = vperm.xlu0 %84, %v58
    %v86 = vpop.permute.xlu0 %85
    %89 = vset.pattern.permute.xlu0 0
    %90 = vperm.xlu0 %89, %v59
    %v91 = vpop.permute.xlu0 %90
    %94 = vset.pattern.permute.xlu0 0
    %95 = vperm.xlu0 %94, %v60
    %v96 = vpop.permute.xlu0 %95
    %99 = vset.pattern.permute.xlu0 0
    %100 = vperm.xlu0 %99, %v61
    %v101 = vpop.permute.xlu0 %100
    %v103 = vlaneseq
    %v104 = vshrl.u32 %v103, 7
    %v105 = vsub.s32 0, %v104
    %v106 = vrot.slane %v62, %v105
    %v107 = vmul.f32 %v66, %v106
    %v108 = vmul.f32 %v71, %v106
    %v109 = vmul.f32 %v76, %v106
    %v110 = vmul.f32 %v81, %v106
    %v111 = vmul.f32 %v86, %v106
    %v112 = vmul.f32 %v91, %v106
    %v113 = vmul.f32 %v96, %v106
    %v114 = vmul.f32 %v101, %v106
    %v115 = vadd.f32 %v46, %v107
    %v116 = vadd.f32 %v47, %v108
    %v117 = vadd.f32 %v48, %v109
    %v118 = vadd.f32 %v49, %v110
    %v119 = vadd.f32 %v50, %v111
    %v120 = vadd.f32 %v51, %v112
    %v121 = vadd.f32 %v52, %v113
    %v122 = vadd.f32 %v53, %v114
    %v123 = vld [vmem:[%s3 + $0x1] sm:$0x1]
    %124 = vset.pattern.permute.xlu0 1
    %125 = vperm.xlu0 %124, %v54
    %v126 = vpop.permute.xlu0 %125
    %128 = vset.pattern.permute.xlu0 1
    %129 = vperm.xlu0 %128, %v55
    %v130 = vpop.permute.xlu0 %129
    %132 = vset.pattern.permute.xlu0 1
    %133 = vperm.xlu0 %132, %v56
    %v134 = vpop.permute.xlu0 %133
    %136 = vset.pattern.permute.xlu0 1
    %137 = vperm.xlu0 %136, %v57
    %v138 = vpop.permute.xlu0 %137
    %140 = vset.pattern.permute.xlu0 1
    %141 = vperm.xlu0 %140, %v58
    %v142 = vpop.permute.xlu0 %141
    %144 = vset.pattern.permute.xlu0 1
    %145 = vperm.xlu0 %144, %v59
    %v146 = vpop.permute.xlu0 %145
    %148 = vset.pattern.permute.xlu0 1
    %149 = vperm.xlu0 %148, %v60
    %v150 = vpop.permute.xlu0 %149
    %152 = vset.pattern.permute.xlu0 1
    %153 = vperm.xlu0 %152, %v61
    %v154 = vpop.permute.xlu0 %153
    %v156 = vlaneseq
    %v157 = vshrl.u32 %v156, 7
    %v158 = vsub.s32 0, %v157
    %v159 = vrot.slane %v123, %v158
    %v160 = vmul.f32 %v126, %v159
    %v161 = vmul.f32 %v130, %v159
    %v162 = vmul.f32 %v134, %v159
    %v163 = vmul.f32 %v138, %v159
    %v164 = vmul.f32 %v142, %v159
    %v165 = vmul.f32 %v146, %v159
    %v166 = vmul.f32 %v150, %v159
    %v167 = vmul.f32 %v154, %v159
    %v168 = vadd.f32 %v115, %v160
    %v169 = vadd.f32 %v116, %v161
    %v170 = vadd.f32 %v117, %v162
    %v171 = vadd.f32 %v118, %v163
    %v172 = vadd.f32 %v119, %v164
    %v173 = vadd.f32 %v120, %v165
    %v174 = vadd.f32 %v121, %v166
    %v175 = vadd.f32 %v122, %v167
    %v176 = vld [vmem:[%s3 + $0x2] sm:$0x1]
    %177 = vset.pattern.permute.xlu0 2
    %178 = vperm.xlu0 %177, %v54
    %v179 = vpop.permute.xlu0 %178
    %181 = vset.pattern.permute.xlu0 2
    %182 = vperm.xlu0 %181, %v55
    %v183 = vpop.permute.xlu0 %182
    %185 = vset.pattern.permute.xlu0 2
    %186 = vperm.xlu0 %185, %v56
    %v187 = vpop.permute.xlu0 %186
    %189 = vset.pattern.permute.xlu0 2
    %190 = vperm.xlu0 %189, %v57
    %v191 = vpop.permute.xlu0 %190
    %193 = vset.pattern.permute.xlu0 2
    %194 = vperm.xlu0 %193, %v58
    %v195 = vpop.permute.xlu0 %194
    %197 = vset.pattern.permute.xlu0 2
    %198 = vperm.xlu0 %197, %v59
    %v199 = vpop.permute.xlu0 %198
    %201 = vset.pattern.permute.xlu0 2
    %202 = vperm.xlu0 %201, %v60
    %v203 = vpop.permute.xlu0 %202
    %205 = vset.pattern.permute.xlu0 2
    %206 = vperm.xlu0 %205, %v61
    %v207 = vpop.permute.xlu0 %206
    %v209 = vlaneseq
    %v210 = vshrl.u32 %v209, 7
    %v211 = vsub.s32 0, %v210
    %v212 = vrot.slane %v176, %v211
    %v213 = vmul.f32 %v179, %v212
    %v214 = vmul.f32 %v183, %v212
    %v215 = vmul.f32 %v187, %v212
    %v216 = vmul.f32 %v191, %v212
    %v217 = vmul.f32 %v195, %v212
    %v218 = vmul.f32 %v199, %v212
    %v219 = vmul.f32 %v203, %v212
    %v220 = vmul.f32 %v207, %v212
    %v221 = vadd.f32 %v168, %v213
    %v222 = vadd.f32 %v169, %v214
    %v223 = vadd.f32 %v170, %v215
    %v224 = vadd.f32 %v171, %v216
    %v225 = vadd.f32 %v172, %v217
    %v226 = vadd.f32 %v173, %v218
    %v227 = vadd.f32 %v174, %v219
    %v228 = vadd.f32 %v175, %v220
    %v229 = vld [vmem:[%s3 + $0x3] sm:$0x1]
    %230 = vset.pattern.permute.xlu0 3
    %231 = vperm.xlu0 %230, %v54
    %v232 = vpop.permute.xlu0 %231
    %234 = vset.pattern.permute.xlu0 3
    %235 = vperm.xlu0 %234, %v55
    %v236 = vpop.permute.xlu0 %235
    %238 = vset.pattern.permute.xlu0 3
    %239 = vperm.xlu0 %238, %v56
    %v240 = vpop.permute.xlu0 %239
    %242 = vset.pattern.permute.xlu0 3
    %243 = vperm.xlu0 %242, %v57
    %v244 = vpop.permute.xlu0 %243
    %246 = vset.pattern.permute.xlu0 3
    %247 = vperm.xlu0 %246, %v58
    %v248 = vpop.permute.xlu0 %247
    %250 = vset.pattern.permute.xlu0 3
    %251 = vperm.xlu0 %250, %v59
    %v252 = vpop.permute.xlu0 %251
    %254 = vset.pattern.permute.xlu0 3
    %255 = vperm.xlu0 %254, %v60
    %v256 = vpop.permute.xlu0 %255
    %258 = vset.pattern.permute.xlu0 3
    %259 = vperm.xlu0 %258, %v61
    %v260 = vpop.permute.xlu0 %259
    %v262 = vlaneseq
    %v263 = vshrl.u32 %v262, 7
    %v264 = vsub.s32 0, %v263
    %v265 = vrot.slane %v229, %v264
    %v266 = vmul.f32 %v232, %v265
    %v267 = vmul.f32 %v236, %v265
    %v268 = vmul.f32 %v240, %v265
    %v269 = vmul.f32 %v244, %v265
    %v270 = vmul.f32 %v248, %v265
    %v271 = vmul.f32 %v252, %v265
    %v272 = vmul.f32 %v256, %v265
    %v273 = vmul.f32 %v260, %v265
    %v274 = vadd.f32 %v221, %v266
    %v275 = vadd.f32 %v222, %v267
    %v276 = vadd.f32 %v223, %v268
    %v277 = vadd.f32 %v224, %v269
    %v278 = vadd.f32 %v225, %v270
    %v279 = vadd.f32 %v226, %v271
    %v280 = vadd.f32 %v227, %v272
    %v281 = vadd.f32 %v228, %v273
    %v290 = vrot.slane %v275, 7
    %vm291 = vcmask 1041409
    %v292 = vsel %vm291, %v290, %v274
    %v293 = vrot.slane %v276, 6
    %vm294 = vcmask 1042434
    %v295 = vsel %vm294, %v293, %v292
    %v296 = vrot.slane %v277, 5
    %vm297 = vcmask 1043459
    %v298 = vsel %vm297, %v296, %v295
    %v299 = vrot.slane %v278, 4
    %vm300 = vcmask 1044484
    %v301 = vsel %vm300, %v299, %v298
    %v302 = vrot.slane %v279, 3
    %vm303 = vcmask 1045509
    %v304 = vsel %vm303, %v302, %v301
    %v305 = vrot.slane %v280, 2
    %vm306 = vcmask 1046534
    %v307 = vsel %vm306, %v305, %v304
    %v308 = vrot.slane %v281, 1
    %vm309 = vcmask 1047559
    %v310 = vsel %vm309, %v308, %v307
    %312 = vst [vmem:[#allocation5] sm:$0xff] %v310
    %v313 = vsel %vm294, %v290, %v274
    %v314 = vsel %vm297, %v293, %v313
    %v315 = vsel %vm300, %v296, %v314
    %v316 = vsel %vm303, %v299, %v315
    %v317 = vsel %vm306, %v302, %v316
    %v318 = vsel %vm309, %v305, %v317
    %s321 = scalar_lea.vmem [#allocation5], 8
    %322 = vst [vmem:[%s321 - $0x1] sm:$0xfe] %v318
    %323 = vst [vmem:[%s321 + $0x7] sm:$0x1] %v308
    %v324 = vsel %vm297, %v290, %v274
    %v325 = vsel %vm300, %v293, %v324
    %v326 = vsel %vm303, %v296, %v325
    %v327 = vsel %vm306, %v299, %v326
    %v328 = vsel %vm309, %v302, %v327
    %v329 = vsel %vm291, %v308, %v305
    %s332 = scalar_lea.vmem [#allocation5], 16
    %333 = vst [vmem:[%s332 - $0x2] sm:$0xfc] %v328
    %334 = vst [vmem:[%s332 + $0x6] sm:$0x3] %v329
    %v335 = vsel %vm300, %v290, %v274
    %v336 = vsel %vm303, %v293, %v335
    %v337 = vsel %vm306, %v296, %v336
    %v338 = vsel %vm309, %v299, %v337
    %v339 = vsel %vm291, %v305, %v302
    %v340 = vsel %vm294, %v308, %v339
    %s343 = scalar_lea.vmem [#allocation5], 24
    %344 = vst [vmem:[%s343 - $0x3] sm:$0xf8] %v338
    %345 = vst [vmem:[%s343 + $0x5] sm:$0x7] %v340
    %v346 = vsel %vm303, %v290, %v274
    %v347 = vsel %vm306, %v293, %v346
    %v348 = vsel %vm309, %v296, %v347
    %v349 = vsel %vm291, %v302, %v299
    %v350 = vsel %vm294, %v305, %v349
    %v351 = vsel %vm297, %v308, %v350
    %s354 = scalar_lea.vmem [#allocation5], 32
    %355 = vst [vmem:[%s354 - $0x4] sm:$0xf0] %v348
    %356 = vst [vmem:[%s354 + $0x4] sm:$0xf] %v351
    %v357 = vsel %vm306, %v290, %v274
    %v358 = vsel %vm309, %v293, %v357
    %v359 = vsel %vm291, %v299, %v296
    %v360 = vsel %vm294, %v302, %v359
    %v361 = vsel %vm297, %v305, %v360
    %v362 = vsel %vm300, %v308, %v361
    %s365 = scalar_lea.vmem [#allocation5], 40
    %366 = vst [vmem:[%s365 - $0x5] sm:$0xe0] %v358
    %367 = vst [vmem:[%s365 + $0x3] sm:$0x1f] %v362
    %v368 = vsel %vm309, %v290, %v274
    %v369 = vsel %vm291, %v296, %v293
    %v370 = vsel %vm294, %v299, %v369
    %v371 = vsel %vm297, %v302, %v370
    %v372 = vsel %vm300, %v305, %v371
    %v373 = vsel %vm303, %v308, %v372
    %s376 = scalar_lea.vmem [#allocation5], 48
    %377 = vst [vmem:[%s376 - $0x6] sm:$0xc0] %v368
    %378 = vst [vmem:[%s376 + $0x2] sm:$0x3f] %v373
    %v379 = vsel %vm291, %v293, %v290
    %v380 = vsel %vm294, %v296, %v379
    %v381 = vsel %vm297, %v299, %v380
    %v382 = vsel %vm300, %v302, %v381
    %v383 = vsel %vm303, %v305, %v382
    %v384 = vsel %vm306, %v308, %v383
    %s387 = scalar_lea.vmem [#allocation5], 56
    %388 = vst [vmem:[%s387 - $0x7] sm:$0x80] %v274
    %389 = vst [vmem:[%s387 + $0x1] sm:$0x7f] %v384
    %v390 = vld [vmem:[%s2] sm:$0xff]
    %v391 = vld [vmem:[%s2 + $0x8] sm:$0xff]
    %v392 = vld [vmem:[%s2 + $0x10] sm:$0xff]
    %v393 = vld [vmem:[%s2 + $0x18] sm:$0xff]
    %v394 = vld [vmem:[%s2 + $0x20] sm:$0xff]
    %v395 = vld [vmem:[%s2 + $0x28] sm:$0xff]
    %v396 = vld [vmem:[%s2 + $0x30] sm:$0xff]
    %v397 = vld [vmem:[%s2 + $0x38] sm:$0xff]
    %v398 = vld [vmem:[%s2 + $0x40] sm:$0xff]
    %v399 = vld [vmem:[%s2 + $0x48] sm:$0xff]
    %v400 = vld [vmem:[%s2 + $0x50] sm:$0xff]
    %v401 = vld [vmem:[%s2 + $0x58] sm:$0xff]
    %v402 = vld [vmem:[%s2 + $0x60] sm:$0xff]
    %v403 = vld [vmem:[%s2 + $0x68] sm:$0xff]
    %v404 = vld [vmem:[%s2 + $0x70] sm:$0xff]
    %v405 = vld [vmem:[%s2 + $0x78] sm:$0xff]
    %v406 = vld [vmem:[#allocation2] sm:$0xff]
    %v407 = vld [vmem:[#allocation3] sm:$0xff]
    %408 = vmatprep.subr.mxu0 0.0
    %409 = vmatpush1.msra.mxu0 %v390
    %410 = vmatprep.subr.mxu0 0.0
    %411 = vmatpush1.msra.mxu0 %v391
    %412 = vmatprep.subr.mxu0 0.0
    %413 = vmatpush1.msra.mxu0 %v392
    %414 = vmatprep.subr.mxu0 0.0
    %415 = vmatpush1.msra.mxu0 %v393
    %416 = vmatprep.subr.mxu0 0.0
    %417 = vmatpush1.msra.mxu0 %v394
    %418 = vmatprep.subr.mxu0 0.0
    %419 = vmatpush1.msra.mxu0 %v395
    %420 = vmatprep.subr.mxu0 0.0
    %421 = vmatpush1.msra.mxu0 %v396
    %422 = vmatprep.subr.mxu0 0.0
    %423 = vmatpush1.msra.mxu0 %v397
    %424 = vmatprep.subr.mxu0 0.0
    %425 = vmatpush1.msra.mxu0 %v398
    %426 = vmatprep.subr.mxu0 0.0
    %427 = vmatpush1.msra.mxu0 %v399
    %428 = vmatprep.subr.mxu0 0.0
    %429 = vmatpush1.msra.mxu0 %v400
    %430 = vmatprep.subr.mxu0 0.0
    %431 = vmatpush1.msra.mxu0 %v401
    %432 = vmatprep.subr.mxu0 0.0
    %433 = vmatpush1.msra.mxu0 %v402
    %434 = vmatprep.subr.mxu0 0.0
    %435 = vmatpush1.msra.mxu0 %v403
    %436 = vmatprep.subr.mxu0 0.0
    %437 = vmatpush1.msra.mxu0 %v404
    %438 = vmatprep.subr.mxu0 0.0
    %439 = vmatpush1.msra.mxu0 %v405
    %440 = vmatprep.subr.mxu0 0.0
    %441 = vmatpush1.msra.mxu0 0.0
    %442 = vmatprep.subr.mxu0 0.0
    %443 = vmatpush1.msra.mxu0 0.0
    %444 = vmatprep.subr.mxu0 0.0
    %445 = vmatpush1.msra.mxu0 0.0
    %446 = vmatprep.subr.mxu0 0.0
    %447 = vmatpush1.msra.mxu0 0.0
    %448 = vmatprep.subr.mxu0 0.0
    %449 = vmatpush1.msra.mxu0 0.0
    %450 = vmatprep.subr.mxu0 0.0
    %451 = vmatpush1.msra.mxu0 0.0
    %452 = vmatprep.subr.mxu0 0.0
    %453 = vmatpush1.msra.mxu0 0.0
    %454 = vmatprep.subr.mxu0 0.0
    %455 = vmatpush1.msra.mxu0 0.0
    %456 = vmatprep.subr.mxu0 0.0
    %457 = vmatpush1.msra.mxu0 0.0
    %458 = vmatprep.subr.mxu0 0.0
    %459 = vmatpush1.msra.mxu0 0.0
    %460 = vmatprep.subr.mxu0 0.0
    %461 = vmatpush1.msra.mxu0 0.0
    %462 = vmatprep.subr.mxu0 0.0
    %463 = vmatpush1.msra.mxu0 0.0
    %464 = vmatprep.subr.mxu0 0.0
    %465 = vmatpush1.msra.mxu0 0.0
    %466 = vmatprep.subr.mxu0 0.0
    %467 = vmatpush1.msra.mxu0 0.0
    %468 = vmatprep.subr.mxu0 0.0
    %469 = vmatpush1.msra.mxu0 0.0
    %470 = vmatprep.subr.mxu0 0.0
    %471 = vmatpush1.msra.mxu0 0.0
    %472 = vmatprep.mubr.f32.mxu0 0.0
    %473 = vmatmul.mubr.f32.gmra.mrb[0].mxu0 %v407
    %v474 = vpop.f32.mrb[0].mxu0
    %v475 = vadd.f32 0.0, %v474
    %v476 = vpop.f32.mrb[0].mxu0
    %477 = vdwg.mxu0
    %v478 = vmul.f32 %v406, 0.8
    %v479 = vld [vmem:[#allocation5] sm:$0xff]
    %v480 = vadd.f32 %v478, %v479
    %v481 = vadd.f32 %v480, %v475
    %v482 = vtanh.pop %v481
    %483 = vst [vmem:[#allocation4] sm:$0xff] %v482
    %484 = vmatprep.subr.mxu0 0.0
    %485 = vmatpush1.msra.mxu0 %v390
    %486 = vmatprep.subr.mxu0 0.0
    %487 = vmatpush1.msra.mxu0 %v391
    %488 = vmatprep.subr.mxu0 0.0
    %489 = vmatpush1.msra.mxu0 %v392
    %490 = vmatprep.subr.mxu0 0.0
    %491 = vmatpush1.msra.mxu0 %v393
    %492 = vmatprep.subr.mxu0 0.0
    %493 = vmatpush1.msra.mxu0 %v394
    %494 = vmatprep.subr.mxu0 0.0
    %495 = vmatpush1.msra.mxu0 %v395
    %496 = vmatprep.subr.mxu0 0.0
    %497 = vmatpush1.msra.mxu0 %v396
    %498 = vmatprep.subr.mxu0 0.0
    %499 = vmatpush1.msra.mxu0 %v397
    %500 = vmatprep.subr.mxu0 0.0
    %501 = vmatpush1.msra.mxu0 %v398
    %502 = vmatprep.subr.mxu0 0.0
    %503 = vmatpush1.msra.mxu0 %v399
    %504 = vmatprep.subr.mxu0 0.0
    %505 = vmatpush1.msra.mxu0 %v400
    %506 = vmatprep.subr.mxu0 0.0
    %507 = vmatpush1.msra.mxu0 %v401
    %508 = vmatprep.subr.mxu0 0.0
    %509 = vmatpush1.msra.mxu0 %v402
    %510 = vmatprep.subr.mxu0 0.0
    %511 = vmatpush1.msra.mxu0 %v403
    %512 = vmatprep.subr.mxu0 0.0
    %513 = vmatpush1.msra.mxu0 %v404
    %514 = vmatprep.subr.mxu0 0.0
    %515 = vmatpush1.msra.mxu0 %v405
    %516 = vmatprep.subr.mxu0 0.0
    %517 = vmatpush1.msra.mxu0 0.0
    %518 = vmatprep.subr.mxu0 0.0
    %519 = vmatpush1.msra.mxu0 0.0
    %520 = vmatprep.subr.mxu0 0.0
    %521 = vmatpush1.msra.mxu0 0.0
    %522 = vmatprep.subr.mxu0 0.0
    %523 = vmatpush1.msra.mxu0 0.0
    %524 = vmatprep.subr.mxu0 0.0
    %525 = vmatpush1.msra.mxu0 0.0
    %526 = vmatprep.subr.mxu0 0.0
    %527 = vmatpush1.msra.mxu0 0.0
    %528 = vmatprep.subr.mxu0 0.0
    %529 = vmatpush1.msra.mxu0 0.0
    %530 = vmatprep.subr.mxu0 0.0
    %531 = vmatpush1.msra.mxu0 0.0
    %532 = vmatprep.subr.mxu0 0.0
    %533 = vmatpush1.msra.mxu0 0.0
    %534 = vmatprep.subr.mxu0 0.0
    %535 = vmatpush1.msra.mxu0 0.0
    %536 = vmatprep.subr.mxu0 0.0
    %537 = vmatpush1.msra.mxu0 0.0
    %538 = vmatprep.subr.mxu0 0.0
    %539 = vmatpush1.msra.mxu0 0.0
    %540 = vmatprep.subr.mxu0 0.0
    %541 = vmatpush1.msra.mxu0 0.0
    %542 = vmatprep.subr.mxu0 0.0
    %543 = vmatpush1.msra.mxu0 0.0
    %544 = vmatprep.subr.mxu0 0.0
    %545 = vmatpush1.msra.mxu0 0.0
    %546 = vmatprep.subr.mxu0 0.0
    %547 = vmatpush1.msra.mxu0 0.0
    %548 = vmatprep.mubr.f32.mxu0 0.0
    %549 = vmatmul.mubr.f32.gmra.mrb[0].mxu0 %v482
    %v550 = vpop.f32.mrb[0].mxu0
    %v551 = vadd.f32 0.0, %v550
    %v552 = vpop.f32.mrb[0].mxu0
    %553 = vdwg.mxu0
    %v554 = vmul.f32 %v481, 0.8
    %v555 = vld [vmem:[%s321] sm:$0xff]
    %v556 = vadd.f32 %v554, %v555
    %v557 = vadd.f32 %v556, %v551
    %v558 = vtanh.pop %v557
    %s559 = scalar_lea.vmem [#allocation4], 8
    %560 = vst [vmem:[%s559] sm:$0xff] %v558
    %561 = vmatprep.subr.mxu0 0.0
    %562 = vmatpush1.msra.mxu0 %v390
    %563 = vmatprep.subr.mxu0 0.0
    %564 = vmatpush1.msra.mxu0 %v391
    %565 = vmatprep.subr.mxu0 0.0
    %566 = vmatpush1.msra.mxu0 %v392
    %567 = vmatprep.subr.mxu0 0.0
    %568 = vmatpush1.msra.mxu0 %v393
    %569 = vmatprep.subr.mxu0 0.0
    %570 = vmatpush1.msra.mxu0 %v394
    %571 = vmatprep.subr.mxu0 0.0
    %572 = vmatpush1.msra.mxu0 %v395
    %573 = vmatprep.subr.mxu0 0.0
    %574 = vmatpush1.msra.mxu0 %v396
    %575 = vmatprep.subr.mxu0 0.0
    %576 = vmatpush1.msra.mxu0 %v397
    %577 = vmatprep.subr.mxu0 0.0
    %578 = vmatpush1.msra.mxu0 %v398
    %579 = vmatprep.subr.mxu0 0.0
    %580 = vmatpush1.msra.mxu0 %v399
    %581 = vmatprep.subr.mxu0 0.0
    %582 = vmatpush1.msra.mxu0 %v400
    %583 = vmatprep.subr.mxu0 0.0
    %584 = vmatpush1.msra.mxu0 %v401
    %585 = vmatprep.subr.mxu0 0.0
    %586 = vmatpush1.msra.mxu0 %v402
    %587 = vmatprep.subr.mxu0 0.0
    %588 = vmatpush1.msra.mxu0 %v403
    %589 = vmatprep.subr.mxu0 0.0
    %590 = vmatpush1.msra.mxu0 %v404
    %591 = vmatprep.subr.mxu0 0.0
    %592 = vmatpush1.msra.mxu0 %v405
    %593 = vmatprep.subr.mxu0 0.0
    %594 = vmatpush1.msra.mxu0 0.0
    %595 = vmatprep.subr.mxu0 0.0
    %596 = vmatpush1.msra.mxu0 0.0
    %597 = vmatprep.subr.mxu0 0.0
    %598 = vmatpush1.msra.mxu0 0.0
    %599 = vmatprep.subr.mxu0 0.0
    %600 = vmatpush1.msra.mxu0 0.0
    %601 = vmatprep.subr.mxu0 0.0
    %602 = vmatpush1.msra.mxu0 0.0
    %603 = vmatprep.subr.mxu0 0.0
    %604 = vmatpush1.msra.mxu0 0.0
    %605 = vmatprep.subr.mxu0 0.0
    %606 = vmatpush1.msra.mxu0 0.0
    %607 = vmatprep.subr.mxu0 0.0
    %608 = vmatpush1.msra.mxu0 0.0
    %609 = vmatprep.subr.mxu0 0.0
    %610 = vmatpush1.msra.mxu0 0.0
    %611 = vmatprep.subr.mxu0 0.0
    %612 = vmatpush1.msra.mxu0 0.0
    %613 = vmatprep.subr.mxu0 0.0
    %614 = vmatpush1.msra.mxu0 0.0
    %615 = vmatprep.subr.mxu0 0.0
    %616 = vmatpush1.msra.mxu0 0.0
    %617 = vmatprep.subr.mxu0 0.0
    %618 = vmatpush1.msra.mxu0 0.0
    %619 = vmatprep.subr.mxu0 0.0
    %620 = vmatpush1.msra.mxu0 0.0
    %621 = vmatprep.subr.mxu0 0.0
    %622 = vmatpush1.msra.mxu0 0.0
    %623 = vmatprep.subr.mxu0 0.0
    %624 = vmatpush1.msra.mxu0 0.0
    %625 = vmatprep.mubr.f32.mxu0 0.0
    %626 = vmatmul.mubr.f32.gmra.mrb[0].mxu0 %v558
    %v627 = vpop.f32.mrb[0].mxu0
    %v628 = vadd.f32 0.0, %v627
    %v629 = vpop.f32.mrb[0].mxu0
    %630 = vdwg.mxu0
    %v631 = vmul.f32 %v557, 0.8
    %v632 = vld [vmem:[%s332] sm:$0xff]
    %v633 = vadd.f32 %v631, %v632
    %v634 = vadd.f32 %v633, %v628
    %v635 = vtanh.pop %v634
    %s636 = scalar_lea.vmem [#allocation4], 16
    %637 = vst [vmem:[%s636] sm:$0xff] %v635
    %638 = vmatprep.subr.mxu0 0.0
    %639 = vmatpush1.msra.mxu0 %v390
    %640 = vmatprep.subr.mxu0 0.0
    %641 = vmatpush1.msra.mxu0 %v391
    %642 = vmatprep.subr.mxu0 0.0
    %643 = vmatpush1.msra.mxu0 %v392
    %644 = vmatprep.subr.mxu0 0.0
    %645 = vmatpush1.msra.mxu0 %v393
    %646 = vmatprep.subr.mxu0 0.0
    %647 = vmatpush1.msra.mxu0 %v394
    %648 = vmatprep.subr.mxu0 0.0
    %649 = vmatpush1.msra.mxu0 %v395
    %650 = vmatprep.subr.mxu0 0.0
    %651 = vmatpush1.msra.mxu0 %v396
    %652 = vmatprep.subr.mxu0 0.0
    %653 = vmatpush1.msra.mxu0 %v397
    %654 = vmatprep.subr.mxu0 0.0
    %655 = vmatpush1.msra.mxu0 %v398
    %656 = vmatprep.subr.mxu0 0.0
    %657 = vmatpush1.msra.mxu0 %v399
    %658 = vmatprep.subr.mxu0 0.0
    %659 = vmatpush1.msra.mxu0 %v400
    %660 = vmatprep.subr.mxu0 0.0
    %661 = vmatpush1.msra.mxu0 %v401
    %662 = vmatprep.subr.mxu0 0.0
    %663 = vmatpush1.msra.mxu0 %v402
    %664 = vmatprep.subr.mxu0 0.0
    %665 = vmatpush1.msra.mxu0 %v403
    %666 = vmatprep.subr.mxu0 0.0
    %667 = vmatpush1.msra.mxu0 %v404
    %668 = vmatprep.subr.mxu0 0.0
    %669 = vmatpush1.msra.mxu0 %v405
    %670 = vmatprep.subr.mxu0 0.0
    %671 = vmatpush1.msra.mxu0 0.0
    %672 = vmatprep.subr.mxu0 0.0
    %673 = vmatpush1.msra.mxu0 0.0
    %674 = vmatprep.subr.mxu0 0.0
    %675 = vmatpush1.msra.mxu0 0.0
    %676 = vmatprep.subr.mxu0 0.0
    %677 = vmatpush1.msra.mxu0 0.0
    %678 = vmatprep.subr.mxu0 0.0
    %679 = vmatpush1.msra.mxu0 0.0
    %680 = vmatprep.subr.mxu0 0.0
    %681 = vmatpush1.msra.mxu0 0.0
    %682 = vmatprep.subr.mxu0 0.0
    %683 = vmatpush1.msra.mxu0 0.0
    %684 = vmatprep.subr.mxu0 0.0
    %685 = vmatpush1.msra.mxu0 0.0
    %686 = vmatprep.subr.mxu0 0.0
    %687 = vmatpush1.msra.mxu0 0.0
    %688 = vmatprep.subr.mxu0 0.0
    %689 = vmatpush1.msra.mxu0 0.0
    %690 = vmatprep.subr.mxu0 0.0
    %691 = vmatpush1.msra.mxu0 0.0
    %692 = vmatprep.subr.mxu0 0.0
    %693 = vmatpush1.msra.mxu0 0.0
    %694 = vmatprep.subr.mxu0 0.0
    %695 = vmatpush1.msra.mxu0 0.0
    %696 = vmatprep.subr.mxu0 0.0
    %697 = vmatpush1.msra.mxu0 0.0
    %698 = vmatprep.subr.mxu0 0.0
    %699 = vmatpush1.msra.mxu0 0.0
    %700 = vmatprep.subr.mxu0 0.0
    %701 = vmatpush1.msra.mxu0 0.0
    %702 = vmatprep.mubr.f32.mxu0 0.0
    %703 = vmatmul.mubr.f32.gmra.mrb[0].mxu0 %v635
    %v704 = vpop.f32.mrb[0].mxu0
    %v705 = vadd.f32 0.0, %v704
    %v706 = vpop.f32.mrb[0].mxu0
    %707 = vdwg.mxu0
    %v708 = vmul.f32 %v634, 0.8
    %v709 = vld [vmem:[%s343] sm:$0xff]
    %v710 = vadd.f32 %v708, %v709
    %v711 = vadd.f32 %v710, %v705
    %v712 = vtanh.pop %v711
    %s713 = scalar_lea.vmem [#allocation4], 24
    %714 = vst [vmem:[%s713] sm:$0xff] %v712
    %715 = vmatprep.subr.mxu0 0.0
    %716 = vmatpush1.msra.mxu0 %v390
    %717 = vmatprep.subr.mxu0 0.0
    %718 = vmatpush1.msra.mxu0 %v391
    %719 = vmatprep.subr.mxu0 0.0
    %720 = vmatpush1.msra.mxu0 %v392
    %721 = vmatprep.subr.mxu0 0.0
    %722 = vmatpush1.msra.mxu0 %v393
    %723 = vmatprep.subr.mxu0 0.0
    %724 = vmatpush1.msra.mxu0 %v394
    %725 = vmatprep.subr.mxu0 0.0
    %726 = vmatpush1.msra.mxu0 %v395
    %727 = vmatprep.subr.mxu0 0.0
    %728 = vmatpush1.msra.mxu0 %v396
    %729 = vmatprep.subr.mxu0 0.0
    %730 = vmatpush1.msra.mxu0 %v397
    %731 = vmatprep.subr.mxu0 0.0
    %732 = vmatpush1.msra.mxu0 %v398
    %733 = vmatprep.subr.mxu0 0.0
    %734 = vmatpush1.msra.mxu0 %v399
    %735 = vmatprep.subr.mxu0 0.0
    %736 = vmatpush1.msra.mxu0 %v400
    %737 = vmatprep.subr.mxu0 0.0
    %738 = vmatpush1.msra.mxu0 %v401
    %739 = vmatprep.subr.mxu0 0.0
    %740 = vmatpush1.msra.mxu0 %v402
    %741 = vmatprep.subr.mxu0 0.0
    %742 = vmatpush1.msra.mxu0 %v403
    %743 = vmatprep.subr.mxu0 0.0
    %744 = vmatpush1.msra.mxu0 %v404
    %745 = vmatprep.subr.mxu0 0.0
    %746 = vmatpush1.msra.mxu0 %v405
    %747 = vmatprep.subr.mxu0 0.0
    %748 = vmatpush1.msra.mxu0 0.0
    %749 = vmatprep.subr.mxu0 0.0
    %750 = vmatpush1.msra.mxu0 0.0
    %751 = vmatprep.subr.mxu0 0.0
    %752 = vmatpush1.msra.mxu0 0.0
    %753 = vmatprep.subr.mxu0 0.0
    %754 = vmatpush1.msra.mxu0 0.0
    %755 = vmatprep.subr.mxu0 0.0
    %756 = vmatpush1.msra.mxu0 0.0
    %757 = vmatprep.subr.mxu0 0.0
    %758 = vmatpush1.msra.mxu0 0.0
    %759 = vmatprep.subr.mxu0 0.0
    %760 = vmatpush1.msra.mxu0 0.0
    %761 = vmatprep.subr.mxu0 0.0
    %762 = vmatpush1.msra.mxu0 0.0
    %763 = vmatprep.subr.mxu0 0.0
    %764 = vmatpush1.msra.mxu0 0.0
    %765 = vmatprep.subr.mxu0 0.0
    %766 = vmatpush1.msra.mxu0 0.0
    %767 = vmatprep.subr.mxu0 0.0
    %768 = vmatpush1.msra.mxu0 0.0
    %769 = vmatprep.subr.mxu0 0.0
    %770 = vmatpush1.msra.mxu0 0.0
    %771 = vmatprep.subr.mxu0 0.0
    %772 = vmatpush1.msra.mxu0 0.0
    %773 = vmatprep.subr.mxu0 0.0
    %774 = vmatpush1.msra.mxu0 0.0
    %775 = vmatprep.subr.mxu0 0.0
    %776 = vmatpush1.msra.mxu0 0.0
    %777 = vmatprep.subr.mxu0 0.0
    %778 = vmatpush1.msra.mxu0 0.0
    %779 = vmatprep.mubr.f32.mxu0 0.0
    %780 = vmatmul.mubr.f32.gmra.mrb[0].mxu0 %v712
    %v781 = vpop.f32.mrb[0].mxu0
    %v782 = vadd.f32 0.0, %v781
    %v783 = vpop.f32.mrb[0].mxu0
    %784 = vdwg.mxu0
    %v785 = vmul.f32 %v711, 0.8
    %v786 = vld [vmem:[%s354] sm:$0xff]
    %v787 = vadd.f32 %v785, %v786
    %v788 = vadd.f32 %v787, %v782
    %v789 = vtanh.pop %v788
    %s790 = scalar_lea.vmem [#allocation4], 32
    %791 = vst [vmem:[%s790] sm:$0xff] %v789
    %792 = vmatprep.subr.mxu0 0.0
    %793 = vmatpush1.msra.mxu0 %v390
    %794 = vmatprep.subr.mxu0 0.0
    %795 = vmatpush1.msra.mxu0 %v391
    %796 = vmatprep.subr.mxu0 0.0
    %797 = vmatpush1.msra.mxu0 %v392
    %798 = vmatprep.subr.mxu0 0.0
    %799 = vmatpush1.msra.mxu0 %v393
    %800 = vmatprep.subr.mxu0 0.0
    %801 = vmatpush1.msra.mxu0 %v394
    %802 = vmatprep.subr.mxu0 0.0
    %803 = vmatpush1.msra.mxu0 %v395
    %804 = vmatprep.subr.mxu0 0.0
    %805 = vmatpush1.msra.mxu0 %v396
    %806 = vmatprep.subr.mxu0 0.0
    %807 = vmatpush1.msra.mxu0 %v397
    %808 = vmatprep.subr.mxu0 0.0
    %809 = vmatpush1.msra.mxu0 %v398
    %810 = vmatprep.subr.mxu0 0.0
    %811 = vmatpush1.msra.mxu0 %v399
    %812 = vmatprep.subr.mxu0 0.0
    %813 = vmatpush1.msra.mxu0 %v400
    %814 = vmatprep.subr.mxu0 0.0
    %815 = vmatpush1.msra.mxu0 %v401
    %816 = vmatprep.subr.mxu0 0.0
    %817 = vmatpush1.msra.mxu0 %v402
    %818 = vmatprep.subr.mxu0 0.0
    %819 = vmatpush1.msra.mxu0 %v403
    %820 = vmatprep.subr.mxu0 0.0
    %821 = vmatpush1.msra.mxu0 %v404
    %822 = vmatprep.subr.mxu0 0.0
    %823 = vmatpush1.msra.mxu0 %v405
    %824 = vmatprep.subr.mxu0 0.0
    %825 = vmatpush1.msra.mxu0 0.0
    %826 = vmatprep.subr.mxu0 0.0
    %827 = vmatpush1.msra.mxu0 0.0
    %828 = vmatprep.subr.mxu0 0.0
    %829 = vmatpush1.msra.mxu0 0.0
    %830 = vmatprep.subr.mxu0 0.0
    %831 = vmatpush1.msra.mxu0 0.0
    %832 = vmatprep.subr.mxu0 0.0
    %833 = vmatpush1.msra.mxu0 0.0
    %834 = vmatprep.subr.mxu0 0.0
    %835 = vmatpush1.msra.mxu0 0.0
    %836 = vmatprep.subr.mxu0 0.0
    %837 = vmatpush1.msra.mxu0 0.0
    %838 = vmatprep.subr.mxu0 0.0
    %839 = vmatpush1.msra.mxu0 0.0
    %840 = vmatprep.subr.mxu0 0.0
    %841 = vmatpush1.msra.mxu0 0.0
    %842 = vmatprep.subr.mxu0 0.0
    %843 = vmatpush1.msra.mxu0 0.0
    %844 = vmatprep.subr.mxu0 0.0
    %845 = vmatpush1.msra.mxu0 0.0
    %846 = vmatprep.subr.mxu0 0.0
    %847 = vmatpush1.msra.mxu0 0.0
    %848 = vmatprep.subr.mxu0 0.0
    %849 = vmatpush1.msra.mxu0 0.0
    %850 = vmatprep.subr.mxu0 0.0
    %851 = vmatpush1.msra.mxu0 0.0
    %852 = vmatprep.subr.mxu0 0.0
    %853 = vmatpush1.msra.mxu0 0.0
    %854 = vmatprep.subr.mxu0 0.0
    %855 = vmatpush1.msra.mxu0 0.0
    %856 = vmatprep.mubr.f32.mxu0 0.0
    %857 = vmatmul.mubr.f32.gmra.mrb[0].mxu0 %v789
    %v858 = vpop.f32.mrb[0].mxu0
    %v859 = vadd.f32 0.0, %v858
    %v860 = vpop.f32.mrb[0].mxu0
    %861 = vdwg.mxu0
    %v862 = vmul.f32 %v788, 0.8
    %v863 = vld [vmem:[%s365] sm:$0xff]
    %v864 = vadd.f32 %v862, %v863
    %v865 = vadd.f32 %v864, %v859
    %v866 = vtanh.pop %v865
    %s867 = scalar_lea.vmem [#allocation4], 40
    %868 = vst [vmem:[%s867] sm:$0xff] %v866
    %869 = vmatprep.subr.mxu0 0.0
    %870 = vmatpush1.msra.mxu0 %v390
    %871 = vmatprep.subr.mxu0 0.0
    %872 = vmatpush1.msra.mxu0 %v391
    %873 = vmatprep.subr.mxu0 0.0
    %874 = vmatpush1.msra.mxu0 %v392
    %875 = vmatprep.subr.mxu0 0.0
    %876 = vmatpush1.msra.mxu0 %v393
    %877 = vmatprep.subr.mxu0 0.0
    %878 = vmatpush1.msra.mxu0 %v394
    %879 = vmatprep.subr.mxu0 0.0
    %880 = vmatpush1.msra.mxu0 %v395
    %881 = vmatprep.subr.mxu0 0.0
    %882 = vmatpush1.msra.mxu0 %v396
    %883 = vmatprep.subr.mxu0 0.0
    %884 = vmatpush1.msra.mxu0 %v397
    %885 = vmatprep.subr.mxu0 0.0
    %886 = vmatpush1.msra.mxu0 %v398
    %887 = vmatprep.subr.mxu0 0.0
    %888 = vmatpush1.msra.mxu0 %v399
    %889 = vmatprep.subr.mxu0 0.0
    %890 = vmatpush1.msra.mxu0 %v400
    %891 = vmatprep.subr.mxu0 0.0
    %892 = vmatpush1.msra.mxu0 %v401
    %893 = vmatprep.subr.mxu0 0.0
    %894 = vmatpush1.msra.mxu0 %v402
    %895 = vmatprep.subr.mxu0 0.0
    %896 = vmatpush1.msra.mxu0 %v403
    %897 = vmatprep.subr.mxu0 0.0
    %898 = vmatpush1.msra.mxu0 %v404
    %899 = vmatprep.subr.mxu0 0.0
    %900 = vmatpush1.msra.mxu0 %v405
    %901 = vmatprep.subr.mxu0 0.0
    %902 = vmatpush1.msra.mxu0 0.0
    %903 = vmatprep.subr.mxu0 0.0
    %904 = vmatpush1.msra.mxu0 0.0
    %905 = vmatprep.subr.mxu0 0.0
    %906 = vmatpush1.msra.mxu0 0.0
    %907 = vmatprep.subr.mxu0 0.0
    %908 = vmatpush1.msra.mxu0 0.0
    %909 = vmatprep.subr.mxu0 0.0
    %910 = vmatpush1.msra.mxu0 0.0
    %911 = vmatprep.subr.mxu0 0.0
    %912 = vmatpush1.msra.mxu0 0.0
    %913 = vmatprep.subr.mxu0 0.0
    %914 = vmatpush1.msra.mxu0 0.0
    %915 = vmatprep.subr.mxu0 0.0
    %916 = vmatpush1.msra.mxu0 0.0
    %917 = vmatprep.subr.mxu0 0.0
    %918 = vmatpush1.msra.mxu0 0.0
    %919 = vmatprep.subr.mxu0 0.0
    %920 = vmatpush1.msra.mxu0 0.0
    %921 = vmatprep.subr.mxu0 0.0
    %922 = vmatpush1.msra.mxu0 0.0
    %923 = vmatprep.subr.mxu0 0.0
    %924 = vmatpush1.msra.mxu0 0.0
    %925 = vmatprep.subr.mxu0 0.0
    %926 = vmatpush1.msra.mxu0 0.0
    %927 = vmatprep.subr.mxu0 0.0
    %928 = vmatpush1.msra.mxu0 0.0
    %929 = vmatprep.subr.mxu0 0.0
    %930 = vmatpush1.msra.mxu0 0.0
    %931 = vmatprep.subr.mxu0 0.0
    %932 = vmatpush1.msra.mxu0 0.0
    %933 = vmatprep.mubr.f32.mxu0 0.0
    %934 = vmatmul.mubr.f32.gmra.mrb[0].mxu0 %v866
    %v935 = vpop.f32.mrb[0].mxu0
    %v936 = vadd.f32 0.0, %v935
    %v937 = vpop.f32.mrb[0].mxu0
    %938 = vdwg.mxu0
    %v939 = vmul.f32 %v865, 0.8
    %v940 = vld [vmem:[%s376] sm:$0xff]
    %v941 = vadd.f32 %v939, %v940
    %v942 = vadd.f32 %v941, %v936
    %v943 = vtanh.pop %v942
    %s944 = scalar_lea.vmem [#allocation4], 48
    %945 = vst [vmem:[%s944] sm:$0xff] %v943
    %946 = vmatprep.subr.mxu0 0.0
    %947 = vmatpush1.msra.mxu0 %v390
    %948 = vmatprep.subr.mxu0 0.0
    %949 = vmatpush1.msra.mxu0 %v391
    %950 = vmatprep.subr.mxu0 0.0
    %951 = vmatpush1.msra.mxu0 %v392
    %952 = vmatprep.subr.mxu0 0.0
    %953 = vmatpush1.msra.mxu0 %v393
    %954 = vmatprep.subr.mxu0 0.0
    %955 = vmatpush1.msra.mxu0 %v394
    %956 = vmatprep.subr.mxu0 0.0
    %957 = vmatpush1.msra.mxu0 %v395
    %958 = vmatprep.subr.mxu0 0.0
    %959 = vmatpush1.msra.mxu0 %v396
    %960 = vmatprep.subr.mxu0 0.0
    %961 = vmatpush1.msra.mxu0 %v397
    %962 = vmatprep.subr.mxu0 0.0
    %963 = vmatpush1.msra.mxu0 %v398
    %964 = vmatprep.subr.mxu0 0.0
    %965 = vmatpush1.msra.mxu0 %v399
    %966 = vmatprep.subr.mxu0 0.0
    %967 = vmatpush1.msra.mxu0 %v400
    %968 = vmatprep.subr.mxu0 0.0
    %969 = vmatpush1.msra.mxu0 %v401
    %970 = vmatprep.subr.mxu0 0.0
    %971 = vmatpush1.msra.mxu0 %v402
    %972 = vmatprep.subr.mxu0 0.0
    %973 = vmatpush1.msra.mxu0 %v403
    %974 = vmatprep.subr.mxu0 0.0
    %975 = vmatpush1.msra.mxu0 %v404
    %976 = vmatprep.subr.mxu0 0.0
    %977 = vmatpush1.msra.mxu0 %v405
    %978 = vmatprep.subr.mxu0 0.0
    %979 = vmatpush1.msra.mxu0 0.0
    %980 = vmatprep.subr.mxu0 0.0
    %981 = vmatpush1.msra.mxu0 0.0
    %982 = vmatprep.subr.mxu0 0.0
    %983 = vmatpush1.msra.mxu0 0.0
    %984 = vmatprep.subr.mxu0 0.0
    %985 = vmatpush1.msra.mxu0 0.0
    %986 = vmatprep.subr.mxu0 0.0
    %987 = vmatpush1.msra.mxu0 0.0
    %988 = vmatprep.subr.mxu0 0.0
    %989 = vmatpush1.msra.mxu0 0.0
    %990 = vmatprep.subr.mxu0 0.0
    %991 = vmatpush1.msra.mxu0 0.0
    %992 = vmatprep.subr.mxu0 0.0
    %993 = vmatpush1.msra.mxu0 0.0
    %994 = vmatprep.subr.mxu0 0.0
    %995 = vmatpush1.msra.mxu0 0.0
    %996 = vmatprep.subr.mxu0 0.0
    %997 = vmatpush1.msra.mxu0 0.0
    %998 = vmatprep.subr.mxu0 0.0
    %999 = vmatpush1.msra.mxu0 0.0
    %1000 = vmatprep.subr.mxu0 0.0
    %1001 = vmatpush1.msra.mxu0 0.0
    %1002 = vmatprep.subr.mxu0 0.0
    %1003 = vmatpush1.msra.mxu0 0.0
    %1004 = vmatprep.subr.mxu0 0.0
    %1005 = vmatpush1.msra.mxu0 0.0
    %1006 = vmatprep.subr.mxu0 0.0
    %1007 = vmatpush1.msra.mxu0 0.0
    %1008 = vmatprep.subr.mxu0 0.0
    %1009 = vmatpush1.msra.mxu0 0.0
    %1010 = vmatprep.mubr.f32.mxu0 0.0
    %1011 = vmatmul.mubr.f32.gmra.mrb[0].mxu0 %v943
    %v1012 = vpop.f32.mrb[0].mxu0
    %v1013 = vadd.f32 0.0, %v1012
    %v1014 = vpop.f32.mrb[0].mxu0
    %1015 = vdwg.mxu0
    %v1016 = vmul.f32 %v942, 0.8
    %v1017 = vld [vmem:[%s387] sm:$0xff]
    %v1018 = vadd.f32 %v1016, %v1017
    %v1019 = vadd.f32 %v1018, %v1013
    %v1020 = vtanh.pop %v1019
    %s1021 = scalar_lea.vmem [#allocation4], 56
    %1022 = vst [vmem:[%s1021] sm:$0xff] %v1020
    %1023 = vst [vmem:[#allocation2] sm:$0xff] %v1019
    %1024 = vst [vmem:[#allocation3] sm:$0xff] %v1020
    %v1025 = vld [vmem:[#allocation4] sm:$0xff]
    %v1026 = vld [vmem:[#allocation4 + $0x8] sm:$0xff]
    %v1027 = vld [vmem:[#allocation4 + $0x10] sm:$0xff]
    %v1028 = vld [vmem:[#allocation4 + $0x18] sm:$0xff]
    %v1029 = vld [vmem:[#allocation4 + $0x20] sm:$0xff]
    %v1030 = vld [vmem:[#allocation4 + $0x28] sm:$0xff]
    %v1031 = vld [vmem:[#allocation4 + $0x30] sm:$0xff]
    %v1032 = vld [vmem:[#allocation4 + $0x38] sm:$0xff]
    %v1033 = vld [vmem:[%s4] sm:$0xff]
    %v1034 = vld [vmem:[%s4 + $0x8] sm:$0xff]
    %v1035 = vld [vmem:[%s4 + $0x10] sm:$0xff]
    %v1036 = vld [vmem:[%s4 + $0x18] sm:$0xff]
    %v1037 = vld [vmem:[%s4 + $0x20] sm:$0xff]
    %v1038 = vld [vmem:[%s4 + $0x28] sm:$0xff]
    %v1039 = vld [vmem:[%s4 + $0x30] sm:$0xff]
    %v1040 = vld [vmem:[%s4 + $0x38] sm:$0xff]
    %v1041 = vld [vmem:[%s4 + $0x40] sm:$0xff]
    %v1042 = vld [vmem:[%s4 + $0x48] sm:$0xff]
    %v1043 = vld [vmem:[%s4 + $0x50] sm:$0xff]
    %v1044 = vld [vmem:[%s4 + $0x58] sm:$0xff]
    %v1045 = vld [vmem:[%s4 + $0x60] sm:$0xff]
    %v1046 = vld [vmem:[%s4 + $0x68] sm:$0xff]
    %v1047 = vld [vmem:[%s4 + $0x70] sm:$0xff]
    %v1048 = vld [vmem:[%s4 + $0x78] sm:$0xff]
    %1049 = vmatprep.subr.mxu0 0.0
    %1050 = vmatpush1.msra.mxu0 %v1033
    %1051 = vmatprep.subr.mxu0 0.0
    %1052 = vmatpush1.msra.mxu0 %v1034
    %1053 = vmatprep.subr.mxu0 0.0
    %1054 = vmatpush1.msra.mxu0 %v1035
    %1055 = vmatprep.subr.mxu0 0.0
    %1056 = vmatpush1.msra.mxu0 %v1036
    %1057 = vmatprep.subr.mxu0 0.0
    %1058 = vmatpush1.msra.mxu0 %v1037
    %1059 = vmatprep.subr.mxu0 0.0
    %1060 = vmatpush1.msra.mxu0 %v1038
    %1061 = vmatprep.subr.mxu0 0.0
    %1062 = vmatpush1.msra.mxu0 %v1039
    %1063 = vmatprep.subr.mxu0 0.0
    %1064 = vmatpush1.msra.mxu0 %v1040
    %1065 = vmatprep.subr.mxu0 0.0
    %1066 = vmatpush1.msra.mxu0 %v1041
    %1067 = vmatprep.subr.mxu0 0.0
    %1068 = vmatpush1.msra.mxu0 %v1042
    %1069 = vmatprep.subr.mxu0 0.0
    %1070 = vmatpush1.msra.mxu0 %v1043
    %1071 = vmatprep.subr.mxu0 0.0
    %1072 = vmatpush1.msra.mxu0 %v1044
    %1073 = vmatprep.subr.mxu0 0.0
    %1074 = vmatpush1.msra.mxu0 %v1045
    %1075 = vmatprep.subr.mxu0 0.0
    %1076 = vmatpush1.msra.mxu0 %v1046
    %1077 = vmatprep.subr.mxu0 0.0
    %1078 = vmatpush1.msra.mxu0 %v1047
    %1079 = vmatprep.subr.mxu0 0.0
    %1080 = vmatpush1.msra.mxu0 %v1048
    %1081 = vmatprep.subr.mxu0 0.0
    %1082 = vmatpush1.msra.mxu0 0.0
    %1083 = vmatprep.subr.mxu0 0.0
    %1084 = vmatpush1.msra.mxu0 0.0
    %1085 = vmatprep.subr.mxu0 0.0
    %1086 = vmatpush1.msra.mxu0 0.0
    %1087 = vmatprep.subr.mxu0 0.0
    %1088 = vmatpush1.msra.mxu0 0.0
    %1089 = vmatprep.subr.mxu0 0.0
    %1090 = vmatpush1.msra.mxu0 0.0
    %1091 = vmatprep.subr.mxu0 0.0
    %1092 = vmatpush1.msra.mxu0 0.0
    %1093 = vmatprep.subr.mxu0 0.0
    %1094 = vmatpush1.msra.mxu0 0.0
    %1095 = vmatprep.subr.mxu0 0.0
    %1096 = vmatpush1.msra.mxu0 0.0
    %1097 = vmatprep.subr.mxu0 0.0
    %1098 = vmatpush1.msra.mxu0 0.0
    %1099 = vmatprep.subr.mxu0 0.0
    %1100 = vmatpush1.msra.mxu0 0.0
    %1101 = vmatprep.subr.mxu0 0.0
    %1102 = vmatpush1.msra.mxu0 0.0
    %1103 = vmatprep.subr.mxu0 0.0
    %1104 = vmatpush1.msra.mxu0 0.0
    %1105 = vmatprep.subr.mxu0 0.0
    %1106 = vmatpush1.msra.mxu0 0.0
    %1107 = vmatprep.subr.mxu0 0.0
    %1108 = vmatpush1.msra.mxu0 0.0
    %1109 = vmatprep.subr.mxu0 0.0
    %1110 = vmatpush1.msra.mxu0 0.0
    %1111 = vmatprep.subr.mxu0 0.0
    %1112 = vmatpush1.msra.mxu0 0.0
    %1113 = vmatprep.mubr.f32.mxu0 0.0
    %1114 = vmatmul.mubr.f32.gmra.mrb[0].mxu0 %v1025
    %v1115 = vpop.f32.mrb[0].mxu0
    %v1116 = vadd.f32 0.0, %v1115
    %v1117 = vpop.f32.mrb[0].mxu0
    %1118 = vmatprep.mubr.f32.mxu0 0.0
    %1119 = vmatmul.mubr.f32.gmra.mrb[0].mxu0 %v1026
    %v1120 = vpop.f32.mrb[0].mxu0
    %v1121 = vadd.f32 0.0, %v1120
    %v1122 = vpop.f32.mrb[0].mxu0
    %1123 = vmatprep.mubr.f32.mxu0 0.0
    %1124 = vmatmul.mubr.f32.gmra.mrb[0].mxu0 %v1027
    %v1125 = vpop.f32.mrb[0].mxu0
    %v1126 = vadd.f32 0.0, %v1125
    %v1127 = vpop.f32.mrb[0].mxu0
    %1128 = vmatprep.mubr.f32.mxu0 0.0
    %1129 = vmatmul.mubr.f32.gmra.mrb[0].mxu0 %v1028
    %v1130 = vpop.f32.mrb[0].mxu0
    %v1131 = vadd.f32 0.0, %v1130
    %v1132 = vpop.f32.mrb[0].mxu0
    %1133 = vmatprep.mubr.f32.mxu0 0.0
    %1134 = vmatmul.mubr.f32.gmra.mrb[0].mxu0 %v1029
    %v1135 = vpop.f32.mrb[0].mxu0
    %v1136 = vadd.f32 0.0, %v1135
    %v1137 = vpop.f32.mrb[0].mxu0
    %1138 = vmatprep.mubr.f32.mxu0 0.0
    %1139 = vmatmul.mubr.f32.gmra.mrb[0].mxu0 %v1030
    %v1140 = vpop.f32.mrb[0].mxu0
    %v1141 = vadd.f32 0.0, %v1140
    %v1142 = vpop.f32.mrb[0].mxu0
    %1143 = vmatprep.mubr.f32.mxu0 0.0
    %1144 = vmatmul.mubr.f32.gmra.mrb[0].mxu0 %v1031
    %v1145 = vpop.f32.mrb[0].mxu0
    %v1146 = vadd.f32 0.0, %v1145
    %v1147 = vpop.f32.mrb[0].mxu0
    %1148 = vmatprep.mubr.f32.mxu0 0.0
    %1149 = vmatmul.mubr.f32.gmra.mrb[0].mxu0 %v1032
    %v1150 = vpop.f32.mrb[0].mxu0
    %v1151 = vadd.f32 0.0, %v1150
    %v1152 = vpop.f32.mrb[0].mxu0
    %1153 = vdwg.mxu0
    %vm1154 = vcmask 64512
    %1155 = vst.msk [vmem:[#allocation6] sm:$0xff] %vm1154, %v1116
    %1156 = vst.msk [vmem:[#allocation6 + $0x8] sm:$0xff] %vm1154, %v1121
    %1157 = vst.msk [vmem:[#allocation6 + $0x10] sm:$0xff] %vm1154, %v1126
    %1158 = vst.msk [vmem:[#allocation6 + $0x18] sm:$0xff] %vm1154, %v1131
    %1159 = vst.msk [vmem:[#allocation6 + $0x20] sm:$0xff] %vm1154, %v1136
    %1160 = vst.msk [vmem:[#allocation6 + $0x28] sm:$0xff] %vm1154, %v1141
    %1161 = vst.msk [vmem:[#allocation6 + $0x30] sm:$0xff] %vm1154, %v1146
    %1162 = vst.msk [vmem:[#allocation6 + $0x38] sm:$0xff] %vm1154, %v1151
    // Predicated region
    $region30: #{tpu_custom_call.1} parent=1 // pred_check
      _
    $region31: #{tpu_custom_call.1} parent=1 // pred_check_branch
      %1164 = sbr.rel (0) target = $region33
    $region32: #{tpu_custom_call.1} parent=1 // pred_region
      %s1166 = ssub.s32 1024, 1024
      %1167 = vsyncadd [#allocation7], %s1166
      %s1168 = sshll.u32 [#allocation6], 4
      %s1169 = int_to_ptr.vmem [resolvable:$true] %s1168
      %1174 = dma.vmem_to_hbm [thread:$0]  %s1169, 1024, %s6, [#allocation7], 128, 128, 8
    $region33: #{tpu_custom_call.1} parent=1 // pred_fallthru
      _
    // Predicated region
    $region34: #{tpu_custom_call.1} parent=1 // pred_check
      _
    $region35: #{tpu_custom_call.1} parent=1 // pred_check_branch
      %1176 = sbr.rel (0) target = $region37
    $region36: #{tpu_custom_call.1} parent=1 // pred_region
      %1177 = dma.done [#allocation7], 1024
    $region37: #{tpu_custom_call.1} parent=1 // pred_fallthru
      _
    %1178 = vsyncpa [#allocation7], 1

// kernel: tpu_custom_call.1
$region0: #{tpu_custom_call.1}
  #allocation0 [shape = 'u32[]', space=smem, size = 0x4, offset = 0x4, fixed_abs, tag = 'smem constant byte address 0x4 - core index']
  #allocation1 [shape = 'u32[144,128]{1,0:T(1,128)}', space=vmem, size = 0x12000, scoped, tag = 'internal scratch']
  #allocation2 [shape = 'f32[8,128]{1,0:T(8,128)}', space=vmem, size = 0x1000, scoped, tag = 'scratch operand']
  #allocation3 [shape = 'f32[8,128]{1,0:T(8,128)}', space=vmem, size = 0x1000, scoped, tag = 'scratch operand']
  #allocation4 [shape = 'f32[8,8,128]{2,1,0:T(8,128)}', space=vmem, size = 0x8000, scoped, tag = 'scratch operand']
  #allocation5 [shape = 'f32[8,8,128]{2,1,0:T(8,128)}', space=vmem, size = 0x8000, scoped, tag = 'scratch operand']
  %s0 = inlined_call_operand.vmem [shape: f32[8,8,4], index: 0, kind: input, shape index: {}]
  %s1 = inlined_call_operand.vmem [shape: f32[8,8,128], index: 1, kind: input, shape index: {}]
  %s2 = inlined_call_operand.vmem [shape: f32[128,128], index: 2, kind: input, shape index: {}]
  %s3 = inlined_call_operand.vmem [shape: f32[4,128], index: 3, kind: input, shape index: {}]
  %s4 = inlined_call_operand.vmem [shape: f32[128,8], index: 4, kind: input, shape index: {}]
  %s5 = inlined_call_operand.vmem [shape: f32[1,128], index: 5, kind: input, shape index: {}]
  %s6 = inlined_call_operand.hbm [shape: f32[8,8,8], index: 6, kind: output, shape index: {}]
  %s7 = sld [smem:[#allocation0]]
  $region38: #{tpu_custom_call.1} parent=0
    _
  %s9 = ssub.s32 1, %s7
  %s10 = scalar_select 0, %s9, %s7
  $region1: #{tpu_custom_call.1} parent=0
    #allocation6 [shape = 'u8[32768]{0}', space=vmem, size = 0x8000, scoped, tag = 'output window, operand 0, single buffered']
    #allocation7 [shape = 's32[1]{0}', space=sflag, size = 0x4, scoped, tag = 'scoped memory for tpu_custom_call.1']
    %11 = vsyncpa [#allocation7], 0
    // Predicated region
    $region2: #{tpu_custom_call.1} parent=1 // pred_check
      _
    $region3: #{tpu_custom_call.1} parent=1 // pred_check_branch
      %13 = sbr.rel (0) target = $region5
    $region4: #{tpu_custom_call.1} parent=1 // pred_region
      _
    $region5: #{tpu_custom_call.1} parent=1 // pred_fallthru
      _
    // Predicated region
    $region6: #{tpu_custom_call.1} parent=1 // pred_check
      _
    $region7: #{tpu_custom_call.1} parent=1 // pred_check_branch
      %15 = sbr.rel (0) target = $region9
    $region8: #{tpu_custom_call.1} parent=1 // pred_region
      _
    $region9: #{tpu_custom_call.1} parent=1 // pred_fallthru
      _
    // Predicated region
    $region10: #{tpu_custom_call.1} parent=1 // pred_check
      _
    $region11: #{tpu_custom_call.1} parent=1 // pred_check_branch
      %17 = sbr.rel (0) target = $region13
    $region12: #{tpu_custom_call.1} parent=1 // pred_region
      _
    $region13: #{tpu_custom_call.1} parent=1 // pred_fallthru
      _
    // Predicated region
    $region14: #{tpu_custom_call.1} parent=1 // pred_check
      _
    $region15: #{tpu_custom_call.1} parent=1 // pred_check_branch
      %19 = sbr.rel (0) target = $region17
    $region16: #{tpu_custom_call.1} parent=1 // pred_region
      _
    $region17: #{tpu_custom_call.1} parent=1 // pred_fallthru
      _
    // Predicated region
    $region18: #{tpu_custom_call.1} parent=1 // pred_check
      _
    $region19: #{tpu_custom_call.1} parent=1 // pred_check_branch
      %21 = sbr.rel (0) target = $region21
    $region20: #{tpu_custom_call.1} parent=1 // pred_region
      _
    $region21: #{tpu_custom_call.1} parent=1 // pred_fallthru
      _
    // Predicated region
    $region22: #{tpu_custom_call.1} parent=1 // pred_check
      _
    $region23: #{tpu_custom_call.1} parent=1 // pred_check_branch
      %23 = sbr.rel (0) target = $region25
    $region24: #{tpu_custom_call.1} parent=1 // pred_region
      _
    $region25: #{tpu_custom_call.1} parent=1 // pred_fallthru
      _
    %p24 = scmp.eq.s32.totalorder 0, 0
    // Predicated region
    $region26: #{tpu_custom_call.1} parent=1 // pred_check
      %p25 = pneg %p24
    $region27: #{tpu_custom_call.1} parent=1 // pred_check_branch
      %27 = sbr.rel (%p25) target = $region29
    $region28: #{tpu_custom_call.1} parent=1 // pred_region
      %v28 = vld [vmem:[%s5] sm:$0x1]
      %v30 = vlaneseq
      %v31 = vshrl.u32 %v30, 7
      %v32 = vsub.s32 0, %v31
      %v33 = vrot.slane %v28, %v32
      %35 = vst [vmem:[#allocation2] sm:$0xff] %v33
      %v36 = vtanh.pop %v33
      %37 = vst [vmem:[#allocation3] sm:$0xff] %v36
    $region29: #{tpu_custom_call.1} parent=1 // pred_fallthru
      _
    %v38 = vld [vmem:[%s1] sm:$0xff]
    %v39 = vld [vmem:[%s1 + $0x8] sm:$0xff]
    %v40 = vld [vmem:[%s1 + $0x10] sm:$0xff]
    %v41 = vld [vmem:[%s1 + $0x18] sm:$0xff]
    %v42 = vld [vmem:[%s1 + $0x20] sm:$0xff]
    %v43 = vld [vmem:[%s1 + $0x28] sm:$0xff]
    %v44 = vld [vmem:[%s1 + $0x30] sm:$0xff]
    %v45 = vld [vmem:[%s1 + $0x38] sm:$0xff]
    %v46 = vmul.f32 %v38, 0.1
    %v47 = vmul.f32 %v39, 0.1
    %v48 = vmul.f32 %v40, 0.1
    %v49 = vmul.f32 %v41, 0.1
    %v50 = vmul.f32 %v42, 0.1
    %v51 = vmul.f32 %v43, 0.1
    %v52 = vmul.f32 %v44, 0.1
    %v53 = vmul.f32 %v45, 0.1
    %v54 = vld [vmem:[%s0] sm:$0xff]
    %v55 = vld [vmem:[%s0 + $0x8] sm:$0xff]
    %v56 = vld [vmem:[%s0 + $0x10] sm:$0xff]
    %v57 = vld [vmem:[%s0 + $0x18] sm:$0xff]
    %v58 = vld [vmem:[%s0 + $0x20] sm:$0xff]
    %v59 = vld [vmem:[%s0 + $0x28] sm:$0xff]
    %v60 = vld [vmem:[%s0 + $0x30] sm:$0xff]
    %v61 = vld [vmem:[%s0 + $0x38] sm:$0xff]
    %v62 = vld [vmem:[%s3] sm:$0xf]
    %vm63 = vcmask 31744
    %v65 = vsel %vm63, %v54, 0
    %v68 = vsel %vm63, %v55, 0
    %v71 = vsel %vm63, %v56, 0
    %v74 = vsel %vm63, %v57, 0
    %v77 = vsel %vm63, %v58, 0
    %v80 = vsel %vm63, %v59, 0
    %v83 = vsel %vm63, %v60, 0
    %v86 = vsel %vm63, %v61, 0
    %vm88 = vcmask 1043456
    %v90 = vsel %vm88, %v62, 0
    %92 = vmatprep.subr.mxu0 0.0
    %93 = vmatpush1.msra.mxu0 %v90
    %94 = vmatprep.subr.mxu0 0.0
    %95 = vmatpush1.msra.mxu0 0.0
    %96 = vmatprep.subr.mxu0 0.0
    %97 = vmatpush1.msra.mxu0 0.0
    %98 = vmatprep.subr.mxu0 0.0
    %99 = vmatpush1.msra.mxu0 0.0
    %100 = vmatprep.subr.mxu0 0.0
    %101 = vmatpush1.msra.mxu0 0.0
    %102 = vmatprep.subr.mxu0 0.0
    %103 = vmatpush1.msra.mxu0 0.0
    %104 = vmatprep.subr.mxu0 0.0
    %105 = vmatpush1.msra.mxu0 0.0
    %106 = vmatprep.subr.mxu0 0.0
    %107 = vmatpush1.msra.mxu0 0.0
    %108 = vmatprep.subr.mxu0 0.0
    %109 = vmatpush1.msra.mxu0 0.0
    %110 = vmatprep.subr.mxu0 0.0
    %111 = vmatpush1.msra.mxu0 0.0
    %112 = vmatprep.subr.mxu0 0.0
    %113 = vmatpush1.msra.mxu0 0.0
    %114 = vmatprep.subr.mxu0 0.0
    %115 = vmatpush1.msra.mxu0 0.0
    %116 = vmatprep.subr.mxu0 0.0
    %117 = vmatpush1.msra.mxu0 0.0
    %118 = vmatprep.subr.mxu0 0.0
    %119 = vmatpush1.msra.mxu0 0.0
    %120 = vmatprep.subr.mxu0 0.0
    %121 = vmatpush1.msra.mxu0 0.0
    %122 = vmatprep.subr.mxu0 0.0
    %123 = vmatpush1.msra.mxu0 0.0
    %124 = vmatprep.subr.mxu0 0.0
    %125 = vmatpush1.msra.mxu0 0.0
    %126 = vmatprep.subr.mxu0 0.0
    %127 = vmatpush1.msra.mxu0 0.0
    %128 = vmatprep.subr.mxu0 0.0
    %129 = vmatpush1.msra.mxu0 0.0
    %130 = vmatprep.subr.mxu0 0.0
    %131 = vmatpush1.msra.mxu0 0.0
    %132 = vmatprep.subr.mxu0 0.0
    %133 = vmatpush1.msra.mxu0 0.0
    %134 = vmatprep.subr.mxu0 0.0
    %135 = vmatpush1.msra.mxu0 0.0
    %136 = vmatprep.subr.mxu0 0.0
    %137 = vmatpush1.msra.mxu0 0.0
    %138 = vmatprep.subr.mxu0 0.0
    %139 = vmatpush1.msra.mxu0 0.0
    %140 = vmatprep.subr.mxu0 0.0
    %141 = vmatpush1.msra.mxu0 0.0
    %142 = vmatprep.subr.mxu0 0.0
    %143 = vmatpush1.msra.mxu0 0.0
    %144 = vmatprep.subr.mxu0 0.0
    %145 = vmatpush1.msra.mxu0 0.0
    %146 = vmatprep.subr.mxu0 0.0
    %147 = vmatpush1.msra.mxu0 0.0
    %148 = vmatprep.subr.mxu0 0.0
    %149 = vmatpush1.msra.mxu0 0.0
    %150 = vmatprep.subr.mxu0 0.0
    %151 = vmatpush1.msra.mxu0 0.0
    %152 = vmatprep.subr.mxu0 0.0
    %153 = vmatpush1.msra.mxu0 0.0
    %154 = vmatprep.subr.mxu0 0.0
    %155 = vmatpush1.msra.mxu0 0.0
    %156 = vmatprep.mubr.f32.mxu0 0.0
    %157 = vmatmul.mubr.f32.gmra.mrb[0].mxu0 %v65
    %v158 = vpop.f32.mrb[0].mxu0
    %v159 = vadd.f32 0.0, %v158
    %v160 = vpop.f32.mrb[0].mxu0
    %161 = vmatprep.mubr.f32.mxu0 0.0
    %162 = vmatmul.mubr.f32.gmra.mrb[0].mxu0 %v68
    %v163 = vpop.f32.mrb[0].mxu0
    %v164 = vadd.f32 0.0, %v163
    %v165 = vpop.f32.mrb[0].mxu0
    %166 = vmatprep.mubr.f32.mxu0 0.0
    %167 = vmatmul.mubr.f32.gmra.mrb[0].mxu0 %v71
    %v168 = vpop.f32.mrb[0].mxu0
    %v169 = vadd.f32 0.0, %v168
    %v170 = vpop.f32.mrb[0].mxu0
    %171 = vmatprep.mubr.f32.mxu0 0.0
    %172 = vmatmul.mubr.f32.gmra.mrb[0].mxu0 %v74
    %v173 = vpop.f32.mrb[0].mxu0
    %v174 = vadd.f32 0.0, %v173
    %v175 = vpop.f32.mrb[0].mxu0
    %176 = vmatprep.mubr.f32.mxu0 0.0
    %177 = vmatmul.mubr.f32.gmra.mrb[0].mxu0 %v77
    %v178 = vpop.f32.mrb[0].mxu0
    %v179 = vadd.f32 0.0, %v178
    %v180 = vpop.f32.mrb[0].mxu0
    %181 = vmatprep.mubr.f32.mxu0 0.0
    %182 = vmatmul.mubr.f32.gmra.mrb[0].mxu0 %v80
    %v183 = vpop.f32.mrb[0].mxu0
    %v184 = vadd.f32 0.0, %v183
    %v185 = vpop.f32.mrb[0].mxu0
    %186 = vmatprep.mubr.f32.mxu0 0.0
    %187 = vmatmul.mubr.f32.gmra.mrb[0].mxu0 %v83
    %v188 = vpop.f32.mrb[0].mxu0
    %v189 = vadd.f32 0.0, %v188
    %v190 = vpop.f32.mrb[0].mxu0
    %191 = vmatprep.mubr.f32.mxu0 0.0
    %192 = vmatmul.mubr.f32.gmra.mrb[0].mxu0 %v86
    %v193 = vpop.f32.mrb[0].mxu0
    %v194 = vadd.f32 0.0, %v193
    %v195 = vpop.f32.mrb[0].mxu0
    %196 = vdwg.mxu0
    %v197 = vadd.f32 %v46, %v159
    %v198 = vadd.f32 %v47, %v164
    %v199 = vadd.f32 %v48, %v169
    %v200 = vadd.f32 %v49, %v174
    %v201 = vadd.f32 %v50, %v179
    %v202 = vadd.f32 %v51, %v184
    %v203 = vadd.f32 %v52, %v189
    %v204 = vadd.f32 %v53, %v194
    %v213 = vrot.slane %v198, 7
    %vm214 = vcmask 1041409
    %v215 = vsel %vm214, %v213, %v197
    %v216 = vrot.slane %v199, 6
    %vm217 = vcmask 1042434
    %v218 = vsel %vm217, %v216, %v215
    %v219 = vrot.slane %v200, 5
    %vm220 = vcmask 1043459
    %v221 = vsel %vm220, %v219, %v218
    %v222 = vrot.slane %v201, 4
    %vm223 = vcmask 1044484
    %v224 = vsel %vm223, %v222, %v221
    %v225 = vrot.slane %v202, 3
    %vm226 = vcmask 1045509
    %v227 = vsel %vm226, %v225, %v224
    %v228 = vrot.slane %v203, 2
    %vm229 = vcmask 1046534
    %v230 = vsel %vm229, %v228, %v227
    %v231 = vrot.slane %v204, 1
    %vm232 = vcmask 1047559
    %v233 = vsel %vm232, %v231, %v230
    %235 = vst [vmem:[#allocation5] sm:$0xff] %v233
    %v236 = vsel %vm217, %v213, %v197
    %v237 = vsel %vm220, %v216, %v236
    %v238 = vsel %vm223, %v219, %v237
    %v239 = vsel %vm226, %v222, %v238
    %v240 = vsel %vm229, %v225, %v239
    %v241 = vsel %vm232, %v228, %v240
    %s244 = scalar_lea.vmem [#allocation5], 8
    %245 = vst [vmem:[%s244 - $0x1] sm:$0xfe] %v241
    %246 = vst [vmem:[%s244 + $0x7] sm:$0x1] %v231
    %v247 = vsel %vm220, %v213, %v197
    %v248 = vsel %vm223, %v216, %v247
    %v249 = vsel %vm226, %v219, %v248
    %v250 = vsel %vm229, %v222, %v249
    %v251 = vsel %vm232, %v225, %v250
    %v252 = vsel %vm214, %v231, %v228
    %s255 = scalar_lea.vmem [#allocation5], 16
    %256 = vst [vmem:[%s255 - $0x2] sm:$0xfc] %v251
    %257 = vst [vmem:[%s255 + $0x6] sm:$0x3] %v252
    %v258 = vsel %vm223, %v213, %v197
    %v259 = vsel %vm226, %v216, %v258
    %v260 = vsel %vm229, %v219, %v259
    %v261 = vsel %vm232, %v222, %v260
    %v262 = vsel %vm214, %v228, %v225
    %v263 = vsel %vm217, %v231, %v262
    %s266 = scalar_lea.vmem [#allocation5], 24
    %267 = vst [vmem:[%s266 - $0x3] sm:$0xf8] %v261
    %268 = vst [vmem:[%s266 + $0x5] sm:$0x7] %v263
    %v269 = vsel %vm226, %v213, %v197
    %v270 = vsel %vm229, %v216, %v269
    %v271 = vsel %vm232, %v219, %v270
    %v272 = vsel %vm214, %v225, %v222
    %v273 = vsel %vm217, %v228, %v272
    %v274 = vsel %vm220, %v231, %v273
    %s277 = scalar_lea.vmem [#allocation5], 32
    %278 = vst [vmem:[%s277 - $0x4] sm:$0xf0] %v271
    %279 = vst [vmem:[%s277 + $0x4] sm:$0xf] %v274
    %v280 = vsel %vm229, %v213, %v197
    %v281 = vsel %vm232, %v216, %v280
    %v282 = vsel %vm214, %v222, %v219
    %v283 = vsel %vm217, %v225, %v282
    %v284 = vsel %vm220, %v228, %v283
    %v285 = vsel %vm223, %v231, %v284
    %s288 = scalar_lea.vmem [#allocation5], 40
    %289 = vst [vmem:[%s288 - $0x5] sm:$0xe0] %v281
    %290 = vst [vmem:[%s288 + $0x3] sm:$0x1f] %v285
    %v291 = vsel %vm232, %v213, %v197
    %v292 = vsel %vm214, %v219, %v216
    %v293 = vsel %vm217, %v222, %v292
    %v294 = vsel %vm220, %v225, %v293
    %v295 = vsel %vm223, %v228, %v294
    %v296 = vsel %vm226, %v231, %v295
    %s299 = scalar_lea.vmem [#allocation5], 48
    %300 = vst [vmem:[%s299 - $0x6] sm:$0xc0] %v291
    %301 = vst [vmem:[%s299 + $0x2] sm:$0x3f] %v296
    %v302 = vsel %vm214, %v216, %v213
    %v303 = vsel %vm217, %v219, %v302
    %v304 = vsel %vm220, %v222, %v303
    %v305 = vsel %vm223, %v225, %v304
    %v306 = vsel %vm226, %v228, %v305
    %v307 = vsel %vm229, %v231, %v306
    %s310 = scalar_lea.vmem [#allocation5], 56
    %311 = vst [vmem:[%s310 - $0x7] sm:$0x80] %v197
    %312 = vst [vmem:[%s310 + $0x1] sm:$0x7f] %v307
    %v313 = vld [vmem:[%s2] sm:$0xff]
    %v314 = vld [vmem:[%s2 + $0x8] sm:$0xff]
    %v315 = vld [vmem:[%s2 + $0x10] sm:$0xff]
    %v316 = vld [vmem:[%s2 + $0x18] sm:$0xff]
    %v317 = vld [vmem:[%s2 + $0x20] sm:$0xff]
    %v318 = vld [vmem:[%s2 + $0x28] sm:$0xff]
    %v319 = vld [vmem:[%s2 + $0x30] sm:$0xff]
    %v320 = vld [vmem:[%s2 + $0x38] sm:$0xff]
    %v321 = vld [vmem:[%s2 + $0x40] sm:$0xff]
    %v322 = vld [vmem:[%s2 + $0x48] sm:$0xff]
    %v323 = vld [vmem:[%s2 + $0x50] sm:$0xff]
    %v324 = vld [vmem:[%s2 + $0x58] sm:$0xff]
    %v325 = vld [vmem:[%s2 + $0x60] sm:$0xff]
    %v326 = vld [vmem:[%s2 + $0x68] sm:$0xff]
    %v327 = vld [vmem:[%s2 + $0x70] sm:$0xff]
    %v328 = vld [vmem:[%s2 + $0x78] sm:$0xff]
    %v329 = vld [vmem:[#allocation2] sm:$0xff]
    %v330 = vld [vmem:[#allocation3] sm:$0xff]
    %331 = vmatprep.subr.mxu0 0.0
    %332 = vmatpush1.msra.mxu0 %v313
    %333 = vmatprep.subr.mxu0 0.0
    %334 = vmatpush1.msra.mxu0 %v314
    %335 = vmatprep.subr.mxu0 0.0
    %336 = vmatpush1.msra.mxu0 %v315
    %337 = vmatprep.subr.mxu0 0.0
    %338 = vmatpush1.msra.mxu0 %v316
    %339 = vmatprep.subr.mxu0 0.0
    %340 = vmatpush1.msra.mxu0 %v317
    %341 = vmatprep.subr.mxu0 0.0
    %342 = vmatpush1.msra.mxu0 %v318
    %343 = vmatprep.subr.mxu0 0.0
    %344 = vmatpush1.msra.mxu0 %v319
    %345 = vmatprep.subr.mxu0 0.0
    %346 = vmatpush1.msra.mxu0 %v320
    %347 = vmatprep.subr.mxu0 0.0
    %348 = vmatpush1.msra.mxu0 %v321
    %349 = vmatprep.subr.mxu0 0.0
    %350 = vmatpush1.msra.mxu0 %v322
    %351 = vmatprep.subr.mxu0 0.0
    %352 = vmatpush1.msra.mxu0 %v323
    %353 = vmatprep.subr.mxu0 0.0
    %354 = vmatpush1.msra.mxu0 %v324
    %355 = vmatprep.subr.mxu0 0.0
    %356 = vmatpush1.msra.mxu0 %v325
    %357 = vmatprep.subr.mxu0 0.0
    %358 = vmatpush1.msra.mxu0 %v326
    %359 = vmatprep.subr.mxu0 0.0
    %360 = vmatpush1.msra.mxu0 %v327
    %361 = vmatprep.subr.mxu0 0.0
    %362 = vmatpush1.msra.mxu0 %v328
    %363 = vmatprep.subr.mxu0 0.0
    %364 = vmatpush1.msra.mxu0 0.0
    %365 = vmatprep.subr.mxu0 0.0
    %366 = vmatpush1.msra.mxu0 0.0
    %367 = vmatprep.subr.mxu0 0.0
    %368 = vmatpush1.msra.mxu0 0.0
    %369 = vmatprep.subr.mxu0 0.0
    %370 = vmatpush1.msra.mxu0 0.0
    %371 = vmatprep.subr.mxu0 0.0
    %372 = vmatpush1.msra.mxu0 0.0
    %373 = vmatprep.subr.mxu0 0.0
    %374 = vmatpush1.msra.mxu0 0.0
    %375 = vmatprep.subr.mxu0 0.0
    %376 = vmatpush1.msra.mxu0 0.0
    %377 = vmatprep.subr.mxu0 0.0
    %378 = vmatpush1.msra.mxu0 0.0
    %379 = vmatprep.subr.mxu0 0.0
    %380 = vmatpush1.msra.mxu0 0.0
    %381 = vmatprep.subr.mxu0 0.0
    %382 = vmatpush1.msra.mxu0 0.0
    %383 = vmatprep.subr.mxu0 0.0
    %384 = vmatpush1.msra.mxu0 0.0
    %385 = vmatprep.subr.mxu0 0.0
    %386 = vmatpush1.msra.mxu0 0.0
    %387 = vmatprep.subr.mxu0 0.0
    %388 = vmatpush1.msra.mxu0 0.0
    %389 = vmatprep.subr.mxu0 0.0
    %390 = vmatpush1.msra.mxu0 0.0
    %391 = vmatprep.subr.mxu0 0.0
    %392 = vmatpush1.msra.mxu0 0.0
    %393 = vmatprep.subr.mxu0 0.0
    %394 = vmatpush1.msra.mxu0 0.0
    %395 = vmatprep.mubr.f32.mxu0 0.0
    %396 = vmatmul.mubr.f32.gmra.mrb[0].mxu0 %v330
    %v397 = vpop.f32.mrb[0].mxu0
    %v398 = vadd.f32 0.0, %v397
    %v399 = vpop.f32.mrb[0].mxu0
    %400 = vdwg.mxu0
    %v401 = vmul.f32 %v329, 0.8
    %v402 = vld [vmem:[#allocation5] sm:$0xff]
    %v403 = vadd.f32 %v401, %v402
    %v404 = vadd.f32 %v403, %v398
    %v405 = vtanh.pop %v404
    %406 = vst [vmem:[#allocation4] sm:$0xff] %v405
    %407 = vmatprep.subr.mxu0 0.0
    %408 = vmatpush1.msra.mxu0 %v313
    %409 = vmatprep.subr.mxu0 0.0
    %410 = vmatpush1.msra.mxu0 %v314
    %411 = vmatprep.subr.mxu0 0.0
    %412 = vmatpush1.msra.mxu0 %v315
    %413 = vmatprep.subr.mxu0 0.0
    %414 = vmatpush1.msra.mxu0 %v316
    %415 = vmatprep.subr.mxu0 0.0
    %416 = vmatpush1.msra.mxu0 %v317
    %417 = vmatprep.subr.mxu0 0.0
    %418 = vmatpush1.msra.mxu0 %v318
    %419 = vmatprep.subr.mxu0 0.0
    %420 = vmatpush1.msra.mxu0 %v319
    %421 = vmatprep.subr.mxu0 0.0
    %422 = vmatpush1.msra.mxu0 %v320
    %423 = vmatprep.subr.mxu0 0.0
    %424 = vmatpush1.msra.mxu0 %v321
    %425 = vmatprep.subr.mxu0 0.0
    %426 = vmatpush1.msra.mxu0 %v322
    %427 = vmatprep.subr.mxu0 0.0
    %428 = vmatpush1.msra.mxu0 %v323
    %429 = vmatprep.subr.mxu0 0.0
    %430 = vmatpush1.msra.mxu0 %v324
    %431 = vmatprep.subr.mxu0 0.0
    %432 = vmatpush1.msra.mxu0 %v325
    %433 = vmatprep.subr.mxu0 0.0
    %434 = vmatpush1.msra.mxu0 %v326
    %435 = vmatprep.subr.mxu0 0.0
    %436 = vmatpush1.msra.mxu0 %v327
    %437 = vmatprep.subr.mxu0 0.0
    %438 = vmatpush1.msra.mxu0 %v328
    %439 = vmatprep.subr.mxu0 0.0
    %440 = vmatpush1.msra.mxu0 0.0
    %441 = vmatprep.subr.mxu0 0.0
    %442 = vmatpush1.msra.mxu0 0.0
    %443 = vmatprep.subr.mxu0 0.0
    %444 = vmatpush1.msra.mxu0 0.0
    %445 = vmatprep.subr.mxu0 0.0
    %446 = vmatpush1.msra.mxu0 0.0
    %447 = vmatprep.subr.mxu0 0.0
    %448 = vmatpush1.msra.mxu0 0.0
    %449 = vmatprep.subr.mxu0 0.0
    %450 = vmatpush1.msra.mxu0 0.0
    %451 = vmatprep.subr.mxu0 0.0
    %452 = vmatpush1.msra.mxu0 0.0
    %453 = vmatprep.subr.mxu0 0.0
    %454 = vmatpush1.msra.mxu0 0.0
    %455 = vmatprep.subr.mxu0 0.0
    %456 = vmatpush1.msra.mxu0 0.0
    %457 = vmatprep.subr.mxu0 0.0
    %458 = vmatpush1.msra.mxu0 0.0
    %459 = vmatprep.subr.mxu0 0.0
    %460 = vmatpush1.msra.mxu0 0.0
    %461 = vmatprep.subr.mxu0 0.0
    %462 = vmatpush1.msra.mxu0 0.0
    %463 = vmatprep.subr.mxu0 0.0
    %464 = vmatpush1.msra.mxu0 0.0
    %465 = vmatprep.subr.mxu0 0.0
    %466 = vmatpush1.msra.mxu0 0.0
    %467 = vmatprep.subr.mxu0 0.0
    %468 = vmatpush1.msra.mxu0 0.0
    %469 = vmatprep.subr.mxu0 0.0
    %470 = vmatpush1.msra.mxu0 0.0
    %471 = vmatprep.mubr.f32.mxu0 0.0
    %472 = vmatmul.mubr.f32.gmra.mrb[0].mxu0 %v405
    %v473 = vpop.f32.mrb[0].mxu0
    %v474 = vadd.f32 0.0, %v473
    %v475 = vpop.f32.mrb[0].mxu0
    %476 = vdwg.mxu0
    %v477 = vmul.f32 %v404, 0.8
    %v478 = vld [vmem:[%s244] sm:$0xff]
    %v479 = vadd.f32 %v477, %v478
    %v480 = vadd.f32 %v479, %v474
    %v481 = vtanh.pop %v480
    %s482 = scalar_lea.vmem [#allocation4], 8
    %483 = vst [vmem:[%s482] sm:$0xff] %v481
    %484 = vmatprep.subr.mxu0 0.0
    %485 = vmatpush1.msra.mxu0 %v313
    %486 = vmatprep.subr.mxu0 0.0
    %487 = vmatpush1.msra.mxu0 %v314
    %488 = vmatprep.subr.mxu0 0.0
    %489 = vmatpush1.msra.mxu0 %v315
    %490 = vmatprep.subr.mxu0 0.0
    %491 = vmatpush1.msra.mxu0 %v316
    %492 = vmatprep.subr.mxu0 0.0
    %493 = vmatpush1.msra.mxu0 %v317
    %494 = vmatprep.subr.mxu0 0.0
    %495 = vmatpush1.msra.mxu0 %v318
    %496 = vmatprep.subr.mxu0 0.0
    %497 = vmatpush1.msra.mxu0 %v319
    %498 = vmatprep.subr.mxu0 0.0
    %499 = vmatpush1.msra.mxu0 %v320
    %500 = vmatprep.subr.mxu0 0.0
    %501 = vmatpush1.msra.mxu0 %v321
    %502 = vmatprep.subr.mxu0 0.0
    %503 = vmatpush1.msra.mxu0 %v322
    %504 = vmatprep.subr.mxu0 0.0
    %505 = vmatpush1.msra.mxu0 %v323
    %506 = vmatprep.subr.mxu0 0.0
    %507 = vmatpush1.msra.mxu0 %v324
    %508 = vmatprep.subr.mxu0 0.0
    %509 = vmatpush1.msra.mxu0 %v325
    %510 = vmatprep.subr.mxu0 0.0
    %511 = vmatpush1.msra.mxu0 %v326
    %512 = vmatprep.subr.mxu0 0.0
    %513 = vmatpush1.msra.mxu0 %v327
    %514 = vmatprep.subr.mxu0 0.0
    %515 = vmatpush1.msra.mxu0 %v328
    %516 = vmatprep.subr.mxu0 0.0
    %517 = vmatpush1.msra.mxu0 0.0
    %518 = vmatprep.subr.mxu0 0.0
    %519 = vmatpush1.msra.mxu0 0.0
    %520 = vmatprep.subr.mxu0 0.0
    %521 = vmatpush1.msra.mxu0 0.0
    %522 = vmatprep.subr.mxu0 0.0
    %523 = vmatpush1.msra.mxu0 0.0
    %524 = vmatprep.subr.mxu0 0.0
    %525 = vmatpush1.msra.mxu0 0.0
    %526 = vmatprep.subr.mxu0 0.0
    %527 = vmatpush1.msra.mxu0 0.0
    %528 = vmatprep.subr.mxu0 0.0
    %529 = vmatpush1.msra.mxu0 0.0
    %530 = vmatprep.subr.mxu0 0.0
    %531 = vmatpush1.msra.mxu0 0.0
    %532 = vmatprep.subr.mxu0 0.0
    %533 = vmatpush1.msra.mxu0 0.0
    %534 = vmatprep.subr.mxu0 0.0
    %535 = vmatpush1.msra.mxu0 0.0
    %536 = vmatprep.subr.mxu0 0.0
    %537 = vmatpush1.msra.mxu0 0.0
    %538 = vmatprep.subr.mxu0 0.0
    %539 = vmatpush1.msra.mxu0 0.0
    %540 = vmatprep.subr.mxu0 0.0
    %541 = vmatpush1.msra.mxu0 0.0
    %542 = vmatprep.subr.mxu0 0.0
    %543 = vmatpush1.msra.mxu0 0.0
    %544 = vmatprep.subr.mxu0 0.0
    %545 = vmatpush1.msra.mxu0 0.0
    %546 = vmatprep.subr.mxu0 0.0
    %547 = vmatpush1.msra.mxu0 0.0
    %548 = vmatprep.mubr.f32.mxu0 0.0
    %549 = vmatmul.mubr.f32.gmra.mrb[0].mxu0 %v481
    %v550 = vpop.f32.mrb[0].mxu0
    %v551 = vadd.f32 0.0, %v550
    %v552 = vpop.f32.mrb[0].mxu0
    %553 = vdwg.mxu0
    %v554 = vmul.f32 %v480, 0.8
    %v555 = vld [vmem:[%s255] sm:$0xff]
    %v556 = vadd.f32 %v554, %v555
    %v557 = vadd.f32 %v556, %v551
    %v558 = vtanh.pop %v557
    %s559 = scalar_lea.vmem [#allocation4], 16
    %560 = vst [vmem:[%s559] sm:$0xff] %v558
    %561 = vmatprep.subr.mxu0 0.0
    %562 = vmatpush1.msra.mxu0 %v313
    %563 = vmatprep.subr.mxu0 0.0
    %564 = vmatpush1.msra.mxu0 %v314
    %565 = vmatprep.subr.mxu0 0.0
    %566 = vmatpush1.msra.mxu0 %v315
    %567 = vmatprep.subr.mxu0 0.0
    %568 = vmatpush1.msra.mxu0 %v316
    %569 = vmatprep.subr.mxu0 0.0
    %570 = vmatpush1.msra.mxu0 %v317
    %571 = vmatprep.subr.mxu0 0.0
    %572 = vmatpush1.msra.mxu0 %v318
    %573 = vmatprep.subr.mxu0 0.0
    %574 = vmatpush1.msra.mxu0 %v319
    %575 = vmatprep.subr.mxu0 0.0
    %576 = vmatpush1.msra.mxu0 %v320
    %577 = vmatprep.subr.mxu0 0.0
    %578 = vmatpush1.msra.mxu0 %v321
    %579 = vmatprep.subr.mxu0 0.0
    %580 = vmatpush1.msra.mxu0 %v322
    %581 = vmatprep.subr.mxu0 0.0
    %582 = vmatpush1.msra.mxu0 %v323
    %583 = vmatprep.subr.mxu0 0.0
    %584 = vmatpush1.msra.mxu0 %v324
    %585 = vmatprep.subr.mxu0 0.0
    %586 = vmatpush1.msra.mxu0 %v325
    %587 = vmatprep.subr.mxu0 0.0
    %588 = vmatpush1.msra.mxu0 %v326
    %589 = vmatprep.subr.mxu0 0.0
    %590 = vmatpush1.msra.mxu0 %v327
    %591 = vmatprep.subr.mxu0 0.0
    %592 = vmatpush1.msra.mxu0 %v328
    %593 = vmatprep.subr.mxu0 0.0
    %594 = vmatpush1.msra.mxu0 0.0
    %595 = vmatprep.subr.mxu0 0.0
    %596 = vmatpush1.msra.mxu0 0.0
    %597 = vmatprep.subr.mxu0 0.0
    %598 = vmatpush1.msra.mxu0 0.0
    %599 = vmatprep.subr.mxu0 0.0
    %600 = vmatpush1.msra.mxu0 0.0
    %601 = vmatprep.subr.mxu0 0.0
    %602 = vmatpush1.msra.mxu0 0.0
    %603 = vmatprep.subr.mxu0 0.0
    %604 = vmatpush1.msra.mxu0 0.0
    %605 = vmatprep.subr.mxu0 0.0
    %606 = vmatpush1.msra.mxu0 0.0
    %607 = vmatprep.subr.mxu0 0.0
    %608 = vmatpush1.msra.mxu0 0.0
    %609 = vmatprep.subr.mxu0 0.0
    %610 = vmatpush1.msra.mxu0 0.0
    %611 = vmatprep.subr.mxu0 0.0
    %612 = vmatpush1.msra.mxu0 0.0
    %613 = vmatprep.subr.mxu0 0.0
    %614 = vmatpush1.msra.mxu0 0.0
    %615 = vmatprep.subr.mxu0 0.0
    %616 = vmatpush1.msra.mxu0 0.0
    %617 = vmatprep.subr.mxu0 0.0
    %618 = vmatpush1.msra.mxu0 0.0
    %619 = vmatprep.subr.mxu0 0.0
    %620 = vmatpush1.msra.mxu0 0.0
    %621 = vmatprep.subr.mxu0 0.0
    %622 = vmatpush1.msra.mxu0 0.0
    %623 = vmatprep.subr.mxu0 0.0
    %624 = vmatpush1.msra.mxu0 0.0
    %625 = vmatprep.mubr.f32.mxu0 0.0
    %626 = vmatmul.mubr.f32.gmra.mrb[0].mxu0 %v558
    %v627 = vpop.f32.mrb[0].mxu0
    %v628 = vadd.f32 0.0, %v627
    %v629 = vpop.f32.mrb[0].mxu0
    %630 = vdwg.mxu0
    %v631 = vmul.f32 %v557, 0.8
    %v632 = vld [vmem:[%s266] sm:$0xff]
    %v633 = vadd.f32 %v631, %v632
    %v634 = vadd.f32 %v633, %v628
    %v635 = vtanh.pop %v634
    %s636 = scalar_lea.vmem [#allocation4], 24
    %637 = vst [vmem:[%s636] sm:$0xff] %v635
    %638 = vmatprep.subr.mxu0 0.0
    %639 = vmatpush1.msra.mxu0 %v313
    %640 = vmatprep.subr.mxu0 0.0
    %641 = vmatpush1.msra.mxu0 %v314
    %642 = vmatprep.subr.mxu0 0.0
    %643 = vmatpush1.msra.mxu0 %v315
    %644 = vmatprep.subr.mxu0 0.0
    %645 = vmatpush1.msra.mxu0 %v316
    %646 = vmatprep.subr.mxu0 0.0
    %647 = vmatpush1.msra.mxu0 %v317
    %648 = vmatprep.subr.mxu0 0.0
    %649 = vmatpush1.msra.mxu0 %v318
    %650 = vmatprep.subr.mxu0 0.0
    %651 = vmatpush1.msra.mxu0 %v319
    %652 = vmatprep.subr.mxu0 0.0
    %653 = vmatpush1.msra.mxu0 %v320
    %654 = vmatprep.subr.mxu0 0.0
    %655 = vmatpush1.msra.mxu0 %v321
    %656 = vmatprep.subr.mxu0 0.0
    %657 = vmatpush1.msra.mxu0 %v322
    %658 = vmatprep.subr.mxu0 0.0
    %659 = vmatpush1.msra.mxu0 %v323
    %660 = vmatprep.subr.mxu0 0.0
    %661 = vmatpush1.msra.mxu0 %v324
    %662 = vmatprep.subr.mxu0 0.0
    %663 = vmatpush1.msra.mxu0 %v325
    %664 = vmatprep.subr.mxu0 0.0
    %665 = vmatpush1.msra.mxu0 %v326
    %666 = vmatprep.subr.mxu0 0.0
    %667 = vmatpush1.msra.mxu0 %v327
    %668 = vmatprep.subr.mxu0 0.0
    %669 = vmatpush1.msra.mxu0 %v328
    %670 = vmatprep.subr.mxu0 0.0
    %671 = vmatpush1.msra.mxu0 0.0
    %672 = vmatprep.subr.mxu0 0.0
    %673 = vmatpush1.msra.mxu0 0.0
    %674 = vmatprep.subr.mxu0 0.0
    %675 = vmatpush1.msra.mxu0 0.0
    %676 = vmatprep.subr.mxu0 0.0
    %677 = vmatpush1.msra.mxu0 0.0
    %678 = vmatprep.subr.mxu0 0.0
    %679 = vmatpush1.msra.mxu0 0.0
    %680 = vmatprep.subr.mxu0 0.0
    %681 = vmatpush1.msra.mxu0 0.0
    %682 = vmatprep.subr.mxu0 0.0
    %683 = vmatpush1.msra.mxu0 0.0
    %684 = vmatprep.subr.mxu0 0.0
    %685 = vmatpush1.msra.mxu0 0.0
    %686 = vmatprep.subr.mxu0 0.0
    %687 = vmatpush1.msra.mxu0 0.0
    %688 = vmatprep.subr.mxu0 0.0
    %689 = vmatpush1.msra.mxu0 0.0
    %690 = vmatprep.subr.mxu0 0.0
    %691 = vmatpush1.msra.mxu0 0.0
    %692 = vmatprep.subr.mxu0 0.0
    %693 = vmatpush1.msra.mxu0 0.0
    %694 = vmatprep.subr.mxu0 0.0
    %695 = vmatpush1.msra.mxu0 0.0
    %696 = vmatprep.subr.mxu0 0.0
    %697 = vmatpush1.msra.mxu0 0.0
    %698 = vmatprep.subr.mxu0 0.0
    %699 = vmatpush1.msra.mxu0 0.0
    %700 = vmatprep.subr.mxu0 0.0
    %701 = vmatpush1.msra.mxu0 0.0
    %702 = vmatprep.mubr.f32.mxu0 0.0
    %703 = vmatmul.mubr.f32.gmra.mrb[0].mxu0 %v635
    %v704 = vpop.f32.mrb[0].mxu0
    %v705 = vadd.f32 0.0, %v704
    %v706 = vpop.f32.mrb[0].mxu0
    %707 = vdwg.mxu0
    %v708 = vmul.f32 %v634, 0.8
    %v709 = vld [vmem:[%s277] sm:$0xff]
    %v710 = vadd.f32 %v708, %v709
    %v711 = vadd.f32 %v710, %v705
    %v712 = vtanh.pop %v711
    %s713 = scalar_lea.vmem [#allocation4], 32
    %714 = vst [vmem:[%s713] sm:$0xff] %v712
    %715 = vmatprep.subr.mxu0 0.0
    %716 = vmatpush1.msra.mxu0 %v313
    %717 = vmatprep.subr.mxu0 0.0
    %718 = vmatpush1.msra.mxu0 %v314
    %719 = vmatprep.subr.mxu0 0.0
    %720 = vmatpush1.msra.mxu0 %v315
    %721 = vmatprep.subr.mxu0 0.0
    %722 = vmatpush1.msra.mxu0 %v316
    %723 = vmatprep.subr.mxu0 0.0
    %724 = vmatpush1.msra.mxu0 %v317
    %725 = vmatprep.subr.mxu0 0.0
    %726 = vmatpush1.msra.mxu0 %v318
    %727 = vmatprep.subr.mxu0 0.0
    %728 = vmatpush1.msra.mxu0 %v319
    %729 = vmatprep.subr.mxu0 0.0
    %730 = vmatpush1.msra.mxu0 %v320
    %731 = vmatprep.subr.mxu0 0.0
    %732 = vmatpush1.msra.mxu0 %v321
    %733 = vmatprep.subr.mxu0 0.0
    %734 = vmatpush1.msra.mxu0 %v322
    %735 = vmatprep.subr.mxu0 0.0
    %736 = vmatpush1.msra.mxu0 %v323
    %737 = vmatprep.subr.mxu0 0.0
    %738 = vmatpush1.msra.mxu0 %v324
    %739 = vmatprep.subr.mxu0 0.0
    %740 = vmatpush1.msra.mxu0 %v325
    %741 = vmatprep.subr.mxu0 0.0
    %742 = vmatpush1.msra.mxu0 %v326
    %743 = vmatprep.subr.mxu0 0.0
    %744 = vmatpush1.msra.mxu0 %v327
    %745 = vmatprep.subr.mxu0 0.0
    %746 = vmatpush1.msra.mxu0 %v328
    %747 = vmatprep.subr.mxu0 0.0
    %748 = vmatpush1.msra.mxu0 0.0
    %749 = vmatprep.subr.mxu0 0.0
    %750 = vmatpush1.msra.mxu0 0.0
    %751 = vmatprep.subr.mxu0 0.0
    %752 = vmatpush1.msra.mxu0 0.0
    %753 = vmatprep.subr.mxu0 0.0
    %754 = vmatpush1.msra.mxu0 0.0
    %755 = vmatprep.subr.mxu0 0.0
    %756 = vmatpush1.msra.mxu0 0.0
    %757 = vmatprep.subr.mxu0 0.0
    %758 = vmatpush1.msra.mxu0 0.0
    %759 = vmatprep.subr.mxu0 0.0
    %760 = vmatpush1.msra.mxu0 0.0
    %761 = vmatprep.subr.mxu0 0.0
    %762 = vmatpush1.msra.mxu0 0.0
    %763 = vmatprep.subr.mxu0 0.0
    %764 = vmatpush1.msra.mxu0 0.0
    %765 = vmatprep.subr.mxu0 0.0
    %766 = vmatpush1.msra.mxu0 0.0
    %767 = vmatprep.subr.mxu0 0.0
    %768 = vmatpush1.msra.mxu0 0.0
    %769 = vmatprep.subr.mxu0 0.0
    %770 = vmatpush1.msra.mxu0 0.0
    %771 = vmatprep.subr.mxu0 0.0
    %772 = vmatpush1.msra.mxu0 0.0
    %773 = vmatprep.subr.mxu0 0.0
    %774 = vmatpush1.msra.mxu0 0.0
    %775 = vmatprep.subr.mxu0 0.0
    %776 = vmatpush1.msra.mxu0 0.0
    %777 = vmatprep.subr.mxu0 0.0
    %778 = vmatpush1.msra.mxu0 0.0
    %779 = vmatprep.mubr.f32.mxu0 0.0
    %780 = vmatmul.mubr.f32.gmra.mrb[0].mxu0 %v712
    %v781 = vpop.f32.mrb[0].mxu0
    %v782 = vadd.f32 0.0, %v781
    %v783 = vpop.f32.mrb[0].mxu0
    %784 = vdwg.mxu0
    %v785 = vmul.f32 %v711, 0.8
    %v786 = vld [vmem:[%s288] sm:$0xff]
    %v787 = vadd.f32 %v785, %v786
    %v788 = vadd.f32 %v787, %v782
    %v789 = vtanh.pop %v788
    %s790 = scalar_lea.vmem [#allocation4], 40
    %791 = vst [vmem:[%s790] sm:$0xff] %v789
    %792 = vmatprep.subr.mxu0 0.0
    %793 = vmatpush1.msra.mxu0 %v313
    %794 = vmatprep.subr.mxu0 0.0
    %795 = vmatpush1.msra.mxu0 %v314
    %796 = vmatprep.subr.mxu0 0.0
    %797 = vmatpush1.msra.mxu0 %v315
    %798 = vmatprep.subr.mxu0 0.0
    %799 = vmatpush1.msra.mxu0 %v316
    %800 = vmatprep.subr.mxu0 0.0
    %801 = vmatpush1.msra.mxu0 %v317
    %802 = vmatprep.subr.mxu0 0.0
    %803 = vmatpush1.msra.mxu0 %v318
    %804 = vmatprep.subr.mxu0 0.0
    %805 = vmatpush1.msra.mxu0 %v319
    %806 = vmatprep.subr.mxu0 0.0
    %807 = vmatpush1.msra.mxu0 %v320
    %808 = vmatprep.subr.mxu0 0.0
    %809 = vmatpush1.msra.mxu0 %v321
    %810 = vmatprep.subr.mxu0 0.0
    %811 = vmatpush1.msra.mxu0 %v322
    %812 = vmatprep.subr.mxu0 0.0
    %813 = vmatpush1.msra.mxu0 %v323
    %814 = vmatprep.subr.mxu0 0.0
    %815 = vmatpush1.msra.mxu0 %v324
    %816 = vmatprep.subr.mxu0 0.0
    %817 = vmatpush1.msra.mxu0 %v325
    %818 = vmatprep.subr.mxu0 0.0
    %819 = vmatpush1.msra.mxu0 %v326
    %820 = vmatprep.subr.mxu0 0.0
    %821 = vmatpush1.msra.mxu0 %v327
    %822 = vmatprep.subr.mxu0 0.0
    %823 = vmatpush1.msra.mxu0 %v328
    %824 = vmatprep.subr.mxu0 0.0
    %825 = vmatpush1.msra.mxu0 0.0
    %826 = vmatprep.subr.mxu0 0.0
    %827 = vmatpush1.msra.mxu0 0.0
    %828 = vmatprep.subr.mxu0 0.0
    %829 = vmatpush1.msra.mxu0 0.0
    %830 = vmatprep.subr.mxu0 0.0
    %831 = vmatpush1.msra.mxu0 0.0
    %832 = vmatprep.subr.mxu0 0.0
    %833 = vmatpush1.msra.mxu0 0.0
    %834 = vmatprep.subr.mxu0 0.0
    %835 = vmatpush1.msra.mxu0 0.0
    %836 = vmatprep.subr.mxu0 0.0
    %837 = vmatpush1.msra.mxu0 0.0
    %838 = vmatprep.subr.mxu0 0.0
    %839 = vmatpush1.msra.mxu0 0.0
    %840 = vmatprep.subr.mxu0 0.0
    %841 = vmatpush1.msra.mxu0 0.0
    %842 = vmatprep.subr.mxu0 0.0
    %843 = vmatpush1.msra.mxu0 0.0
    %844 = vmatprep.subr.mxu0 0.0
    %845 = vmatpush1.msra.mxu0 0.0
    %846 = vmatprep.subr.mxu0 0.0
    %847 = vmatpush1.msra.mxu0 0.0
    %848 = vmatprep.subr.mxu0 0.0
    %849 = vmatpush1.msra.mxu0 0.0
    %850 = vmatprep.subr.mxu0 0.0
    %851 = vmatpush1.msra.mxu0 0.0
    %852 = vmatprep.subr.mxu0 0.0
    %853 = vmatpush1.msra.mxu0 0.0
    %854 = vmatprep.subr.mxu0 0.0
    %855 = vmatpush1.msra.mxu0 0.0
    %856 = vmatprep.mubr.f32.mxu0 0.0
    %857 = vmatmul.mubr.f32.gmra.mrb[0].mxu0 %v789
    %v858 = vpop.f32.mrb[0].mxu0
    %v859 = vadd.f32 0.0, %v858
    %v860 = vpop.f32.mrb[0].mxu0
    %861 = vdwg.mxu0
    %v862 = vmul.f32 %v788, 0.8
    %v863 = vld [vmem:[%s299] sm:$0xff]
    %v864 = vadd.f32 %v862, %v863
    %v865 = vadd.f32 %v864, %v859
    %v866 = vtanh.pop %v865
    %s867 = scalar_lea.vmem [#allocation4], 48
    %868 = vst [vmem:[%s867] sm:$0xff] %v866
    %869 = vmatprep.subr.mxu0 0.0
    %870 = vmatpush1.msra.mxu0 %v313
    %871 = vmatprep.subr.mxu0 0.0
    %872 = vmatpush1.msra.mxu0 %v314
    %873 = vmatprep.subr.mxu0 0.0
    %874 = vmatpush1.msra.mxu0 %v315
    %875 = vmatprep.subr.mxu0 0.0
    %876 = vmatpush1.msra.mxu0 %v316
    %877 = vmatprep.subr.mxu0 0.0
    %878 = vmatpush1.msra.mxu0 %v317
    %879 = vmatprep.subr.mxu0 0.0
    %880 = vmatpush1.msra.mxu0 %v318
    %881 = vmatprep.subr.mxu0 0.0
    %882 = vmatpush1.msra.mxu0 %v319
    %883 = vmatprep.subr.mxu0 0.0
    %884 = vmatpush1.msra.mxu0 %v320
    %885 = vmatprep.subr.mxu0 0.0
    %886 = vmatpush1.msra.mxu0 %v321
    %887 = vmatprep.subr.mxu0 0.0
    %888 = vmatpush1.msra.mxu0 %v322
    %889 = vmatprep.subr.mxu0 0.0
    %890 = vmatpush1.msra.mxu0 %v323
    %891 = vmatprep.subr.mxu0 0.0
    %892 = vmatpush1.msra.mxu0 %v324
    %893 = vmatprep.subr.mxu0 0.0
    %894 = vmatpush1.msra.mxu0 %v325
    %895 = vmatprep.subr.mxu0 0.0
    %896 = vmatpush1.msra.mxu0 %v326
    %897 = vmatprep.subr.mxu0 0.0
    %898 = vmatpush1.msra.mxu0 %v327
    %899 = vmatprep.subr.mxu0 0.0
    %900 = vmatpush1.msra.mxu0 %v328
    %901 = vmatprep.subr.mxu0 0.0
    %902 = vmatpush1.msra.mxu0 0.0
    %903 = vmatprep.subr.mxu0 0.0
    %904 = vmatpush1.msra.mxu0 0.0
    %905 = vmatprep.subr.mxu0 0.0
    %906 = vmatpush1.msra.mxu0 0.0
    %907 = vmatprep.subr.mxu0 0.0
    %908 = vmatpush1.msra.mxu0 0.0
    %909 = vmatprep.subr.mxu0 0.0
    %910 = vmatpush1.msra.mxu0 0.0
    %911 = vmatprep.subr.mxu0 0.0
    %912 = vmatpush1.msra.mxu0 0.0
    %913 = vmatprep.subr.mxu0 0.0
    %914 = vmatpush1.msra.mxu0 0.0
    %915 = vmatprep.subr.mxu0 0.0
    %916 = vmatpush1.msra.mxu0 0.0
    %917 = vmatprep.subr.mxu0 0.0
    %918 = vmatpush1.msra.mxu0 0.0
    %919 = vmatprep.subr.mxu0 0.0
    %920 = vmatpush1.msra.mxu0 0.0
    %921 = vmatprep.subr.mxu0 0.0
    %922 = vmatpush1.msra.mxu0 0.0
    %923 = vmatprep.subr.mxu0 0.0
    %924 = vmatpush1.msra.mxu0 0.0
    %925 = vmatprep.subr.mxu0 0.0
    %926 = vmatpush1.msra.mxu0 0.0
    %927 = vmatprep.subr.mxu0 0.0
    %928 = vmatpush1.msra.mxu0 0.0
    %929 = vmatprep.subr.mxu0 0.0
    %930 = vmatpush1.msra.mxu0 0.0
    %931 = vmatprep.subr.mxu0 0.0
    %932 = vmatpush1.msra.mxu0 0.0
    %933 = vmatprep.mubr.f32.mxu0 0.0
    %934 = vmatmul.mubr.f32.gmra.mrb[0].mxu0 %v866
    %v935 = vpop.f32.mrb[0].mxu0
    %v936 = vadd.f32 0.0, %v935
    %v937 = vpop.f32.mrb[0].mxu0
    %938 = vdwg.mxu0
    %v939 = vmul.f32 %v865, 0.8
    %v940 = vld [vmem:[%s310] sm:$0xff]
    %v941 = vadd.f32 %v939, %v940
    %v942 = vadd.f32 %v941, %v936
    %v943 = vtanh.pop %v942
    %s944 = scalar_lea.vmem [#allocation4], 56
    %945 = vst [vmem:[%s944] sm:$0xff] %v943
    %946 = vst [vmem:[#allocation2] sm:$0xff] %v942
    %947 = vst [vmem:[#allocation3] sm:$0xff] %v943
    %v948 = vld [vmem:[#allocation4] sm:$0xff]
    %v949 = vld [vmem:[#allocation4 + $0x8] sm:$0xff]
    %v950 = vld [vmem:[#allocation4 + $0x10] sm:$0xff]
    %v951 = vld [vmem:[#allocation4 + $0x18] sm:$0xff]
    %v952 = vld [vmem:[#allocation4 + $0x20] sm:$0xff]
    %v953 = vld [vmem:[#allocation4 + $0x28] sm:$0xff]
    %v954 = vld [vmem:[#allocation4 + $0x30] sm:$0xff]
    %v955 = vld [vmem:[#allocation4 + $0x38] sm:$0xff]
    %v956 = vld [vmem:[%s4] sm:$0xff]
    %v957 = vld [vmem:[%s4 + $0x8] sm:$0xff]
    %v958 = vld [vmem:[%s4 + $0x10] sm:$0xff]
    %v959 = vld [vmem:[%s4 + $0x18] sm:$0xff]
    %v960 = vld [vmem:[%s4 + $0x20] sm:$0xff]
    %v961 = vld [vmem:[%s4 + $0x28] sm:$0xff]
    %v962 = vld [vmem:[%s4 + $0x30] sm:$0xff]
    %v963 = vld [vmem:[%s4 + $0x38] sm:$0xff]
    %v964 = vld [vmem:[%s4 + $0x40] sm:$0xff]
    %v965 = vld [vmem:[%s4 + $0x48] sm:$0xff]
    %v966 = vld [vmem:[%s4 + $0x50] sm:$0xff]
    %v967 = vld [vmem:[%s4 + $0x58] sm:$0xff]
    %v968 = vld [vmem:[%s4 + $0x60] sm:$0xff]
    %v969 = vld [vmem:[%s4 + $0x68] sm:$0xff]
    %v970 = vld [vmem:[%s4 + $0x70] sm:$0xff]
    %v971 = vld [vmem:[%s4 + $0x78] sm:$0xff]
    %972 = vmatprep.subr.mxu0 0.0
    %973 = vmatpush1.msra.mxu0 %v956
    %974 = vmatprep.subr.mxu0 0.0
    %975 = vmatpush1.msra.mxu0 %v957
    %976 = vmatprep.subr.mxu0 0.0
    %977 = vmatpush1.msra.mxu0 %v958
    %978 = vmatprep.subr.mxu0 0.0
    %979 = vmatpush1.msra.mxu0 %v959
    %980 = vmatprep.subr.mxu0 0.0
    %981 = vmatpush1.msra.mxu0 %v960
    %982 = vmatprep.subr.mxu0 0.0
    %983 = vmatpush1.msra.mxu0 %v961
    %984 = vmatprep.subr.mxu0 0.0
    %985 = vmatpush1.msra.mxu0 %v962
    %986 = vmatprep.subr.mxu0 0.0
    %987 = vmatpush1.msra.mxu0 %v963
    %988 = vmatprep.subr.mxu0 0.0
    %989 = vmatpush1.msra.mxu0 %v964
    %990 = vmatprep.subr.mxu0 0.0
    %991 = vmatpush1.msra.mxu0 %v965
    %992 = vmatprep.subr.mxu0 0.0
    %993 = vmatpush1.msra.mxu0 %v966
    %994 = vmatprep.subr.mxu0 0.0
    %995 = vmatpush1.msra.mxu0 %v967
    %996 = vmatprep.subr.mxu0 0.0
    %997 = vmatpush1.msra.mxu0 %v968
    %998 = vmatprep.subr.mxu0 0.0
    %999 = vmatpush1.msra.mxu0 %v969
    %1000 = vmatprep.subr.mxu0 0.0
    %1001 = vmatpush1.msra.mxu0 %v970
    %1002 = vmatprep.subr.mxu0 0.0
    %1003 = vmatpush1.msra.mxu0 %v971
    %1004 = vmatprep.subr.mxu0 0.0
    %1005 = vmatpush1.msra.mxu0 0.0
    %1006 = vmatprep.subr.mxu0 0.0
    %1007 = vmatpush1.msra.mxu0 0.0
    %1008 = vmatprep.subr.mxu0 0.0
    %1009 = vmatpush1.msra.mxu0 0.0
    %1010 = vmatprep.subr.mxu0 0.0
    %1011 = vmatpush1.msra.mxu0 0.0
    %1012 = vmatprep.subr.mxu0 0.0
    %1013 = vmatpush1.msra.mxu0 0.0
    %1014 = vmatprep.subr.mxu0 0.0
    %1015 = vmatpush1.msra.mxu0 0.0
    %1016 = vmatprep.subr.mxu0 0.0
    %1017 = vmatpush1.msra.mxu0 0.0
    %1018 = vmatprep.subr.mxu0 0.0
    %1019 = vmatpush1.msra.mxu0 0.0
    %1020 = vmatprep.subr.mxu0 0.0
    %1021 = vmatpush1.msra.mxu0 0.0
    %1022 = vmatprep.subr.mxu0 0.0
    %1023 = vmatpush1.msra.mxu0 0.0
    %1024 = vmatprep.subr.mxu0 0.0
    %1025 = vmatpush1.msra.mxu0 0.0
    %1026 = vmatprep.subr.mxu0 0.0
    %1027 = vmatpush1.msra.mxu0 0.0
    %1028 = vmatprep.subr.mxu0 0.0
    %1029 = vmatpush1.msra.mxu0 0.0
    %1030 = vmatprep.subr.mxu0 0.0
    %1031 = vmatpush1.msra.mxu0 0.0
    %1032 = vmatprep.subr.mxu0 0.0
    %1033 = vmatpush1.msra.mxu0 0.0
    %1034 = vmatprep.subr.mxu0 0.0
    %1035 = vmatpush1.msra.mxu0 0.0
    %1036 = vmatprep.mubr.f32.mxu0 0.0
    %1037 = vmatmul.mubr.f32.gmra.mrb[0].mxu0 %v948
    %v1038 = vpop.f32.mrb[0].mxu0
    %v1039 = vadd.f32 0.0, %v1038
    %v1040 = vpop.f32.mrb[0].mxu0
    %1041 = vmatprep.mubr.f32.mxu0 0.0
    %1042 = vmatmul.mubr.f32.gmra.mrb[0].mxu0 %v949
    %v1043 = vpop.f32.mrb[0].mxu0
    %v1044 = vadd.f32 0.0, %v1043
    %v1045 = vpop.f32.mrb[0].mxu0
    %1046 = vmatprep.mubr.f32.mxu0 0.0
    %1047 = vmatmul.mubr.f32.gmra.mrb[0].mxu0 %v950
    %v1048 = vpop.f32.mrb[0].mxu0
    %v1049 = vadd.f32 0.0, %v1048
    %v1050 = vpop.f32.mrb[0].mxu0
    %1051 = vmatprep.mubr.f32.mxu0 0.0
    %1052 = vmatmul.mubr.f32.gmra.mrb[0].mxu0 %v951
    %v1053 = vpop.f32.mrb[0].mxu0
    %v1054 = vadd.f32 0.0, %v1053
    %v1055 = vpop.f32.mrb[0].mxu0
    %1056 = vmatprep.mubr.f32.mxu0 0.0
    %1057 = vmatmul.mubr.f32.gmra.mrb[0].mxu0 %v952
    %v1058 = vpop.f32.mrb[0].mxu0
    %v1059 = vadd.f32 0.0, %v1058
    %v1060 = vpop.f32.mrb[0].mxu0
    %1061 = vmatprep.mubr.f32.mxu0 0.0
    %1062 = vmatmul.mubr.f32.gmra.mrb[0].mxu0 %v953
    %v1063 = vpop.f32.mrb[0].mxu0
    %v1064 = vadd.f32 0.0, %v1063
    %v1065 = vpop.f32.mrb[0].mxu0
    %1066 = vmatprep.mubr.f32.mxu0 0.0
    %1067 = vmatmul.mubr.f32.gmra.mrb[0].mxu0 %v954
    %v1068 = vpop.f32.mrb[0].mxu0
    %v1069 = vadd.f32 0.0, %v1068
    %v1070 = vpop.f32.mrb[0].mxu0
    %1071 = vmatprep.mubr.f32.mxu0 0.0
    %1072 = vmatmul.mubr.f32.gmra.mrb[0].mxu0 %v955
    %v1073 = vpop.f32.mrb[0].mxu0
    %v1074 = vadd.f32 0.0, %v1073
    %v1075 = vpop.f32.mrb[0].mxu0
    %1076 = vdwg.mxu0
    %vm1077 = vcmask 64512
    %1078 = vst.msk [vmem:[#allocation6] sm:$0xff] %vm1077, %v1039
    %1079 = vst.msk [vmem:[#allocation6 + $0x8] sm:$0xff] %vm1077, %v1044
    %1080 = vst.msk [vmem:[#allocation6 + $0x10] sm:$0xff] %vm1077, %v1049
    %1081 = vst.msk [vmem:[#allocation6 + $0x18] sm:$0xff] %vm1077, %v1054
    %1082 = vst.msk [vmem:[#allocation6 + $0x20] sm:$0xff] %vm1077, %v1059
    %1083 = vst.msk [vmem:[#allocation6 + $0x28] sm:$0xff] %vm1077, %v1064
    %1084 = vst.msk [vmem:[#allocation6 + $0x30] sm:$0xff] %vm1077, %v1069
    %1085 = vst.msk [vmem:[#allocation6 + $0x38] sm:$0xff] %vm1077, %v1074
    // Predicated region
    $region30: #{tpu_custom_call.1} parent=1 // pred_check
      _
    $region31: #{tpu_custom_call.1} parent=1 // pred_check_branch
      %1087 = sbr.rel (0) target = $region33
    $region32: #{tpu_custom_call.1} parent=1 // pred_region
      %s1089 = ssub.s32 1024, 1024
      %1090 = vsyncadd [#allocation7], %s1089
      %s1091 = sshll.u32 [#allocation6], 4
      %s1092 = int_to_ptr.vmem [resolvable:$true] %s1091
      %1097 = dma.vmem_to_hbm [thread:$0]  %s1092, 1024, %s6, [#allocation7], 128, 128, 8
    $region33: #{tpu_custom_call.1} parent=1 // pred_fallthru
      _
    // Predicated region
    $region34: #{tpu_custom_call.1} parent=1 // pred_check
      _
    $region35: #{tpu_custom_call.1} parent=1 // pred_check_branch
      %1099 = sbr.rel (0) target = $region37
    $region36: #{tpu_custom_call.1} parent=1 // pred_region
      %1100 = dma.done [#allocation7], 1024
    $region37: #{tpu_custom_call.1} parent=1 // pred_fallthru
      _
    %1101 = vsyncpa [#allocation7], 1

// kernel: tpu_custom_call.1
$region0: #{tpu_custom_call.1}
  #allocation0 [shape = 'u32[]', space=smem, size = 0x4, offset = 0x4, fixed_abs, tag = 'smem constant byte address 0x4 - core index']
  #allocation1 [shape = 'u32[144,128]{1,0:T(1,128)}', space=vmem, size = 0x12000, scoped, tag = 'internal scratch']
  #allocation2 [shape = 'f32[8,128]{1,0:T(8,128)}', space=vmem, size = 0x1000, scoped, tag = 'scratch operand']
  #allocation3 [shape = 'f32[8,128]{1,0:T(8,128)}', space=vmem, size = 0x1000, scoped, tag = 'scratch operand']
  #allocation4 [shape = 'f32[8,8,128]{2,1,0:T(8,128)}', space=vmem, size = 0x8000, scoped, tag = 'scratch operand']
  #allocation5 [shape = 'f32[8,8,128]{2,1,0:T(8,128)}', space=vmem, size = 0x8000, scoped, tag = 'scratch operand']
  %s0 = inlined_call_operand.vmem [shape: f32[8,8,4], index: 0, kind: input, shape index: {}]
  %s1 = inlined_call_operand.vmem [shape: f32[8,8,128], index: 1, kind: input, shape index: {}]
  %s2 = inlined_call_operand.vmem [shape: f32[128,128], index: 2, kind: input, shape index: {}]
  %s3 = inlined_call_operand.vmem [shape: f32[4,128], index: 3, kind: input, shape index: {}]
  %s4 = inlined_call_operand.vmem [shape: f32[128,8], index: 4, kind: input, shape index: {}]
  %s5 = inlined_call_operand.vmem [shape: f32[1,128], index: 5, kind: input, shape index: {}]
  %s6 = inlined_call_operand.hbm [shape: f32[8,8,8], index: 6, kind: output, shape index: {}]
  %s7 = sld [smem:[#allocation0]]
  $region38: #{tpu_custom_call.1} parent=0
    _
  %s9 = ssub.s32 1, %s7
  %s10 = scalar_select 0, %s9, %s7
  $region1: #{tpu_custom_call.1} parent=0
    #allocation6 [shape = 'u8[32768]{0}', space=vmem, size = 0x8000, scoped, tag = 'output window, operand 0, single buffered']
    #allocation7 [shape = 's32[1]{0}', space=sflag, size = 0x4, scoped, tag = 'scoped memory for tpu_custom_call.1']
    %11 = vsyncpa [#allocation7], 0
    // Predicated region
    $region2: #{tpu_custom_call.1} parent=1 // pred_check
      _
    $region3: #{tpu_custom_call.1} parent=1 // pred_check_branch
      %13 = sbr.rel (0) target = $region5
    $region4: #{tpu_custom_call.1} parent=1 // pred_region
      _
    $region5: #{tpu_custom_call.1} parent=1 // pred_fallthru
      _
    // Predicated region
    $region6: #{tpu_custom_call.1} parent=1 // pred_check
      _
    $region7: #{tpu_custom_call.1} parent=1 // pred_check_branch
      %15 = sbr.rel (0) target = $region9
    $region8: #{tpu_custom_call.1} parent=1 // pred_region
      _
    $region9: #{tpu_custom_call.1} parent=1 // pred_fallthru
      _
    // Predicated region
    $region10: #{tpu_custom_call.1} parent=1 // pred_check
      _
    $region11: #{tpu_custom_call.1} parent=1 // pred_check_branch
      %17 = sbr.rel (0) target = $region13
    $region12: #{tpu_custom_call.1} parent=1 // pred_region
      _
    $region13: #{tpu_custom_call.1} parent=1 // pred_fallthru
      _
    // Predicated region
    $region14: #{tpu_custom_call.1} parent=1 // pred_check
      _
    $region15: #{tpu_custom_call.1} parent=1 // pred_check_branch
      %19 = sbr.rel (0) target = $region17
    $region16: #{tpu_custom_call.1} parent=1 // pred_region
      _
    $region17: #{tpu_custom_call.1} parent=1 // pred_fallthru
      _
    // Predicated region
    $region18: #{tpu_custom_call.1} parent=1 // pred_check
      _
    $region19: #{tpu_custom_call.1} parent=1 // pred_check_branch
      %21 = sbr.rel (0) target = $region21
    $region20: #{tpu_custom_call.1} parent=1 // pred_region
      _
    $region21: #{tpu_custom_call.1} parent=1 // pred_fallthru
      _
    // Predicated region
    $region22: #{tpu_custom_call.1} parent=1 // pred_check
      _
    $region23: #{tpu_custom_call.1} parent=1 // pred_check_branch
      %23 = sbr.rel (0) target = $region25
    $region24: #{tpu_custom_call.1} parent=1 // pred_region
      _
    $region25: #{tpu_custom_call.1} parent=1 // pred_fallthru
      _
    %p24 = scmp.eq.s32.totalorder 0, 0
    // Predicated region
    $region26: #{tpu_custom_call.1} parent=1 // pred_check
      %p25 = pneg %p24
    $region27: #{tpu_custom_call.1} parent=1 // pred_check_branch
      %27 = sbr.rel (%p25) target = $region29
    $region28: #{tpu_custom_call.1} parent=1 // pred_region
      %v28 = vld [vmem:[%s5] sm:$0x1]
      %v30 = vlaneseq
      %v31 = vshrl.u32 %v30, 7
      %v32 = vsub.s32 0, %v31
      %v33 = vrot.slane %v28, %v32
      %35 = vst [vmem:[#allocation2] sm:$0xff] %v33
      %v36 = vtanh.pop %v33
      %37 = vst [vmem:[#allocation3] sm:$0xff] %v36
    $region29: #{tpu_custom_call.1} parent=1 // pred_fallthru
      _
    %v38 = vld [vmem:[%s1] sm:$0xff]
    %v39 = vld [vmem:[%s1 + $0x8] sm:$0xff]
    %v40 = vld [vmem:[%s1 + $0x10] sm:$0xff]
    %v41 = vld [vmem:[%s1 + $0x18] sm:$0xff]
    %v42 = vld [vmem:[%s1 + $0x20] sm:$0xff]
    %v43 = vld [vmem:[%s1 + $0x28] sm:$0xff]
    %v44 = vld [vmem:[%s1 + $0x30] sm:$0xff]
    %v45 = vld [vmem:[%s1 + $0x38] sm:$0xff]
    %v46 = vmul.f32 %v38, 0.1
    %v47 = vmul.f32 %v39, 0.1
    %v48 = vmul.f32 %v40, 0.1
    %v49 = vmul.f32 %v41, 0.1
    %v50 = vmul.f32 %v42, 0.1
    %v51 = vmul.f32 %v43, 0.1
    %v52 = vmul.f32 %v44, 0.1
    %v53 = vmul.f32 %v45, 0.1
    %v54 = vld [vmem:[%s0] sm:$0xff]
    %v55 = vld [vmem:[%s0 + $0x8] sm:$0xff]
    %v56 = vld [vmem:[%s0 + $0x10] sm:$0xff]
    %v57 = vld [vmem:[%s0 + $0x18] sm:$0xff]
    %v58 = vld [vmem:[%s0 + $0x20] sm:$0xff]
    %v59 = vld [vmem:[%s0 + $0x28] sm:$0xff]
    %v60 = vld [vmem:[%s0 + $0x30] sm:$0xff]
    %v61 = vld [vmem:[%s0 + $0x38] sm:$0xff]
    %v62 = vld [vmem:[%s3] sm:$0xf]
    %vm63 = vcmask 31744
    %v65 = vsel %vm63, %v54, 0
    %v68 = vsel %vm63, %v55, 0
    %v71 = vsel %vm63, %v56, 0
    %v74 = vsel %vm63, %v57, 0
    %v77 = vsel %vm63, %v58, 0
    %v80 = vsel %vm63, %v59, 0
    %v83 = vsel %vm63, %v60, 0
    %v86 = vsel %vm63, %v61, 0
    %vm88 = vcmask 1043456
    %v90 = vsel %vm88, %v62, 0
    %92 = vmatprep.subr.mxu0 0.0
    %93 = vmatpush1.msra.mxu0 %v90
    %94 = vmatprep.subr.mxu0 0.0
    %95 = vmatpush1.msra.mxu0 0.0
    %96 = vmatprep.subr.mxu0 0.0
    %97 = vmatpush1.msra.mxu0 0.0
    %98 = vmatprep.subr.mxu0 0.0
    %99 = vmatpush1.msra.mxu0 0.0
    %100 = vmatprep.subr.mxu0 0.0
    %101 = vmatpush1.msra.mxu0 0.0
    %102 = vmatprep.subr.mxu0 0.0
    %103 = vmatpush1.msra.mxu0 0.0
    %104 = vmatprep.subr.mxu0 0.0
    %105 = vmatpush1.msra.mxu0 0.0
    %106 = vmatprep.subr.mxu0 0.0
    %107 = vmatpush1.msra.mxu0 0.0
    %108 = vmatprep.subr.mxu0 0.0
    %109 = vmatpush1.msra.mxu0 0.0
    %110 = vmatprep.subr.mxu0 0.0
    %111 = vmatpush1.msra.mxu0 0.0
    %112 = vmatprep.subr.mxu0 0.0
    %113 = vmatpush1.msra.mxu0 0.0
    %114 = vmatprep.subr.mxu0 0.0
    %115 = vmatpush1.msra.mxu0 0.0
    %116 = vmatprep.subr.mxu0 0.0
    %117 = vmatpush1.msra.mxu0 0.0
    %118 = vmatprep.subr.mxu0 0.0
    %119 = vmatpush1.msra.mxu0 0.0
    %120 = vmatprep.subr.mxu0 0.0
    %121 = vmatpush1.msra.mxu0 0.0
    %122 = vmatprep.subr.mxu0 0.0
    %123 = vmatpush1.msra.mxu0 0.0
    %124 = vmatprep.subr.mxu0 0.0
    %125 = vmatpush1.msra.mxu0 0.0
    %126 = vmatprep.subr.mxu0 0.0
    %127 = vmatpush1.msra.mxu0 0.0
    %128 = vmatprep.subr.mxu0 0.0
    %129 = vmatpush1.msra.mxu0 0.0
    %130 = vmatprep.subr.mxu0 0.0
    %131 = vmatpush1.msra.mxu0 0.0
    %132 = vmatprep.subr.mxu0 0.0
    %133 = vmatpush1.msra.mxu0 0.0
    %134 = vmatprep.subr.mxu0 0.0
    %135 = vmatpush1.msra.mxu0 0.0
    %136 = vmatprep.subr.mxu0 0.0
    %137 = vmatpush1.msra.mxu0 0.0
    %138 = vmatprep.subr.mxu0 0.0
    %139 = vmatpush1.msra.mxu0 0.0
    %140 = vmatprep.subr.mxu0 0.0
    %141 = vmatpush1.msra.mxu0 0.0
    %142 = vmatprep.subr.mxu0 0.0
    %143 = vmatpush1.msra.mxu0 0.0
    %144 = vmatprep.subr.mxu0 0.0
    %145 = vmatpush1.msra.mxu0 0.0
    %146 = vmatprep.subr.mxu0 0.0
    %147 = vmatpush1.msra.mxu0 0.0
    %148 = vmatprep.subr.mxu0 0.0
    %149 = vmatpush1.msra.mxu0 0.0
    %150 = vmatprep.subr.mxu0 0.0
    %151 = vmatpush1.msra.mxu0 0.0
    %152 = vmatprep.subr.mxu0 0.0
    %153 = vmatpush1.msra.mxu0 0.0
    %154 = vmatprep.subr.mxu0 0.0
    %155 = vmatpush1.msra.mxu0 0.0
    %156 = vmatprep.mubr.f32.mxu0 0.0
    %157 = vmatmul.mubr.f32.gmra.mrb[0].mxu0 %v65
    %v158 = vpop.f32.mrb[0].mxu0
    %v159 = vadd.f32 0.0, %v158
    %v160 = vpop.f32.mrb[0].mxu0
    %161 = vmatprep.mubr.f32.mxu0 0.0
    %162 = vmatmul.mubr.f32.gmra.mrb[0].mxu0 %v68
    %v163 = vpop.f32.mrb[0].mxu0
    %v164 = vadd.f32 0.0, %v163
    %v165 = vpop.f32.mrb[0].mxu0
    %166 = vmatprep.mubr.f32.mxu0 0.0
    %167 = vmatmul.mubr.f32.gmra.mrb[0].mxu0 %v71
    %v168 = vpop.f32.mrb[0].mxu0
    %v169 = vadd.f32 0.0, %v168
    %v170 = vpop.f32.mrb[0].mxu0
    %171 = vmatprep.mubr.f32.mxu0 0.0
    %172 = vmatmul.mubr.f32.gmra.mrb[0].mxu0 %v74
    %v173 = vpop.f32.mrb[0].mxu0
    %v174 = vadd.f32 0.0, %v173
    %v175 = vpop.f32.mrb[0].mxu0
    %176 = vmatprep.mubr.f32.mxu0 0.0
    %177 = vmatmul.mubr.f32.gmra.mrb[0].mxu0 %v77
    %v178 = vpop.f32.mrb[0].mxu0
    %v179 = vadd.f32 0.0, %v178
    %v180 = vpop.f32.mrb[0].mxu0
    %181 = vmatprep.mubr.f32.mxu0 0.0
    %182 = vmatmul.mubr.f32.gmra.mrb[0].mxu0 %v80
    %v183 = vpop.f32.mrb[0].mxu0
    %v184 = vadd.f32 0.0, %v183
    %v185 = vpop.f32.mrb[0].mxu0
    %186 = vmatprep.mubr.f32.mxu0 0.0
    %187 = vmatmul.mubr.f32.gmra.mrb[0].mxu0 %v83
    %v188 = vpop.f32.mrb[0].mxu0
    %v189 = vadd.f32 0.0, %v188
    %v190 = vpop.f32.mrb[0].mxu0
    %191 = vmatprep.mubr.f32.mxu0 0.0
    %192 = vmatmul.mubr.f32.gmra.mrb[0].mxu0 %v86
    %v193 = vpop.f32.mrb[0].mxu0
    %v194 = vadd.f32 0.0, %v193
    %v195 = vpop.f32.mrb[0].mxu0
    %196 = vdwg.mxu0
    %v197 = vadd.f32 %v46, %v159
    %v198 = vadd.f32 %v47, %v164
    %v199 = vadd.f32 %v48, %v169
    %v200 = vadd.f32 %v49, %v174
    %v201 = vadd.f32 %v50, %v179
    %v202 = vadd.f32 %v51, %v184
    %v203 = vadd.f32 %v52, %v189
    %v204 = vadd.f32 %v53, %v194
    %v213 = vrot.slane %v198, 7
    %vm214 = vcmask 1041409
    %v215 = vsel %vm214, %v213, %v197
    %v216 = vrot.slane %v199, 6
    %vm217 = vcmask 1042434
    %v218 = vsel %vm217, %v216, %v215
    %v219 = vrot.slane %v200, 5
    %vm220 = vcmask 1043459
    %v221 = vsel %vm220, %v219, %v218
    %v222 = vrot.slane %v201, 4
    %vm223 = vcmask 1044484
    %v224 = vsel %vm223, %v222, %v221
    %v225 = vrot.slane %v202, 3
    %vm226 = vcmask 1045509
    %v227 = vsel %vm226, %v225, %v224
    %v228 = vrot.slane %v203, 2
    %vm229 = vcmask 1046534
    %v230 = vsel %vm229, %v228, %v227
    %v231 = vrot.slane %v204, 1
    %vm232 = vcmask 1047559
    %v233 = vsel %vm232, %v231, %v230
    %235 = vst [vmem:[#allocation5] sm:$0xff] %v233
    %v236 = vsel %vm217, %v213, %v197
    %v237 = vsel %vm220, %v216, %v236
    %v238 = vsel %vm223, %v219, %v237
    %v239 = vsel %vm226, %v222, %v238
    %v240 = vsel %vm229, %v225, %v239
    %v241 = vsel %vm232, %v228, %v240
    %s244 = scalar_lea.vmem [#allocation5], 8
    %245 = vst [vmem:[%s244 - $0x1] sm:$0xfe] %v241
    %246 = vst [vmem:[%s244 + $0x7] sm:$0x1] %v231
    %v247 = vsel %vm220, %v213, %v197
    %v248 = vsel %vm223, %v216, %v247
    %v249 = vsel %vm226, %v219, %v248
    %v250 = vsel %vm229, %v222, %v249
    %v251 = vsel %vm232, %v225, %v250
    %v252 = vsel %vm214, %v231, %v228
    %s255 = scalar_lea.vmem [#allocation5], 16
    %256 = vst [vmem:[%s255 - $0x2] sm:$0xfc] %v251
    %257 = vst [vmem:[%s255 + $0x6] sm:$0x3] %v252
    %v258 = vsel %vm223, %v213, %v197
    %v259 = vsel %vm226, %v216, %v258
    %v260 = vsel %vm229, %v219, %v259
    %v261 = vsel %vm232, %v222, %v260
    %v262 = vsel %vm214, %v228, %v225
    %v263 = vsel %vm217, %v231, %v262
    %s266 = scalar_lea.vmem [#allocation5], 24
    %267 = vst [vmem:[%s266 - $0x3] sm:$0xf8] %v261
    %268 = vst [vmem:[%s266 + $0x5] sm:$0x7] %v263
    %v269 = vsel %vm226, %v213, %v197
    %v270 = vsel %vm229, %v216, %v269
    %v271 = vsel %vm232, %v219, %v270
    %v272 = vsel %vm214, %v225, %v222
    %v273 = vsel %vm217, %v228, %v272
    %v274 = vsel %vm220, %v231, %v273
    %s277 = scalar_lea.vmem [#allocation5], 32
    %278 = vst [vmem:[%s277 - $0x4] sm:$0xf0] %v271
    %279 = vst [vmem:[%s277 + $0x4] sm:$0xf] %v274
    %v280 = vsel %vm229, %v213, %v197
    %v281 = vsel %vm232, %v216, %v280
    %v282 = vsel %vm214, %v222, %v219
    %v283 = vsel %vm217, %v225, %v282
    %v284 = vsel %vm220, %v228, %v283
    %v285 = vsel %vm223, %v231, %v284
    %s288 = scalar_lea.vmem [#allocation5], 40
    %289 = vst [vmem:[%s288 - $0x5] sm:$0xe0] %v281
    %290 = vst [vmem:[%s288 + $0x3] sm:$0x1f] %v285
    %v291 = vsel %vm232, %v213, %v197
    %v292 = vsel %vm214, %v219, %v216
    %v293 = vsel %vm217, %v222, %v292
    %v294 = vsel %vm220, %v225, %v293
    %v295 = vsel %vm223, %v228, %v294
    %v296 = vsel %vm226, %v231, %v295
    %s299 = scalar_lea.vmem [#allocation5], 48
    %300 = vst [vmem:[%s299 - $0x6] sm:$0xc0] %v291
    %301 = vst [vmem:[%s299 + $0x2] sm:$0x3f] %v296
    %v302 = vsel %vm214, %v216, %v213
    %v303 = vsel %vm217, %v219, %v302
    %v304 = vsel %vm220, %v222, %v303
    %v305 = vsel %vm223, %v225, %v304
    %v306 = vsel %vm226, %v228, %v305
    %v307 = vsel %vm229, %v231, %v306
    %s310 = scalar_lea.vmem [#allocation5], 56
    %311 = vst [vmem:[%s310 - $0x7] sm:$0x80] %v197
    %312 = vst [vmem:[%s310 + $0x1] sm:$0x7f] %v307
    %v313 = vld [vmem:[%s2] sm:$0xff]
    %v314 = vld [vmem:[%s2 + $0x8] sm:$0xff]
    %v315 = vld [vmem:[%s2 + $0x10] sm:$0xff]
    %v316 = vld [vmem:[%s2 + $0x18] sm:$0xff]
    %v317 = vld [vmem:[%s2 + $0x20] sm:$0xff]
    %v318 = vld [vmem:[%s2 + $0x28] sm:$0xff]
    %v319 = vld [vmem:[%s2 + $0x30] sm:$0xff]
    %v320 = vld [vmem:[%s2 + $0x38] sm:$0xff]
    %v321 = vld [vmem:[%s2 + $0x40] sm:$0xff]
    %v322 = vld [vmem:[%s2 + $0x48] sm:$0xff]
    %v323 = vld [vmem:[%s2 + $0x50] sm:$0xff]
    %v324 = vld [vmem:[%s2 + $0x58] sm:$0xff]
    %v325 = vld [vmem:[%s2 + $0x60] sm:$0xff]
    %v326 = vld [vmem:[%s2 + $0x68] sm:$0xff]
    %v327 = vld [vmem:[%s2 + $0x70] sm:$0xff]
    %v328 = vld [vmem:[%s2 + $0x78] sm:$0xff]
    %v329 = vld [vmem:[#allocation2] sm:$0xff]
    %v330 = vld [vmem:[#allocation3] sm:$0xff]
    %331 = vmatprep.subr.mxu0 0.0
    %332 = vmatpush1.msra.mxu0 %v313
    %333 = vmatprep.subr.mxu0 0.0
    %334 = vmatpush1.msra.mxu0 %v314
    %335 = vmatprep.subr.mxu0 0.0
    %336 = vmatpush1.msra.mxu0 %v315
    %337 = vmatprep.subr.mxu0 0.0
    %338 = vmatpush1.msra.mxu0 %v316
    %339 = vmatprep.subr.mxu0 0.0
    %340 = vmatpush1.msra.mxu0 %v317
    %341 = vmatprep.subr.mxu0 0.0
    %342 = vmatpush1.msra.mxu0 %v318
    %343 = vmatprep.subr.mxu0 0.0
    %344 = vmatpush1.msra.mxu0 %v319
    %345 = vmatprep.subr.mxu0 0.0
    %346 = vmatpush1.msra.mxu0 %v320
    %347 = vmatprep.subr.mxu0 0.0
    %348 = vmatpush1.msra.mxu0 %v321
    %349 = vmatprep.subr.mxu0 0.0
    %350 = vmatpush1.msra.mxu0 %v322
    %351 = vmatprep.subr.mxu0 0.0
    %352 = vmatpush1.msra.mxu0 %v323
    %353 = vmatprep.subr.mxu0 0.0
    %354 = vmatpush1.msra.mxu0 %v324
    %355 = vmatprep.subr.mxu0 0.0
    %356 = vmatpush1.msra.mxu0 %v325
    %357 = vmatprep.subr.mxu0 0.0
    %358 = vmatpush1.msra.mxu0 %v326
    %359 = vmatprep.subr.mxu0 0.0
    %360 = vmatpush1.msra.mxu0 %v327
    %361 = vmatprep.subr.mxu0 0.0
    %362 = vmatpush1.msra.mxu0 %v328
    %363 = vmatprep.subr.mxu0 0.0
    %364 = vmatpush1.msra.mxu0 0.0
    %365 = vmatprep.subr.mxu0 0.0
    %366 = vmatpush1.msra.mxu0 0.0
    %367 = vmatprep.subr.mxu0 0.0
    %368 = vmatpush1.msra.mxu0 0.0
    %369 = vmatprep.subr.mxu0 0.0
    %370 = vmatpush1.msra.mxu0 0.0
    %371 = vmatprep.subr.mxu0 0.0
    %372 = vmatpush1.msra.mxu0 0.0
    %373 = vmatprep.subr.mxu0 0.0
    %374 = vmatpush1.msra.mxu0 0.0
    %375 = vmatprep.subr.mxu0 0.0
    %376 = vmatpush1.msra.mxu0 0.0
    %377 = vmatprep.subr.mxu0 0.0
    %378 = vmatpush1.msra.mxu0 0.0
    %379 = vmatprep.subr.mxu0 0.0
    %380 = vmatpush1.msra.mxu0 0.0
    %381 = vmatprep.subr.mxu0 0.0
    %382 = vmatpush1.msra.mxu0 0.0
    %383 = vmatprep.subr.mxu0 0.0
    %384 = vmatpush1.msra.mxu0 0.0
    %385 = vmatprep.subr.mxu0 0.0
    %386 = vmatpush1.msra.mxu0 0.0
    %387 = vmatprep.subr.mxu0 0.0
    %388 = vmatpush1.msra.mxu0 0.0
    %389 = vmatprep.subr.mxu0 0.0
    %390 = vmatpush1.msra.mxu0 0.0
    %391 = vmatprep.subr.mxu0 0.0
    %392 = vmatpush1.msra.mxu0 0.0
    %393 = vmatprep.subr.mxu0 0.0
    %394 = vmatpush1.msra.mxu0 0.0
    %395 = vmatprep.mubr.f32.mxu0 0.0
    %396 = vmatmul.mubr.f32.gmra.mrb[0].mxu0 %v330
    %v397 = vpop.f32.mrb[0].mxu0
    %v398 = vadd.f32 0.0, %v397
    %v399 = vpop.f32.mrb[0].mxu0
    %400 = vdwg.mxu0
    %v401 = vmul.f32 %v329, 0.8
    %v402 = vld [vmem:[#allocation5] sm:$0xff]
    %v403 = vadd.f32 %v401, %v402
    %v404 = vadd.f32 %v403, %v398
    %v405 = vtanh.pop %v404
    %406 = vst [vmem:[#allocation4] sm:$0xff] %v405
    %407 = vmatprep.subr.mxu0 0.0
    %408 = vmatpush1.msra.mxu0 %v313
    %409 = vmatprep.subr.mxu0 0.0
    %410 = vmatpush1.msra.mxu0 %v314
    %411 = vmatprep.subr.mxu0 0.0
    %412 = vmatpush1.msra.mxu0 %v315
    %413 = vmatprep.subr.mxu0 0.0
    %414 = vmatpush1.msra.mxu0 %v316
    %415 = vmatprep.subr.mxu0 0.0
    %416 = vmatpush1.msra.mxu0 %v317
    %417 = vmatprep.subr.mxu0 0.0
    %418 = vmatpush1.msra.mxu0 %v318
    %419 = vmatprep.subr.mxu0 0.0
    %420 = vmatpush1.msra.mxu0 %v319
    %421 = vmatprep.subr.mxu0 0.0
    %422 = vmatpush1.msra.mxu0 %v320
    %423 = vmatprep.subr.mxu0 0.0
    %424 = vmatpush1.msra.mxu0 %v321
    %425 = vmatprep.subr.mxu0 0.0
    %426 = vmatpush1.msra.mxu0 %v322
    %427 = vmatprep.subr.mxu0 0.0
    %428 = vmatpush1.msra.mxu0 %v323
    %429 = vmatprep.subr.mxu0 0.0
    %430 = vmatpush1.msra.mxu0 %v324
    %431 = vmatprep.subr.mxu0 0.0
    %432 = vmatpush1.msra.mxu0 %v325
    %433 = vmatprep.subr.mxu0 0.0
    %434 = vmatpush1.msra.mxu0 %v326
    %435 = vmatprep.subr.mxu0 0.0
    %436 = vmatpush1.msra.mxu0 %v327
    %437 = vmatprep.subr.mxu0 0.0
    %438 = vmatpush1.msra.mxu0 %v328
    %439 = vmatprep.subr.mxu0 0.0
    %440 = vmatpush1.msra.mxu0 0.0
    %441 = vmatprep.subr.mxu0 0.0
    %442 = vmatpush1.msra.mxu0 0.0
    %443 = vmatprep.subr.mxu0 0.0
    %444 = vmatpush1.msra.mxu0 0.0
    %445 = vmatprep.subr.mxu0 0.0
    %446 = vmatpush1.msra.mxu0 0.0
    %447 = vmatprep.subr.mxu0 0.0
    %448 = vmatpush1.msra.mxu0 0.0
    %449 = vmatprep.subr.mxu0 0.0
    %450 = vmatpush1.msra.mxu0 0.0
    %451 = vmatprep.subr.mxu0 0.0
    %452 = vmatpush1.msra.mxu0 0.0
    %453 = vmatprep.subr.mxu0 0.0
    %454 = vmatpush1.msra.mxu0 0.0
    %455 = vmatprep.subr.mxu0 0.0
    %456 = vmatpush1.msra.mxu0 0.0
    %457 = vmatprep.subr.mxu0 0.0
    %458 = vmatpush1.msra.mxu0 0.0
    %459 = vmatprep.subr.mxu0 0.0
    %460 = vmatpush1.msra.mxu0 0.0
    %461 = vmatprep.subr.mxu0 0.0
    %462 = vmatpush1.msra.mxu0 0.0
    %463 = vmatprep.subr.mxu0 0.0
    %464 = vmatpush1.msra.mxu0 0.0
    %465 = vmatprep.subr.mxu0 0.0
    %466 = vmatpush1.msra.mxu0 0.0
    %467 = vmatprep.subr.mxu0 0.0
    %468 = vmatpush1.msra.mxu0 0.0
    %469 = vmatprep.subr.mxu0 0.0
    %470 = vmatpush1.msra.mxu0 0.0
    %471 = vmatprep.mubr.f32.mxu0 0.0
    %472 = vmatmul.mubr.f32.gmra.mrb[0].mxu0 %v405
    %v473 = vpop.f32.mrb[0].mxu0
    %v474 = vadd.f32 0.0, %v473
    %v475 = vpop.f32.mrb[0].mxu0
    %476 = vdwg.mxu0
    %v477 = vmul.f32 %v404, 0.8
    %v478 = vld [vmem:[%s244] sm:$0xff]
    %v479 = vadd.f32 %v477, %v478
    %v480 = vadd.f32 %v479, %v474
    %v481 = vtanh.pop %v480
    %s482 = scalar_lea.vmem [#allocation4], 8
    %483 = vst [vmem:[%s482] sm:$0xff] %v481
    %484 = vmatprep.subr.mxu0 0.0
    %485 = vmatpush1.msra.mxu0 %v313
    %486 = vmatprep.subr.mxu0 0.0
    %487 = vmatpush1.msra.mxu0 %v314
    %488 = vmatprep.subr.mxu0 0.0
    %489 = vmatpush1.msra.mxu0 %v315
    %490 = vmatprep.subr.mxu0 0.0
    %491 = vmatpush1.msra.mxu0 %v316
    %492 = vmatprep.subr.mxu0 0.0
    %493 = vmatpush1.msra.mxu0 %v317
    %494 = vmatprep.subr.mxu0 0.0
    %495 = vmatpush1.msra.mxu0 %v318
    %496 = vmatprep.subr.mxu0 0.0
    %497 = vmatpush1.msra.mxu0 %v319
    %498 = vmatprep.subr.mxu0 0.0
    %499 = vmatpush1.msra.mxu0 %v320
    %500 = vmatprep.subr.mxu0 0.0
    %501 = vmatpush1.msra.mxu0 %v321
    %502 = vmatprep.subr.mxu0 0.0
    %503 = vmatpush1.msra.mxu0 %v322
    %504 = vmatprep.subr.mxu0 0.0
    %505 = vmatpush1.msra.mxu0 %v323
    %506 = vmatprep.subr.mxu0 0.0
    %507 = vmatpush1.msra.mxu0 %v324
    %508 = vmatprep.subr.mxu0 0.0
    %509 = vmatpush1.msra.mxu0 %v325
    %510 = vmatprep.subr.mxu0 0.0
    %511 = vmatpush1.msra.mxu0 %v326
    %512 = vmatprep.subr.mxu0 0.0
    %513 = vmatpush1.msra.mxu0 %v327
    %514 = vmatprep.subr.mxu0 0.0
    %515 = vmatpush1.msra.mxu0 %v328
    %516 = vmatprep.subr.mxu0 0.0
    %517 = vmatpush1.msra.mxu0 0.0
    %518 = vmatprep.subr.mxu0 0.0
    %519 = vmatpush1.msra.mxu0 0.0
    %520 = vmatprep.subr.mxu0 0.0
    %521 = vmatpush1.msra.mxu0 0.0
    %522 = vmatprep.subr.mxu0 0.0
    %523 = vmatpush1.msra.mxu0 0.0
    %524 = vmatprep.subr.mxu0 0.0
    %525 = vmatpush1.msra.mxu0 0.0
    %526 = vmatprep.subr.mxu0 0.0
    %527 = vmatpush1.msra.mxu0 0.0
    %528 = vmatprep.subr.mxu0 0.0
    %529 = vmatpush1.msra.mxu0 0.0
    %530 = vmatprep.subr.mxu0 0.0
    %531 = vmatpush1.msra.mxu0 0.0
    %532 = vmatprep.subr.mxu0 0.0
    %533 = vmatpush1.msra.mxu0 0.0
    %534 = vmatprep.subr.mxu0 0.0
    %535 = vmatpush1.msra.mxu0 0.0
    %536 = vmatprep.subr.mxu0 0.0
    %537 = vmatpush1.msra.mxu0 0.0
    %538 = vmatprep.subr.mxu0 0.0
    %539 = vmatpush1.msra.mxu0 0.0
    %540 = vmatprep.subr.mxu0 0.0
    %541 = vmatpush1.msra.mxu0 0.0
    %542 = vmatprep.subr.mxu0 0.0
    %543 = vmatpush1.msra.mxu0 0.0
    %544 = vmatprep.subr.mxu0 0.0
    %545 = vmatpush1.msra.mxu0 0.0
    %546 = vmatprep.subr.mxu0 0.0
    %547 = vmatpush1.msra.mxu0 0.0
    %548 = vmatprep.mubr.f32.mxu0 0.0
    %549 = vmatmul.mubr.f32.gmra.mrb[0].mxu0 %v481
    %v550 = vpop.f32.mrb[0].mxu0
    %v551 = vadd.f32 0.0, %v550
    %v552 = vpop.f32.mrb[0].mxu0
    %553 = vdwg.mxu0
    %v554 = vmul.f32 %v480, 0.8
    %v555 = vld [vmem:[%s255] sm:$0xff]
    %v556 = vadd.f32 %v554, %v555
    %v557 = vadd.f32 %v556, %v551
    %v558 = vtanh.pop %v557
    %s559 = scalar_lea.vmem [#allocation4], 16
    %560 = vst [vmem:[%s559] sm:$0xff] %v558
    %561 = vmatprep.subr.mxu0 0.0
    %562 = vmatpush1.msra.mxu0 %v313
    %563 = vmatprep.subr.mxu0 0.0
    %564 = vmatpush1.msra.mxu0 %v314
    %565 = vmatprep.subr.mxu0 0.0
    %566 = vmatpush1.msra.mxu0 %v315
    %567 = vmatprep.subr.mxu0 0.0
    %568 = vmatpush1.msra.mxu0 %v316
    %569 = vmatprep.subr.mxu0 0.0
    %570 = vmatpush1.msra.mxu0 %v317
    %571 = vmatprep.subr.mxu0 0.0
    %572 = vmatpush1.msra.mxu0 %v318
    %573 = vmatprep.subr.mxu0 0.0
    %574 = vmatpush1.msra.mxu0 %v319
    %575 = vmatprep.subr.mxu0 0.0
    %576 = vmatpush1.msra.mxu0 %v320
    %577 = vmatprep.subr.mxu0 0.0
    %578 = vmatpush1.msra.mxu0 %v321
    %579 = vmatprep.subr.mxu0 0.0
    %580 = vmatpush1.msra.mxu0 %v322
    %581 = vmatprep.subr.mxu0 0.0
    %582 = vmatpush1.msra.mxu0 %v323
    %583 = vmatprep.subr.mxu0 0.0
    %584 = vmatpush1.msra.mxu0 %v324
    %585 = vmatprep.subr.mxu0 0.0
    %586 = vmatpush1.msra.mxu0 %v325
    %587 = vmatprep.subr.mxu0 0.0
    %588 = vmatpush1.msra.mxu0 %v326
    %589 = vmatprep.subr.mxu0 0.0
    %590 = vmatpush1.msra.mxu0 %v327
    %591 = vmatprep.subr.mxu0 0.0
    %592 = vmatpush1.msra.mxu0 %v328
    %593 = vmatprep.subr.mxu0 0.0
    %594 = vmatpush1.msra.mxu0 0.0
    %595 = vmatprep.subr.mxu0 0.0
    %596 = vmatpush1.msra.mxu0 0.0
    %597 = vmatprep.subr.mxu0 0.0
    %598 = vmatpush1.msra.mxu0 0.0
    %599 = vmatprep.subr.mxu0 0.0
    %600 = vmatpush1.msra.mxu0 0.0
    %601 = vmatprep.subr.mxu0 0.0
    %602 = vmatpush1.msra.mxu0 0.0
    %603 = vmatprep.subr.mxu0 0.0
    %604 = vmatpush1.msra.mxu0 0.0
    %605 = vmatprep.subr.mxu0 0.0
    %606 = vmatpush1.msra.mxu0 0.0
    %607 = vmatprep.subr.mxu0 0.0
    %608 = vmatpush1.msra.mxu0 0.0
    %609 = vmatprep.subr.mxu0 0.0
    %610 = vmatpush1.msra.mxu0 0.0
    %611 = vmatprep.subr.mxu0 0.0
    %612 = vmatpush1.msra.mxu0 0.0
    %613 = vmatprep.subr.mxu0 0.0
    %614 = vmatpush1.msra.mxu0 0.0
    %615 = vmatprep.subr.mxu0 0.0
    %616 = vmatpush1.msra.mxu0 0.0
    %617 = vmatprep.subr.mxu0 0.0
    %618 = vmatpush1.msra.mxu0 0.0
    %619 = vmatprep.subr.mxu0 0.0
    %620 = vmatpush1.msra.mxu0 0.0
    %621 = vmatprep.subr.mxu0 0.0
    %622 = vmatpush1.msra.mxu0 0.0
    %623 = vmatprep.subr.mxu0 0.0
    %624 = vmatpush1.msra.mxu0 0.0
    %625 = vmatprep.mubr.f32.mxu0 0.0
    %626 = vmatmul.mubr.f32.gmra.mrb[0].mxu0 %v558
    %v627 = vpop.f32.mrb[0].mxu0
    %v628 = vadd.f32 0.0, %v627
    %v629 = vpop.f32.mrb[0].mxu0
    %630 = vdwg.mxu0
    %v631 = vmul.f32 %v557, 0.8
    %v632 = vld [vmem:[%s266] sm:$0xff]
    %v633 = vadd.f32 %v631, %v632
    %v634 = vadd.f32 %v633, %v628
    %v635 = vtanh.pop %v634
    %s636 = scalar_lea.vmem [#allocation4], 24
    %637 = vst [vmem:[%s636] sm:$0xff] %v635
    %638 = vmatprep.subr.mxu0 0.0
    %639 = vmatpush1.msra.mxu0 %v313
    %640 = vmatprep.subr.mxu0 0.0
    %641 = vmatpush1.msra.mxu0 %v314
    %642 = vmatprep.subr.mxu0 0.0
    %643 = vmatpush1.msra.mxu0 %v315
    %644 = vmatprep.subr.mxu0 0.0
    %645 = vmatpush1.msra.mxu0 %v316
    %646 = vmatprep.subr.mxu0 0.0
    %647 = vmatpush1.msra.mxu0 %v317
    %648 = vmatprep.subr.mxu0 0.0
    %649 = vmatpush1.msra.mxu0 %v318
    %650 = vmatprep.subr.mxu0 0.0
    %651 = vmatpush1.msra.mxu0 %v319
    %652 = vmatprep.subr.mxu0 0.0
    %653 = vmatpush1.msra.mxu0 %v320
    %654 = vmatprep.subr.mxu0 0.0
    %655 = vmatpush1.msra.mxu0 %v321
    %656 = vmatprep.subr.mxu0 0.0
    %657 = vmatpush1.msra.mxu0 %v322
    %658 = vmatprep.subr.mxu0 0.0
    %659 = vmatpush1.msra.mxu0 %v323
    %660 = vmatprep.subr.mxu0 0.0
    %661 = vmatpush1.msra.mxu0 %v324
    %662 = vmatprep.subr.mxu0 0.0
    %663 = vmatpush1.msra.mxu0 %v325
    %664 = vmatprep.subr.mxu0 0.0
    %665 = vmatpush1.msra.mxu0 %v326
    %666 = vmatprep.subr.mxu0 0.0
    %667 = vmatpush1.msra.mxu0 %v327
    %668 = vmatprep.subr.mxu0 0.0
    %669 = vmatpush1.msra.mxu0 %v328
    %670 = vmatprep.subr.mxu0 0.0
    %671 = vmatpush1.msra.mxu0 0.0
    %672 = vmatprep.subr.mxu0 0.0
    %673 = vmatpush1.msra.mxu0 0.0
    %674 = vmatprep.subr.mxu0 0.0
    %675 = vmatpush1.msra.mxu0 0.0
    %676 = vmatprep.subr.mxu0 0.0
    %677 = vmatpush1.msra.mxu0 0.0
    %678 = vmatprep.subr.mxu0 0.0
    %679 = vmatpush1.msra.mxu0 0.0
    %680 = vmatprep.subr.mxu0 0.0
    %681 = vmatpush1.msra.mxu0 0.0
    %682 = vmatprep.subr.mxu0 0.0
    %683 = vmatpush1.msra.mxu0 0.0
    %684 = vmatprep.subr.mxu0 0.0
    %685 = vmatpush1.msra.mxu0 0.0
    %686 = vmatprep.subr.mxu0 0.0
    %687 = vmatpush1.msra.mxu0 0.0
    %688 = vmatprep.subr.mxu0 0.0
    %689 = vmatpush1.msra.mxu0 0.0
    %690 = vmatprep.subr.mxu0 0.0
    %691 = vmatpush1.msra.mxu0 0.0
    %692 = vmatprep.subr.mxu0 0.0
    %693 = vmatpush1.msra.mxu0 0.0
    %694 = vmatprep.subr.mxu0 0.0
    %695 = vmatpush1.msra.mxu0 0.0
    %696 = vmatprep.subr.mxu0 0.0
    %697 = vmatpush1.msra.mxu0 0.0
    %698 = vmatprep.subr.mxu0 0.0
    %699 = vmatpush1.msra.mxu0 0.0
    %700 = vmatprep.subr.mxu0 0.0
    %701 = vmatpush1.msra.mxu0 0.0
    %702 = vmatprep.mubr.f32.mxu0 0.0
    %703 = vmatmul.mubr.f32.gmra.mrb[0].mxu0 %v635
    %v704 = vpop.f32.mrb[0].mxu0
    %v705 = vadd.f32 0.0, %v704
    %v706 = vpop.f32.mrb[0].mxu0
    %707 = vdwg.mxu0
    %v708 = vmul.f32 %v634, 0.8
    %v709 = vld [vmem:[%s277] sm:$0xff]
    %v710 = vadd.f32 %v708, %v709
    %v711 = vadd.f32 %v710, %v705
    %v712 = vtanh.pop %v711
    %s713 = scalar_lea.vmem [#allocation4], 32
    %714 = vst [vmem:[%s713] sm:$0xff] %v712
    %715 = vmatprep.subr.mxu0 0.0
    %716 = vmatpush1.msra.mxu0 %v313
    %717 = vmatprep.subr.mxu0 0.0
    %718 = vmatpush1.msra.mxu0 %v314
    %719 = vmatprep.subr.mxu0 0.0
    %720 = vmatpush1.msra.mxu0 %v315
    %721 = vmatprep.subr.mxu0 0.0
    %722 = vmatpush1.msra.mxu0 %v316
    %723 = vmatprep.subr.mxu0 0.0
    %724 = vmatpush1.msra.mxu0 %v317
    %725 = vmatprep.subr.mxu0 0.0
    %726 = vmatpush1.msra.mxu0 %v318
    %727 = vmatprep.subr.mxu0 0.0
    %728 = vmatpush1.msra.mxu0 %v319
    %729 = vmatprep.subr.mxu0 0.0
    %730 = vmatpush1.msra.mxu0 %v320
    %731 = vmatprep.subr.mxu0 0.0
    %732 = vmatpush1.msra.mxu0 %v321
    %733 = vmatprep.subr.mxu0 0.0
    %734 = vmatpush1.msra.mxu0 %v322
    %735 = vmatprep.subr.mxu0 0.0
    %736 = vmatpush1.msra.mxu0 %v323
    %737 = vmatprep.subr.mxu0 0.0
    %738 = vmatpush1.msra.mxu0 %v324
    %739 = vmatprep.subr.mxu0 0.0
    %740 = vmatpush1.msra.mxu0 %v325
    %741 = vmatprep.subr.mxu0 0.0
    %742 = vmatpush1.msra.mxu0 %v326
    %743 = vmatprep.subr.mxu0 0.0
    %744 = vmatpush1.msra.mxu0 %v327
    %745 = vmatprep.subr.mxu0 0.0
    %746 = vmatpush1.msra.mxu0 %v328
    %747 = vmatprep.subr.mxu0 0.0
    %748 = vmatpush1.msra.mxu0 0.0
    %749 = vmatprep.subr.mxu0 0.0
    %750 = vmatpush1.msra.mxu0 0.0
    %751 = vmatprep.subr.mxu0 0.0
    %752 = vmatpush1.msra.mxu0 0.0
    %753 = vmatprep.subr.mxu0 0.0
    %754 = vmatpush1.msra.mxu0 0.0
    %755 = vmatprep.subr.mxu0 0.0
    %756 = vmatpush1.msra.mxu0 0.0
    %757 = vmatprep.subr.mxu0 0.0
    %758 = vmatpush1.msra.mxu0 0.0
    %759 = vmatprep.subr.mxu0 0.0
    %760 = vmatpush1.msra.mxu0 0.0
    %761 = vmatprep.subr.mxu0 0.0
    %762 = vmatpush1.msra.mxu0 0.0
    %763 = vmatprep.subr.mxu0 0.0
    %764 = vmatpush1.msra.mxu0 0.0
    %765 = vmatprep.subr.mxu0 0.0
    %766 = vmatpush1.msra.mxu0 0.0
    %767 = vmatprep.subr.mxu0 0.0
    %768 = vmatpush1.msra.mxu0 0.0
    %769 = vmatprep.subr.mxu0 0.0
    %770 = vmatpush1.msra.mxu0 0.0
    %771 = vmatprep.subr.mxu0 0.0
    %772 = vmatpush1.msra.mxu0 0.0
    %773 = vmatprep.subr.mxu0 0.0
    %774 = vmatpush1.msra.mxu0 0.0
    %775 = vmatprep.subr.mxu0 0.0
    %776 = vmatpush1.msra.mxu0 0.0
    %777 = vmatprep.subr.mxu0 0.0
    %778 = vmatpush1.msra.mxu0 0.0
    %779 = vmatprep.mubr.f32.mxu0 0.0
    %780 = vmatmul.mubr.f32.gmra.mrb[0].mxu0 %v712
    %v781 = vpop.f32.mrb[0].mxu0
    %v782 = vadd.f32 0.0, %v781
    %v783 = vpop.f32.mrb[0].mxu0
    %784 = vdwg.mxu0
    %v785 = vmul.f32 %v711, 0.8
    %v786 = vld [vmem:[%s288] sm:$0xff]
    %v787 = vadd.f32 %v785, %v786
    %v788 = vadd.f32 %v787, %v782
    %v789 = vtanh.pop %v788
    %s790 = scalar_lea.vmem [#allocation4], 40
    %791 = vst [vmem:[%s790] sm:$0xff] %v789
    %792 = vmatprep.subr.mxu0 0.0
    %793 = vmatpush1.msra.mxu0 %v313
    %794 = vmatprep.subr.mxu0 0.0
    %795 = vmatpush1.msra.mxu0 %v314
    %796 = vmatprep.subr.mxu0 0.0
    %797 = vmatpush1.msra.mxu0 %v315
    %798 = vmatprep.subr.mxu0 0.0
    %799 = vmatpush1.msra.mxu0 %v316
    %800 = vmatprep.subr.mxu0 0.0
    %801 = vmatpush1.msra.mxu0 %v317
    %802 = vmatprep.subr.mxu0 0.0
    %803 = vmatpush1.msra.mxu0 %v318
    %804 = vmatprep.subr.mxu0 0.0
    %805 = vmatpush1.msra.mxu0 %v319
    %806 = vmatprep.subr.mxu0 0.0
    %807 = vmatpush1.msra.mxu0 %v320
    %808 = vmatprep.subr.mxu0 0.0
    %809 = vmatpush1.msra.mxu0 %v321
    %810 = vmatprep.subr.mxu0 0.0
    %811 = vmatpush1.msra.mxu0 %v322
    %812 = vmatprep.subr.mxu0 0.0
    %813 = vmatpush1.msra.mxu0 %v323
    %814 = vmatprep.subr.mxu0 0.0
    %815 = vmatpush1.msra.mxu0 %v324
    %816 = vmatprep.subr.mxu0 0.0
    %817 = vmatpush1.msra.mxu0 %v325
    %818 = vmatprep.subr.mxu0 0.0
    %819 = vmatpush1.msra.mxu0 %v326
    %820 = vmatprep.subr.mxu0 0.0
    %821 = vmatpush1.msra.mxu0 %v327
    %822 = vmatprep.subr.mxu0 0.0
    %823 = vmatpush1.msra.mxu0 %v328
    %824 = vmatprep.subr.mxu0 0.0
    %825 = vmatpush1.msra.mxu0 0.0
    %826 = vmatprep.subr.mxu0 0.0
    %827 = vmatpush1.msra.mxu0 0.0
    %828 = vmatprep.subr.mxu0 0.0
    %829 = vmatpush1.msra.mxu0 0.0
    %830 = vmatprep.subr.mxu0 0.0
    %831 = vmatpush1.msra.mxu0 0.0
    %832 = vmatprep.subr.mxu0 0.0
    %833 = vmatpush1.msra.mxu0 0.0
    %834 = vmatprep.subr.mxu0 0.0
    %835 = vmatpush1.msra.mxu0 0.0
    %836 = vmatprep.subr.mxu0 0.0
    %837 = vmatpush1.msra.mxu0 0.0
    %838 = vmatprep.subr.mxu0 0.0
    %839 = vmatpush1.msra.mxu0 0.0
    %840 = vmatprep.subr.mxu0 0.0
    %841 = vmatpush1.msra.mxu0 0.0
    %842 = vmatprep.subr.mxu0 0.0
    %843 = vmatpush1.msra.mxu0 0.0
    %844 = vmatprep.subr.mxu0 0.0
    %845 = vmatpush1.msra.mxu0 0.0
    %846 = vmatprep.subr.mxu0 0.0
    %847 = vmatpush1.msra.mxu0 0.0
    %848 = vmatprep.subr.mxu0 0.0
    %849 = vmatpush1.msra.mxu0 0.0
    %850 = vmatprep.subr.mxu0 0.0
    %851 = vmatpush1.msra.mxu0 0.0
    %852 = vmatprep.subr.mxu0 0.0
    %853 = vmatpush1.msra.mxu0 0.0
    %854 = vmatprep.subr.mxu0 0.0
    %855 = vmatpush1.msra.mxu0 0.0
    %856 = vmatprep.mubr.f32.mxu0 0.0
    %857 = vmatmul.mubr.f32.gmra.mrb[0].mxu0 %v789
    %v858 = vpop.f32.mrb[0].mxu0
    %v859 = vadd.f32 0.0, %v858
    %v860 = vpop.f32.mrb[0].mxu0
    %861 = vdwg.mxu0
    %v862 = vmul.f32 %v788, 0.8
    %v863 = vld [vmem:[%s299] sm:$0xff]
    %v864 = vadd.f32 %v862, %v863
    %v865 = vadd.f32 %v864, %v859
    %v866 = vtanh.pop %v865
    %s867 = scalar_lea.vmem [#allocation4], 48
    %868 = vst [vmem:[%s867] sm:$0xff] %v866
    %869 = vmatprep.subr.mxu0 0.0
    %870 = vmatpush1.msra.mxu0 %v313
    %871 = vmatprep.subr.mxu0 0.0
    %872 = vmatpush1.msra.mxu0 %v314
    %873 = vmatprep.subr.mxu0 0.0
    %874 = vmatpush1.msra.mxu0 %v315
    %875 = vmatprep.subr.mxu0 0.0
    %876 = vmatpush1.msra.mxu0 %v316
    %877 = vmatprep.subr.mxu0 0.0
    %878 = vmatpush1.msra.mxu0 %v317
    %879 = vmatprep.subr.mxu0 0.0
    %880 = vmatpush1.msra.mxu0 %v318
    %881 = vmatprep.subr.mxu0 0.0
    %882 = vmatpush1.msra.mxu0 %v319
    %883 = vmatprep.subr.mxu0 0.0
    %884 = vmatpush1.msra.mxu0 %v320
    %885 = vmatprep.subr.mxu0 0.0
    %886 = vmatpush1.msra.mxu0 %v321
    %887 = vmatprep.subr.mxu0 0.0
    %888 = vmatpush1.msra.mxu0 %v322
    %889 = vmatprep.subr.mxu0 0.0
    %890 = vmatpush1.msra.mxu0 %v323
    %891 = vmatprep.subr.mxu0 0.0
    %892 = vmatpush1.msra.mxu0 %v324
    %893 = vmatprep.subr.mxu0 0.0
    %894 = vmatpush1.msra.mxu0 %v325
    %895 = vmatprep.subr.mxu0 0.0
    %896 = vmatpush1.msra.mxu0 %v326
    %897 = vmatprep.subr.mxu0 0.0
    %898 = vmatpush1.msra.mxu0 %v327
    %899 = vmatprep.subr.mxu0 0.0
    %900 = vmatpush1.msra.mxu0 %v328
    %901 = vmatprep.subr.mxu0 0.0
    %902 = vmatpush1.msra.mxu0 0.0
    %903 = vmatprep.subr.mxu0 0.0
    %904 = vmatpush1.msra.mxu0 0.0
    %905 = vmatprep.subr.mxu0 0.0
    %906 = vmatpush1.msra.mxu0 0.0
    %907 = vmatprep.subr.mxu0 0.0
    %908 = vmatpush1.msra.mxu0 0.0
    %909 = vmatprep.subr.mxu0 0.0
    %910 = vmatpush1.msra.mxu0 0.0
    %911 = vmatprep.subr.mxu0 0.0
    %912 = vmatpush1.msra.mxu0 0.0
    %913 = vmatprep.subr.mxu0 0.0
    %914 = vmatpush1.msra.mxu0 0.0
    %915 = vmatprep.subr.mxu0 0.0
    %916 = vmatpush1.msra.mxu0 0.0
    %917 = vmatprep.subr.mxu0 0.0
    %918 = vmatpush1.msra.mxu0 0.0
    %919 = vmatprep.subr.mxu0 0.0
    %920 = vmatpush1.msra.mxu0 0.0
    %921 = vmatprep.subr.mxu0 0.0
    %922 = vmatpush1.msra.mxu0 0.0
    %923 = vmatprep.subr.mxu0 0.0
    %924 = vmatpush1.msra.mxu0 0.0
    %925 = vmatprep.subr.mxu0 0.0
    %926 = vmatpush1.msra.mxu0 0.0
    %927 = vmatprep.subr.mxu0 0.0
    %928 = vmatpush1.msra.mxu0 0.0
    %929 = vmatprep.subr.mxu0 0.0
    %930 = vmatpush1.msra.mxu0 0.0
    %931 = vmatprep.subr.mxu0 0.0
    %932 = vmatpush1.msra.mxu0 0.0
    %933 = vmatprep.mubr.f32.mxu0 0.0
    %934 = vmatmul.mubr.f32.gmra.mrb[0].mxu0 %v866
    %v935 = vpop.f32.mrb[0].mxu0
    %v936 = vadd.f32 0.0, %v935
    %v937 = vpop.f32.mrb[0].mxu0
    %938 = vdwg.mxu0
    %v939 = vmul.f32 %v865, 0.8
    %v940 = vld [vmem:[%s310] sm:$0xff]
    %v941 = vadd.f32 %v939, %v940
    %v942 = vadd.f32 %v941, %v936
    %v943 = vtanh.pop %v942
    %s944 = scalar_lea.vmem [#allocation4], 56
    %945 = vst [vmem:[%s944] sm:$0xff] %v943
    %946 = vst [vmem:[#allocation2] sm:$0xff] %v942
    %947 = vst [vmem:[#allocation3] sm:$0xff] %v943
    %v948 = vld [vmem:[#allocation4] sm:$0xff]
    %v949 = vld [vmem:[#allocation4 + $0x8] sm:$0xff]
    %v950 = vld [vmem:[#allocation4 + $0x10] sm:$0xff]
    %v951 = vld [vmem:[#allocation4 + $0x18] sm:$0xff]
    %v952 = vld [vmem:[#allocation4 + $0x20] sm:$0xff]
    %v953 = vld [vmem:[#allocation4 + $0x28] sm:$0xff]
    %v954 = vld [vmem:[#allocation4 + $0x30] sm:$0xff]
    %v955 = vld [vmem:[#allocation4 + $0x38] sm:$0xff]
    %v956 = vld [vmem:[%s4] sm:$0xff]
    %v957 = vld [vmem:[%s4 + $0x8] sm:$0xff]
    %v958 = vld [vmem:[%s4 + $0x10] sm:$0xff]
    %v959 = vld [vmem:[%s4 + $0x18] sm:$0xff]
    %v960 = vld [vmem:[%s4 + $0x20] sm:$0xff]
    %v961 = vld [vmem:[%s4 + $0x28] sm:$0xff]
    %v962 = vld [vmem:[%s4 + $0x30] sm:$0xff]
    %v963 = vld [vmem:[%s4 + $0x38] sm:$0xff]
    %v964 = vld [vmem:[%s4 + $0x40] sm:$0xff]
    %v965 = vld [vmem:[%s4 + $0x48] sm:$0xff]
    %v966 = vld [vmem:[%s4 + $0x50] sm:$0xff]
    %v967 = vld [vmem:[%s4 + $0x58] sm:$0xff]
    %v968 = vld [vmem:[%s4 + $0x60] sm:$0xff]
    %v969 = vld [vmem:[%s4 + $0x68] sm:$0xff]
    %v970 = vld [vmem:[%s4 + $0x70] sm:$0xff]
    %v971 = vld [vmem:[%s4 + $0x78] sm:$0xff]
    %972 = vmatprep.subr.mxu0 0.0
    %973 = vmatpush1.msra.mxu0 %v956
    %974 = vmatprep.subr.mxu0 0.0
    %975 = vmatpush1.msra.mxu0 %v957
    %976 = vmatprep.subr.mxu0 0.0
    %977 = vmatpush1.msra.mxu0 %v958
    %978 = vmatprep.subr.mxu0 0.0
    %979 = vmatpush1.msra.mxu0 %v959
    %980 = vmatprep.subr.mxu0 0.0
    %981 = vmatpush1.msra.mxu0 %v960
    %982 = vmatprep.subr.mxu0 0.0
    %983 = vmatpush1.msra.mxu0 %v961
    %984 = vmatprep.subr.mxu0 0.0
    %985 = vmatpush1.msra.mxu0 %v962
    %986 = vmatprep.subr.mxu0 0.0
    %987 = vmatpush1.msra.mxu0 %v963
    %988 = vmatprep.subr.mxu0 0.0
    %989 = vmatpush1.msra.mxu0 %v964
    %990 = vmatprep.subr.mxu0 0.0
    %991 = vmatpush1.msra.mxu0 %v965
    %992 = vmatprep.subr.mxu0 0.0
    %993 = vmatpush1.msra.mxu0 %v966
    %994 = vmatprep.subr.mxu0 0.0
    %995 = vmatpush1.msra.mxu0 %v967
    %996 = vmatprep.subr.mxu0 0.0
    %997 = vmatpush1.msra.mxu0 %v968
    %998 = vmatprep.subr.mxu0 0.0
    %999 = vmatpush1.msra.mxu0 %v969
    %1000 = vmatprep.subr.mxu0 0.0
    %1001 = vmatpush1.msra.mxu0 %v970
    %1002 = vmatprep.subr.mxu0 0.0
    %1003 = vmatpush1.msra.mxu0 %v971
    %1004 = vmatprep.subr.mxu0 0.0
    %1005 = vmatpush1.msra.mxu0 0.0
    %1006 = vmatprep.subr.mxu0 0.0
    %1007 = vmatpush1.msra.mxu0 0.0
    %1008 = vmatprep.subr.mxu0 0.0
    %1009 = vmatpush1.msra.mxu0 0.0
    %1010 = vmatprep.subr.mxu0 0.0
    %1011 = vmatpush1.msra.mxu0 0.0
    %1012 = vmatprep.subr.mxu0 0.0
    %1013 = vmatpush1.msra.mxu0 0.0
    %1014 = vmatprep.subr.mxu0 0.0
    %1015 = vmatpush1.msra.mxu0 0.0
    %1016 = vmatprep.subr.mxu0 0.0
    %1017 = vmatpush1.msra.mxu0 0.0
    %1018 = vmatprep.subr.mxu0 0.0
    %1019 = vmatpush1.msra.mxu0 0.0
    %1020 = vmatprep.subr.mxu0 0.0
    %1021 = vmatpush1.msra.mxu0 0.0
    %1022 = vmatprep.subr.mxu0 0.0
    %1023 = vmatpush1.msra.mxu0 0.0
    %1024 = vmatprep.subr.mxu0 0.0
    %1025 = vmatpush1.msra.mxu0 0.0
    %1026 = vmatprep.subr.mxu0 0.0
    %1027 = vmatpush1.msra.mxu0 0.0
    %1028 = vmatprep.subr.mxu0 0.0
    %1029 = vmatpush1.msra.mxu0 0.0
    %1030 = vmatprep.subr.mxu0 0.0
    %1031 = vmatpush1.msra.mxu0 0.0
    %1032 = vmatprep.subr.mxu0 0.0
    %1033 = vmatpush1.msra.mxu0 0.0
    %1034 = vmatprep.subr.mxu0 0.0
    %1035 = vmatpush1.msra.mxu0 0.0
    %1036 = vmatprep.mubr.f32.mxu0 0.0
    %1037 = vmatmul.mubr.f32.gmra.mrb[0].mxu0 %v948
    %v1038 = vpop.f32.mrb[0].mxu0
    %v1039 = vadd.f32 0.0, %v1038
    %v1040 = vpop.f32.mrb[0].mxu0
    %1041 = vmatprep.mubr.f32.mxu0 0.0
    %1042 = vmatmul.mubr.f32.gmra.mrb[0].mxu0 %v949
    %v1043 = vpop.f32.mrb[0].mxu0
    %v1044 = vadd.f32 0.0, %v1043
    %v1045 = vpop.f32.mrb[0].mxu0
    %1046 = vmatprep.mubr.f32.mxu0 0.0
    %1047 = vmatmul.mubr.f32.gmra.mrb[0].mxu0 %v950
    %v1048 = vpop.f32.mrb[0].mxu0
    %v1049 = vadd.f32 0.0, %v1048
    %v1050 = vpop.f32.mrb[0].mxu0
    %1051 = vmatprep.mubr.f32.mxu0 0.0
    %1052 = vmatmul.mubr.f32.gmra.mrb[0].mxu0 %v951
    %v1053 = vpop.f32.mrb[0].mxu0
    %v1054 = vadd.f32 0.0, %v1053
    %v1055 = vpop.f32.mrb[0].mxu0
    %1056 = vmatprep.mubr.f32.mxu0 0.0
    %1057 = vmatmul.mubr.f32.gmra.mrb[0].mxu0 %v952
    %v1058 = vpop.f32.mrb[0].mxu0
    %v1059 = vadd.f32 0.0, %v1058
    %v1060 = vpop.f32.mrb[0].mxu0
    %1061 = vmatprep.mubr.f32.mxu0 0.0
    %1062 = vmatmul.mubr.f32.gmra.mrb[0].mxu0 %v953
    %v1063 = vpop.f32.mrb[0].mxu0
    %v1064 = vadd.f32 0.0, %v1063
    %v1065 = vpop.f32.mrb[0].mxu0
    %1066 = vmatprep.mubr.f32.mxu0 0.0
    %1067 = vmatmul.mubr.f32.gmra.mrb[0].mxu0 %v954
    %v1068 = vpop.f32.mrb[0].mxu0
    %v1069 = vadd.f32 0.0, %v1068
    %v1070 = vpop.f32.mrb[0].mxu0
    %1071 = vmatprep.mubr.f32.mxu0 0.0
    %1072 = vmatmul.mubr.f32.gmra.mrb[0].mxu0 %v955
    %v1073 = vpop.f32.mrb[0].mxu0
    %v1074 = vadd.f32 0.0, %v1073
    %v1075 = vpop.f32.mrb[0].mxu0
    %1076 = vdwg.mxu0
    %vm1077 = vcmask 64512
    %1078 = vst.msk [vmem:[#allocation6] sm:$0xff] %vm1077, %v1039
    %1079 = vst.msk [vmem:[#allocation6 + $0x8] sm:$0xff] %vm1077, %v1044
    %1080 = vst.msk [vmem:[#allocation6 + $0x10] sm:$0xff] %vm1077, %v1049
    %1081 = vst.msk [vmem:[#allocation6 + $0x18] sm:$0xff] %vm1077, %v1054
    %1082 = vst.msk [vmem:[#allocation6 + $0x20] sm:$0xff] %vm1077, %v1059
    %1083 = vst.msk [vmem:[#allocation6 + $0x28] sm:$0xff] %vm1077, %v1064
    %1084 = vst.msk [vmem:[#allocation6 + $0x30] sm:$0xff] %vm1077, %v1069
    %1085 = vst.msk [vmem:[#allocation6 + $0x38] sm:$0xff] %vm1077, %v1074
    // Predicated region
    $region30: #{tpu_custom_call.1} parent=1 // pred_check
      _
    $region31: #{tpu_custom_call.1} parent=1 // pred_check_branch
      %1087 = sbr.rel (0) target = $region33
    $region32: #{tpu_custom_call.1} parent=1 // pred_region
      %s1089 = ssub.s32 1024, 1024
      %1090 = vsyncadd [#allocation7], %s1089
      %s1091 = sshll.u32 [#allocation6], 4
      %s1092 = int_to_ptr.vmem [resolvable:$true] %s1091
      %1097 = dma.vmem_to_hbm [thread:$0]  %s1092, 1024, %s6, [#allocation7], 128, 128, 8
    $region33: #{tpu_custom_call.1} parent=1 // pred_fallthru
      _
    // Predicated region
    $region34: #{tpu_custom_call.1} parent=1 // pred_check
      _
    $region35: #{tpu_custom_call.1} parent=1 // pred_check_branch
      %1099 = sbr.rel (0) target = $region37
    $region36: #{tpu_custom_call.1} parent=1 // pred_region
      %1100 = dma.done [#allocation7], 1024
    $region37: #{tpu_custom_call.1} parent=1 // pred_fallthru
      _
    %1101 = vsyncpa [#allocation7], 1

</llo_original>
